<compile_context>
chip_gen: v7x
topology: tpu7x:2x2x1
jax: 0.10.0
libtpu: 0.0.40
codegen_flags: <defaults>
</compile_context>

<pallas_src>
import jax
import jax.numpy as jnp
from jax.experimental import pallas as pl
from jax.experimental.pallas import tpu as pltpu


# ----------------------------------------------------------------------------
# Fused conv stack kernel: 4x (conv3x3 + folded-BN + ReLU), 2x fused 2x2 pool
# ----------------------------------------------------------------------------
def _conv_stack_kernel(x_ref, w1_ref, s1_ref, b1_ref, w2_ref, s2_ref, b2_ref,
                       w3_ref, s3_ref, b3_ref, w4_ref, s4_ref, b4_ref,
                       o_ref, a1_ref, a2_ref, a3_ref):
    """One batch element, everything VMEM-resident.

    x_ref : (H+2, W+2, 8)        zero-halo padded input (channels padded 3->8)
    w*    : (9*Cin, Cout) bf16   tap-major packed conv weights
    s*/b* : (1, Cout) f32        folded BatchNorm scale / bias
    a1    : (H+2, W+2, 32)       scratch: padded activation after conv1
    a2    : (H/2+2, W/2+2, 32)   scratch: after conv2 + pool1
    a3    : (H/2+2, W/2+2, 64)   scratch: after conv3
    o_ref : (H/4, W/4, 64) bf16  final NHWC activation (flattened by wrapper)
    """

    def conv_bn_relu(src_ref, h, w, w_ref, s_ref, b_ref, pool):
        c_in = src_ref.shape[-1]
        c_out = w_ref.shape[-1]
        # In-register im2col: 9 statically shifted slices of the zero-padded
        # activation, concatenated along lanes -> ONE MXU dot with K = 9*Cin.
        taps = [src_ref[kh:kh + h, kw:kw + w, :]
                for kh in range(3) for kw in range(3)]
        patches = jnp.concatenate(taps, axis=-1).reshape(h * w, 9 * c_in)
        y = jnp.dot(patches, w_ref[...], preferred_element_type=jnp.float32)
        y = jnp.maximum(y * s_ref[...] + b_ref[...], 0.0)      # folded BN + ReLU
        if pool:                                               # fused 2x2 maxpool
            y = y.reshape(h, w // 2, 2, c_out)
            y = jnp.maximum(y[:, :, 0, :], y[:, :, 1, :])      # horizontal pairs
            y = y.reshape(h // 2, 2, w // 2, c_out)
            y = jnp.maximum(y[:, 0], y[:, 1])                  # vertical pairs
            return y                                           # (h/2, w/2, c_out)
        return y.reshape(h, w, c_out)

    def store_padded(dst_ref, val):
        # Zero the halo and write the interior: the next layer's padding never
        # leaves VMEM (no jnp.pad / HBM round trip between layers).
        dst_ref[...] = jnp.zeros_like(dst_ref)
        dst_ref[1:1 + val.shape[0], 1:1 + val.shape[1], :] = val.astype(dst_ref.dtype)

    h = x_ref.shape[0] - 2
    w = x_ref.shape[1] - 2

    y = conv_bn_relu(x_ref, h, w, w1_ref, s1_ref, b1_ref, pool=False)
    store_padded(a1_ref, y)
    y = conv_bn_relu(a1_ref, h, w, w2_ref, s2_ref, b2_ref, pool=True)
    store_padded(a2_ref, y)
    # dropout1: identity (eval mode)
    y = conv_bn_relu(a2_ref, h // 2, w // 2, w3_ref, s3_ref, b3_ref, pool=False)
    store_padded(a3_ref, y)
    y = conv_bn_relu(a3_ref, h // 2, w // 2, w4_ref, s4_ref, b4_ref, pool=True)
    # dropout2: identity (eval mode)
    o_ref[...] = y.astype(o_ref.dtype)


def conv_stack(xp, prep):
    """xp: (N, H+2, W+2, 8) bf16 zero-padded NHWC input -> (N, H/4, W/4, 64) bf16."""
    n, hp, wp, ci = xp.shape
    h, w = hp - 2, wp - 2
    h2, w2 = h // 2, w // 2
    h4, w4 = h // 4, w // 4

    args = (xp,
            prep["c1_w"], prep["c1_s"], prep["c1_b"],
            prep["c2_w"], prep["c2_s"], prep["c2_b"],
            prep["c3_w"], prep["c3_s"], prep["c3_b"],
            prep["c4_w"], prep["c4_s"], prep["c4_b"])

    flops = 2 * n * 9 * (h * w * ci * 32 + h * w * 32 * 32
                         + h2 * w2 * 32 * 64 + h2 * w2 * 64 * 64)
    bytes_accessed = (sum(a.size * a.dtype.itemsize for a in args)
                      + n * h4 * w4 * 64 * 2)

    def full_spec(a):
        return pl.BlockSpec(a.shape, lambda b: (0,) * a.ndim)

    in_specs = [pl.BlockSpec((None, hp, wp, ci), lambda b: (b, 0, 0, 0))]
    in_specs += [full_spec(a) for a in args[1:]]

    return pl.pallas_call(
        _conv_stack_kernel,
        out_shape=jax.ShapeDtypeStruct((n, h4, w4, 64), jnp.bfloat16),
        grid_spec=pltpu.PrefetchScalarGridSpec(
            num_scalar_prefetch=0,
            grid=(n,),
            in_specs=in_specs,
            out_specs=pl.BlockSpec((None, h4, w4, 64), lambda b: (b, 0, 0, 0)),
            scratch_shapes=[
                pltpu.VMEM((hp, wp, 32), jnp.bfloat16),          # after conv1
                pltpu.VMEM((h2 + 2, w2 + 2, 32), jnp.bfloat16),  # after pool1
                pltpu.VMEM((h2 + 2, w2 + 2, 64), jnp.bfloat16),  # after conv3
            ]),
        compiler_params=pltpu.CompilerParams(
            dimension_semantics=("parallel",)),   # v7x: one image per TensorCore
        cost_estimate=pl.CostEstimate(flops=flops, transcendentals=0,
                                      bytes_accessed=bytes_accessed),
    )(*args)


# ----------------------------------------------------------------------------
# Fused fc1 + folded-BN + ReLU + fc2 kernel (weights fully VMEM resident)
# ----------------------------------------------------------------------------
def _fc_stack_kernel(x_ref, w1_ref, s1_ref, b1_ref, w2_ref, b2_ref, o_ref):
    hid = jnp.dot(x_ref[...], w1_ref[...], preferred_element_type=jnp.float32)
    hid = jnp.maximum(hid * s1_ref[...] + b1_ref[...], 0.0)     # folded bn5 + ReLU
    # dropout3: identity (eval mode)
    y = jnp.dot(hid.astype(jnp.bfloat16), w2_ref[...],
                preferred_element_type=jnp.float32)
    o_ref[...] = y + b2_ref[...]


def fc_stack(x, prep):
    """x: (M, K) bf16, M multiple of 8.  Returns (M, N_pad) f32 logits."""
    m, k = x.shape
    w1, w2 = prep["fc1_w"], prep["fc2_w"]
    n1, n2 = w1.shape[1], w2.shape[1]
    # TODO(synk): K-tile fc1 (grid over K + f32 accumulator) if img_size grows
    # enough that the (feat, 512) bf16 weight no longer fits comfortably in VMEM.

    def full_spec(a):
        return pl.BlockSpec(a.shape, lambda i: (0,) * a.ndim)

    args = (x, w1, prep["fc1_s"], prep["fc1_b"], w2, prep["fc2_b"])
    bytes_accessed = (sum(a.size * a.dtype.itemsize for a in args) + m * n2 * 4)

    return pl.pallas_call(
        _fc_stack_kernel,
        out_shape=jax.ShapeDtypeStruct((m, n2), jnp.float32),
        grid_spec=pltpu.PrefetchScalarGridSpec(
            num_scalar_prefetch=0,
            grid=(1,),
            in_specs=[full_spec(a) for a in args],
            out_specs=pl.BlockSpec((m, n2), lambda i: (0, 0)),
        ),
        compiler_params=pltpu.CompilerParams(
            dimension_semantics=("arbitrary",)),
        cost_estimate=pl.CostEstimate(flops=2 * m * (k * n1 + n1 * n2),
                                      transcendentals=0,
                                      bytes_accessed=bytes_accessed),
    )(*args)


# ----------------------------------------------------------------------------
# Parameter init (PyTorch layout) and one-time pre-packing
# ----------------------------------------------------------------------------
def init_params(key, num_classes, img_size):
    ks = iter(jax.random.split(key, 32))

    def conv_w(co, ci):
        return 0.05 * jax.random.normal(next(ks), (co, ci, 3, 3), jnp.float32)

    def bn(c):
        gamma = 1.0 + 0.1 * jax.random.normal(next(ks), (c,), jnp.float32)
        beta = 0.1 * jax.random.normal(next(ks), (c,), jnp.float32)
        mean = 0.1 * jax.random.normal(next(ks), (c,), jnp.float32)
        var = jnp.abs(jax.random.normal(next(ks), (c,), jnp.float32)) + 0.5
        return (gamma, beta, mean, var)

    feat = 64 * (img_size // 4) * (img_size // 4)
    return {
        "w1": conv_w(32, 3),  "b1": 0.01 * jax.random.normal(next(ks), (32,)),
        "bn1": bn(32),
        "w2": conv_w(32, 32), "b2": 0.01 * jax.random.normal(next(ks), (32,)),
        "bn2": bn(32),
        "w3": conv_w(64, 32), "b3": 0.01 * jax.random.normal(next(ks), (64,)),
        "bn3": bn(64),
        "w4": conv_w(64, 64), "b4": 0.01 * jax.random.normal(next(ks), (64,)),
        "bn4": bn(64),
        "fc1_w": 0.02 * jax.random.normal(next(ks), (512, feat), jnp.float32),
        "fc1_b": 0.01 * jax.random.normal(next(ks), (512,), jnp.float32),
        "bn5": bn(512),
        "fc2_w": 0.02 * jax.random.normal(next(ks), (num_classes, 512), jnp.float32),
        "fc2_b": 0.01 * jax.random.normal(next(ks), (num_classes,), jnp.float32),
    }


def _fold_bn(bn, prev_bias, eps=1e-5):
    gamma, beta, mean, var = bn
    scale = gamma / jnp.sqrt(var + eps)
    bias = beta + (prev_bias - mean) * scale
    return (scale.reshape(1, -1).astype(jnp.float32),
            bias.reshape(1, -1).astype(jnp.float32))


def _pack_conv(w_pt, ci_pad=None):
    """PyTorch (Cout,Cin,3,3) -> (9*Cin[_pad], Cout) bf16, tap-major then cin."""
    co, ci, _, _ = w_pt.shape
    wm = jnp.transpose(w_pt, (2, 3, 1, 0)).reshape(9, ci, co)
    if ci_pad is not None and ci_pad > ci:
        wm = jnp.pad(wm, ((0, 0), (0, ci_pad - ci), (0, 0)))
        ci = ci_pad
    return wm.reshape(9 * ci, co).astype(jnp.bfloat16)


def prepare_params(p, num_classes, img_size):
    """One-time offline packing: bf16, (9*Cin,Cout) conv weights, NHWC fc1 rows."""
    h4 = w4 = img_size // 4
    # fc1 expects an NCHW flatten; permute its rows to the NHWC flatten order the
    # conv-stack kernel emits, so no runtime transpose is needed.
    fc1 = p["fc1_w"].reshape(512, 64, h4, w4)
    fc1 = jnp.transpose(fc1, (2, 3, 1, 0)).reshape(h4 * w4 * 64, 512)

    s1, b1 = _fold_bn(p["bn1"], p["b1"])
    s2, b2 = _fold_bn(p["bn2"], p["b2"])
    s3, b3 = _fold_bn(p["bn3"], p["b3"])
    s4, b4 = _fold_bn(p["bn4"], p["b4"])
    s5, b5 = _fold_bn(p["bn5"], p["fc1_b"])

    # Pad fc2's output dim to a multiple of 128 so the FC kernel is lane-dense.
    nc_pad = ((num_classes + 127) // 128) * 128
    fc2 = jnp.pad(jnp.transpose(p["fc2_w"]), ((0, 0), (0, nc_pad - num_classes)))
    fc2_b = jnp.pad(p["fc2_b"], (0, nc_pad - num_classes)).reshape(1, -1)

    return {
        "c1_w": _pack_conv(p["w1"], ci_pad=8), "c1_s": s1, "c1_b": b1,
        "c2_w": _pack_conv(p["w2"]),           "c2_s": s2, "c2_b": b2,
        "c3_w": _pack_conv(p["w3"]),           "c3_s": s3, "c3_b": b3,
        "c4_w": _pack_conv(p["w4"]),           "c4_s": s4, "c4_b": b4,
        "fc1_w": fc1.astype(jnp.bfloat16), "fc1_s": s5, "fc1_b": b5,
        "fc2_w": fc2.astype(jnp.bfloat16),
        "fc2_b": fc2_b.astype(jnp.float32),
    }


# ----------------------------------------------------------------------------
# Forward pass (inference / eval mode)
# ----------------------------------------------------------------------------
def medium_cnn_forward(x_nchw, prep, num_classes):
    n, c, _, _ = x_nchw.shape
    # NCHW -> NHWC, bf16, and a single tiny pad of the raw input (spatial halo
    # + channel 3->8 alignment).  All later halo padding happens in-kernel.
    x = jnp.transpose(x_nchw, (0, 2, 3, 1)).astype(jnp.bfloat16)
    xp = jnp.pad(x, ((0, 0), (1, 1), (1, 1), (0, 8 - c)))

    feats = conv_stack(xp, prep)                  # (n, H/4, W/4, 64) bf16, NHWC
    feats = feats.reshape(n, -1)                  # NHWC flatten (fc1 pre-permuted)

    m_pad = ((n + 7) // 8) * 8                    # sublane-align the batch dim
    if m_pad != n:
        feats = jnp.pad(feats, ((0, m_pad - n), (0, 0)))

    logits = fc_stack(feats, prep)                # (m_pad, 128) f32
    return logits[:n, :num_classes]


# ----------------------------------------------------------------------------
if __name__ == "__main__":
    num_classes = 10
    img_size = 16      # fc1 sees 64 * 4 * 4 = 1024 features
    batch = 2

    key = jax.random.PRNGKey(0)
    k_x, k_p = jax.random.split(key)
    x = jax.random.normal(k_x, (batch, 3, img_size, img_size), jnp.float32)  # NCHW
    params = init_params(k_p, num_classes, img_size)
    prep = prepare_params(params, num_classes, img_size)

    fwd = jax.jit(medium_cnn_forward, static_argnums=2)
    logits = fwd(x, prep, num_classes)
    jax.block_until_ready(logits)
    assert logits.shape == (batch, num_classes)
    assert bool(jnp.all(jnp.isfinite(logits)))
    print("KERNEL_OK")
</pallas_src>

<mosaic_0001>
module attributes {stable_mosaic.version = 11 : i64} {
  func.func @_conv_stack_kernel(%arg0: i32, %arg1: memref<1x18x18x8xbf16, #tpu.memory_space<vmem>>, %arg2: memref<72x32xbf16, #tpu.memory_space<vmem>>, %arg3: memref<1x32xf32, #tpu.memory_space<vmem>>, %arg4: memref<1x32xf32, #tpu.memory_space<vmem>>, %arg5: memref<288x32xbf16, #tpu.memory_space<vmem>>, %arg6: memref<1x32xf32, #tpu.memory_space<vmem>>, %arg7: memref<1x32xf32, #tpu.memory_space<vmem>>, %arg8: memref<288x64xbf16, #tpu.memory_space<vmem>>, %arg9: memref<1x64xf32, #tpu.memory_space<vmem>>, %arg10: memref<1x64xf32, #tpu.memory_space<vmem>>, %arg11: memref<576x64xbf16, #tpu.memory_space<vmem>>, %arg12: memref<1x64xf32, #tpu.memory_space<vmem>>, %arg13: memref<1x64xf32, #tpu.memory_space<vmem>>, %arg14: memref<1x4x4x64xbf16, #tpu.memory_space<vmem>>, %arg15: memref<18x18x32xbf16, #tpu.memory_space<vmem>>, %arg16: memref<10x10x32xbf16, #tpu.memory_space<vmem>>, %arg17: memref<10x10x64xbf16, #tpu.memory_space<vmem>>) attributes {dimension_semantics = [#tpu.dimension_semantics<parallel>], iteration_bounds = array<i64: 2>, scalar_prefetch = 0 : i64, scratch_operands = 3 : i64, tpu.core_type = #tpu.core_type<tc>, window_params = [{transform_indices = @transform_0, window_bounds = array<i64: 1, 18, 18, 8>}, {pipeline_mode = #tpu.pipeline_mode<synchronous>, transform_indices = @transform_1, window_bounds = array<i64: 72, 32>}, {pipeline_mode = #tpu.pipeline_mode<synchronous>, transform_indices = @transform_2, window_bounds = array<i64: 1, 32>}, {pipeline_mode = #tpu.pipeline_mode<synchronous>, transform_indices = @transform_3, window_bounds = array<i64: 1, 32>}, {pipeline_mode = #tpu.pipeline_mode<synchronous>, transform_indices = @transform_4, window_bounds = array<i64: 288, 32>}, {pipeline_mode = #tpu.pipeline_mode<synchronous>, transform_indices = @transform_5, window_bounds = array<i64: 1, 32>}, {pipeline_mode = #tpu.pipeline_mode<synchronous>, transform_indices = @transform_6, window_bounds = array<i64: 1, 32>}, {pipeline_mode = #tpu.pipeline_mode<synchronous>, transform_indices = @transform_7, window_bounds = array<i64: 288, 64>}, {pipeline_mode = #tpu.pipeline_mode<synchronous>, transform_indices = @transform_8, window_bounds = array<i64: 1, 64>}, {pipeline_mode = #tpu.pipeline_mode<synchronous>, transform_indices = @transform_9, window_bounds = array<i64: 1, 64>}, {pipeline_mode = #tpu.pipeline_mode<synchronous>, transform_indices = @transform_10, window_bounds = array<i64: 576, 64>}, {pipeline_mode = #tpu.pipeline_mode<synchronous>, transform_indices = @transform_11, window_bounds = array<i64: 1, 64>}, {pipeline_mode = #tpu.pipeline_mode<synchronous>, transform_indices = @transform_12, window_bounds = array<i64: 1, 64>}, {transform_indices = @transform_13, window_bounds = array<i64: 1, 4, 4, 64>}]} {
    %c0 = arith.constant 0 : index
    %c0_0 = arith.constant 0 : index
    %c0_1 = arith.constant 0 : index
    %c0_2 = arith.constant 0 : index
    %0 = vector.load %arg1[%c0, %c0_0, %c0_1, %c0_2] : memref<1x18x18x8xbf16, #tpu.memory_space<vmem>>, vector<1x16x16x8xbf16>
    %1 = vector.shape_cast %0 : vector<1x16x16x8xbf16> to vector<16x16x8xbf16>
    %c0_3 = arith.constant 0 : index
    %c0_4 = arith.constant 0 : index
    %c1 = arith.constant 1 : index
    %c0_5 = arith.constant 0 : index
    %2 = vector.load %arg1[%c0_3, %c0_4, %c1, %c0_5] : memref<1x18x18x8xbf16, #tpu.memory_space<vmem>>, vector<1x16x16x8xbf16>
    %3 = vector.shape_cast %2 : vector<1x16x16x8xbf16> to vector<16x16x8xbf16>
    %c0_6 = arith.constant 0 : index
    %c0_7 = arith.constant 0 : index
    %c2 = arith.constant 2 : index
    %c0_8 = arith.constant 0 : index
    %4 = vector.load %arg1[%c0_6, %c0_7, %c2, %c0_8] : memref<1x18x18x8xbf16, #tpu.memory_space<vmem>>, vector<1x16x16x8xbf16>
    %5 = vector.shape_cast %4 : vector<1x16x16x8xbf16> to vector<16x16x8xbf16>
    %c0_9 = arith.constant 0 : index
    %c1_10 = arith.constant 1 : index
    %c0_11 = arith.constant 0 : index
    %c0_12 = arith.constant 0 : index
    %6 = vector.load %arg1[%c0_9, %c1_10, %c0_11, %c0_12] : memref<1x18x18x8xbf16, #tpu.memory_space<vmem>>, vector<1x16x16x8xbf16>
    %7 = vector.shape_cast %6 : vector<1x16x16x8xbf16> to vector<16x16x8xbf16>
    %c0_13 = arith.constant 0 : index
    %c1_14 = arith.constant 1 : index
    %c1_15 = arith.constant 1 : index
    %c0_16 = arith.constant 0 : index
    %8 = vector.load %arg1[%c0_13, %c1_14, %c1_15, %c0_16] : memref<1x18x18x8xbf16, #tpu.memory_space<vmem>>, vector<1x16x16x8xbf16>
    %9 = vector.shape_cast %8 : vector<1x16x16x8xbf16> to vector<16x16x8xbf16>
    %c0_17 = arith.constant 0 : index
    %c1_18 = arith.constant 1 : index
    %c2_19 = arith.constant 2 : index
    %c0_20 = arith.constant 0 : index
    %10 = vector.load %arg1[%c0_17, %c1_18, %c2_19, %c0_20] : memref<1x18x18x8xbf16, #tpu.memory_space<vmem>>, vector<1x16x16x8xbf16>
    %11 = vector.shape_cast %10 : vector<1x16x16x8xbf16> to vector<16x16x8xbf16>
    %c0_21 = arith.constant 0 : index
    %c2_22 = arith.constant 2 : index
    %c0_23 = arith.constant 0 : index
    %c0_24 = arith.constant 0 : index
    %12 = vector.load %arg1[%c0_21, %c2_22, %c0_23, %c0_24] : memref<1x18x18x8xbf16, #tpu.memory_space<vmem>>, vector<1x16x16x8xbf16>
    %13 = vector.shape_cast %12 : vector<1x16x16x8xbf16> to vector<16x16x8xbf16>
    %c0_25 = arith.constant 0 : index
    %c2_26 = arith.constant 2 : index
    %c1_27 = arith.constant 1 : index
    %c0_28 = arith.constant 0 : index
    %14 = vector.load %arg1[%c0_25, %c2_26, %c1_27, %c0_28] : memref<1x18x18x8xbf16, #tpu.memory_space<vmem>>, vector<1x16x16x8xbf16>
    %15 = vector.shape_cast %14 : vector<1x16x16x8xbf16> to vector<16x16x8xbf16>
    %c0_29 = arith.constant 0 : index
    %c2_30 = arith.constant 2 : index
    %c2_31 = arith.constant 2 : index
    %c0_32 = arith.constant 0 : index
    %16 = vector.load %arg1[%c0_29, %c2_30, %c2_31, %c0_32] : memref<1x18x18x8xbf16, #tpu.memory_space<vmem>>, vector<1x16x16x8xbf16>
    %17 = vector.shape_cast %16 : vector<1x16x16x8xbf16> to vector<16x16x8xbf16>
    %18 = tpu.concatenate %1, %3, %5, %7, %9, %11, %13, %15, %17 in 2 : vector<16x16x8xbf16>, vector<16x16x8xbf16>, vector<16x16x8xbf16>, vector<16x16x8xbf16>, vector<16x16x8xbf16>, vector<16x16x8xbf16>, vector<16x16x8xbf16>, vector<16x16x8xbf16>, vector<16x16x8xbf16> -> vector<16x16x72xbf16>
    %19 = vector.shape_cast %18 : vector<16x16x72xbf16> to vector<256x72xbf16>
    %c0_33 = arith.constant 0 : index
    %c0_34 = arith.constant 0 : index
    %20 = vector.load %arg2[%c0_33, %c0_34] : memref<72x32xbf16, #tpu.memory_space<vmem>>, vector<72x32xbf16>
    %cst = arith.constant dense<0.000000e+00> : vector<256x32xf32>
    %21 = tpu.matmul %19, %20, %cst {dimension_numbers = #tpu.dot_dimension_numbers<[1], [0], [0], [1], [0, 0, 1, 1], [], []>} : vector<256x72xbf16>, vector<72x32xbf16>, vector<256x32xf32> -> vector<256x32xf32>
    %c0_35 = arith.constant 0 : index
    %c0_36 = arith.constant 0 : index
    %22 = vector.load %arg3[%c0_35, %c0_36] : memref<1x32xf32, #tpu.memory_space<vmem>>, vector<1x32xf32>
    %23 = vector.broadcast %22 : vector<1x32xf32> to vector<256x32xf32>
    %24 = arith.mulf %21, %23 : vector<256x32xf32>
    %c0_37 = arith.constant 0 : index
    %c0_38 = arith.constant 0 : index
    %25 = vector.load %arg4[%c0_37, %c0_38] : memref<1x32xf32, #tpu.memory_space<vmem>>, vector<1x32xf32>
    %26 = vector.broadcast %25 : vector<1x32xf32> to vector<256x32xf32>
    %27 = arith.addf %24, %26 : vector<256x32xf32>
    %cst_39 = arith.constant 0.000000e+00 : f32
    %28 = vector.broadcast %cst_39 : f32 to vector<256x32xf32>
    %29 = arith.maximumf %27, %28 : vector<256x32xf32>
    %30 = vector.shape_cast %29 : vector<256x32xf32> to vector<16x16x32xf32>
    %cst_40 = arith.constant 0.000000e+00 : bf16
    %31 = vector.broadcast %cst_40 : bf16 to vector<18x18x32xbf16>
    %c0_41 = arith.constant 0 : index
    %c0_42 = arith.constant 0 : index
    %c0_43 = arith.constant 0 : index
    %32 = vector.load %arg15[%c0_41, %c0_42, %c0_43] : memref<18x18x32xbf16, #tpu.memory_space<vmem>>, vector<18x18x32xbf16>
    tpu.vector_store %arg15[%c0_41, %c0_42, %c0_43], %31 {strides = array<i32>} : memref<18x18x32xbf16, #tpu.memory_space<vmem>>, vector<18x18x32xbf16>,
    %33 = arith.truncf %30 : vector<16x16x32xf32> to vector<16x16x32xbf16>
    %c1_44 = arith.constant 1 : index
    %c1_45 = arith.constant 1 : index
    %c0_46 = arith.constant 0 : index
    %34 = vector.load %arg15[%c1_44, %c1_45, %c0_46] : memref<18x18x32xbf16, #tpu.memory_space<vmem>>, vector<16x16x32xbf16>
    tpu.vector_store %arg15[%c1_44, %c1_45, %c0_46], %33 {strides = array<i32>} : memref<18x18x32xbf16, #tpu.memory_space<vmem>>, vector<16x16x32xbf16>,
    %c0_47 = arith.constant 0 : index
    %c0_48 = arith.constant 0 : index
    %c0_49 = arith.constant 0 : index
    %35 = vector.load %arg15[%c0_47, %c0_48, %c0_49] : memref<18x18x32xbf16, #tpu.memory_space<vmem>>, vector<16x16x32xbf16>
    %c0_50 = arith.constant 0 : index
    %c1_51 = arith.constant 1 : index
    %c0_52 = arith.constant 0 : index
    %36 = vector.load %arg15[%c0_50, %c1_51, %c0_52] : memref<18x18x32xbf16, #tpu.memory_space<vmem>>, vector<16x16x32xbf16>
    %c0_53 = arith.constant 0 : index
    %c2_54 = arith.constant 2 : index
    %c0_55 = arith.constant 0 : index
    %37 = vector.load %arg15[%c0_53, %c2_54, %c0_55] : memref<18x18x32xbf16, #tpu.memory_space<vmem>>, vector<16x16x32xbf16>
    %c1_56 = arith.constant 1 : index
    %c0_57 = arith.constant 0 : index
    %c0_58 = arith.constant 0 : index
    %38 = vector.load %arg15[%c1_56, %c0_57, %c0_58] : memref<18x18x32xbf16, #tpu.memory_space<vmem>>, vector<16x16x32xbf16>
    %c1_59 = arith.constant 1 : index
    %c1_60 = arith.constant 1 : index
    %c0_61 = arith.constant 0 : index
    %39 = vector.load %arg15[%c1_59, %c1_60, %c0_61] : memref<18x18x32xbf16, #tpu.memory_space<vmem>>, vector<16x16x32xbf16>
    %c1_62 = arith.constant 1 : index
    %c2_63 = arith.constant 2 : index
    %c0_64 = arith.constant 0 : index
    %40 = vector.load %arg15[%c1_62, %c2_63, %c0_64] : memref<18x18x32xbf16, #tpu.memory_space<vmem>>, vector<16x16x32xbf16>
    %c2_65 = arith.constant 2 : index
    %c0_66 = arith.constant 0 : index
    %c0_67 = arith.constant 0 : index
    %41 = vector.load %arg15[%c2_65, %c0_66, %c0_67] : memref<18x18x32xbf16, #tpu.memory_space<vmem>>, vector<16x16x32xbf16>
    %c2_68 = arith.constant 2 : index
    %c1_69 = arith.constant 1 : index
    %c0_70 = arith.constant 0 : index
    %42 = vector.load %arg15[%c2_68, %c1_69, %c0_70] : memref<18x18x32xbf16, #tpu.memory_space<vmem>>, vector<16x16x32xbf16>
    %c2_71 = arith.constant 2 : index
    %c2_72 = arith.constant 2 : index
    %c0_73 = arith.constant 0 : index
    %43 = vector.load %arg15[%c2_71, %c2_72, %c0_73] : memref<18x18x32xbf16, #tpu.memory_space<vmem>>, vector<16x16x32xbf16>
    %44 = tpu.concatenate %35, %36, %37, %38, %39, %40, %41, %42, %43 in 2 : vector<16x16x32xbf16>, vector<16x16x32xbf16>, vector<16x16x32xbf16>, vector<16x16x32xbf16>, vector<16x16x32xbf16>, vector<16x16x32xbf16>, vector<16x16x32xbf16>, vector<16x16x32xbf16>, vector<16x16x32xbf16> -> vector<16x16x288xbf16>
    %45 = vector.shape_cast %44 : vector<16x16x288xbf16> to vector<256x288xbf16>
    %c0_74 = arith.constant 0 : index
    %c0_75 = arith.constant 0 : index
    %46 = vector.load %arg5[%c0_74, %c0_75] : memref<288x32xbf16, #tpu.memory_space<vmem>>, vector<288x32xbf16>
    %cst_76 = arith.constant dense<0.000000e+00> : vector<256x32xf32>
    %47 = tpu.matmul %45, %46, %cst_76 {dimension_numbers = #tpu.dot_dimension_numbers<[1], [0], [0], [1], [0, 0, 1, 1], [], []>} : vector<256x288xbf16>, vector<288x32xbf16>, vector<256x32xf32> -> vector<256x32xf32>
    %c0_77 = arith.constant 0 : index
    %c0_78 = arith.constant 0 : index
    %48 = vector.load %arg6[%c0_77, %c0_78] : memref<1x32xf32, #tpu.memory_space<vmem>>, vector<1x32xf32>
    %49 = vector.broadcast %48 : vector<1x32xf32> to vector<256x32xf32>
    %50 = arith.mulf %47, %49 : vector<256x32xf32>
    %c0_79 = arith.constant 0 : index
    %c0_80 = arith.constant 0 : index
    %51 = vector.load %arg7[%c0_79, %c0_80] : memref<1x32xf32, #tpu.memory_space<vmem>>, vector<1x32xf32>
    %52 = vector.broadcast %51 : vector<1x32xf32> to vector<256x32xf32>
    %53 = arith.addf %50, %52 : vector<256x32xf32>
    %cst_81 = arith.constant 0.000000e+00 : f32
    %54 = vector.broadcast %cst_81 : f32 to vector<256x32xf32>
    %55 = arith.maximumf %53, %54 : vector<256x32xf32>
    %56 = vector.shape_cast %55 : vector<256x32xf32> to vector<16x8x2x32xf32>
    %57 = vector.extract_strided_slice %56 {offsets = [0, 0, 0, 0], sizes = [16, 8, 1, 32], strides = [1, 1, 1, 1]} : vector<16x8x2x32xf32> to vector<16x8x1x32xf32>
    %58 = vector.shape_cast %57 : vector<16x8x1x32xf32> to vector<16x8x32xf32>
    %59 = vector.extract_strided_slice %56 {offsets = [0, 0, 1, 0], sizes = [16, 8, 1, 32], strides = [1, 1, 1, 1]} : vector<16x8x2x32xf32> to vector<16x8x1x32xf32>
    %60 = vector.shape_cast %59 : vector<16x8x1x32xf32> to vector<16x8x32xf32>
    %61 = arith.maximumf %58, %60 : vector<16x8x32xf32>
    %62 = vector.shape_cast %61 : vector<16x8x32xf32> to vector<8x2x8x32xf32>
    %63 = vector.extract_strided_slice %62 {offsets = [0, 0, 0, 0], sizes = [8, 1, 8, 32], strides = [1, 1, 1, 1]} : vector<8x2x8x32xf32> to vector<8x1x8x32xf32>
    %64 = vector.shape_cast %63 : vector<8x1x8x32xf32> to vector<8x8x32xf32>
    %65 = vector.extract_strided_slice %62 {offsets = [0, 1, 0, 0], sizes = [8, 1, 8, 32], strides = [1, 1, 1, 1]} : vector<8x2x8x32xf32> to vector<8x1x8x32xf32>
    %66 = vector.shape_cast %65 : vector<8x1x8x32xf32> to vector<8x8x32xf32>
    %67 = arith.maximumf %64, %66 : vector<8x8x32xf32>
    %cst_82 = arith.constant 0.000000e+00 : bf16
    %68 = vector.broadcast %cst_82 : bf16 to vector<10x10x32xbf16>
    %c0_83 = arith.constant 0 : index
    %c0_84 = arith.constant 0 : index
    %c0_85 = arith.constant 0 : index
    %69 = vector.load %arg16[%c0_83, %c0_84, %c0_85] : memref<10x10x32xbf16, #tpu.memory_space<vmem>>, vector<10x10x32xbf16>
    tpu.vector_store %arg16[%c0_83, %c0_84, %c0_85], %68 {strides = array<i32>} : memref<10x10x32xbf16, #tpu.memory_space<vmem>>, vector<10x10x32xbf16>,
    %70 = arith.truncf %67 : vector<8x8x32xf32> to vector<8x8x32xbf16>
    %c1_86 = arith.constant 1 : index
    %c1_87 = arith.constant 1 : index
    %c0_88 = arith.constant 0 : index
    %71 = vector.load %arg16[%c1_86, %c1_87, %c0_88] : memref<10x10x32xbf16, #tpu.memory_space<vmem>>, vector<8x8x32xbf16>
    tpu.vector_store %arg16[%c1_86, %c1_87, %c0_88], %70 {strides = array<i32>} : memref<10x10x32xbf16, #tpu.memory_space<vmem>>, vector<8x8x32xbf16>,
    %c0_89 = arith.constant 0 : index
    %c0_90 = arith.constant 0 : index
    %c0_91 = arith.constant 0 : index
    %72 = vector.load %arg16[%c0_89, %c0_90, %c0_91] : memref<10x10x32xbf16, #tpu.memory_space<vmem>>, vector<8x8x32xbf16>
    %c0_92 = arith.constant 0 : index
    %c1_93 = arith.constant 1 : index
    %c0_94 = arith.constant 0 : index
    %73 = vector.load %arg16[%c0_92, %c1_93, %c0_94] : memref<10x10x32xbf16, #tpu.memory_space<vmem>>, vector<8x8x32xbf16>
    %c0_95 = arith.constant 0 : index
    %c2_96 = arith.constant 2 : index
    %c0_97 = arith.constant 0 : index
    %74 = vector.load %arg16[%c0_95, %c2_96, %c0_97] : memref<10x10x32xbf16, #tpu.memory_space<vmem>>, vector<8x8x32xbf16>
    %c1_98 = arith.constant 1 : index
    %c0_99 = arith.constant 0 : index
    %c0_100 = arith.constant 0 : index
    %75 = vector.load %arg16[%c1_98, %c0_99, %c0_100] : memref<10x10x32xbf16, #tpu.memory_space<vmem>>, vector<8x8x32xbf16>
    %c1_101 = arith.constant 1 : index
    %c1_102 = arith.constant 1 : index
    %c0_103 = arith.constant 0 : index
    %76 = vector.load %arg16[%c1_101, %c1_102, %c0_103] : memref<10x10x32xbf16, #tpu.memory_space<vmem>>, vector<8x8x32xbf16>
    %c1_104 = arith.constant 1 : index
    %c2_105 = arith.constant 2 : index
    %c0_106 = arith.constant 0 : index
    %77 = vector.load %arg16[%c1_104, %c2_105, %c0_106] : memref<10x10x32xbf16, #tpu.memory_space<vmem>>, vector<8x8x32xbf16>
    %c2_107 = arith.constant 2 : index
    %c0_108 = arith.constant 0 : index
    %c0_109 = arith.constant 0 : index
    %78 = vector.load %arg16[%c2_107, %c0_108, %c0_109] : memref<10x10x32xbf16, #tpu.memory_space<vmem>>, vector<8x8x32xbf16>
    %c2_110 = arith.constant 2 : index
    %c1_111 = arith.constant 1 : index
    %c0_112 = arith.constant 0 : index
    %79 = vector.load %arg16[%c2_110, %c1_111, %c0_112] : memref<10x10x32xbf16, #tpu.memory_space<vmem>>, vector<8x8x32xbf16>
    %c2_113 = arith.constant 2 : index
    %c2_114 = arith.constant 2 : index
    %c0_115 = arith.constant 0 : index
    %80 = vector.load %arg16[%c2_113, %c2_114, %c0_115] : memref<10x10x32xbf16, #tpu.memory_space<vmem>>, vector<8x8x32xbf16>
    %81 = tpu.concatenate %72, %73, %74, %75, %76, %77, %78, %79, %80 in 2 : vector<8x8x32xbf16>, vector<8x8x32xbf16>, vector<8x8x32xbf16>, vector<8x8x32xbf16>, vector<8x8x32xbf16>, vector<8x8x32xbf16>, vector<8x8x32xbf16>, vector<8x8x32xbf16>, vector<8x8x32xbf16> -> vector<8x8x288xbf16>
    %82 = vector.shape_cast %81 : vector<8x8x288xbf16> to vector<64x288xbf16>
    %c0_116 = arith.constant 0 : index
    %c0_117 = arith.constant 0 : index
    %83 = vector.load %arg8[%c0_116, %c0_117] : memref<288x64xbf16, #tpu.memory_space<vmem>>, vector<288x64xbf16>
    %cst_118 = arith.constant dense<0.000000e+00> : vector<64x64xf32>
    %84 = tpu.matmul %82, %83, %cst_118 {dimension_numbers = #tpu.dot_dimension_numbers<[1], [0], [0], [1], [0, 0, 1, 1], [], []>} : vector<64x288xbf16>, vector<288x64xbf16>, vector<64x64xf32> -> vector<64x64xf32>
    %c0_119 = arith.constant 0 : index
    %c0_120 = arith.constant 0 : index
    %85 = vector.load %arg9[%c0_119, %c0_120] : memref<1x64xf32, #tpu.memory_space<vmem>>, vector<1x64xf32>
    %86 = vector.broadcast %85 : vector<1x64xf32> to vector<64x64xf32>
    %87 = arith.mulf %84, %86 : vector<64x64xf32>
    %c0_121 = arith.constant 0 : index
    %c0_122 = arith.constant 0 : index
    %88 = vector.load %arg10[%c0_121, %c0_122] : memref<1x64xf32, #tpu.memory_space<vmem>>, vector<1x64xf32>
    %89 = vector.broadcast %88 : vector<1x64xf32> to vector<64x64xf32>
    %90 = arith.addf %87, %89 : vector<64x64xf32>
    %cst_123 = arith.constant 0.000000e+00 : f32
    %91 = vector.broadcast %cst_123 : f32 to vector<64x64xf32>
    %92 = arith.maximumf %90, %91 : vector<64x64xf32>
    %93 = vector.shape_cast %92 : vector<64x64xf32> to vector<8x8x64xf32>
    %cst_124 = arith.constant 0.000000e+00 : bf16
    %94 = vector.broadcast %cst_124 : bf16 to vector<10x10x64xbf16>
    %c0_125 = arith.constant 0 : index
    %c0_126 = arith.constant 0 : index
    %c0_127 = arith.constant 0 : index
    %95 = vector.load %arg17[%c0_125, %c0_126, %c0_127] : memref<10x10x64xbf16, #tpu.memory_space<vmem>>, vector<10x10x64xbf16>
    tpu.vector_store %arg17[%c0_125, %c0_126, %c0_127], %94 {strides = array<i32>} : memref<10x10x64xbf16, #tpu.memory_space<vmem>>, vector<10x10x64xbf16>,
    %96 = arith.truncf %93 : vector<8x8x64xf32> to vector<8x8x64xbf16>
    %c1_128 = arith.constant 1 : index
    %c1_129 = arith.constant 1 : index
    %c0_130 = arith.constant 0 : index
    %97 = vector.load %arg17[%c1_128, %c1_129, %c0_130] : memref<10x10x64xbf16, #tpu.memory_space<vmem>>, vector<8x8x64xbf16>
    tpu.vector_store %arg17[%c1_128, %c1_129, %c0_130], %96 {strides = array<i32>} : memref<10x10x64xbf16, #tpu.memory_space<vmem>>, vector<8x8x64xbf16>,
    %c0_131 = arith.constant 0 : index
    %c0_132 = arith.constant 0 : index
    %c0_133 = arith.constant 0 : index
    %98 = vector.load %arg17[%c0_131, %c0_132, %c0_133] : memref<10x10x64xbf16, #tpu.memory_space<vmem>>, vector<8x8x64xbf16>
    %c0_134 = arith.constant 0 : index
    %c1_135 = arith.constant 1 : index
    %c0_136 = arith.constant 0 : index
    %99 = vector.load %arg17[%c0_134, %c1_135, %c0_136] : memref<10x10x64xbf16, #tpu.memory_space<vmem>>, vector<8x8x64xbf16>
    %c0_137 = arith.constant 0 : index
    %c2_138 = arith.constant 2 : index
    %c0_139 = arith.constant 0 : index
    %100 = vector.load %arg17[%c0_137, %c2_138, %c0_139] : memref<10x10x64xbf16, #tpu.memory_space<vmem>>, vector<8x8x64xbf16>
    %c1_140 = arith.constant 1 : index
    %c0_141 = arith.constant 0 : index
    %c0_142 = arith.constant 0 : index
    %101 = vector.load %arg17[%c1_140, %c0_141, %c0_142] : memref<10x10x64xbf16, #tpu.memory_space<vmem>>, vector<8x8x64xbf16>
    %c1_143 = arith.constant 1 : index
    %c1_144 = arith.constant 1 : index
    %c0_145 = arith.constant 0 : index
    %102 = vector.load %arg17[%c1_143, %c1_144, %c0_145] : memref<10x10x64xbf16, #tpu.memory_space<vmem>>, vector<8x8x64xbf16>
    %c1_146 = arith.constant 1 : index
    %c2_147 = arith.constant 2 : index
    %c0_148 = arith.constant 0 : index
    %103 = vector.load %arg17[%c1_146, %c2_147, %c0_148] : memref<10x10x64xbf16, #tpu.memory_space<vmem>>, vector<8x8x64xbf16>
    %c2_149 = arith.constant 2 : index
    %c0_150 = arith.constant 0 : index
    %c0_151 = arith.constant 0 : index
    %104 = vector.load %arg17[%c2_149, %c0_150, %c0_151] : memref<10x10x64xbf16, #tpu.memory_space<vmem>>, vector<8x8x64xbf16>
    %c2_152 = arith.constant 2 : index
    %c1_153 = arith.constant 1 : index
    %c0_154 = arith.constant 0 : index
    %105 = vector.load %arg17[%c2_152, %c1_153, %c0_154] : memref<10x10x64xbf16, #tpu.memory_space<vmem>>, vector<8x8x64xbf16>
    %c2_155 = arith.constant 2 : index
    %c2_156 = arith.constant 2 : index
    %c0_157 = arith.constant 0 : index
    %106 = vector.load %arg17[%c2_155, %c2_156, %c0_157] : memref<10x10x64xbf16, #tpu.memory_space<vmem>>, vector<8x8x64xbf16>
    %107 = tpu.concatenate %98, %99, %100, %101, %102, %103, %104, %105, %106 in 2 : vector<8x8x64xbf16>, vector<8x8x64xbf16>, vector<8x8x64xbf16>, vector<8x8x64xbf16>, vector<8x8x64xbf16>, vector<8x8x64xbf16>, vector<8x8x64xbf16>, vector<8x8x64xbf16>, vector<8x8x64xbf16> -> vector<8x8x576xbf16>
    %108 = vector.shape_cast %107 : vector<8x8x576xbf16> to vector<64x576xbf16>
    %c0_158 = arith.constant 0 : index
    %c0_159 = arith.constant 0 : index
    %109 = vector.load %arg11[%c0_158, %c0_159] : memref<576x64xbf16, #tpu.memory_space<vmem>>, vector<576x64xbf16>
    %cst_160 = arith.constant dense<0.000000e+00> : vector<64x64xf32>
    %110 = tpu.matmul %108, %109, %cst_160 {dimension_numbers = #tpu.dot_dimension_numbers<[1], [0], [0], [1], [0, 0, 1, 1], [], []>} : vector<64x576xbf16>, vector<576x64xbf16>, vector<64x64xf32> -> vector<64x64xf32>
    %c0_161 = arith.constant 0 : index
    %c0_162 = arith.constant 0 : index
    %111 = vector.load %arg12[%c0_161, %c0_162] : memref<1x64xf32, #tpu.memory_space<vmem>>, vector<1x64xf32>
    %112 = vector.broadcast %111 : vector<1x64xf32> to vector<64x64xf32>
    %113 = arith.mulf %110, %112 : vector<64x64xf32>
    %c0_163 = arith.constant 0 : index
    %c0_164 = arith.constant 0 : index
    %114 = vector.load %arg13[%c0_163, %c0_164] : memref<1x64xf32, #tpu.memory_space<vmem>>, vector<1x64xf32>
    %115 = vector.broadcast %114 : vector<1x64xf32> to vector<64x64xf32>
    %116 = arith.addf %113, %115 : vector<64x64xf32>
    %cst_165 = arith.constant 0.000000e+00 : f32
    %117 = vector.broadcast %cst_165 : f32 to vector<64x64xf32>
    %118 = arith.maximumf %116, %117 : vector<64x64xf32>
    %119 = vector.shape_cast %118 : vector<64x64xf32> to vector<8x4x2x64xf32>
    %120 = vector.extract_strided_slice %119 {offsets = [0, 0, 0, 0], sizes = [8, 4, 1, 64], strides = [1, 1, 1, 1]} : vector<8x4x2x64xf32> to vector<8x4x1x64xf32>
    %121 = vector.shape_cast %120 : vector<8x4x1x64xf32> to vector<8x4x64xf32>
    %122 = vector.extract_strided_slice %119 {offsets = [0, 0, 1, 0], sizes = [8, 4, 1, 64], strides = [1, 1, 1, 1]} : vector<8x4x2x64xf32> to vector<8x4x1x64xf32>
    %123 = vector.shape_cast %122 : vector<8x4x1x64xf32> to vector<8x4x64xf32>
    %124 = arith.maximumf %121, %123 : vector<8x4x64xf32>
    %125 = vector.shape_cast %124 : vector<8x4x64xf32> to vector<4x2x4x64xf32>
    %126 = vector.extract_strided_slice %125 {offsets = [0, 0, 0, 0], sizes = [4, 1, 4, 64], strides = [1, 1, 1, 1]} : vector<4x2x4x64xf32> to vector<4x1x4x64xf32>
    %127 = vector.shape_cast %126 : vector<4x1x4x64xf32> to vector<4x4x64xf32>
    %128 = vector.extract_strided_slice %125 {offsets = [0, 1, 0, 0], sizes = [4, 1, 4, 64], strides = [1, 1, 1, 1]} : vector<4x2x4x64xf32> to vector<4x1x4x64xf32>
    %129 = vector.shape_cast %128 : vector<4x1x4x64xf32> to vector<4x4x64xf32>
    %130 = arith.maximumf %127, %129 : vector<4x4x64xf32>
    %131 = arith.truncf %130 : vector<4x4x64xf32> to vector<4x4x64xbf16>
    %c0_166 = arith.constant 0 : index
    %c0_167 = arith.constant 0 : index
    %c0_168 = arith.constant 0 : index
    %c0_169 = arith.constant 0 : index
    %132 = vector.load %arg14[%c0_166, %c0_167, %c0_168, %c0_169] : memref<1x4x4x64xbf16, #tpu.memory_space<vmem>>, vector<1x4x4x64xbf16>
    %133 = vector.shape_cast %132 : vector<1x4x4x64xbf16> to vector<4x4x64xbf16>
    %134 = vector.shape_cast %131 : vector<4x4x64xbf16> to vector<1x4x4x64xbf16>
    tpu.vector_store %arg14[%c0_166, %c0_167, %c0_168, %c0_169], %134 {strides = array<i32>} : memref<1x4x4x64xbf16, #tpu.memory_space<vmem>>, vector<1x4x4x64xbf16>,
    return
  }
  func.func @transform_0(%arg0: i32) -> (i32, i32, i32, i32) {
    %c0_i32 = arith.constant 0 : i32
    %c0_i32_0 = arith.constant 0 : i32
    %c0_i32_1 = arith.constant 0 : i32
    %c0_i32_2 = arith.constant 0 : i32
    return %arg0, %c0_i32, %c0_i32_0, %c0_i32_1 : i32, i32, i32, i32
  }
  func.func @transform_1(%arg0: i32) -> (i32, i32) {
    %c0_i32 = arith.constant 0 : i32
    %c0_i32_0 = arith.constant 0 : i32
    %c0_i32_1 = arith.constant 0 : i32
    return %c0_i32, %c0_i32_0 : i32, i32
  }
  func.func @transform_2(%arg0: i32) -> (i32, i32) {
    %c0_i32 = arith.constant 0 : i32
    %c0_i32_0 = arith.constant 0 : i32
    %c0_i32_1 = arith.constant 0 : i32
    return %c0_i32, %c0_i32_0 : i32, i32
  }
  func.func @transform_3(%arg0: i32) -> (i32, i32) {
    %c0_i32 = arith.constant 0 : i32
    %c0_i32_0 = arith.constant 0 : i32
    %c0_i32_1 = arith.constant 0 : i32
    return %c0_i32, %c0_i32_0 : i32, i32
  }
  func.func @transform_4(%arg0: i32) -> (i32, i32) {
    %c0_i32 = arith.constant 0 : i32
    %c0_i32_0 = arith.constant 0 : i32
    %c0_i32_1 = arith.constant 0 : i32
    return %c0_i32, %c0_i32_0 : i32, i32
  }
  func.func @transform_5(%arg0: i32) -> (i32, i32) {
    %c0_i32 = arith.constant 0 : i32
    %c0_i32_0 = arith.constant 0 : i32
    %c0_i32_1 = arith.constant 0 : i32
    return %c0_i32, %c0_i32_0 : i32, i32
  }
  func.func @transform_6(%arg0: i32) -> (i32, i32) {
    %c0_i32 = arith.constant 0 : i32
    %c0_i32_0 = arith.constant 0 : i32
    %c0_i32_1 = arith.constant 0 : i32
    return %c0_i32, %c0_i32_0 : i32, i32
  }
  func.func @transform_7(%arg0: i32) -> (i32, i32) {
    %c0_i32 = arith.constant 0 : i32
    %c0_i32_0 = arith.constant 0 : i32
    %c0_i32_1 = arith.constant 0 : i32
    return %c0_i32, %c0_i32_0 : i32, i32
  }
  func.func @transform_8(%arg0: i32) -> (i32, i32) {
    %c0_i32 = arith.constant 0 : i32
    %c0_i32_0 = arith.constant 0 : i32
    %c0_i32_1 = arith.constant 0 : i32
    return %c0_i32, %c0_i32_0 : i32, i32
  }
  func.func @transform_9(%arg0: i32) -> (i32, i32) {
    %c0_i32 = arith.constant 0 : i32
    %c0_i32_0 = arith.constant 0 : i32
    %c0_i32_1 = arith.constant 0 : i32
    return %c0_i32, %c0_i32_0 : i32, i32
  }
  func.func @transform_10(%arg0: i32) -> (i32, i32) {
    %c0_i32 = arith.constant 0 : i32
    %c0_i32_0 = arith.constant 0 : i32
    %c0_i32_1 = arith.constant 0 : i32
    return %c0_i32, %c0_i32_0 : i32, i32
  }
  func.func @transform_11(%arg0: i32) -> (i32, i32) {
    %c0_i32 = arith.constant 0 : i32
    %c0_i32_0 = arith.constant 0 : i32
    %c0_i32_1 = arith.constant 0 : i32
    return %c0_i32, %c0_i32_0 : i32, i32
  }
  func.func @transform_12(%arg0: i32) -> (i32, i32) {
    %c0_i32 = arith.constant 0 : i32
    %c0_i32_0 = arith.constant 0 : i32
    %c0_i32_1 = arith.constant 0 : i32
    return %c0_i32, %c0_i32_0 : i32, i32
  }
  func.func @transform_13(%arg0: i32) -> (i32, i32, i32, i32) {
    %c0_i32 = arith.constant 0 : i32
    %c0_i32_0 = arith.constant 0 : i32
    %c0_i32_1 = arith.constant 0 : i32
    %c0_i32_2 = arith.constant 0 : i32
    return %arg0, %c0_i32, %c0_i32_0, %c0_i32_1 : i32, i32, i32, i32
  }
}

module attributes {stable_mosaic.version = 11 : i64} {
  func.func @_fc_stack_kernel(%arg0: i32, %arg1: memref<8x1024xbf16, #tpu.memory_space<vmem>>, %arg2: memref<1024x512xbf16, #tpu.memory_space<vmem>>, %arg3: memref<1x512xf32, #tpu.memory_space<vmem>>, %arg4: memref<1x512xf32, #tpu.memory_space<vmem>>, %arg5: memref<512x128xbf16, #tpu.memory_space<vmem>>, %arg6: memref<1x128xf32, #tpu.memory_space<vmem>>, %arg7: memref<8x128xf32, #tpu.memory_space<vmem>>) attributes {dimension_semantics = [#tpu.dimension_semantics<arbitrary>], iteration_bounds = array<i64: 1>, scalar_prefetch = 0 : i64, scratch_operands = 0 : i64, tpu.core_type = #tpu.core_type<tc>, window_params = [{pipeline_mode = #tpu.pipeline_mode<synchronous>, transform_indices = @transform_0, window_bounds = array<i64: 8, 1024>}, {pipeline_mode = #tpu.pipeline_mode<synchronous>, transform_indices = @transform_1, window_bounds = array<i64: 1024, 512>}, {pipeline_mode = #tpu.pipeline_mode<synchronous>, transform_indices = @transform_2, window_bounds = array<i64: 1, 512>}, {pipeline_mode = #tpu.pipeline_mode<synchronous>, transform_indices = @transform_3, window_bounds = array<i64: 1, 512>}, {pipeline_mode = #tpu.pipeline_mode<synchronous>, transform_indices = @transform_4, window_bounds = array<i64: 512, 128>}, {pipeline_mode = #tpu.pipeline_mode<synchronous>, transform_indices = @transform_5, window_bounds = array<i64: 1, 128>}, {pipeline_mode = #tpu.pipeline_mode<synchronous>, transform_indices = @transform_6, window_bounds = array<i64: 8, 128>}]} {
    %c0 = arith.constant 0 : index
    %c0_0 = arith.constant 0 : index
    %0 = vector.load %arg1[%c0, %c0_0] : memref<8x1024xbf16, #tpu.memory_space<vmem>>, vector<8x1024xbf16>
    %c0_1 = arith.constant 0 : index
    %c0_2 = arith.constant 0 : index
    %1 = vector.load %arg2[%c0_1, %c0_2] : memref<1024x512xbf16, #tpu.memory_space<vmem>>, vector<1024x512xbf16>
    %cst = arith.constant dense<0.000000e+00> : vector<8x512xf32>
    %2 = tpu.matmul %0, %1, %cst {dimension_numbers = #tpu.dot_dimension_numbers<[1], [0], [0], [1], [0, 0, 1, 1], [], []>} : vector<8x1024xbf16>, vector<1024x512xbf16>, vector<8x512xf32> -> vector<8x512xf32>
    %c0_3 = arith.constant 0 : index
    %c0_4 = arith.constant 0 : index
    %3 = vector.load %arg3[%c0_3, %c0_4] : memref<1x512xf32, #tpu.memory_space<vmem>>, vector<1x512xf32>
    %4 = vector.broadcast %3 : vector<1x512xf32> to vector<8x512xf32>
    %5 = arith.mulf %2, %4 : vector<8x512xf32>
    %c0_5 = arith.constant 0 : index
    %c0_6 = arith.constant 0 : index
    %6 = vector.load %arg4[%c0_5, %c0_6] : memref<1x512xf32, #tpu.memory_space<vmem>>, vector<1x512xf32>
    %7 = vector.broadcast %6 : vector<1x512xf32> to vector<8x512xf32>
    %8 = arith.addf %5, %7 : vector<8x512xf32>
    %cst_7 = arith.constant 0.000000e+00 : f32
    %9 = vector.broadcast %cst_7 : f32 to vector<8x512xf32>
    %10 = arith.maximumf %8, %9 : vector<8x512xf32>
    %11 = arith.truncf %10 : vector<8x512xf32> to vector<8x512xbf16>
    %c0_8 = arith.constant 0 : index
    %c0_9 = arith.constant 0 : index
    %12 = vector.load %arg5[%c0_8, %c0_9] : memref<512x128xbf16, #tpu.memory_space<vmem>>, vector<512x128xbf16>
    %cst_10 = arith.constant dense<0.000000e+00> : vector<8x128xf32>
    %13 = tpu.matmul %11, %12, %cst_10 {dimension_numbers = #tpu.dot_dimension_numbers<[1], [0], [0], [1], [0, 0, 1, 1], [], []>} : vector<8x512xbf16>, vector<512x128xbf16>, vector<8x128xf32> -> vector<8x128xf32>
    %c0_11 = arith.constant 0 : index
    %c0_12 = arith.constant 0 : index
    %14 = vector.load %arg6[%c0_11, %c0_12] : memref<1x128xf32, #tpu.memory_space<vmem>>, vector<1x128xf32>
    %15 = vector.broadcast %14 : vector<1x128xf32> to vector<8x128xf32>
    %16 = arith.addf %13, %15 : vector<8x128xf32>
    %c0_13 = arith.constant 0 : index
    %c0_14 = arith.constant 0 : index
    %17 = vector.load %arg7[%c0_13, %c0_14] : memref<8x128xf32, #tpu.memory_space<vmem>>, vector<8x128xf32>
    tpu.vector_store %arg7[%c0_13, %c0_14], %16 {strides = array<i32>} : memref<8x128xf32, #tpu.memory_space<vmem>>, vector<8x128xf32>,
    return
  }
  func.func @transform_0(%arg0: i32) -> (i32, i32) {
    %c0_i32 = arith.constant 0 : i32
    %c0_i32_0 = arith.constant 0 : i32
    %c0_i32_1 = arith.constant 0 : i32
    return %c0_i32, %c0_i32_0 : i32, i32
  }
  func.func @transform_1(%arg0: i32) -> (i32, i32) {
    %c0_i32 = arith.constant 0 : i32
    %c0_i32_0 = arith.constant 0 : i32
    %c0_i32_1 = arith.constant 0 : i32
    return %c0_i32, %c0_i32_0 : i32, i32
  }
  func.func @transform_2(%arg0: i32) -> (i32, i32) {
    %c0_i32 = arith.constant 0 : i32
    %c0_i32_0 = arith.constant 0 : i32
    %c0_i32_1 = arith.constant 0 : i32
    return %c0_i32, %c0_i32_0 : i32, i32
  }
  func.func @transform_3(%arg0: i32) -> (i32, i32) {
    %c0_i32 = arith.constant 0 : i32
    %c0_i32_0 = arith.constant 0 : i32
    %c0_i32_1 = arith.constant 0 : i32
    return %c0_i32, %c0_i32_0 : i32, i32
  }
  func.func @transform_4(%arg0: i32) -> (i32, i32) {
    %c0_i32 = arith.constant 0 : i32
    %c0_i32_0 = arith.constant 0 : i32
    %c0_i32_1 = arith.constant 0 : i32
    return %c0_i32, %c0_i32_0 : i32, i32
  }
  func.func @transform_5(%arg0: i32) -> (i32, i32) {
    %c0_i32 = arith.constant 0 : i32
    %c0_i32_0 = arith.constant 0 : i32
    %c0_i32_1 = arith.constant 0 : i32
    return %c0_i32, %c0_i32_0 : i32, i32
  }
  func.func @transform_6(%arg0: i32) -> (i32, i32) {
    %c0_i32 = arith.constant 0 : i32
    %c0_i32_0 = arith.constant 0 : i32
    %c0_i32_1 = arith.constant 0 : i32
    return %c0_i32, %c0_i32_0 : i32, i32
  }
}

</mosaic_0001>

<llo_original>
// kernel: medium_cnn_forward.3
$region0: #{medium_cnn_forward.3}
  #allocation0 [shape = 'u32[]', space=smem, size = 0x4, offset = 0x4, fixed_abs, tag = 'smem constant byte address 0x4 - core index']
  #allocation1 [shape = 'u32[144,128]{1,0:T(1,128)}', space=vmem, size = 0x12000, scoped, tag = 'internal scratch']
  %s0 = inlined_call_operand.vmem [shape: bf16[8,1024], index: 0, kind: input, shape index: {}]
  %s1 = inlined_call_operand.vmem [shape: bf16[1024,512], index: 1, kind: input, shape index: {}]
  %s2 = inlined_call_operand.vmem [shape: f32[1,512], index: 2, kind: input, shape index: {}]
  %s3 = inlined_call_operand.vmem [shape: f32[1,512], index: 3, kind: input, shape index: {}]
  %s4 = inlined_call_operand.vmem [shape: bf16[512,128], index: 4, kind: input, shape index: {}]
  %s5 = inlined_call_operand.vmem [shape: f32[1,128], index: 5, kind: input, shape index: {}]
  %s6 = inlined_call_operand.vmem [shape: f32[8,128], index: 6, kind: output, shape index: {}]
  %s7 = sld [smem:[#allocation0]]
  $region34: #{medium_cnn_forward.3} parent=0
    _
  %s9 = ssub.s32 1, %s7
  %s10 = scalar_select 0, %s9, %s7
  // Predicated region
  $region2: #{medium_cnn_forward.3} parent=0 // pred_check
    _
  $region3: #{medium_cnn_forward.3} parent=0 // pred_check_branch
    %12 = sbr.rel (0) target = $region5
  $region4: #{medium_cnn_forward.3} parent=0 // pred_region
    _
  $region5: #{medium_cnn_forward.3} parent=0 // pred_fallthru
    _
  // Predicated region
  $region6: #{medium_cnn_forward.3} parent=0 // pred_check
    _
  $region7: #{medium_cnn_forward.3} parent=0 // pred_check_branch
    %14 = sbr.rel (0) target = $region9
  $region8: #{medium_cnn_forward.3} parent=0 // pred_region
    _
  $region9: #{medium_cnn_forward.3} parent=0 // pred_fallthru
    _
  // Predicated region
  $region10: #{medium_cnn_forward.3} parent=0 // pred_check
    _
  $region11: #{medium_cnn_forward.3} parent=0 // pred_check_branch
    %16 = sbr.rel (0) target = $region13
  $region12: #{medium_cnn_forward.3} parent=0 // pred_region
    _
  $region13: #{medium_cnn_forward.3} parent=0 // pred_fallthru
    _
  // Predicated region
  $region14: #{medium_cnn_forward.3} parent=0 // pred_check
    _
  $region15: #{medium_cnn_forward.3} parent=0 // pred_check_branch
    %18 = sbr.rel (0) target = $region17
  $region16: #{medium_cnn_forward.3} parent=0 // pred_region
    _
  $region17: #{medium_cnn_forward.3} parent=0 // pred_fallthru
    _
  // Predicated region
  $region18: #{medium_cnn_forward.3} parent=0 // pred_check
    _
  $region19: #{medium_cnn_forward.3} parent=0 // pred_check_branch
    %20 = sbr.rel (0) target = $region21
  $region20: #{medium_cnn_forward.3} parent=0 // pred_region
    _
  $region21: #{medium_cnn_forward.3} parent=0 // pred_fallthru
    _
  // Predicated region
  $region22: #{medium_cnn_forward.3} parent=0 // pred_check
    _
  $region23: #{medium_cnn_forward.3} parent=0 // pred_check_branch
    %22 = sbr.rel (0) target = $region25
  $region24: #{medium_cnn_forward.3} parent=0 // pred_region
    _
  $region25: #{medium_cnn_forward.3} parent=0 // pred_fallthru
    _
  %v24 = vld [vmem:[%s0] sm:$0xff]
  %v25 = vld [vmem:[%s0 + $0x8] sm:$0xff]
  %v26 = vld [vmem:[%s0 + $0x10] sm:$0xff]
  %v27 = vld [vmem:[%s0 + $0x18] sm:$0xff]
  %v28 = vld [vmem:[%s1] sm:$0xff]
  %v29 = vld [vmem:[%s1 + $0x8] sm:$0xff]
  %v30 = vld [vmem:[%s1 + $0x10] sm:$0xff]
  %v31 = vld [vmem:[%s1 + $0x18] sm:$0xff]
  %v32 = vld [vmem:[%s1 + $0x20] sm:$0xff]
  %v33 = vld [vmem:[%s1 + $0x28] sm:$0xff]
  %v34 = vld [vmem:[%s1 + $0x30] sm:$0xff]
  %v35 = vld [vmem:[%s1 + $0x38] sm:$0xff]
  %v36 = vld [vmem:[%s1 + $0x40] sm:$0xff]
  %v37 = vld [vmem:[%s1 + $0x48] sm:$0xff]
  %v38 = vld [vmem:[%s1 + $0x50] sm:$0xff]
  %v39 = vld [vmem:[%s1 + $0x58] sm:$0xff]
  %v40 = vld [vmem:[%s1 + $0x60] sm:$0xff]
  %v41 = vld [vmem:[%s1 + $0x68] sm:$0xff]
  %v42 = vld [vmem:[%s1 + $0x70] sm:$0xff]
  %v43 = vld [vmem:[%s1 + $0x78] sm:$0xff]
  %v44 = vld [vmem:[%s1 + $0x80] sm:$0xff]
  %v45 = vld [vmem:[%s1 + $0x88] sm:$0xff]
  %v46 = vld [vmem:[%s1 + $0x90] sm:$0xff]
  %v47 = vld [vmem:[%s1 + $0x98] sm:$0xff]
  %v48 = vld [vmem:[%s1 + $0xa0] sm:$0xff]
  %v49 = vld [vmem:[%s1 + $0xa8] sm:$0xff]
  %v50 = vld [vmem:[%s1 + $0xb0] sm:$0xff]
  %v51 = vld [vmem:[%s1 + $0xb8] sm:$0xff]
  %v52 = vld [vmem:[%s1 + $0xc0] sm:$0xff]
  %v53 = vld [vmem:[%s1 + $0xc8] sm:$0xff]
  %v54 = vld [vmem:[%s1 + $0xd0] sm:$0xff]
  %v55 = vld [vmem:[%s1 + $0xd8] sm:$0xff]
  %v56 = vld [vmem:[%s1 + $0xe0] sm:$0xff]
  %v57 = vld [vmem:[%s1 + $0xe8] sm:$0xff]
  %v58 = vld [vmem:[%s1 + $0xf0] sm:$0xff]
  %v59 = vld [vmem:[%s1 + $0xf8] sm:$0xff]
  %v60 = vld [vmem:[%s1 + $0x100] sm:$0xff]
  %v61 = vld [vmem:[%s1 + $0x108] sm:$0xff]
  %v62 = vld [vmem:[%s1 + $0x110] sm:$0xff]
  %v63 = vld [vmem:[%s1 + $0x118] sm:$0xff]
  %v64 = vld [vmem:[%s1 + $0x120] sm:$0xff]
  %v65 = vld [vmem:[%s1 + $0x128] sm:$0xff]
  %v66 = vld [vmem:[%s1 + $0x130] sm:$0xff]
  %v67 = vld [vmem:[%s1 + $0x138] sm:$0xff]
  %v68 = vld [vmem:[%s1 + $0x140] sm:$0xff]
  %v69 = vld [vmem:[%s1 + $0x148] sm:$0xff]
  %v70 = vld [vmem:[%s1 + $0x150] sm:$0xff]
  %v71 = vld [vmem:[%s1 + $0x158] sm:$0xff]
  %v72 = vld [vmem:[%s1 + $0x160] sm:$0xff]
  %v73 = vld [vmem:[%s1 + $0x168] sm:$0xff]
  %v74 = vld [vmem:[%s1 + $0x170] sm:$0xff]
  %v75 = vld [vmem:[%s1 + $0x178] sm:$0xff]
  %v76 = vld [vmem:[%s1 + $0x180] sm:$0xff]
  %v77 = vld [vmem:[%s1 + $0x188] sm:$0xff]
  %v78 = vld [vmem:[%s1 + $0x190] sm:$0xff]
  %v79 = vld [vmem:[%s1 + $0x198] sm:$0xff]
  %v80 = vld [vmem:[%s1 + $0x1a0] sm:$0xff]
  %v81 = vld [vmem:[%s1 + $0x1a8] sm:$0xff]
  %v82 = vld [vmem:[%s1 + $0x1b0] sm:$0xff]
  %v83 = vld [vmem:[%s1 + $0x1b8] sm:$0xff]
  %v84 = vld [vmem:[%s1 + $0x1c0] sm:$0xff]
  %v85 = vld [vmem:[%s1 + $0x1c8] sm:$0xff]
  %v86 = vld [vmem:[%s1 + $0x1d0] sm:$0xff]
  %v87 = vld [vmem:[%s1 + $0x1d8] sm:$0xff]
  %v88 = vld [vmem:[%s1 + $0x1e0] sm:$0xff]
  %v89 = vld [vmem:[%s1 + $0x1e8] sm:$0xff]
  %v90 = vld [vmem:[%s1 + $0x1f0] sm:$0xff]
  %v91 = vld [vmem:[%s1 + $0x1f8] sm:$0xff]
  %v92 = vld [vmem:[%s1 + $0x200] sm:$0xff]
  %v93 = vld [vmem:[%s1 + $0x208] sm:$0xff]
  %v94 = vld [vmem:[%s1 + $0x210] sm:$0xff]
  %v95 = vld [vmem:[%s1 + $0x218] sm:$0xff]
  %v96 = vld [vmem:[%s1 + $0x220] sm:$0xff]
  %v97 = vld [vmem:[%s1 + $0x228] sm:$0xff]
  %v98 = vld [vmem:[%s1 + $0x230] sm:$0xff]
  %v99 = vld [vmem:[%s1 + $0x238] sm:$0xff]
  %v100 = vld [vmem:[%s1 + $0x240] sm:$0xff]
  %v101 = vld [vmem:[%s1 + $0x248] sm:$0xff]
  %v102 = vld [vmem:[%s1 + $0x250] sm:$0xff]
  %v103 = vld [vmem:[%s1 + $0x258] sm:$0xff]
  %v104 = vld [vmem:[%s1 + $0x260] sm:$0xff]
  %v105 = vld [vmem:[%s1 + $0x268] sm:$0xff]
  %v106 = vld [vmem:[%s1 + $0x270] sm:$0xff]
  %v107 = vld [vmem:[%s1 + $0x278] sm:$0xff]
  %v108 = vld [vmem:[%s1 + $0x280] sm:$0xff]
  %v109 = vld [vmem:[%s1 + $0x288] sm:$0xff]
  %v110 = vld [vmem:[%s1 + $0x290] sm:$0xff]
  %v111 = vld [vmem:[%s1 + $0x298] sm:$0xff]
  %v112 = vld [vmem:[%s1 + $0x2a0] sm:$0xff]
  %v113 = vld [vmem:[%s1 + $0x2a8] sm:$0xff]
  %v114 = vld [vmem:[%s1 + $0x2b0] sm:$0xff]
  %v115 = vld [vmem:[%s1 + $0x2b8] sm:$0xff]
  %v116 = vld [vmem:[%s1 + $0x2c0] sm:$0xff]
  %v117 = vld [vmem:[%s1 + $0x2c8] sm:$0xff]
  %v118 = vld [vmem:[%s1 + $0x2d0] sm:$0xff]
  %v119 = vld [vmem:[%s1 + $0x2d8] sm:$0xff]
  %v120 = vld [vmem:[%s1 + $0x2e0] sm:$0xff]
  %v121 = vld [vmem:[%s1 + $0x2e8] sm:$0xff]
  %v122 = vld [vmem:[%s1 + $0x2f0] sm:$0xff]
  %v123 = vld [vmem:[%s1 + $0x2f8] sm:$0xff]
  %v124 = vld [vmem:[%s1 + $0x300] sm:$0xff]
  %v125 = vld [vmem:[%s1 + $0x308] sm:$0xff]
  %v126 = vld [vmem:[%s1 + $0x310] sm:$0xff]
  %v127 = vld [vmem:[%s1 + $0x318] sm:$0xff]
  %v128 = vld [vmem:[%s1 + $0x320] sm:$0xff]
  %v129 = vld [vmem:[%s1 + $0x328] sm:$0xff]
  %v130 = vld [vmem:[%s1 + $0x330] sm:$0xff]
  %v131 = vld [vmem:[%s1 + $0x338] sm:$0xff]
  %v132 = vld [vmem:[%s1 + $0x340] sm:$0xff]
  %v133 = vld [vmem:[%s1 + $0x348] sm:$0xff]
  %v134 = vld [vmem:[%s1 + $0x350] sm:$0xff]
  %v135 = vld [vmem:[%s1 + $0x358] sm:$0xff]
  %v136 = vld [vmem:[%s1 + $0x360] sm:$0xff]
  %v137 = vld [vmem:[%s1 + $0x368] sm:$0xff]
  %v138 = vld [vmem:[%s1 + $0x370] sm:$0xff]
  %v139 = vld [vmem:[%s1 + $0x378] sm:$0xff]
  %v140 = vld [vmem:[%s1 + $0x380] sm:$0xff]
  %v141 = vld [vmem:[%s1 + $0x388] sm:$0xff]
  %v142 = vld [vmem:[%s1 + $0x390] sm:$0xff]
  %v143 = vld [vmem:[%s1 + $0x398] sm:$0xff]
  %v144 = vld [vmem:[%s1 + $0x3a0] sm:$0xff]
  %v145 = vld [vmem:[%s1 + $0x3a8] sm:$0xff]
  %v146 = vld [vmem:[%s1 + $0x3b0] sm:$0xff]
  %v147 = vld [vmem:[%s1 + $0x3b8] sm:$0xff]
  %v148 = vld [vmem:[%s1 + $0x3c0] sm:$0xff]
  %v149 = vld [vmem:[%s1 + $0x3c8] sm:$0xff]
  %v150 = vld [vmem:[%s1 + $0x3d0] sm:$0xff]
  %v151 = vld [vmem:[%s1 + $0x3d8] sm:$0xff]
  %v152 = vld [vmem:[%s1 + $0x3e0] sm:$0xff]
  %v153 = vld [vmem:[%s1 + $0x3e8] sm:$0xff]
  %v154 = vld [vmem:[%s1 + $0x3f0] sm:$0xff]
  %v155 = vld [vmem:[%s1 + $0x3f8] sm:$0xff]
  %v156 = vld [vmem:[%s1 + $0x400] sm:$0xff]
  %v157 = vld [vmem:[%s1 + $0x408] sm:$0xff]
  %v158 = vld [vmem:[%s1 + $0x410] sm:$0xff]
  %v159 = vld [vmem:[%s1 + $0x418] sm:$0xff]
  %v160 = vld [vmem:[%s1 + $0x420] sm:$0xff]
  %v161 = vld [vmem:[%s1 + $0x428] sm:$0xff]
  %v162 = vld [vmem:[%s1 + $0x430] sm:$0xff]
  %v163 = vld [vmem:[%s1 + $0x438] sm:$0xff]
  %v164 = vld [vmem:[%s1 + $0x440] sm:$0xff]
  %v165 = vld [vmem:[%s1 + $0x448] sm:$0xff]
  %v166 = vld [vmem:[%s1 + $0x450] sm:$0xff]
  %v167 = vld [vmem:[%s1 + $0x458] sm:$0xff]
  %v168 = vld [vmem:[%s1 + $0x460] sm:$0xff]
  %v169 = vld [vmem:[%s1 + $0x468] sm:$0xff]
  %v170 = vld [vmem:[%s1 + $0x470] sm:$0xff]
  %v171 = vld [vmem:[%s1 + $0x478] sm:$0xff]
  %v172 = vld [vmem:[%s1 + $0x480] sm:$0xff]
  %v173 = vld [vmem:[%s1 + $0x488] sm:$0xff]
  %v174 = vld [vmem:[%s1 + $0x490] sm:$0xff]
  %v175 = vld [vmem:[%s1 + $0x498] sm:$0xff]
  %v176 = vld [vmem:[%s1 + $0x4a0] sm:$0xff]
  %v177 = vld [vmem:[%s1 + $0x4a8] sm:$0xff]
  %v178 = vld [vmem:[%s1 + $0x4b0] sm:$0xff]
  %v179 = vld [vmem:[%s1 + $0x4b8] sm:$0xff]
  %v180 = vld [vmem:[%s1 + $0x4c0] sm:$0xff]
  %v181 = vld [vmem:[%s1 + $0x4c8] sm:$0xff]
  %v182 = vld [vmem:[%s1 + $0x4d0] sm:$0xff]
  %v183 = vld [vmem:[%s1 + $0x4d8] sm:$0xff]
  %v184 = vld [vmem:[%s1 + $0x4e0] sm:$0xff]
  %v185 = vld [vmem:[%s1 + $0x4e8] sm:$0xff]
  %v186 = vld [vmem:[%s1 + $0x4f0] sm:$0xff]
  %v187 = vld [vmem:[%s1 + $0x4f8] sm:$0xff]
  %v188 = vld [vmem:[%s1 + $0x500] sm:$0xff]
  %v189 = vld [vmem:[%s1 + $0x508] sm:$0xff]
  %v190 = vld [vmem:[%s1 + $0x510] sm:$0xff]
  %v191 = vld [vmem:[%s1 + $0x518] sm:$0xff]
  %v192 = vld [vmem:[%s1 + $0x520] sm:$0xff]
  %v193 = vld [vmem:[%s1 + $0x528] sm:$0xff]
  %v194 = vld [vmem:[%s1 + $0x530] sm:$0xff]
  %v195 = vld [vmem:[%s1 + $0x538] sm:$0xff]
  %v196 = vld [vmem:[%s1 + $0x540] sm:$0xff]
  %v197 = vld [vmem:[%s1 + $0x548] sm:$0xff]
  %v198 = vld [vmem:[%s1 + $0x550] sm:$0xff]
  %v199 = vld [vmem:[%s1 + $0x558] sm:$0xff]
  %v200 = vld [vmem:[%s1 + $0x560] sm:$0xff]
  %v201 = vld [vmem:[%s1 + $0x568] sm:$0xff]
  %v202 = vld [vmem:[%s1 + $0x570] sm:$0xff]
  %v203 = vld [vmem:[%s1 + $0x578] sm:$0xff]
  %v204 = vld [vmem:[%s1 + $0x580] sm:$0xff]
  %v205 = vld [vmem:[%s1 + $0x588] sm:$0xff]
  %v206 = vld [vmem:[%s1 + $0x590] sm:$0xff]
  %v207 = vld [vmem:[%s1 + $0x598] sm:$0xff]
  %v208 = vld [vmem:[%s1 + $0x5a0] sm:$0xff]
  %v209 = vld [vmem:[%s1 + $0x5a8] sm:$0xff]
  %v210 = vld [vmem:[%s1 + $0x5b0] sm:$0xff]
  %v211 = vld [vmem:[%s1 + $0x5b8] sm:$0xff]
  %v212 = vld [vmem:[%s1 + $0x5c0] sm:$0xff]
  %v213 = vld [vmem:[%s1 + $0x5c8] sm:$0xff]
  %v214 = vld [vmem:[%s1 + $0x5d0] sm:$0xff]
  %v215 = vld [vmem:[%s1 + $0x5d8] sm:$0xff]
  %v216 = vld [vmem:[%s1 + $0x5e0] sm:$0xff]
  %v217 = vld [vmem:[%s1 + $0x5e8] sm:$0xff]
  %v218 = vld [vmem:[%s1 + $0x5f0] sm:$0xff]
  %v219 = vld [vmem:[%s1 + $0x5f8] sm:$0xff]
  %v220 = vld [vmem:[%s1 + $0x600] sm:$0xff]
  %v221 = vld [vmem:[%s1 + $0x608] sm:$0xff]
  %v222 = vld [vmem:[%s1 + $0x610] sm:$0xff]
  %v223 = vld [vmem:[%s1 + $0x618] sm:$0xff]
  %v224 = vld [vmem:[%s1 + $0x620] sm:$0xff]
  %v225 = vld [vmem:[%s1 + $0x628] sm:$0xff]
  %v226 = vld [vmem:[%s1 + $0x630] sm:$0xff]
  %v227 = vld [vmem:[%s1 + $0x638] sm:$0xff]
  %v228 = vld [vmem:[%s1 + $0x640] sm:$0xff]
  %v229 = vld [vmem:[%s1 + $0x648] sm:$0xff]
  %v230 = vld [vmem:[%s1 + $0x650] sm:$0xff]
  %v231 = vld [vmem:[%s1 + $0x658] sm:$0xff]
  %v232 = vld [vmem:[%s1 + $0x660] sm:$0xff]
  %v233 = vld [vmem:[%s1 + $0x668] sm:$0xff]
  %v234 = vld [vmem:[%s1 + $0x670] sm:$0xff]
  %v235 = vld [vmem:[%s1 + $0x678] sm:$0xff]
  %v236 = vld [vmem:[%s1 + $0x680] sm:$0xff]
  %v237 = vld [vmem:[%s1 + $0x688] sm:$0xff]
  %v238 = vld [vmem:[%s1 + $0x690] sm:$0xff]
  %v239 = vld [vmem:[%s1 + $0x698] sm:$0xff]
  %v240 = vld [vmem:[%s1 + $0x6a0] sm:$0xff]
  %v241 = vld [vmem:[%s1 + $0x6a8] sm:$0xff]
  %v242 = vld [vmem:[%s1 + $0x6b0] sm:$0xff]
  %v243 = vld [vmem:[%s1 + $0x6b8] sm:$0xff]
  %v244 = vld [vmem:[%s1 + $0x6c0] sm:$0xff]
  %v245 = vld [vmem:[%s1 + $0x6c8] sm:$0xff]
  %v246 = vld [vmem:[%s1 + $0x6d0] sm:$0xff]
  %v247 = vld [vmem:[%s1 + $0x6d8] sm:$0xff]
  %v248 = vld [vmem:[%s1 + $0x6e0] sm:$0xff]
  %v249 = vld [vmem:[%s1 + $0x6e8] sm:$0xff]
  %v250 = vld [vmem:[%s1 + $0x6f0] sm:$0xff]
  %v251 = vld [vmem:[%s1 + $0x6f8] sm:$0xff]
  %v252 = vld [vmem:[%s1 + $0x700] sm:$0xff]
  %v253 = vld [vmem:[%s1 + $0x708] sm:$0xff]
  %v254 = vld [vmem:[%s1 + $0x710] sm:$0xff]
  %v255 = vld [vmem:[%s1 + $0x718] sm:$0xff]
  %v256 = vld [vmem:[%s1 + $0x720] sm:$0xff]
  %v257 = vld [vmem:[%s1 + $0x728] sm:$0xff]
  %v258 = vld [vmem:[%s1 + $0x730] sm:$0xff]
  %v259 = vld [vmem:[%s1 + $0x738] sm:$0xff]
  %v260 = vld [vmem:[%s1 + $0x740] sm:$0xff]
  %v261 = vld [vmem:[%s1 + $0x748] sm:$0xff]
  %v262 = vld [vmem:[%s1 + $0x750] sm:$0xff]
  %v263 = vld [vmem:[%s1 + $0x758] sm:$0xff]
  %v264 = vld [vmem:[%s1 + $0x760] sm:$0xff]
  %v265 = vld [vmem:[%s1 + $0x768] sm:$0xff]
  %v266 = vld [vmem:[%s1 + $0x770] sm:$0xff]
  %v267 = vld [vmem:[%s1 + $0x778] sm:$0xff]
  %v268 = vld [vmem:[%s1 + $0x780] sm:$0xff]
  %v269 = vld [vmem:[%s1 + $0x788] sm:$0xff]
  %v270 = vld [vmem:[%s1 + $0x790] sm:$0xff]
  %v271 = vld [vmem:[%s1 + $0x798] sm:$0xff]
  %v272 = vld [vmem:[%s1 + $0x7a0] sm:$0xff]
  %v273 = vld [vmem:[%s1 + $0x7a8] sm:$0xff]
  %v274 = vld [vmem:[%s1 + $0x7b0] sm:$0xff]
  %v275 = vld [vmem:[%s1 + $0x7b8] sm:$0xff]
  %v276 = vld [vmem:[%s1 + $0x7c0] sm:$0xff]
  %v277 = vld [vmem:[%s1 + $0x7c8] sm:$0xff]
  %v278 = vld [vmem:[%s1 + $0x7d0] sm:$0xff]
  %v279 = vld [vmem:[%s1 + $0x7d8] sm:$0xff]
  %v280 = vld [vmem:[%s1 + $0x7e0] sm:$0xff]
  %v281 = vld [vmem:[%s1 + $0x7e8] sm:$0xff]
  %v282 = vld [vmem:[%s1 + $0x7f0] sm:$0xff]
  %v283 = vld [vmem:[%s1 + $0x7f8] sm:$0xff]
  %v288 = vunpack.c.l.b16 %v24
  %v289 = vunpack.c.h.b16 %v24
  %v290 = vunpack.c.l.b16 %v25
  %v291 = vunpack.c.h.b16 %v25
  %v292 = vunpack.c.l.b16 %v26
  %v293 = vunpack.c.h.b16 %v26
  %v294 = vunpack.c.l.b16 %v27
  %v295 = vunpack.c.h.b16 %v27
  %v296 = vpack.c.b16 %v288, %v288
  %v297 = vpack.c.b16 %v289, %v289
  %v298 = vpack.c.b16 %v290, %v290
  %v299 = vpack.c.b16 %v291, %v291
  %v300 = vpack.c.b16 %v292, %v292
  %v301 = vpack.c.b16 %v293, %v293
  %v302 = vpack.c.b16 %v294, %v294
  %v303 = vpack.c.b16 %v295, %v295
  %v568 = vunpack.c.l.b16 %v28
  %v569 = vunpack.c.h.b16 %v28
  %v570 = vunpack.c.l.b16 %v29
  %v571 = vunpack.c.h.b16 %v29
  %v572 = vunpack.c.l.b16 %v30
  %v573 = vunpack.c.h.b16 %v30
  %v574 = vunpack.c.l.b16 %v31
  %v575 = vunpack.c.h.b16 %v31
  %v576 = vunpack.c.l.b16 %v32
  %v577 = vunpack.c.h.b16 %v32
  %v578 = vunpack.c.l.b16 %v33
  %v579 = vunpack.c.h.b16 %v33
  %v580 = vunpack.c.l.b16 %v34
  %v581 = vunpack.c.h.b16 %v34
  %v582 = vunpack.c.l.b16 %v35
  %v583 = vunpack.c.h.b16 %v35
  %v584 = vunpack.c.l.b16 %v36
  %v585 = vunpack.c.h.b16 %v36
  %v586 = vunpack.c.l.b16 %v37
  %v587 = vunpack.c.h.b16 %v37
  %v588 = vunpack.c.l.b16 %v38
  %v589 = vunpack.c.h.b16 %v38
  %v590 = vunpack.c.l.b16 %v39
  %v591 = vunpack.c.h.b16 %v39
  %v592 = vunpack.c.l.b16 %v40
  %v593 = vunpack.c.h.b16 %v40
  %v594 = vunpack.c.l.b16 %v41
  %v595 = vunpack.c.h.b16 %v41
  %v596 = vunpack.c.l.b16 %v42
  %v597 = vunpack.c.h.b16 %v42
  %v598 = vunpack.c.l.b16 %v43
  %v599 = vunpack.c.h.b16 %v43
  %v600 = vunpack.c.l.b16 %v44
  %v601 = vunpack.c.h.b16 %v44
  %v602 = vunpack.c.l.b16 %v45
  %v603 = vunpack.c.h.b16 %v45
  %v604 = vunpack.c.l.b16 %v46
  %v605 = vunpack.c.h.b16 %v46
  %v606 = vunpack.c.l.b16 %v47
  %v607 = vunpack.c.h.b16 %v47
  %v608 = vunpack.c.l.b16 %v48
  %v609 = vunpack.c.h.b16 %v48
  %v610 = vunpack.c.l.b16 %v49
  %v611 = vunpack.c.h.b16 %v49
  %v612 = vunpack.c.l.b16 %v50
  %v613 = vunpack.c.h.b16 %v50
  %v614 = vunpack.c.l.b16 %v51
  %v615 = vunpack.c.h.b16 %v51
  %v616 = vunpack.c.l.b16 %v52
  %v617 = vunpack.c.h.b16 %v52
  %v618 = vunpack.c.l.b16 %v53
  %v619 = vunpack.c.h.b16 %v53
  %v620 = vunpack.c.l.b16 %v54
  %v621 = vunpack.c.h.b16 %v54
  %v622 = vunpack.c.l.b16 %v55
  %v623 = vunpack.c.h.b16 %v55
  %v624 = vunpack.c.l.b16 %v56
  %v625 = vunpack.c.h.b16 %v56
  %v626 = vunpack.c.l.b16 %v57
  %v627 = vunpack.c.h.b16 %v57
  %v628 = vunpack.c.l.b16 %v58
  %v629 = vunpack.c.h.b16 %v58
  %v630 = vunpack.c.l.b16 %v59
  %v631 = vunpack.c.h.b16 %v59
  %v632 = vunpack.c.l.b16 %v60
  %v633 = vunpack.c.h.b16 %v60
  %v634 = vunpack.c.l.b16 %v61
  %v635 = vunpack.c.h.b16 %v61
  %v636 = vunpack.c.l.b16 %v62
  %v637 = vunpack.c.h.b16 %v62
  %v638 = vunpack.c.l.b16 %v63
  %v639 = vunpack.c.h.b16 %v63
  %v640 = vunpack.c.l.b16 %v64
  %v641 = vunpack.c.h.b16 %v64
  %v642 = vunpack.c.l.b16 %v65
  %v643 = vunpack.c.h.b16 %v65
  %v644 = vunpack.c.l.b16 %v66
  %v645 = vunpack.c.h.b16 %v66
  %v646 = vunpack.c.l.b16 %v67
  %v647 = vunpack.c.h.b16 %v67
  %v648 = vunpack.c.l.b16 %v68
  %v649 = vunpack.c.h.b16 %v68
  %v650 = vunpack.c.l.b16 %v69
  %v651 = vunpack.c.h.b16 %v69
  %v652 = vunpack.c.l.b16 %v70
  %v653 = vunpack.c.h.b16 %v70
  %v654 = vunpack.c.l.b16 %v71
  %v655 = vunpack.c.h.b16 %v71
  %v656 = vunpack.c.l.b16 %v72
  %v657 = vunpack.c.h.b16 %v72
  %v658 = vunpack.c.l.b16 %v73
  %v659 = vunpack.c.h.b16 %v73
  %v660 = vunpack.c.l.b16 %v74
  %v661 = vunpack.c.h.b16 %v74
  %v662 = vunpack.c.l.b16 %v75
  %v663 = vunpack.c.h.b16 %v75
  %v664 = vunpack.c.l.b16 %v76
  %v665 = vunpack.c.h.b16 %v76
  %v666 = vunpack.c.l.b16 %v77
  %v667 = vunpack.c.h.b16 %v77
  %v668 = vunpack.c.l.b16 %v78
  %v669 = vunpack.c.h.b16 %v78
  %v670 = vunpack.c.l.b16 %v79
  %v671 = vunpack.c.h.b16 %v79
  %v672 = vunpack.c.l.b16 %v80
  %v673 = vunpack.c.h.b16 %v80
  %v674 = vunpack.c.l.b16 %v81
  %v675 = vunpack.c.h.b16 %v81
  %v676 = vunpack.c.l.b16 %v82
  %v677 = vunpack.c.h.b16 %v82
  %v678 = vunpack.c.l.b16 %v83
  %v679 = vunpack.c.h.b16 %v83
  %v680 = vunpack.c.l.b16 %v84
  %v681 = vunpack.c.h.b16 %v84
  %v682 = vunpack.c.l.b16 %v85
  %v683 = vunpack.c.h.b16 %v85
  %v684 = vunpack.c.l.b16 %v86
  %v685 = vunpack.c.h.b16 %v86
  %v686 = vunpack.c.l.b16 %v87
  %v687 = vunpack.c.h.b16 %v87
  %v688 = vunpack.c.l.b16 %v88
  %v689 = vunpack.c.h.b16 %v88
  %v690 = vunpack.c.l.b16 %v89
  %v691 = vunpack.c.h.b16 %v89
  %v692 = vunpack.c.l.b16 %v90
  %v693 = vunpack.c.h.b16 %v90
  %v694 = vunpack.c.l.b16 %v91
  %v695 = vunpack.c.h.b16 %v91
  %v696 = vunpack.c.l.b16 %v92
  %v697 = vunpack.c.h.b16 %v92
  %v698 = vunpack.c.l.b16 %v93
  %v699 = vunpack.c.h.b16 %v93
  %v700 = vunpack.c.l.b16 %v94
  %v701 = vunpack.c.h.b16 %v94
  %v702 = vunpack.c.l.b16 %v95
  %v703 = vunpack.c.h.b16 %v95
  %v704 = vunpack.c.l.b16 %v96
  %v705 = vunpack.c.h.b16 %v96
  %v706 = vunpack.c.l.b16 %v97
  %v707 = vunpack.c.h.b16 %v97
  %v708 = vunpack.c.l.b16 %v98
  %v709 = vunpack.c.h.b16 %v98
  %v710 = vunpack.c.l.b16 %v99
  %v711 = vunpack.c.h.b16 %v99
  %v712 = vunpack.c.l.b16 %v100
  %v713 = vunpack.c.h.b16 %v100
  %v714 = vunpack.c.l.b16 %v101
  %v715 = vunpack.c.h.b16 %v101
  %v716 = vunpack.c.l.b16 %v102
  %v717 = vunpack.c.h.b16 %v102
  %v718 = vunpack.c.l.b16 %v103
  %v719 = vunpack.c.h.b16 %v103
  %v720 = vunpack.c.l.b16 %v104
  %v721 = vunpack.c.h.b16 %v104
  %v722 = vunpack.c.l.b16 %v105
  %v723 = vunpack.c.h.b16 %v105
  %v724 = vunpack.c.l.b16 %v106
  %v725 = vunpack.c.h.b16 %v106
  %v726 = vunpack.c.l.b16 %v107
  %v727 = vunpack.c.h.b16 %v107
  %v728 = vunpack.c.l.b16 %v108
  %v729 = vunpack.c.h.b16 %v108
  %v730 = vunpack.c.l.b16 %v109
  %v731 = vunpack.c.h.b16 %v109
  %v732 = vunpack.c.l.b16 %v110
  %v733 = vunpack.c.h.b16 %v110
  %v734 = vunpack.c.l.b16 %v111
  %v735 = vunpack.c.h.b16 %v111
  %v736 = vunpack.c.l.b16 %v112
  %v737 = vunpack.c.h.b16 %v112
  %v738 = vunpack.c.l.b16 %v113
  %v739 = vunpack.c.h.b16 %v113
  %v740 = vunpack.c.l.b16 %v114
  %v741 = vunpack.c.h.b16 %v114
  %v742 = vunpack.c.l.b16 %v115
  %v743 = vunpack.c.h.b16 %v115
  %v744 = vunpack.c.l.b16 %v116
  %v745 = vunpack.c.h.b16 %v116
  %v746 = vunpack.c.l.b16 %v117
  %v747 = vunpack.c.h.b16 %v117
  %v748 = vunpack.c.l.b16 %v118
  %v749 = vunpack.c.h.b16 %v118
  %v750 = vunpack.c.l.b16 %v119
  %v751 = vunpack.c.h.b16 %v119
  %v752 = vunpack.c.l.b16 %v120
  %v753 = vunpack.c.h.b16 %v120
  %v754 = vunpack.c.l.b16 %v121
  %v755 = vunpack.c.h.b16 %v121
  %v756 = vunpack.c.l.b16 %v122
  %v757 = vunpack.c.h.b16 %v122
  %v758 = vunpack.c.l.b16 %v123
  %v759 = vunpack.c.h.b16 %v123
  %v760 = vunpack.c.l.b16 %v124
  %v761 = vunpack.c.h.b16 %v124
  %v762 = vunpack.c.l.b16 %v125
  %v763 = vunpack.c.h.b16 %v125
  %v764 = vunpack.c.l.b16 %v126
  %v765 = vunpack.c.h.b16 %v126
  %v766 = vunpack.c.l.b16 %v127
  %v767 = vunpack.c.h.b16 %v127
  %v768 = vunpack.c.l.b16 %v128
  %v769 = vunpack.c.h.b16 %v128
  %v770 = vunpack.c.l.b16 %v129
  %v771 = vunpack.c.h.b16 %v129
  %v772 = vunpack.c.l.b16 %v130
  %v773 = vunpack.c.h.b16 %v130
  %v774 = vunpack.c.l.b16 %v131
  %v775 = vunpack.c.h.b16 %v131
  %v776 = vunpack.c.l.b16 %v132
  %v777 = vunpack.c.h.b16 %v132
  %v778 = vunpack.c.l.b16 %v133
  %v779 = vunpack.c.h.b16 %v133
  %v780 = vunpack.c.l.b16 %v134
  %v781 = vunpack.c.h.b16 %v134
  %v782 = vunpack.c.l.b16 %v135
  %v783 = vunpack.c.h.b16 %v135
  %v784 = vunpack.c.l.b16 %v136
  %v785 = vunpack.c.h.b16 %v136
  %v786 = vunpack.c.l.b16 %v137
  %v787 = vunpack.c.h.b16 %v137
  %v788 = vunpack.c.l.b16 %v138
  %v789 = vunpack.c.h.b16 %v138
  %v790 = vunpack.c.l.b16 %v139
  %v791 = vunpack.c.h.b16 %v139
  %v792 = vunpack.c.l.b16 %v140
  %v793 = vunpack.c.h.b16 %v140
  %v794 = vunpack.c.l.b16 %v141
  %v795 = vunpack.c.h.b16 %v141
  %v796 = vunpack.c.l.b16 %v142
  %v797 = vunpack.c.h.b16 %v142
  %v798 = vunpack.c.l.b16 %v143
  %v799 = vunpack.c.h.b16 %v143
  %v800 = vunpack.c.l.b16 %v144
  %v801 = vunpack.c.h.b16 %v144
  %v802 = vunpack.c.l.b16 %v145
  %v803 = vunpack.c.h.b16 %v145
  %v804 = vunpack.c.l.b16 %v146
  %v805 = vunpack.c.h.b16 %v146
  %v806 = vunpack.c.l.b16 %v147
  %v807 = vunpack.c.h.b16 %v147
  %v808 = vunpack.c.l.b16 %v148
  %v809 = vunpack.c.h.b16 %v148
  %v810 = vunpack.c.l.b16 %v149
  %v811 = vunpack.c.h.b16 %v149
  %v812 = vunpack.c.l.b16 %v150
  %v813 = vunpack.c.h.b16 %v150
  %v814 = vunpack.c.l.b16 %v151
  %v815 = vunpack.c.h.b16 %v151
  %v816 = vunpack.c.l.b16 %v152
  %v817 = vunpack.c.h.b16 %v152
  %v818 = vunpack.c.l.b16 %v153
  %v819 = vunpack.c.h.b16 %v153
  %v820 = vunpack.c.l.b16 %v154
  %v821 = vunpack.c.h.b16 %v154
  %v822 = vunpack.c.l.b16 %v155
  %v823 = vunpack.c.h.b16 %v155
  %v824 = vunpack.c.l.b16 %v156
  %v825 = vunpack.c.h.b16 %v156
  %v826 = vunpack.c.l.b16 %v157
  %v827 = vunpack.c.h.b16 %v157
  %v828 = vunpack.c.l.b16 %v158
  %v829 = vunpack.c.h.b16 %v158
  %v830 = vunpack.c.l.b16 %v159
  %v831 = vunpack.c.h.b16 %v159
  %v832 = vunpack.c.l.b16 %v160
  %v833 = vunpack.c.h.b16 %v160
  %v834 = vunpack.c.l.b16 %v161
  %v835 = vunpack.c.h.b16 %v161
  %v836 = vunpack.c.l.b16 %v162
  %v837 = vunpack.c.h.b16 %v162
  %v838 = vunpack.c.l.b16 %v163
  %v839 = vunpack.c.h.b16 %v163
  %v840 = vunpack.c.l.b16 %v164
  %v841 = vunpack.c.h.b16 %v164
  %v842 = vunpack.c.l.b16 %v165
  %v843 = vunpack.c.h.b16 %v165
  %v844 = vunpack.c.l.b16 %v166
  %v845 = vunpack.c.h.b16 %v166
  %v846 = vunpack.c.l.b16 %v167
  %v847 = vunpack.c.h.b16 %v167
  %v848 = vunpack.c.l.b16 %v168
  %v849 = vunpack.c.h.b16 %v168
  %v850 = vunpack.c.l.b16 %v169
  %v851 = vunpack.c.h.b16 %v169
  %v852 = vunpack.c.l.b16 %v170
  %v853 = vunpack.c.h.b16 %v170
  %v854 = vunpack.c.l.b16 %v171
  %v855 = vunpack.c.h.b16 %v171
  %v856 = vunpack.c.l.b16 %v172
  %v857 = vunpack.c.h.b16 %v172
  %v858 = vunpack.c.l.b16 %v173
  %v859 = vunpack.c.h.b16 %v173
  %v860 = vunpack.c.l.b16 %v174
  %v861 = vunpack.c.h.b16 %v174
  %v862 = vunpack.c.l.b16 %v175
  %v863 = vunpack.c.h.b16 %v175
  %v864 = vunpack.c.l.b16 %v176
  %v865 = vunpack.c.h.b16 %v176
  %v866 = vunpack.c.l.b16 %v177
  %v867 = vunpack.c.h.b16 %v177
  %v868 = vunpack.c.l.b16 %v178
  %v869 = vunpack.c.h.b16 %v178
  %v870 = vunpack.c.l.b16 %v179
  %v871 = vunpack.c.h.b16 %v179
  %v872 = vunpack.c.l.b16 %v180
  %v873 = vunpack.c.h.b16 %v180
  %v874 = vunpack.c.l.b16 %v181
  %v875 = vunpack.c.h.b16 %v181
  %v876 = vunpack.c.l.b16 %v182
  %v877 = vunpack.c.h.b16 %v182
  %v878 = vunpack.c.l.b16 %v183
  %v879 = vunpack.c.h.b16 %v183
  %v880 = vunpack.c.l.b16 %v184
  %v881 = vunpack.c.h.b16 %v184
  %v882 = vunpack.c.l.b16 %v185
  %v883 = vunpack.c.h.b16 %v185
  %v884 = vunpack.c.l.b16 %v186
  %v885 = vunpack.c.h.b16 %v186
  %v886 = vunpack.c.l.b16 %v187
  %v887 = vunpack.c.h.b16 %v187
  %v888 = vunpack.c.l.b16 %v188
  %v889 = vunpack.c.h.b16 %v188
  %v890 = vunpack.c.l.b16 %v189
  %v891 = vunpack.c.h.b16 %v189
  %v892 = vunpack.c.l.b16 %v190
  %v893 = vunpack.c.h.b16 %v190
  %v894 = vunpack.c.l.b16 %v191
  %v895 = vunpack.c.h.b16 %v191
  %v896 = vunpack.c.l.b16 %v192
  %v897 = vunpack.c.h.b16 %v192
  %v898 = vunpack.c.l.b16 %v193
  %v899 = vunpack.c.h.b16 %v193
  %v900 = vunpack.c.l.b16 %v194
  %v901 = vunpack.c.h.b16 %v194
  %v902 = vunpack.c.l.b16 %v195
  %v903 = vunpack.c.h.b16 %v195
  %v904 = vunpack.c.l.b16 %v196
  %v905 = vunpack.c.h.b16 %v196
  %v906 = vunpack.c.l.b16 %v197
  %v907 = vunpack.c.h.b16 %v197
  %v908 = vunpack.c.l.b16 %v198
  %v909 = vunpack.c.h.b16 %v198
  %v910 = vunpack.c.l.b16 %v199
  %v911 = vunpack.c.h.b16 %v199
  %v912 = vunpack.c.l.b16 %v200
  %v913 = vunpack.c.h.b16 %v200
  %v914 = vunpack.c.l.b16 %v201
  %v915 = vunpack.c.h.b16 %v201
  %v916 = vunpack.c.l.b16 %v202
  %v917 = vunpack.c.h.b16 %v202
  %v918 = vunpack.c.l.b16 %v203
  %v919 = vunpack.c.h.b16 %v203
  %v920 = vunpack.c.l.b16 %v204
  %v921 = vunpack.c.h.b16 %v204
  %v922 = vunpack.c.l.b16 %v205
  %v923 = vunpack.c.h.b16 %v205
  %v924 = vunpack.c.l.b16 %v206
  %v925 = vunpack.c.h.b16 %v206
  %v926 = vunpack.c.l.b16 %v207
  %v927 = vunpack.c.h.b16 %v207
  %v928 = vunpack.c.l.b16 %v208
  %v929 = vunpack.c.h.b16 %v208
  %v930 = vunpack.c.l.b16 %v209
  %v931 = vunpack.c.h.b16 %v209
  %v932 = vunpack.c.l.b16 %v210
  %v933 = vunpack.c.h.b16 %v210
  %v934 = vunpack.c.l.b16 %v211
  %v935 = vunpack.c.h.b16 %v211
  %v936 = vunpack.c.l.b16 %v212
  %v937 = vunpack.c.h.b16 %v212
  %v938 = vunpack.c.l.b16 %v213
  %v939 = vunpack.c.h.b16 %v213
  %v940 = vunpack.c.l.b16 %v214
  %v941 = vunpack.c.h.b16 %v214
  %v942 = vunpack.c.l.b16 %v215
  %v943 = vunpack.c.h.b16 %v215
  %v944 = vunpack.c.l.b16 %v216
  %v945 = vunpack.c.h.b16 %v216
  %v946 = vunpack.c.l.b16 %v217
  %v947 = vunpack.c.h.b16 %v217
  %v948 = vunpack.c.l.b16 %v218
  %v949 = vunpack.c.h.b16 %v218
  %v950 = vunpack.c.l.b16 %v219
  %v951 = vunpack.c.h.b16 %v219
  %v952 = vunpack.c.l.b16 %v220
  %v953 = vunpack.c.h.b16 %v220
  %v954 = vunpack.c.l.b16 %v221
  %v955 = vunpack.c.h.b16 %v221
  %v956 = vunpack.c.l.b16 %v222
  %v957 = vunpack.c.h.b16 %v222
  %v958 = vunpack.c.l.b16 %v223
  %v959 = vunpack.c.h.b16 %v223
  %v960 = vunpack.c.l.b16 %v224
  %v961 = vunpack.c.h.b16 %v224
  %v962 = vunpack.c.l.b16 %v225
  %v963 = vunpack.c.h.b16 %v225
  %v964 = vunpack.c.l.b16 %v226
  %v965 = vunpack.c.h.b16 %v226
  %v966 = vunpack.c.l.b16 %v227
  %v967 = vunpack.c.h.b16 %v227
  %v968 = vunpack.c.l.b16 %v228
  %v969 = vunpack.c.h.b16 %v228
  %v970 = vunpack.c.l.b16 %v229
  %v971 = vunpack.c.h.b16 %v229
  %v972 = vunpack.c.l.b16 %v230
  %v973 = vunpack.c.h.b16 %v230
  %v974 = vunpack.c.l.b16 %v231
  %v975 = vunpack.c.h.b16 %v231
  %v976 = vunpack.c.l.b16 %v232
  %v977 = vunpack.c.h.b16 %v232
  %v978 = vunpack.c.l.b16 %v233
  %v979 = vunpack.c.h.b16 %v233
  %v980 = vunpack.c.l.b16 %v234
  %v981 = vunpack.c.h.b16 %v234
  %v982 = vunpack.c.l.b16 %v235
  %v983 = vunpack.c.h.b16 %v235
  %v984 = vunpack.c.l.b16 %v236
  %v985 = vunpack.c.h.b16 %v236
  %v986 = vunpack.c.l.b16 %v237
  %v987 = vunpack.c.h.b16 %v237
  %v988 = vunpack.c.l.b16 %v238
  %v989 = vunpack.c.h.b16 %v238
  %v990 = vunpack.c.l.b16 %v239
  %v991 = vunpack.c.h.b16 %v239
  %v992 = vunpack.c.l.b16 %v240
  %v993 = vunpack.c.h.b16 %v240
  %v994 = vunpack.c.l.b16 %v241
  %v995 = vunpack.c.h.b16 %v241
  %v996 = vunpack.c.l.b16 %v242
  %v997 = vunpack.c.h.b16 %v242
  %v998 = vunpack.c.l.b16 %v243
  %v999 = vunpack.c.h.b16 %v243
  %v1000 = vunpack.c.l.b16 %v244
  %v1001 = vunpack.c.h.b16 %v244
  %v1002 = vunpack.c.l.b16 %v245
  %v1003 = vunpack.c.h.b16 %v245
  %v1004 = vunpack.c.l.b16 %v246
  %v1005 = vunpack.c.h.b16 %v246
  %v1006 = vunpack.c.l.b16 %v247
  %v1007 = vunpack.c.h.b16 %v247
  %v1008 = vunpack.c.l.b16 %v248
  %v1009 = vunpack.c.h.b16 %v248
  %v1010 = vunpack.c.l.b16 %v249
  %v1011 = vunpack.c.h.b16 %v249
  %v1012 = vunpack.c.l.b16 %v250
  %v1013 = vunpack.c.h.b16 %v250
  %v1014 = vunpack.c.l.b16 %v251
  %v1015 = vunpack.c.h.b16 %v251
  %v1016 = vunpack.c.l.b16 %v252
  %v1017 = vunpack.c.h.b16 %v252
  %v1018 = vunpack.c.l.b16 %v253
  %v1019 = vunpack.c.h.b16 %v253
  %v1020 = vunpack.c.l.b16 %v254
  %v1021 = vunpack.c.h.b16 %v254
  %v1022 = vunpack.c.l.b16 %v255
  %v1023 = vunpack.c.h.b16 %v255
  %v1024 = vunpack.c.l.b16 %v256
  %v1025 = vunpack.c.h.b16 %v256
  %v1026 = vunpack.c.l.b16 %v257
  %v1027 = vunpack.c.h.b16 %v257
  %v1028 = vunpack.c.l.b16 %v258
  %v1029 = vunpack.c.h.b16 %v258
  %v1030 = vunpack.c.l.b16 %v259
  %v1031 = vunpack.c.h.b16 %v259
  %v1032 = vunpack.c.l.b16 %v260
  %v1033 = vunpack.c.h.b16 %v260
  %v1034 = vunpack.c.l.b16 %v261
  %v1035 = vunpack.c.h.b16 %v261
  %v1036 = vunpack.c.l.b16 %v262
  %v1037 = vunpack.c.h.b16 %v262
  %v1038 = vunpack.c.l.b16 %v263
  %v1039 = vunpack.c.h.b16 %v263
  %v1040 = vunpack.c.l.b16 %v264
  %v1041 = vunpack.c.h.b16 %v264
  %v1042 = vunpack.c.l.b16 %v265
  %v1043 = vunpack.c.h.b16 %v265
  %v1044 = vunpack.c.l.b16 %v266
  %v1045 = vunpack.c.h.b16 %v266
  %v1046 = vunpack.c.l.b16 %v267
  %v1047 = vunpack.c.h.b16 %v267
  %v1048 = vunpack.c.l.b16 %v268
  %v1049 = vunpack.c.h.b16 %v268
  %v1050 = vunpack.c.l.b16 %v269
  %v1051 = vunpack.c.h.b16 %v269
  %v1052 = vunpack.c.l.b16 %v270
  %v1053 = vunpack.c.h.b16 %v270
  %v1054 = vunpack.c.l.b16 %v271
  %v1055 = vunpack.c.h.b16 %v271
  %v1056 = vunpack.c.l.b16 %v272
  %v1057 = vunpack.c.h.b16 %v272
  %v1058 = vunpack.c.l.b16 %v273
  %v1059 = vunpack.c.h.b16 %v273
  %v1060 = vunpack.c.l.b16 %v274
  %v1061 = vunpack.c.h.b16 %v274
  %v1062 = vunpack.c.l.b16 %v275
  %v1063 = vunpack.c.h.b16 %v275
  %v1064 = vunpack.c.l.b16 %v276
  %v1065 = vunpack.c.h.b16 %v276
  %v1066 = vunpack.c.l.b16 %v277
  %v1067 = vunpack.c.h.b16 %v277
  %v1068 = vunpack.c.l.b16 %v278
  %v1069 = vunpack.c.h.b16 %v278
  %v1070 = vunpack.c.l.b16 %v279
  %v1071 = vunpack.c.h.b16 %v279
  %v1072 = vunpack.c.l.b16 %v280
  %v1073 = vunpack.c.h.b16 %v280
  %v1074 = vunpack.c.l.b16 %v281
  %v1075 = vunpack.c.h.b16 %v281
  %v1076 = vunpack.c.l.b16 %v282
  %v1077 = vunpack.c.h.b16 %v282
  %v1078 = vunpack.c.l.b16 %v283
  %v1079 = vunpack.c.h.b16 %v283
  %v1080 = vpack.c.b16 %v572, %v568
  %v1081 = vpack.c.b16 %v573, %v569
  %v1082 = vpack.c.b16 %v574, %v570
  %v1083 = vpack.c.b16 %v575, %v571
  %v1084 = vpack.c.b16 %v580, %v576
  %v1085 = vpack.c.b16 %v581, %v577
  %v1086 = vpack.c.b16 %v582, %v578
  %v1087 = vpack.c.b16 %v583, %v579
  %v1088 = vpack.c.b16 %v588, %v584
  %v1089 = vpack.c.b16 %v589, %v585
  %v1090 = vpack.c.b16 %v590, %v586
  %v1091 = vpack.c.b16 %v591, %v587
  %v1092 = vpack.c.b16 %v596, %v592
  %v1093 = vpack.c.b16 %v597, %v593
  %v1094 = vpack.c.b16 %v598, %v594
  %v1095 = vpack.c.b16 %v599, %v595
  %v1096 = vpack.c.b16 %v604, %v600
  %v1097 = vpack.c.b16 %v605, %v601
  %v1098 = vpack.c.b16 %v606, %v602
  %v1099 = vpack.c.b16 %v607, %v603
  %v1100 = vpack.c.b16 %v612, %v608
  %v1101 = vpack.c.b16 %v613, %v609
  %v1102 = vpack.c.b16 %v614, %v610
  %v1103 = vpack.c.b16 %v615, %v611
  %v1104 = vpack.c.b16 %v620, %v616
  %v1105 = vpack.c.b16 %v621, %v617
  %v1106 = vpack.c.b16 %v622, %v618
  %v1107 = vpack.c.b16 %v623, %v619
  %v1108 = vpack.c.b16 %v628, %v624
  %v1109 = vpack.c.b16 %v629, %v625
  %v1110 = vpack.c.b16 %v630, %v626
  %v1111 = vpack.c.b16 %v631, %v627
  %v1112 = vpack.c.b16 %v636, %v632
  %v1113 = vpack.c.b16 %v637, %v633
  %v1114 = vpack.c.b16 %v638, %v634
  %v1115 = vpack.c.b16 %v639, %v635
  %v1116 = vpack.c.b16 %v644, %v640
  %v1117 = vpack.c.b16 %v645, %v641
  %v1118 = vpack.c.b16 %v646, %v642
  %v1119 = vpack.c.b16 %v647, %v643
  %v1120 = vpack.c.b16 %v652, %v648
  %v1121 = vpack.c.b16 %v653, %v649
  %v1122 = vpack.c.b16 %v654, %v650
  %v1123 = vpack.c.b16 %v655, %v651
  %v1124 = vpack.c.b16 %v660, %v656
  %v1125 = vpack.c.b16 %v661, %v657
  %v1126 = vpack.c.b16 %v662, %v658
  %v1127 = vpack.c.b16 %v663, %v659
  %v1128 = vpack.c.b16 %v668, %v664
  %v1129 = vpack.c.b16 %v669, %v665
  %v1130 = vpack.c.b16 %v670, %v666
  %v1131 = vpack.c.b16 %v671, %v667
  %v1132 = vpack.c.b16 %v676, %v672
  %v1133 = vpack.c.b16 %v677, %v673
  %v1134 = vpack.c.b16 %v678, %v674
  %v1135 = vpack.c.b16 %v679, %v675
  %v1136 = vpack.c.b16 %v684, %v680
  %v1137 = vpack.c.b16 %v685, %v681
  %v1138 = vpack.c.b16 %v686, %v682
  %v1139 = vpack.c.b16 %v687, %v683
  %v1140 = vpack.c.b16 %v692, %v688
  %v1141 = vpack.c.b16 %v693, %v689
  %v1142 = vpack.c.b16 %v694, %v690
  %v1143 = vpack.c.b16 %v695, %v691
  %v1144 = vpack.c.b16 %v700, %v696
  %v1145 = vpack.c.b16 %v701, %v697
  %v1146 = vpack.c.b16 %v702, %v698
  %v1147 = vpack.c.b16 %v703, %v699
  %v1148 = vpack.c.b16 %v708, %v704
  %v1149 = vpack.c.b16 %v709, %v705
  %v1150 = vpack.c.b16 %v710, %v706
  %v1151 = vpack.c.b16 %v711, %v707
  %v1152 = vpack.c.b16 %v716, %v712
  %v1153 = vpack.c.b16 %v717, %v713
  %v1154 = vpack.c.b16 %v718, %v714
  %v1155 = vpack.c.b16 %v719, %v715
  %v1156 = vpack.c.b16 %v724, %v720
  %v1157 = vpack.c.b16 %v725, %v721
  %v1158 = vpack.c.b16 %v726, %v722
  %v1159 = vpack.c.b16 %v727, %v723
  %v1160 = vpack.c.b16 %v732, %v728
  %v1161 = vpack.c.b16 %v733, %v729
  %v1162 = vpack.c.b16 %v734, %v730
  %v1163 = vpack.c.b16 %v735, %v731
  %v1164 = vpack.c.b16 %v740, %v736
  %v1165 = vpack.c.b16 %v741, %v737
  %v1166 = vpack.c.b16 %v742, %v738
  %v1167 = vpack.c.b16 %v743, %v739
  %v1168 = vpack.c.b16 %v748, %v744
  %v1169 = vpack.c.b16 %v749, %v745
  %v1170 = vpack.c.b16 %v750, %v746
  %v1171 = vpack.c.b16 %v751, %v747
  %v1172 = vpack.c.b16 %v756, %v752
  %v1173 = vpack.c.b16 %v757, %v753
  %v1174 = vpack.c.b16 %v758, %v754
  %v1175 = vpack.c.b16 %v759, %v755
  %v1176 = vpack.c.b16 %v764, %v760
  %v1177 = vpack.c.b16 %v765, %v761
  %v1178 = vpack.c.b16 %v766, %v762
  %v1179 = vpack.c.b16 %v767, %v763
  %v1180 = vpack.c.b16 %v772, %v768
  %v1181 = vpack.c.b16 %v773, %v769
  %v1182 = vpack.c.b16 %v774, %v770
  %v1183 = vpack.c.b16 %v775, %v771
  %v1184 = vpack.c.b16 %v780, %v776
  %v1185 = vpack.c.b16 %v781, %v777
  %v1186 = vpack.c.b16 %v782, %v778
  %v1187 = vpack.c.b16 %v783, %v779
  %v1188 = vpack.c.b16 %v788, %v784
  %v1189 = vpack.c.b16 %v789, %v785
  %v1190 = vpack.c.b16 %v790, %v786
  %v1191 = vpack.c.b16 %v791, %v787
  %v1192 = vpack.c.b16 %v796, %v792
  %v1193 = vpack.c.b16 %v797, %v793
  %v1194 = vpack.c.b16 %v798, %v794
  %v1195 = vpack.c.b16 %v799, %v795
  %v1196 = vpack.c.b16 %v804, %v800
  %v1197 = vpack.c.b16 %v805, %v801
  %v1198 = vpack.c.b16 %v806, %v802
  %v1199 = vpack.c.b16 %v807, %v803
  %v1200 = vpack.c.b16 %v812, %v808
  %v1201 = vpack.c.b16 %v813, %v809
  %v1202 = vpack.c.b16 %v814, %v810
  %v1203 = vpack.c.b16 %v815, %v811
  %v1204 = vpack.c.b16 %v820, %v816
  %v1205 = vpack.c.b16 %v821, %v817
  %v1206 = vpack.c.b16 %v822, %v818
  %v1207 = vpack.c.b16 %v823, %v819
  %v1208 = vpack.c.b16 %v828, %v824
  %v1209 = vpack.c.b16 %v829, %v825
  %v1210 = vpack.c.b16 %v830, %v826
  %v1211 = vpack.c.b16 %v831, %v827
  %v1212 = vpack.c.b16 %v836, %v832
  %v1213 = vpack.c.b16 %v837, %v833
  %v1214 = vpack.c.b16 %v838, %v834
  %v1215 = vpack.c.b16 %v839, %v835
  %v1216 = vpack.c.b16 %v844, %v840
  %v1217 = vpack.c.b16 %v845, %v841
  %v1218 = vpack.c.b16 %v846, %v842
  %v1219 = vpack.c.b16 %v847, %v843
  %v1220 = vpack.c.b16 %v852, %v848
  %v1221 = vpack.c.b16 %v853, %v849
  %v1222 = vpack.c.b16 %v854, %v850
  %v1223 = vpack.c.b16 %v855, %v851
  %v1224 = vpack.c.b16 %v860, %v856
  %v1225 = vpack.c.b16 %v861, %v857
  %v1226 = vpack.c.b16 %v862, %v858
  %v1227 = vpack.c.b16 %v863, %v859
  %v1228 = vpack.c.b16 %v868, %v864
  %v1229 = vpack.c.b16 %v869, %v865
  %v1230 = vpack.c.b16 %v870, %v866
  %v1231 = vpack.c.b16 %v871, %v867
  %v1232 = vpack.c.b16 %v876, %v872
  %v1233 = vpack.c.b16 %v877, %v873
  %v1234 = vpack.c.b16 %v878, %v874
  %v1235 = vpack.c.b16 %v879, %v875
  %v1236 = vpack.c.b16 %v884, %v880
  %v1237 = vpack.c.b16 %v885, %v881
  %v1238 = vpack.c.b16 %v886, %v882
  %v1239 = vpack.c.b16 %v887, %v883
  %v1240 = vpack.c.b16 %v892, %v888
  %v1241 = vpack.c.b16 %v893, %v889
  %v1242 = vpack.c.b16 %v894, %v890
  %v1243 = vpack.c.b16 %v895, %v891
  %v1244 = vpack.c.b16 %v900, %v896
  %v1245 = vpack.c.b16 %v901, %v897
  %v1246 = vpack.c.b16 %v902, %v898
  %v1247 = vpack.c.b16 %v903, %v899
  %v1248 = vpack.c.b16 %v908, %v904
  %v1249 = vpack.c.b16 %v909, %v905
  %v1250 = vpack.c.b16 %v910, %v906
  %v1251 = vpack.c.b16 %v911, %v907
  %v1252 = vpack.c.b16 %v916, %v912
  %v1253 = vpack.c.b16 %v917, %v913
  %v1254 = vpack.c.b16 %v918, %v914
  %v1255 = vpack.c.b16 %v919, %v915
  %v1256 = vpack.c.b16 %v924, %v920
  %v1257 = vpack.c.b16 %v925, %v921
  %v1258 = vpack.c.b16 %v926, %v922
  %v1259 = vpack.c.b16 %v927, %v923
  %v1260 = vpack.c.b16 %v932, %v928
  %v1261 = vpack.c.b16 %v933, %v929
  %v1262 = vpack.c.b16 %v934, %v930
  %v1263 = vpack.c.b16 %v935, %v931
  %v1264 = vpack.c.b16 %v940, %v936
  %v1265 = vpack.c.b16 %v941, %v937
  %v1266 = vpack.c.b16 %v942, %v938
  %v1267 = vpack.c.b16 %v943, %v939
  %v1268 = vpack.c.b16 %v948, %v944
  %v1269 = vpack.c.b16 %v949, %v945
  %v1270 = vpack.c.b16 %v950, %v946
  %v1271 = vpack.c.b16 %v951, %v947
  %v1272 = vpack.c.b16 %v956, %v952
  %v1273 = vpack.c.b16 %v957, %v953
  %v1274 = vpack.c.b16 %v958, %v954
  %v1275 = vpack.c.b16 %v959, %v955
  %v1276 = vpack.c.b16 %v964, %v960
  %v1277 = vpack.c.b16 %v965, %v961
  %v1278 = vpack.c.b16 %v966, %v962
  %v1279 = vpack.c.b16 %v967, %v963
  %v1280 = vpack.c.b16 %v972, %v968
  %v1281 = vpack.c.b16 %v973, %v969
  %v1282 = vpack.c.b16 %v974, %v970
  %v1283 = vpack.c.b16 %v975, %v971
  %v1284 = vpack.c.b16 %v980, %v976
  %v1285 = vpack.c.b16 %v981, %v977
  %v1286 = vpack.c.b16 %v982, %v978
  %v1287 = vpack.c.b16 %v983, %v979
  %v1288 = vpack.c.b16 %v988, %v984
  %v1289 = vpack.c.b16 %v989, %v985
  %v1290 = vpack.c.b16 %v990, %v986
  %v1291 = vpack.c.b16 %v991, %v987
  %v1292 = vpack.c.b16 %v996, %v992
  %v1293 = vpack.c.b16 %v997, %v993
  %v1294 = vpack.c.b16 %v998, %v994
  %v1295 = vpack.c.b16 %v999, %v995
  %v1296 = vpack.c.b16 %v1004, %v1000
  %v1297 = vpack.c.b16 %v1005, %v1001
  %v1298 = vpack.c.b16 %v1006, %v1002
  %v1299 = vpack.c.b16 %v1007, %v1003
  %v1300 = vpack.c.b16 %v1012, %v1008
  %v1301 = vpack.c.b16 %v1013, %v1009
  %v1302 = vpack.c.b16 %v1014, %v1010
  %v1303 = vpack.c.b16 %v1015, %v1011
  %v1304 = vpack.c.b16 %v1020, %v1016
  %v1305 = vpack.c.b16 %v1021, %v1017
  %v1306 = vpack.c.b16 %v1022, %v1018
  %v1307 = vpack.c.b16 %v1023, %v1019
  %v1308 = vpack.c.b16 %v1028, %v1024
  %v1309 = vpack.c.b16 %v1029, %v1025
  %v1310 = vpack.c.b16 %v1030, %v1026
  %v1311 = vpack.c.b16 %v1031, %v1027
  %v1312 = vpack.c.b16 %v1036, %v1032
  %v1313 = vpack.c.b16 %v1037, %v1033
  %v1314 = vpack.c.b16 %v1038, %v1034
  %v1315 = vpack.c.b16 %v1039, %v1035
  %v1316 = vpack.c.b16 %v1044, %v1040
  %v1317 = vpack.c.b16 %v1045, %v1041
  %v1318 = vpack.c.b16 %v1046, %v1042
  %v1319 = vpack.c.b16 %v1047, %v1043
  %v1320 = vpack.c.b16 %v1052, %v1048
  %v1321 = vpack.c.b16 %v1053, %v1049
  %v1322 = vpack.c.b16 %v1054, %v1050
  %v1323 = vpack.c.b16 %v1055, %v1051
  %v1324 = vpack.c.b16 %v1060, %v1056
  %v1325 = vpack.c.b16 %v1061, %v1057
  %v1326 = vpack.c.b16 %v1062, %v1058
  %v1327 = vpack.c.b16 %v1063, %v1059
  %v1328 = vpack.c.b16 %v1068, %v1064
  %v1329 = vpack.c.b16 %v1069, %v1065
  %v1330 = vpack.c.b16 %v1070, %v1066
  %v1331 = vpack.c.b16 %v1071, %v1067
  %v1332 = vpack.c.b16 %v1076, %v1072
  %v1333 = vpack.c.b16 %v1077, %v1073
  %v1334 = vpack.c.b16 %v1078, %v1074
  %v1335 = vpack.c.b16 %v1079, %v1075
  %1592 = vmatprep.subr.bf16.mxu0 %v1081
  %1593 = vmatpush1.bf16.msra.mxu0 %v1080
  %1594 = vmatprep.subr.bf16.mxu0 %v1085
  %1595 = vmatpush1.bf16.msra.mxu0 %v1084
  %1596 = vmatprep.subr.bf16.mxu0 %v1089
  %1597 = vmatpush1.bf16.msra.mxu0 %v1088
  %1598 = vmatprep.subr.bf16.mxu0 %v1093
  %1599 = vmatpush1.bf16.msra.mxu0 %v1092
  %1600 = vmatprep.subr.bf16.mxu0 %v1097
  %1601 = vmatpush1.bf16.msra.mxu0 %v1096
  %1602 = vmatprep.subr.bf16.mxu0 %v1101
  %1603 = vmatpush1.bf16.msra.mxu0 %v1100
  %1604 = vmatprep.subr.bf16.mxu0 %v1105
  %1605 = vmatpush1.bf16.msra.mxu0 %v1104
  %1606 = vmatprep.subr.bf16.mxu0 %v1109
  %1607 = vmatpush1.bf16.msra.mxu0 %v1108
  %1608 = vmatprep.subr.bf16.mxu0 %v1113
  %1609 = vmatpush1.bf16.msra.mxu0 %v1112
  %1610 = vmatprep.subr.bf16.mxu0 %v1117
  %1611 = vmatpush1.bf16.msra.mxu0 %v1116
  %1612 = vmatprep.subr.bf16.mxu0 %v1121
  %1613 = vmatpush1.bf16.msra.mxu0 %v1120
  %1614 = vmatprep.subr.bf16.mxu0 %v1125
  %1615 = vmatpush1.bf16.msra.mxu0 %v1124
  %1616 = vmatprep.subr.bf16.mxu0 %v1129
  %1617 = vmatpush1.bf16.msra.mxu0 %v1128
  %1618 = vmatprep.subr.bf16.mxu0 %v1133
  %1619 = vmatpush1.bf16.msra.mxu0 %v1132
  %1620 = vmatprep.subr.bf16.mxu0 %v1137
  %1621 = vmatpush1.bf16.msra.mxu0 %v1136
  %1622 = vmatprep.subr.bf16.mxu0 %v1141
  %1623 = vmatpush1.bf16.msra.mxu0 %v1140
  %1624 = vmatprep.mubr.bf16.mxu0 %v297
  %1625 = vmatmul.mubr.bf16.gmra.mrb[0].mxu0 %v296
  %v1626 = vpop.f32.mrb[0].mxu0
  %v1627 = vadd.f32 0.0, %v1626
  %v1628 = vpop.f32.mrb[0].mxu0
  %v1629 = vadd.f32 0.0, %v1628
  %v1630 = vpop.f32.mrb[0].mxu0
  %v1631 = vpop.f32.mrb[0].mxu0
  %1632 = vdwg.mxu0
  %1633 = vmatprep.subr.bf16.mxu0 %v1145
  %1634 = vmatpush1.bf16.msra.mxu0 %v1144
  %1635 = vmatprep.subr.bf16.mxu0 %v1149
  %1636 = vmatpush1.bf16.msra.mxu0 %v1148
  %1637 = vmatprep.subr.bf16.mxu0 %v1153
  %1638 = vmatpush1.bf16.msra.mxu0 %v1152
  %1639 = vmatprep.subr.bf16.mxu0 %v1157
  %1640 = vmatpush1.bf16.msra.mxu0 %v1156
  %1641 = vmatprep.subr.bf16.mxu0 %v1161
  %1642 = vmatpush1.bf16.msra.mxu0 %v1160
  %1643 = vmatprep.subr.bf16.mxu0 %v1165
  %1644 = vmatpush1.bf16.msra.mxu0 %v1164
  %1645 = vmatprep.subr.bf16.mxu0 %v1169
  %1646 = vmatpush1.bf16.msra.mxu0 %v1168
  %1647 = vmatprep.subr.bf16.mxu0 %v1173
  %1648 = vmatpush1.bf16.msra.mxu0 %v1172
  %1649 = vmatprep.subr.bf16.mxu0 %v1177
  %1650 = vmatpush1.bf16.msra.mxu0 %v1176
  %1651 = vmatprep.subr.bf16.mxu0 %v1181
  %1652 = vmatpush1.bf16.msra.mxu0 %v1180
  %1653 = vmatprep.subr.bf16.mxu0 %v1185
  %1654 = vmatpush1.bf16.msra.mxu0 %v1184
  %1655 = vmatprep.subr.bf16.mxu0 %v1189
  %1656 = vmatpush1.bf16.msra.mxu0 %v1188
  %1657 = vmatprep.subr.bf16.mxu0 %v1193
  %1658 = vmatpush1.bf16.msra.mxu0 %v1192
  %1659 = vmatprep.subr.bf16.mxu0 %v1197
  %1660 = vmatpush1.bf16.msra.mxu0 %v1196
  %1661 = vmatprep.subr.bf16.mxu0 %v1201
  %1662 = vmatpush1.bf16.msra.mxu0 %v1200
  %1663 = vmatprep.subr.bf16.mxu0 %v1205
  %1664 = vmatpush1.bf16.msra.mxu0 %v1204
  %1665 = vmatprep.mubr.bf16.mxu0 %v299
  %1666 = vmatmul.mubr.bf16.gmra.mrb[0].mxu0 %v298
  %v1667 = vpop.f32.mrb[0].mxu0
  %v1668 = vadd.f32 %v1627, %v1667
  %v1669 = vpop.f32.mrb[0].mxu0
  %v1670 = vadd.f32 %v1629, %v1669
  %v1671 = vpop.f32.mrb[0].mxu0
  %v1672 = vpop.f32.mrb[0].mxu0
  %1673 = vdwg.mxu0
  %1674 = vmatprep.subr.bf16.mxu0 %v1209
  %1675 = vmatpush1.bf16.msra.mxu0 %v1208
  %1676 = vmatprep.subr.bf16.mxu0 %v1213
  %1677 = vmatpush1.bf16.msra.mxu0 %v1212
  %1678 = vmatprep.subr.bf16.mxu0 %v1217
  %1679 = vmatpush1.bf16.msra.mxu0 %v1216
  %1680 = vmatprep.subr.bf16.mxu0 %v1221
  %1681 = vmatpush1.bf16.msra.mxu0 %v1220
  %1682 = vmatprep.subr.bf16.mxu0 %v1225
  %1683 = vmatpush1.bf16.msra.mxu0 %v1224
  %1684 = vmatprep.subr.bf16.mxu0 %v1229
  %1685 = vmatpush1.bf16.msra.mxu0 %v1228
  %1686 = vmatprep.subr.bf16.mxu0 %v1233
  %1687 = vmatpush1.bf16.msra.mxu0 %v1232
  %1688 = vmatprep.subr.bf16.mxu0 %v1237
  %1689 = vmatpush1.bf16.msra.mxu0 %v1236
  %1690 = vmatprep.subr.bf16.mxu0 %v1241
  %1691 = vmatpush1.bf16.msra.mxu0 %v1240
  %1692 = vmatprep.subr.bf16.mxu0 %v1245
  %1693 = vmatpush1.bf16.msra.mxu0 %v1244
  %1694 = vmatprep.subr.bf16.mxu0 %v1249
  %1695 = vmatpush1.bf16.msra.mxu0 %v1248
  %1696 = vmatprep.subr.bf16.mxu0 %v1253
  %1697 = vmatpush1.bf16.msra.mxu0 %v1252
  %1698 = vmatprep.subr.bf16.mxu0 %v1257
  %1699 = vmatpush1.bf16.msra.mxu0 %v1256
  %1700 = vmatprep.subr.bf16.mxu0 %v1261
  %1701 = vmatpush1.bf16.msra.mxu0 %v1260
  %1702 = vmatprep.subr.bf16.mxu0 %v1265
  %1703 = vmatpush1.bf16.msra.mxu0 %v1264
  %1704 = vmatprep.subr.bf16.mxu0 %v1269
  %1705 = vmatpush1.bf16.msra.mxu0 %v1268
  %1706 = vmatprep.mubr.bf16.mxu0 %v301
  %1707 = vmatmul.mubr.bf16.gmra.mrb[0].mxu0 %v300
  %v1708 = vpop.f32.mrb[0].mxu0
  %v1709 = vadd.f32 %v1668, %v1708
  %v1710 = vpop.f32.mrb[0].mxu0
  %v1711 = vadd.f32 %v1670, %v1710
  %v1712 = vpop.f32.mrb[0].mxu0
  %v1713 = vpop.f32.mrb[0].mxu0
  %1714 = vdwg.mxu0
  %1715 = vmatprep.subr.bf16.mxu0 %v1273
  %1716 = vmatpush1.bf16.msra.mxu0 %v1272
  %1717 = vmatprep.subr.bf16.mxu0 %v1277
  %1718 = vmatpush1.bf16.msra.mxu0 %v1276
  %1719 = vmatprep.subr.bf16.mxu0 %v1281
  %1720 = vmatpush1.bf16.msra.mxu0 %v1280
  %1721 = vmatprep.subr.bf16.mxu0 %v1285
  %1722 = vmatpush1.bf16.msra.mxu0 %v1284
  %1723 = vmatprep.subr.bf16.mxu0 %v1289
  %1724 = vmatpush1.bf16.msra.mxu0 %v1288
  %1725 = vmatprep.subr.bf16.mxu0 %v1293
  %1726 = vmatpush1.bf16.msra.mxu0 %v1292
  %1727 = vmatprep.subr.bf16.mxu0 %v1297
  %1728 = vmatpush1.bf16.msra.mxu0 %v1296
  %1729 = vmatprep.subr.bf16.mxu0 %v1301
  %1730 = vmatpush1.bf16.msra.mxu0 %v1300
  %1731 = vmatprep.subr.bf16.mxu0 %v1305
  %1732 = vmatpush1.bf16.msra.mxu0 %v1304
  %1733 = vmatprep.subr.bf16.mxu0 %v1309
  %1734 = vmatpush1.bf16.msra.mxu0 %v1308
  %1735 = vmatprep.subr.bf16.mxu0 %v1313
  %1736 = vmatpush1.bf16.msra.mxu0 %v1312
  %1737 = vmatprep.subr.bf16.mxu0 %v1317
  %1738 = vmatpush1.bf16.msra.mxu0 %v1316
  %1739 = vmatprep.subr.bf16.mxu0 %v1321
  %1740 = vmatpush1.bf16.msra.mxu0 %v1320
  %1741 = vmatprep.subr.bf16.mxu0 %v1325
  %1742 = vmatpush1.bf16.msra.mxu0 %v1324
  %1743 = vmatprep.subr.bf16.mxu0 %v1329
  %1744 = vmatpush1.bf16.msra.mxu0 %v1328
  %1745 = vmatprep.subr.bf16.mxu0 %v1333
  %1746 = vmatpush1.bf16.msra.mxu0 %v1332
  %1747 = vmatprep.mubr.bf16.mxu0 %v303
  %1748 = vmatmul.mubr.bf16.gmra.mrb[0].mxu0 %v302
  %v1749 = vpop.f32.mrb[0].mxu0
  %v1750 = vadd.f32 %v1709, %v1749
  %v1751 = vpop.f32.mrb[0].mxu0
  %v1752 = vadd.f32 %v1711, %v1751
  %v1753 = vpop.f32.mrb[0].mxu0
  %v1754 = vpop.f32.mrb[0].mxu0
  %1755 = vdwg.mxu0
  %1756 = vmatprep.subr.bf16.mxu0 %v1083
  %1757 = vmatpush1.bf16.msra.mxu0 %v1082
  %1758 = vmatprep.subr.bf16.mxu0 %v1087
  %1759 = vmatpush1.bf16.msra.mxu0 %v1086
  %1760 = vmatprep.subr.bf16.mxu0 %v1091
  %1761 = vmatpush1.bf16.msra.mxu0 %v1090
  %1762 = vmatprep.subr.bf16.mxu0 %v1095
  %1763 = vmatpush1.bf16.msra.mxu0 %v1094
  %1764 = vmatprep.subr.bf16.mxu0 %v1099
  %1765 = vmatpush1.bf16.msra.mxu0 %v1098
  %1766 = vmatprep.subr.bf16.mxu0 %v1103
  %1767 = vmatpush1.bf16.msra.mxu0 %v1102
  %1768 = vmatprep.subr.bf16.mxu0 %v1107
  %1769 = vmatpush1.bf16.msra.mxu0 %v1106
  %1770 = vmatprep.subr.bf16.mxu0 %v1111
  %1771 = vmatpush1.bf16.msra.mxu0 %v1110
  %1772 = vmatprep.subr.bf16.mxu0 %v1115
  %1773 = vmatpush1.bf16.msra.mxu0 %v1114
  %1774 = vmatprep.subr.bf16.mxu0 %v1119
  %1775 = vmatpush1.bf16.msra.mxu0 %v1118
  %1776 = vmatprep.subr.bf16.mxu0 %v1123
  %1777 = vmatpush1.bf16.msra.mxu0 %v1122
  %1778 = vmatprep.subr.bf16.mxu0 %v1127
  %1779 = vmatpush1.bf16.msra.mxu0 %v1126
  %1780 = vmatprep.subr.bf16.mxu0 %v1131
  %1781 = vmatpush1.bf16.msra.mxu0 %v1130
  %1782 = vmatprep.subr.bf16.mxu0 %v1135
  %1783 = vmatpush1.bf16.msra.mxu0 %v1134
  %1784 = vmatprep.subr.bf16.mxu0 %v1139
  %1785 = vmatpush1.bf16.msra.mxu0 %v1138
  %1786 = vmatprep.subr.bf16.mxu0 %v1143
  %1787 = vmatpush1.bf16.msra.mxu0 %v1142
  %1788 = vmatprep.mubr.bf16.mxu0 %v297
  %1789 = vmatmul.mubr.bf16.gmra.mrb[0].mxu0 %v296
  %v1790 = vpop.f32.mrb[0].mxu0
  %v1791 = vadd.f32 0.0, %v1790
  %v1792 = vpop.f32.mrb[0].mxu0
  %v1793 = vadd.f32 0.0, %v1792
  %v1794 = vpop.f32.mrb[0].mxu0
  %v1795 = vpop.f32.mrb[0].mxu0
  %1796 = vdwg.mxu0
  %1797 = vmatprep.subr.bf16.mxu0 %v1147
  %1798 = vmatpush1.bf16.msra.mxu0 %v1146
  %1799 = vmatprep.subr.bf16.mxu0 %v1151
  %1800 = vmatpush1.bf16.msra.mxu0 %v1150
  %1801 = vmatprep.subr.bf16.mxu0 %v1155
  %1802 = vmatpush1.bf16.msra.mxu0 %v1154
  %1803 = vmatprep.subr.bf16.mxu0 %v1159
  %1804 = vmatpush1.bf16.msra.mxu0 %v1158
  %1805 = vmatprep.subr.bf16.mxu0 %v1163
  %1806 = vmatpush1.bf16.msra.mxu0 %v1162
  %1807 = vmatprep.subr.bf16.mxu0 %v1167
  %1808 = vmatpush1.bf16.msra.mxu0 %v1166
  %1809 = vmatprep.subr.bf16.mxu0 %v1171
  %1810 = vmatpush1.bf16.msra.mxu0 %v1170
  %1811 = vmatprep.subr.bf16.mxu0 %v1175
  %1812 = vmatpush1.bf16.msra.mxu0 %v1174
  %1813 = vmatprep.subr.bf16.mxu0 %v1179
  %1814 = vmatpush1.bf16.msra.mxu0 %v1178
  %1815 = vmatprep.subr.bf16.mxu0 %v1183
  %1816 = vmatpush1.bf16.msra.mxu0 %v1182
  %1817 = vmatprep.subr.bf16.mxu0 %v1187
  %1818 = vmatpush1.bf16.msra.mxu0 %v1186
  %1819 = vmatprep.subr.bf16.mxu0 %v1191
  %1820 = vmatpush1.bf16.msra.mxu0 %v1190
  %1821 = vmatprep.subr.bf16.mxu0 %v1195
  %1822 = vmatpush1.bf16.msra.mxu0 %v1194
  %1823 = vmatprep.subr.bf16.mxu0 %v1199
  %1824 = vmatpush1.bf16.msra.mxu0 %v1198
  %1825 = vmatprep.subr.bf16.mxu0 %v1203
  %1826 = vmatpush1.bf16.msra.mxu0 %v1202
  %1827 = vmatprep.subr.bf16.mxu0 %v1207
  %1828 = vmatpush1.bf16.msra.mxu0 %v1206
  %1829 = vmatprep.mubr.bf16.mxu0 %v299
  %1830 = vmatmul.mubr.bf16.gmra.mrb[0].mxu0 %v298
  %v1831 = vpop.f32.mrb[0].mxu0
  %v1832 = vadd.f32 %v1791, %v1831
  %v1833 = vpop.f32.mrb[0].mxu0
  %v1834 = vadd.f32 %v1793, %v1833
  %v1835 = vpop.f32.mrb[0].mxu0
  %v1836 = vpop.f32.mrb[0].mxu0
  %1837 = vdwg.mxu0
  %1838 = vmatprep.subr.bf16.mxu0 %v1211
  %1839 = vmatpush1.bf16.msra.mxu0 %v1210
  %1840 = vmatprep.subr.bf16.mxu0 %v1215
  %1841 = vmatpush1.bf16.msra.mxu0 %v1214
  %1842 = vmatprep.subr.bf16.mxu0 %v1219
  %1843 = vmatpush1.bf16.msra.mxu0 %v1218
  %1844 = vmatprep.subr.bf16.mxu0 %v1223
  %1845 = vmatpush1.bf16.msra.mxu0 %v1222
  %1846 = vmatprep.subr.bf16.mxu0 %v1227
  %1847 = vmatpush1.bf16.msra.mxu0 %v1226
  %1848 = vmatprep.subr.bf16.mxu0 %v1231
  %1849 = vmatpush1.bf16.msra.mxu0 %v1230
  %1850 = vmatprep.subr.bf16.mxu0 %v1235
  %1851 = vmatpush1.bf16.msra.mxu0 %v1234
  %1852 = vmatprep.subr.bf16.mxu0 %v1239
  %1853 = vmatpush1.bf16.msra.mxu0 %v1238
  %1854 = vmatprep.subr.bf16.mxu0 %v1243
  %1855 = vmatpush1.bf16.msra.mxu0 %v1242
  %1856 = vmatprep.subr.bf16.mxu0 %v1247
  %1857 = vmatpush1.bf16.msra.mxu0 %v1246
  %1858 = vmatprep.subr.bf16.mxu0 %v1251
  %1859 = vmatpush1.bf16.msra.mxu0 %v1250
  %1860 = vmatprep.subr.bf16.mxu0 %v1255
  %1861 = vmatpush1.bf16.msra.mxu0 %v1254
  %1862 = vmatprep.subr.bf16.mxu0 %v1259
  %1863 = vmatpush1.bf16.msra.mxu0 %v1258
  %1864 = vmatprep.subr.bf16.mxu0 %v1263
  %1865 = vmatpush1.bf16.msra.mxu0 %v1262
  %1866 = vmatprep.subr.bf16.mxu0 %v1267
  %1867 = vmatpush1.bf16.msra.mxu0 %v1266
  %1868 = vmatprep.subr.bf16.mxu0 %v1271
  %1869 = vmatpush1.bf16.msra.mxu0 %v1270
  %1870 = vmatprep.mubr.bf16.mxu0 %v301
  %1871 = vmatmul.mubr.bf16.gmra.mrb[0].mxu0 %v300
  %v1872 = vpop.f32.mrb[0].mxu0
  %v1873 = vadd.f32 %v1832, %v1872
  %v1874 = vpop.f32.mrb[0].mxu0
  %v1875 = vadd.f32 %v1834, %v1874
  %v1876 = vpop.f32.mrb[0].mxu0
  %v1877 = vpop.f32.mrb[0].mxu0
  %1878 = vdwg.mxu0
  %1879 = vmatprep.subr.bf16.mxu0 %v1275
  %1880 = vmatpush1.bf16.msra.mxu0 %v1274
  %1881 = vmatprep.subr.bf16.mxu0 %v1279
  %1882 = vmatpush1.bf16.msra.mxu0 %v1278
  %1883 = vmatprep.subr.bf16.mxu0 %v1283
  %1884 = vmatpush1.bf16.msra.mxu0 %v1282
  %1885 = vmatprep.subr.bf16.mxu0 %v1287
  %1886 = vmatpush1.bf16.msra.mxu0 %v1286
  %1887 = vmatprep.subr.bf16.mxu0 %v1291
  %1888 = vmatpush1.bf16.msra.mxu0 %v1290
  %1889 = vmatprep.subr.bf16.mxu0 %v1295
  %1890 = vmatpush1.bf16.msra.mxu0 %v1294
  %1891 = vmatprep.subr.bf16.mxu0 %v1299
  %1892 = vmatpush1.bf16.msra.mxu0 %v1298
  %1893 = vmatprep.subr.bf16.mxu0 %v1303
  %1894 = vmatpush1.bf16.msra.mxu0 %v1302
  %1895 = vmatprep.subr.bf16.mxu0 %v1307
  %1896 = vmatpush1.bf16.msra.mxu0 %v1306
  %1897 = vmatprep.subr.bf16.mxu0 %v1311
  %1898 = vmatpush1.bf16.msra.mxu0 %v1310
  %1899 = vmatprep.subr.bf16.mxu0 %v1315
  %1900 = vmatpush1.bf16.msra.mxu0 %v1314
  %1901 = vmatprep.subr.bf16.mxu0 %v1319
  %1902 = vmatpush1.bf16.msra.mxu0 %v1318
  %1903 = vmatprep.subr.bf16.mxu0 %v1323
  %1904 = vmatpush1.bf16.msra.mxu0 %v1322
  %1905 = vmatprep.subr.bf16.mxu0 %v1327
  %1906 = vmatpush1.bf16.msra.mxu0 %v1326
  %1907 = vmatprep.subr.bf16.mxu0 %v1331
  %1908 = vmatpush1.bf16.msra.mxu0 %v1330
  %1909 = vmatprep.subr.bf16.mxu0 %v1335
  %1910 = vmatpush1.bf16.msra.mxu0 %v1334
  %1911 = vmatprep.mubr.bf16.mxu0 %v303
  %1912 = vmatmul.mubr.bf16.gmra.mrb[0].mxu0 %v302
  %v1913 = vpop.f32.mrb[0].mxu0
  %v1914 = vadd.f32 %v1873, %v1913
  %v1915 = vpop.f32.mrb[0].mxu0
  %v1916 = vadd.f32 %v1875, %v1915
  %v1917 = vpop.f32.mrb[0].mxu0
  %v1918 = vpop.f32.mrb[0].mxu0
  %1919 = vdwg.mxu0
  %v1920 = vld [vmem:[%s2] sm:$0xf]
  %v1922 = vlaneseq
  %v1923 = vshrl.u32 %v1922, 7
  %v1924 = vsub.s32 0, %v1923
  %v1925 = vrot.slane %v1920, %v1924
  %v1926 = vlaneseq
  %v1927 = vshrl.u32 %v1926, 7
  %v1928 = vsub.s32 1, %v1927
  %v1929 = vrot.slane %v1920, %v1928
  %v1930 = vlaneseq
  %v1931 = vshrl.u32 %v1930, 7
  %v1932 = vsub.s32 2, %v1931
  %v1933 = vrot.slane %v1920, %v1932
  %v1934 = vlaneseq
  %v1935 = vshrl.u32 %v1934, 7
  %v1936 = vsub.s32 3, %v1935
  %v1937 = vrot.slane %v1920, %v1936
  %v1942 = vmul.f32 %v1750, %v1925
  %v1943 = vmul.f32 %v1752, %v1929
  %v1944 = vmul.f32 %v1914, %v1933
  %v1945 = vmul.f32 %v1916, %v1937
  %v1946 = vld [vmem:[%s3] sm:$0xf]
  %v1948 = vlaneseq
  %v1949 = vshrl.u32 %v1948, 7
  %v1950 = vsub.s32 0, %v1949
  %v1951 = vrot.slane %v1946, %v1950
  %v1952 = vlaneseq
  %v1953 = vshrl.u32 %v1952, 7
  %v1954 = vsub.s32 1, %v1953
  %v1955 = vrot.slane %v1946, %v1954
  %v1956 = vlaneseq
  %v1957 = vshrl.u32 %v1956, 7
  %v1958 = vsub.s32 2, %v1957
  %v1959 = vrot.slane %v1946, %v1958
  %v1960 = vlaneseq
  %v1961 = vshrl.u32 %v1960, 7
  %v1962 = vsub.s32 3, %v1961
  %v1963 = vrot.slane %v1946, %v1962
  %v1968 = vadd.f32 %v1942, %v1951
  %v1969 = vadd.f32 %v1943, %v1955
  %v1970 = vadd.f32 %v1944, %v1959
  %v1971 = vadd.f32 %v1945, %v1963
  %v1972 = vmax.f32 %v1968, 0.0
  %v1973 = vmax.f32 %v1969, 0.0
  %v1974 = vmax.f32 %v1970, 0.0
  %v1975 = vmax.f32 %v1971, 0.0
  %v1976 = vpack.c.bf16 %v1972, %v1972
  %v1977 = vpack.c.bf16 %v1973, %v1973
  %v1978 = vpack.c.bf16 %v1974, %v1974
  %v1979 = vpack.c.bf16 %v1975, %v1975
  %v1980 = vld [vmem:[%s4] sm:$0xf]
  %v1981 = vld [vmem:[%s4 + $0x4] sm:$0xf]
  %v1982 = vld [vmem:[%s4 + $0x8] sm:$0xf]
  %v1983 = vld [vmem:[%s4 + $0xc] sm:$0xf]
  %v1984 = vld [vmem:[%s4 + $0x10] sm:$0xf]
  %v1985 = vld [vmem:[%s4 + $0x14] sm:$0xf]
  %v1986 = vld [vmem:[%s4 + $0x18] sm:$0xf]
  %v1987 = vld [vmem:[%s4 + $0x1c] sm:$0xf]
  %v1988 = vld [vmem:[%s4 + $0x20] sm:$0xf]
  %v1989 = vld [vmem:[%s4 + $0x24] sm:$0xf]
  %v1990 = vld [vmem:[%s4 + $0x28] sm:$0xf]
  %v1991 = vld [vmem:[%s4 + $0x2c] sm:$0xf]
  %v1992 = vld [vmem:[%s4 + $0x30] sm:$0xf]
  %v1993 = vld [vmem:[%s4 + $0x34] sm:$0xf]
  %v1994 = vld [vmem:[%s4 + $0x38] sm:$0xf]
  %v1995 = vld [vmem:[%s4 + $0x3c] sm:$0xf]
  %v1996 = vld [vmem:[%s4 + $0x40] sm:$0xf]
  %v1997 = vld [vmem:[%s4 + $0x44] sm:$0xf]
  %v1998 = vld [vmem:[%s4 + $0x48] sm:$0xf]
  %v1999 = vld [vmem:[%s4 + $0x4c] sm:$0xf]
  %v2000 = vld [vmem:[%s4 + $0x50] sm:$0xf]
  %v2001 = vld [vmem:[%s4 + $0x54] sm:$0xf]
  %v2002 = vld [vmem:[%s4 + $0x58] sm:$0xf]
  %v2003 = vld [vmem:[%s4 + $0x5c] sm:$0xf]
  %v2004 = vld [vmem:[%s4 + $0x60] sm:$0xf]
  %v2005 = vld [vmem:[%s4 + $0x64] sm:$0xf]
  %v2006 = vld [vmem:[%s4 + $0x68] sm:$0xf]
  %v2007 = vld [vmem:[%s4 + $0x6c] sm:$0xf]
  %v2008 = vld [vmem:[%s4 + $0x70] sm:$0xf]
  %v2009 = vld [vmem:[%s4 + $0x74] sm:$0xf]
  %v2010 = vld [vmem:[%s4 + $0x78] sm:$0xf]
  %v2011 = vld [vmem:[%s4 + $0x7c] sm:$0xf]
  %v2012 = vld [vmem:[%s4 + $0x80] sm:$0xf]
  %v2013 = vld [vmem:[%s4 + $0x84] sm:$0xf]
  %v2014 = vld [vmem:[%s4 + $0x88] sm:$0xf]
  %v2015 = vld [vmem:[%s4 + $0x8c] sm:$0xf]
  %v2016 = vld [vmem:[%s4 + $0x90] sm:$0xf]
  %v2017 = vld [vmem:[%s4 + $0x94] sm:$0xf]
  %v2018 = vld [vmem:[%s4 + $0x98] sm:$0xf]
  %v2019 = vld [vmem:[%s4 + $0x9c] sm:$0xf]
  %v2020 = vld [vmem:[%s4 + $0xa0] sm:$0xf]
  %v2021 = vld [vmem:[%s4 + $0xa4] sm:$0xf]
  %v2022 = vld [vmem:[%s4 + $0xa8] sm:$0xf]
  %v2023 = vld [vmem:[%s4 + $0xac] sm:$0xf]
  %v2024 = vld [vmem:[%s4 + $0xb0] sm:$0xf]
  %v2025 = vld [vmem:[%s4 + $0xb4] sm:$0xf]
  %v2026 = vld [vmem:[%s4 + $0xb8] sm:$0xf]
  %v2027 = vld [vmem:[%s4 + $0xbc] sm:$0xf]
  %v2028 = vld [vmem:[%s4 + $0xc0] sm:$0xf]
  %v2029 = vld [vmem:[%s4 + $0xc4] sm:$0xf]
  %v2030 = vld [vmem:[%s4 + $0xc8] sm:$0xf]
  %v2031 = vld [vmem:[%s4 + $0xcc] sm:$0xf]
  %v2032 = vld [vmem:[%s4 + $0xd0] sm:$0xf]
  %v2033 = vld [vmem:[%s4 + $0xd4] sm:$0xf]
  %v2034 = vld [vmem:[%s4 + $0xd8] sm:$0xf]
  %v2035 = vld [vmem:[%s4 + $0xdc] sm:$0xf]
  %v2036 = vld [vmem:[%s4 + $0xe0] sm:$0xf]
  %v2037 = vld [vmem:[%s4 + $0xe4] sm:$0xf]
  %v2038 = vld [vmem:[%s4 + $0xe8] sm:$0xf]
  %v2039 = vld [vmem:[%s4 + $0xec] sm:$0xf]
  %v2040 = vld [vmem:[%s4 + $0xf0] sm:$0xf]
  %v2041 = vld [vmem:[%s4 + $0xf4] sm:$0xf]
  %v2042 = vld [vmem:[%s4 + $0xf8] sm:$0xf]
  %v2043 = vld [vmem:[%s4 + $0xfc] sm:$0xf]
  %v2044 = vld [vmem:[%s5] sm:$0x1]
  %v2046 = vlaneseq
  %v2047 = vshrl.u32 %v2046, 7
  %v2048 = vsub.s32 0, %v2047
  %v2049 = vrot.slane %v2044, %v2048
  %v2115 = vunpack.c.l.b16 %v1980
  %v2116 = vunpack.c.l.b16 %v1981
  %v2117 = vunpack.c.l.b16 %v1982
  %v2118 = vunpack.c.l.b16 %v1983
  %v2119 = vunpack.c.l.b16 %v1984
  %v2120 = vunpack.c.l.b16 %v1985
  %v2121 = vunpack.c.l.b16 %v1986
  %v2122 = vunpack.c.l.b16 %v1987
  %v2123 = vunpack.c.l.b16 %v1988
  %v2124 = vunpack.c.l.b16 %v1989
  %v2125 = vunpack.c.l.b16 %v1990
  %v2126 = vunpack.c.l.b16 %v1991
  %v2127 = vunpack.c.l.b16 %v1992
  %v2128 = vunpack.c.l.b16 %v1993
  %v2129 = vunpack.c.l.b16 %v1994
  %v2130 = vunpack.c.l.b16 %v1995
  %v2131 = vunpack.c.l.b16 %v1996
  %v2132 = vunpack.c.l.b16 %v1997
  %v2133 = vunpack.c.l.b16 %v1998
  %v2134 = vunpack.c.l.b16 %v1999
  %v2135 = vunpack.c.l.b16 %v2000
  %v2136 = vunpack.c.l.b16 %v2001
  %v2137 = vunpack.c.l.b16 %v2002
  %v2138 = vunpack.c.l.b16 %v2003
  %v2139 = vunpack.c.l.b16 %v2004
  %v2140 = vunpack.c.l.b16 %v2005
  %v2141 = vunpack.c.l.b16 %v2006
  %v2142 = vunpack.c.l.b16 %v2007
  %v2143 = vunpack.c.l.b16 %v2008
  %v2144 = vunpack.c.l.b16 %v2009
  %v2145 = vunpack.c.l.b16 %v2010
  %v2146 = vunpack.c.l.b16 %v2011
  %v2147 = vunpack.c.l.b16 %v2012
  %v2148 = vunpack.c.l.b16 %v2013
  %v2149 = vunpack.c.l.b16 %v2014
  %v2150 = vunpack.c.l.b16 %v2015
  %v2151 = vunpack.c.l.b16 %v2016
  %v2152 = vunpack.c.l.b16 %v2017
  %v2153 = vunpack.c.l.b16 %v2018
  %v2154 = vunpack.c.l.b16 %v2019
  %v2155 = vunpack.c.l.b16 %v2020
  %v2156 = vunpack.c.l.b16 %v2021
  %v2157 = vunpack.c.l.b16 %v2022
  %v2158 = vunpack.c.l.b16 %v2023
  %v2159 = vunpack.c.l.b16 %v2024
  %v2160 = vunpack.c.l.b16 %v2025
  %v2161 = vunpack.c.l.b16 %v2026
  %v2162 = vunpack.c.l.b16 %v2027
  %v2163 = vunpack.c.l.b16 %v2028
  %v2164 = vunpack.c.l.b16 %v2029
  %v2165 = vunpack.c.l.b16 %v2030
  %v2166 = vunpack.c.l.b16 %v2031
  %v2167 = vunpack.c.l.b16 %v2032
  %v2168 = vunpack.c.l.b16 %v2033
  %v2169 = vunpack.c.l.b16 %v2034
  %v2170 = vunpack.c.l.b16 %v2035
  %v2171 = vunpack.c.l.b16 %v2036
  %v2172 = vunpack.c.l.b16 %v2037
  %v2173 = vunpack.c.l.b16 %v2038
  %v2174 = vunpack.c.l.b16 %v2039
  %v2175 = vunpack.c.l.b16 %v2040
  %v2176 = vunpack.c.l.b16 %v2041
  %v2177 = vunpack.c.l.b16 %v2042
  %v2178 = vunpack.c.l.b16 %v2043
  %v2179 = vpack.c.b16 %v2116, %v2115
  %v2180 = vpack.c.b16 %v2118, %v2117
  %v2181 = vpack.c.b16 %v2120, %v2119
  %v2182 = vpack.c.b16 %v2122, %v2121
  %v2183 = vpack.c.b16 %v2124, %v2123
  %v2184 = vpack.c.b16 %v2126, %v2125
  %v2185 = vpack.c.b16 %v2128, %v2127
  %v2186 = vpack.c.b16 %v2130, %v2129
  %v2187 = vpack.c.b16 %v2132, %v2131
  %v2188 = vpack.c.b16 %v2134, %v2133
  %v2189 = vpack.c.b16 %v2136, %v2135
  %v2190 = vpack.c.b16 %v2138, %v2137
  %v2191 = vpack.c.b16 %v2140, %v2139
  %v2192 = vpack.c.b16 %v2142, %v2141
  %v2193 = vpack.c.b16 %v2144, %v2143
  %v2194 = vpack.c.b16 %v2146, %v2145
  %v2195 = vpack.c.b16 %v2148, %v2147
  %v2196 = vpack.c.b16 %v2150, %v2149
  %v2197 = vpack.c.b16 %v2152, %v2151
  %v2198 = vpack.c.b16 %v2154, %v2153
  %v2199 = vpack.c.b16 %v2156, %v2155
  %v2200 = vpack.c.b16 %v2158, %v2157
  %v2201 = vpack.c.b16 %v2160, %v2159
  %v2202 = vpack.c.b16 %v2162, %v2161
  %v2203 = vpack.c.b16 %v2164, %v2163
  %v2204 = vpack.c.b16 %v2166, %v2165
  %v2205 = vpack.c.b16 %v2168, %v2167
  %v2206 = vpack.c.b16 %v2170, %v2169
  %v2207 = vpack.c.b16 %v2172, %v2171
  %v2208 = vpack.c.b16 %v2174, %v2173
  %v2209 = vpack.c.b16 %v2176, %v2175
  %v2210 = vpack.c.b16 %v2178, %v2177
  %2243 = vmatprep.subr.bf16.mxu0 0
  %2244 = vmatpush1.bf16.msra.mxu0 %v2179
  %2245 = vmatprep.subr.bf16.mxu0 0
  %2246 = vmatpush1.bf16.msra.mxu0 %v2180
  %2247 = vmatprep.subr.bf16.mxu0 0
  %2248 = vmatpush1.bf16.msra.mxu0 %v2181
  %2249 = vmatprep.subr.bf16.mxu0 0
  %2250 = vmatpush1.bf16.msra.mxu0 %v2182
  %2251 = vmatprep.subr.bf16.mxu0 0
  %2252 = vmatpush1.bf16.msra.mxu0 %v2183
  %2253 = vmatprep.subr.bf16.mxu0 0
  %2254 = vmatpush1.bf16.msra.mxu0 %v2184
  %2255 = vmatprep.subr.bf16.mxu0 0
  %2256 = vmatpush1.bf16.msra.mxu0 %v2185
  %2257 = vmatprep.subr.bf16.mxu0 0
  %2258 = vmatpush1.bf16.msra.mxu0 %v2186
  %2259 = vmatprep.subr.bf16.mxu0 0
  %2260 = vmatpush1.bf16.msra.mxu0 %v2187
  %2261 = vmatprep.subr.bf16.mxu0 0
  %2262 = vmatpush1.bf16.msra.mxu0 %v2188
  %2263 = vmatprep.subr.bf16.mxu0 0
  %2264 = vmatpush1.bf16.msra.mxu0 %v2189
  %2265 = vmatprep.subr.bf16.mxu0 0
  %2266 = vmatpush1.bf16.msra.mxu0 %v2190
  %2267 = vmatprep.subr.bf16.mxu0 0
  %2268 = vmatpush1.bf16.msra.mxu0 %v2191
  %2269 = vmatprep.subr.bf16.mxu0 0
  %2270 = vmatpush1.bf16.msra.mxu0 %v2192
  %2271 = vmatprep.subr.bf16.mxu0 0
  %2272 = vmatpush1.bf16.msra.mxu0 %v2193
  %2273 = vmatprep.subr.bf16.mxu0 0
  %2274 = vmatpush1.bf16.msra.mxu0 %v2194
  %2275 = vmatprep.mubr.bf16.mxu0 %v1977
  %2276 = vmatmul.mubr.bf16.gmra.mrb[0].mxu0 %v1976
  %v2277 = vpop.f32.mrb[0].mxu0
  %v2278 = vadd.f32 %v2049, %v2277
  %v2279 = vpop.f32.mrb[0].mxu0
  %v2280 = vpop.f32.mrb[0].mxu0
  %v2281 = vpop.f32.mrb[0].mxu0
  %2282 = vdwg.mxu0
  %2283 = vmatprep.subr.bf16.mxu0 0
  %2284 = vmatpush1.bf16.msra.mxu0 %v2195
  %2285 = vmatprep.subr.bf16.mxu0 0
  %2286 = vmatpush1.bf16.msra.mxu0 %v2196
  %2287 = vmatprep.subr.bf16.mxu0 0
  %2288 = vmatpush1.bf16.msra.mxu0 %v2197
  %2289 = vmatprep.subr.bf16.mxu0 0
  %2290 = vmatpush1.bf16.msra.mxu0 %v2198
  %2291 = vmatprep.subr.bf16.mxu0 0
  %2292 = vmatpush1.bf16.msra.mxu0 %v2199
  %2293 = vmatprep.subr.bf16.mxu0 0
  %2294 = vmatpush1.bf16.msra.mxu0 %v2200
  %2295 = vmatprep.subr.bf16.mxu0 0
  %2296 = vmatpush1.bf16.msra.mxu0 %v2201
  %2297 = vmatprep.subr.bf16.mxu0 0
  %2298 = vmatpush1.bf16.msra.mxu0 %v2202
  %2299 = vmatprep.subr.bf16.mxu0 0
  %2300 = vmatpush1.bf16.msra.mxu0 %v2203
  %2301 = vmatprep.subr.bf16.mxu0 0
  %2302 = vmatpush1.bf16.msra.mxu0 %v2204
  %2303 = vmatprep.subr.bf16.mxu0 0
  %2304 = vmatpush1.bf16.msra.mxu0 %v2205
  %2305 = vmatprep.subr.bf16.mxu0 0
  %2306 = vmatpush1.bf16.msra.mxu0 %v2206
  %2307 = vmatprep.subr.bf16.mxu0 0
  %2308 = vmatpush1.bf16.msra.mxu0 %v2207
  %2309 = vmatprep.subr.bf16.mxu0 0
  %2310 = vmatpush1.bf16.msra.mxu0 %v2208
  %2311 = vmatprep.subr.bf16.mxu0 0
  %2312 = vmatpush1.bf16.msra.mxu0 %v2209
  %2313 = vmatprep.subr.bf16.mxu0 0
  %2314 = vmatpush1.bf16.msra.mxu0 %v2210
  %2315 = vmatprep.mubr.bf16.mxu0 %v1979
  %2316 = vmatmul.mubr.bf16.gmra.mrb[0].mxu0 %v1978
  %v2317 = vpop.f32.mrb[0].mxu0
  %v2318 = vadd.f32 %v2278, %v2317
  %v2319 = vpop.f32.mrb[0].mxu0
  %v2320 = vpop.f32.mrb[0].mxu0
  %v2321 = vpop.f32.mrb[0].mxu0
  %2322 = vdwg.mxu0
  %2323 = vst [vmem:[%s6] sm:$0xff] %v2318
  // Predicated region
  $region26: #{medium_cnn_forward.3} parent=0 // pred_check
    _
  $region27: #{medium_cnn_forward.3} parent=0 // pred_check_branch
    %2325 = sbr.rel (0) target = $region29
  $region28: #{medium_cnn_forward.3} parent=0 // pred_region
    _
  $region29: #{medium_cnn_forward.3} parent=0 // pred_fallthru
    _
  // Predicated region
  $region30: #{medium_cnn_forward.3} parent=0 // pred_check
    _
  $region31: #{medium_cnn_forward.3} parent=0 // pred_check_branch
    %2327 = sbr.rel (0) target = $region33
  $region32: #{medium_cnn_forward.3} parent=0 // pred_region
    _
  $region33: #{medium_cnn_forward.3} parent=0 // pred_fallthru
    _

// kernel: medium_cnn_forward.2
$region0: #{medium_cnn_forward.2}
  #allocation0 [shape = 'u32[]', space=smem, size = 0x4, offset = 0x4, fixed_abs, tag = 'smem constant byte address 0x4 - core index']
  #allocation1 [shape = 'u32[144,128]{1,0:T(1,128)}', space=vmem, size = 0x12000, scoped, tag = 'internal scratch']
  #allocation2 [shape = 'bf16[18,18,32]{2,1,0:T(8,128)(2,1)}', space=vmem, size = 0x1b000, scoped, tag = 'scratch operand']
  #allocation3 [shape = 'bf16[10,10,32]{2,1,0:T(8,128)(2,1)}', space=vmem, size = 0xa000, scoped, tag = 'scratch operand']
  #allocation4 [shape = 'bf16[10,10,64]{2,1,0:T(8,128)(2,1)}', space=vmem, size = 0xa000, scoped, tag = 'scratch operand']
  %s0 = inlined_call_operand.vmem [shape: bf16[2,18,18,8], index: 0, kind: input, shape index: {}]
  %s1 = inlined_call_operand.vmem [shape: bf16[72,32], index: 1, kind: input, shape index: {}]
  %s2 = inlined_call_operand.vmem [shape: f32[1,32], index: 2, kind: input, shape index: {}]
  %s3 = inlined_call_operand.vmem [shape: f32[1,32], index: 3, kind: input, shape index: {}]
  %s4 = inlined_call_operand.vmem [shape: bf16[288,32], index: 4, kind: input, shape index: {}]
  %s5 = inlined_call_operand.vmem [shape: f32[1,32], index: 5, kind: input, shape index: {}]
  %s6 = inlined_call_operand.vmem [shape: f32[1,32], index: 6, kind: input, shape index: {}]
  %s7 = inlined_call_operand.vmem [shape: bf16[288,64], index: 7, kind: input, shape index: {}]
  %s8 = inlined_call_operand.vmem [shape: f32[1,64], index: 8, kind: input, shape index: {}]
  %s9 = inlined_call_operand.vmem [shape: f32[1,64], index: 9, kind: input, shape index: {}]
  %s10 = inlined_call_operand.vmem [shape: bf16[576,64], index: 10, kind: input, shape index: {}]
  %s11 = inlined_call_operand.vmem [shape: f32[1,64], index: 11, kind: input, shape index: {}]
  %s12 = inlined_call_operand.vmem [shape: f32[1,64], index: 12, kind: input, shape index: {}]
  %s13 = inlined_call_operand.vmem [shape: bf16[2,4,4,64], index: 13, kind: output, shape index: {}]
  %s14 = sld [smem:[#allocation0]]
  $region85: #{medium_cnn_forward.2} parent=0
    _
  %s16 = ssub.s32 1, %s14
  %s17 = scalar_select 0, %s16, %s14
  loop: start=0, step=1, limit=4
  $region2: #{medium_cnn_forward.2} parent=0 // loop_pre_header
    _
  $region3: #{medium_cnn_forward.2} parent=0 // loop_header
    %s19 = sphi 0, %s23
    %p20 = scmp.ge.s32.totalorder %s19, 4
    %s29 = sphi 0, %s31
    %s32 = sphi 0, %s29
    %s33 = sphi 0, %s32
    %s49 = sphi 0, %s33
    %s53 = sphi 0, %s53
    %s55 = sphi 0, %s53
    %s56 = sphi 0, %s55
    %s70 = sphi 0, %s56
    %s74 = sphi 0, %s74
    %s76 = sphi 0, %s74
    %s77 = sphi 0, %s76
    %s91 = sphi 0, %s77
    %s95 = sphi 0, %s95
    %s97 = sphi 0, %s95
    %s98 = sphi 0, %s97
    %s112 = sphi 0, %s98
    %s116 = sphi 0, %s116
    %s118 = sphi 0, %s116
    %s119 = sphi 0, %s118
    %s133 = sphi 0, %s119
    %s137 = sphi 0, %s137
    %s139 = sphi 0, %s137
    %s140 = sphi 0, %s139
    %s154 = sphi 0, %s140
    %s158 = sphi 0, %s158
    %s160 = sphi 0, %s158
    %s161 = sphi 0, %s160
    %s175 = sphi 0, %s161
    %s179 = sphi 0, %s179
    %s181 = sphi 0, %s179
    %s182 = sphi 0, %s181
    %s196 = sphi 0, %s182
    %s200 = sphi 0, %s200
    %s202 = sphi 0, %s200
    %s203 = sphi 0, %s202
    %s217 = sphi 0, %s203
    %s221 = sphi 0, %s221
    %s223 = sphi 0, %s221
    %s224 = sphi 0, %s223
    %s238 = sphi 0, %s224
    %s242 = sphi 0, %s242
    %s244 = sphi 0, %s242
    %s245 = sphi 0, %s244
    %s259 = sphi 0, %s245
    %s263 = sphi 0, %s263
    %s265 = sphi 0, %s263
    %s266 = sphi 0, %s265
    %s280 = sphi 0, %s266
    %s284 = sphi 0, %s284
    %s286 = sphi 0, %s284
    %s287 = sphi 0, %s286
    %s301 = sphi 0, %s287
    %s307 = sphi 0, %s309
    %s310 = sphi 0, %s307
    %s311 = sphi 0, %s310
    %s327 = sphi 0, %s311
  $region4: #{medium_cnn_forward.2} parent=0 // loop_header_branch
    %22 = sbr.rel (%p20) target = $region8
  $region5: #{medium_cnn_forward.2} parent=0 // loop_body
    %s24 = ssub.s32 %s19, 1
    %s25 = ssub.s32 %s19, 2
    %s26 = sadd.s32 %s19, 1
    %s27 = ssub.s32 %s19, %s26
    %p28 = scmp.eq.s32.totalorder %s27, 0
    %s30 = sadd.s32 %s29, 1
    %s31 = scalar_select %p28, %s29, %s30
    %p34 = pneg %p28
    %p35 = scmp.eq.s32.totalorder %s19, 1
    %p36 = por %p34, %p35
    %p37 = scmp.ne.s32.totalorder %s29, %s32
    %p38 = scmp.eq.s32.totalorder %s19, 0
    %p39 = por %p37, %p38
    %p40 = scmp.ne.s32.totalorder %s29, %s32
    %p41 = scmp.eq.s32.totalorder %s24, 1
    %p42 = por %p40, %p41
    %p43 = scmp.ne.s32.totalorder %s32, %s33
    %p44 = scmp.eq.s32.totalorder %s24, 0
    %p45 = por %p43, %p44
    %p46 = scmp.ne.s32.totalorder %s32, %s33
    %p47 = scmp.eq.s32.totalorder %s25, 1
    %p48 = por %p46, %p47
    %p50 = scmp.ne.s32.totalorder %s33, %s49
    %p51 = scmp.eq.s32.totalorder %s25, 0
    %p52 = por %p50, %p51
    %s54 = sadd.s32 %s53, 1
    %p57 = scmp.eq.s32.totalorder %s19, 1
    %p58 = scmp.ne.s32.totalorder %s53, %s55
    %p59 = scmp.eq.s32.totalorder %s19, 0
    %p60 = por %p58, %p59
    %p61 = scmp.ne.s32.totalorder %s53, %s55
    %p62 = scmp.eq.s32.totalorder %s24, 1
    %p63 = por %p61, %p62
    %p64 = scmp.ne.s32.totalorder %s55, %s56
    %p65 = scmp.eq.s32.totalorder %s24, 0
    %p66 = por %p64, %p65
    %p67 = scmp.ne.s32.totalorder %s55, %s56
    %p68 = scmp.eq.s32.totalorder %s25, 1
    %p69 = por %p67, %p68
    %p71 = scmp.ne.s32.totalorder %s56, %s70
    %p72 = scmp.eq.s32.totalorder %s25, 0
    %p73 = por %p71, %p72
    %s75 = sadd.s32 %s74, 1
    %p78 = scmp.eq.s32.totalorder %s19, 1
    %p79 = scmp.ne.s32.totalorder %s74, %s76
    %p80 = scmp.eq.s32.totalorder %s19, 0
    %p81 = por %p79, %p80
    %p82 = scmp.ne.s32.totalorder %s74, %s76
    %p83 = scmp.eq.s32.totalorder %s24, 1
    %p84 = por %p82, %p83
    %p85 = scmp.ne.s32.totalorder %s76, %s77
    %p86 = scmp.eq.s32.totalorder %s24, 0
    %p87 = por %p85, %p86
    %p88 = scmp.ne.s32.totalorder %s76, %s77
    %p89 = scmp.eq.s32.totalorder %s25, 1
    %p90 = por %p88, %p89
    %p92 = scmp.ne.s32.totalorder %s77, %s91
    %p93 = scmp.eq.s32.totalorder %s25, 0
    %p94 = por %p92, %p93
    %s96 = sadd.s32 %s95, 1
    %p99 = scmp.eq.s32.totalorder %s19, 1
    %p100 = scmp.ne.s32.totalorder %s95, %s97
    %p101 = scmp.eq.s32.totalorder %s19, 0
    %p102 = por %p100, %p101
    %p103 = scmp.ne.s32.totalorder %s95, %s97
    %p104 = scmp.eq.s32.totalorder %s24, 1
    %p105 = por %p103, %p104
    %p106 = scmp.ne.s32.totalorder %s97, %s98
    %p107 = scmp.eq.s32.totalorder %s24, 0
    %p108 = por %p106, %p107
    %p109 = scmp.ne.s32.totalorder %s97, %s98
    %p110 = scmp.eq.s32.totalorder %s25, 1
    %p111 = por %p109, %p110
    %p113 = scmp.ne.s32.totalorder %s98, %s112
    %p114 = scmp.eq.s32.totalorder %s25, 0
    %p115 = por %p113, %p114
    %s117 = sadd.s32 %s116, 1
    %p120 = scmp.eq.s32.totalorder %s19, 1
    %p121 = scmp.ne.s32.totalorder %s116, %s118
    %p122 = scmp.eq.s32.totalorder %s19, 0
    %p123 = por %p121, %p122
    %p124 = scmp.ne.s32.totalorder %s116, %s118
    %p125 = scmp.eq.s32.totalorder %s24, 1
    %p126 = por %p124, %p125
    %p127 = scmp.ne.s32.totalorder %s118, %s119
    %p128 = scmp.eq.s32.totalorder %s24, 0
    %p129 = por %p127, %p128
    %p130 = scmp.ne.s32.totalorder %s118, %s119
    %p131 = scmp.eq.s32.totalorder %s25, 1
    %p132 = por %p130, %p131
    %p134 = scmp.ne.s32.totalorder %s119, %s133
    %p135 = scmp.eq.s32.totalorder %s25, 0
    %p136 = por %p134, %p135
    %s138 = sadd.s32 %s137, 1
    %p141 = scmp.eq.s32.totalorder %s19, 1
    %p142 = scmp.ne.s32.totalorder %s137, %s139
    %p143 = scmp.eq.s32.totalorder %s19, 0
    %p144 = por %p142, %p143
    %p145 = scmp.ne.s32.totalorder %s137, %s139
    %p146 = scmp.eq.s32.totalorder %s24, 1
    %p147 = por %p145, %p146
    %p148 = scmp.ne.s32.totalorder %s139, %s140
    %p149 = scmp.eq.s32.totalorder %s24, 0
    %p150 = por %p148, %p149
    %p151 = scmp.ne.s32.totalorder %s139, %s140
    %p152 = scmp.eq.s32.totalorder %s25, 1
    %p153 = por %p151, %p152
    %p155 = scmp.ne.s32.totalorder %s140, %s154
    %p156 = scmp.eq.s32.totalorder %s25, 0
    %p157 = por %p155, %p156
    %s159 = sadd.s32 %s158, 1
    %p162 = scmp.eq.s32.totalorder %s19, 1
    %p163 = scmp.ne.s32.totalorder %s158, %s160
    %p164 = scmp.eq.s32.totalorder %s19, 0
    %p165 = por %p163, %p164
    %p166 = scmp.ne.s32.totalorder %s158, %s160
    %p167 = scmp.eq.s32.totalorder %s24, 1
    %p168 = por %p166, %p167
    %p169 = scmp.ne.s32.totalorder %s160, %s161
    %p170 = scmp.eq.s32.totalorder %s24, 0
    %p171 = por %p169, %p170
    %p172 = scmp.ne.s32.totalorder %s160, %s161
    %p173 = scmp.eq.s32.totalorder %s25, 1
    %p174 = por %p172, %p173
    %p176 = scmp.ne.s32.totalorder %s161, %s175
    %p177 = scmp.eq.s32.totalorder %s25, 0
    %p178 = por %p176, %p177
    %s180 = sadd.s32 %s179, 1
    %p183 = scmp.eq.s32.totalorder %s19, 1
    %p184 = scmp.ne.s32.totalorder %s179, %s181
    %p185 = scmp.eq.s32.totalorder %s19, 0
    %p186 = por %p184, %p185
    %p187 = scmp.ne.s32.totalorder %s179, %s181
    %p188 = scmp.eq.s32.totalorder %s24, 1
    %p189 = por %p187, %p188
    %p190 = scmp.ne.s32.totalorder %s181, %s182
    %p191 = scmp.eq.s32.totalorder %s24, 0
    %p192 = por %p190, %p191
    %p193 = scmp.ne.s32.totalorder %s181, %s182
    %p194 = scmp.eq.s32.totalorder %s25, 1
    %p195 = por %p193, %p194
    %p197 = scmp.ne.s32.totalorder %s182, %s196
    %p198 = scmp.eq.s32.totalorder %s25, 0
    %p199 = por %p197, %p198
    %s201 = sadd.s32 %s200, 1
    %p204 = scmp.eq.s32.totalorder %s19, 1
    %p205 = scmp.ne.s32.totalorder %s200, %s202
    %p206 = scmp.eq.s32.totalorder %s19, 0
    %p207 = por %p205, %p206
    %p208 = scmp.ne.s32.totalorder %s200, %s202
    %p209 = scmp.eq.s32.totalorder %s24, 1
    %p210 = por %p208, %p209
    %p211 = scmp.ne.s32.totalorder %s202, %s203
    %p212 = scmp.eq.s32.totalorder %s24, 0
    %p213 = por %p211, %p212
    %p214 = scmp.ne.s32.totalorder %s202, %s203
    %p215 = scmp.eq.s32.totalorder %s25, 1
    %p216 = por %p214, %p215
    %p218 = scmp.ne.s32.totalorder %s203, %s217
    %p219 = scmp.eq.s32.totalorder %s25, 0
    %p220 = por %p218, %p219
    %s222 = sadd.s32 %s221, 1
    %p225 = scmp.eq.s32.totalorder %s19, 1
    %p226 = scmp.ne.s32.totalorder %s221, %s223
    %p227 = scmp.eq.s32.totalorder %s19, 0
    %p228 = por %p226, %p227
    %p229 = scmp.ne.s32.totalorder %s221, %s223
    %p230 = scmp.eq.s32.totalorder %s24, 1
    %p231 = por %p229, %p230
    %p232 = scmp.ne.s32.totalorder %s223, %s224
    %p233 = scmp.eq.s32.totalorder %s24, 0
    %p234 = por %p232, %p233
    %p235 = scmp.ne.s32.totalorder %s223, %s224
    %p236 = scmp.eq.s32.totalorder %s25, 1
    %p237 = por %p235, %p236
    %p239 = scmp.ne.s32.totalorder %s224, %s238
    %p240 = scmp.eq.s32.totalorder %s25, 0
    %p241 = por %p239, %p240
    %s243 = sadd.s32 %s242, 1
    %p246 = scmp.eq.s32.totalorder %s19, 1
    %p247 = scmp.ne.s32.totalorder %s242, %s244
    %p248 = scmp.eq.s32.totalorder %s19, 0
    %p249 = por %p247, %p248
    %p250 = scmp.ne.s32.totalorder %s242, %s244
    %p251 = scmp.eq.s32.totalorder %s24, 1
    %p252 = por %p250, %p251
    %p253 = scmp.ne.s32.totalorder %s244, %s245
    %p254 = scmp.eq.s32.totalorder %s24, 0
    %p255 = por %p253, %p254
    %p256 = scmp.ne.s32.totalorder %s244, %s245
    %p257 = scmp.eq.s32.totalorder %s25, 1
    %p258 = por %p256, %p257
    %p260 = scmp.ne.s32.totalorder %s245, %s259
    %p261 = scmp.eq.s32.totalorder %s25, 0
    %p262 = por %p260, %p261
    %s264 = sadd.s32 %s263, 1
    %p267 = scmp.eq.s32.totalorder %s19, 1
    %p268 = scmp.ne.s32.totalorder %s263, %s265
    %p269 = scmp.eq.s32.totalorder %s19, 0
    %p270 = por %p268, %p269
    %p271 = scmp.ne.s32.totalorder %s263, %s265
    %p272 = scmp.eq.s32.totalorder %s24, 1
    %p273 = por %p271, %p272
    %p274 = scmp.ne.s32.totalorder %s265, %s266
    %p275 = scmp.eq.s32.totalorder %s24, 0
    %p276 = por %p274, %p275
    %p277 = scmp.ne.s32.totalorder %s265, %s266
    %p278 = scmp.eq.s32.totalorder %s25, 1
    %p279 = por %p277, %p278
    %p281 = scmp.ne.s32.totalorder %s266, %s280
    %p282 = scmp.eq.s32.totalorder %s25, 0
    %p283 = por %p281, %p282
    %s285 = sadd.s32 %s284, 1
    %p288 = scmp.eq.s32.totalorder %s19, 1
    %p289 = scmp.ne.s32.totalorder %s284, %s286
    %p290 = scmp.eq.s32.totalorder %s19, 0
    %p291 = por %p289, %p290
    %p292 = scmp.ne.s32.totalorder %s284, %s286
    %p293 = scmp.eq.s32.totalorder %s24, 1
    %p294 = por %p292, %p293
    %p295 = scmp.ne.s32.totalorder %s286, %s287
    %p296 = scmp.eq.s32.totalorder %s24, 0
    %p297 = por %p295, %p296
    %p298 = scmp.ne.s32.totalorder %s286, %s287
    %p299 = scmp.eq.s32.totalorder %s25, 1
    %p300 = por %p298, %p299
    %p302 = scmp.ne.s32.totalorder %s287, %s301
    %p303 = scmp.eq.s32.totalorder %s25, 0
    %p304 = por %p302, %p303
    %s305 = ssub.s32 %s19, %s26
    %p306 = scmp.eq.s32.totalorder %s305, 0
    %s308 = sadd.s32 %s307, 1
    %s309 = scalar_select %p306, %s307, %s308
    %p312 = pneg %p306
    %p313 = scmp.eq.s32.totalorder %s19, 1
    %p314 = por %p312, %p313
    %p315 = scmp.ne.s32.totalorder %s307, %s310
    %p316 = scmp.eq.s32.totalorder %s19, 0
    %p317 = por %p315, %p316
    %p318 = scmp.ne.s32.totalorder %s307, %s310
    %p319 = scmp.eq.s32.totalorder %s24, 1
    %p320 = por %p318, %p319
    %p321 = scmp.ne.s32.totalorder %s310, %s311
    %p322 = scmp.eq.s32.totalorder %s24, 0
    %p323 = por %p321, %p322
    %p324 = scmp.ne.s32.totalorder %s310, %s311
    %p325 = scmp.eq.s32.totalorder %s25, 1
    %p326 = por %p324, %p325
    %p328 = scmp.ne.s32.totalorder %s311, %s327
    %p329 = scmp.eq.s32.totalorder %s25, 0
    %p330 = por %p328, %p329
    %p331 = scmp.le.s32.totalorder 1, %s19
    %p332 = scmp.lt.s32.totalorder %s19, 3
    %p333 = pnand %p331, %p332
    %p334 = pneg %p333
    // Predicated region
    $region9: #{medium_cnn_forward.2} parent=5 // pred_check
      _
    $region10: #{medium_cnn_forward.2} parent=5 // pred_check_branch
      %336 = sbr.rel (%p333) target = $region12
    $region11: #{medium_cnn_forward.2} parent=5 // pred_region
      %s337 = ssub.s32 %s19, 1
      // Predicated region
      $region13: #{medium_cnn_forward.2} parent=11 // pred_check
        %p338 = pneg %p66
      $region14: #{medium_cnn_forward.2} parent=11 // pred_check_branch
        %340 = sbr.rel (%p338) target = $region16
      $region15: #{medium_cnn_forward.2} parent=11 // pred_region
        _
      $region16: #{medium_cnn_forward.2} parent=11 // pred_fallthru
        _
      // Predicated region
      $region17: #{medium_cnn_forward.2} parent=11 // pred_check
        %p341 = pneg %p87
      $region18: #{medium_cnn_forward.2} parent=11 // pred_check_branch
        %343 = sbr.rel (%p341) target = $region20
      $region19: #{medium_cnn_forward.2} parent=11 // pred_region
        _
      $region20: #{medium_cnn_forward.2} parent=11 // pred_fallthru
        _
      // Predicated region
      $region21: #{medium_cnn_forward.2} parent=11 // pred_check
        %p344 = pneg %p108
      $region22: #{medium_cnn_forward.2} parent=11 // pred_check_branch
        %346 = sbr.rel (%p344) target = $region24
      $region23: #{medium_cnn_forward.2} parent=11 // pred_region
        _
      $region24: #{medium_cnn_forward.2} parent=11 // pred_fallthru
        _
      // Predicated region
      $region25: #{medium_cnn_forward.2} parent=11 // pred_check
        %p347 = pneg %p129
      $region26: #{medium_cnn_forward.2} parent=11 // pred_check_branch
        %349 = sbr.rel (%p347) target = $region28
      $region27: #{medium_cnn_forward.2} parent=11 // pred_region
        _
      $region28: #{medium_cnn_forward.2} parent=11 // pred_fallthru
        _
      // Predicated region
      $region29: #{medium_cnn_forward.2} parent=11 // pred_check
        %p350 = pneg %p150
      $region30: #{medium_cnn_forward.2} parent=11 // pred_check_branch
        %352 = sbr.rel (%p350) target = $region32
      $region31: #{medium_cnn_forward.2} parent=11 // pred_region
        _
      $region32: #{medium_cnn_forward.2} parent=11 // pred_fallthru
        _
      // Predicated region
      $region33: #{medium_cnn_forward.2} parent=11 // pred_check
        %p353 = pneg %p171
      $region34: #{medium_cnn_forward.2} parent=11 // pred_check_branch
        %355 = sbr.rel (%p353) target = $region36
      $region35: #{medium_cnn_forward.2} parent=11 // pred_region
        _
      $region36: #{medium_cnn_forward.2} parent=11 // pred_fallthru
        _
      // Predicated region
      $region37: #{medium_cnn_forward.2} parent=11 // pred_check
        %p356 = pneg %p192
      $region38: #{medium_cnn_forward.2} parent=11 // pred_check_branch
        %358 = sbr.rel (%p356) target = $region40
      $region39: #{medium_cnn_forward.2} parent=11 // pred_region
        _
      $region40: #{medium_cnn_forward.2} parent=11 // pred_fallthru
        _
      // Predicated region
      $region41: #{medium_cnn_forward.2} parent=11 // pred_check
        %p359 = pneg %p213
      $region42: #{medium_cnn_forward.2} parent=11 // pred_check_branch
        %361 = sbr.rel (%p359) target = $region44
      $region43: #{medium_cnn_forward.2} parent=11 // pred_region
        _
      $region44: #{medium_cnn_forward.2} parent=11 // pred_fallthru
        _
      // Predicated region
      $region45: #{medium_cnn_forward.2} parent=11 // pred_check
        %p362 = pneg %p234
      $region46: #{medium_cnn_forward.2} parent=11 // pred_check_branch
        %364 = sbr.rel (%p362) target = $region48
      $region47: #{medium_cnn_forward.2} parent=11 // pred_region
        _
      $region48: #{medium_cnn_forward.2} parent=11 // pred_fallthru
        _
      // Predicated region
      $region49: #{medium_cnn_forward.2} parent=11 // pred_check
        %p365 = pneg %p255
      $region50: #{medium_cnn_forward.2} parent=11 // pred_check_branch
        %367 = sbr.rel (%p365) target = $region52
      $region51: #{medium_cnn_forward.2} parent=11 // pred_region
        _
      $region52: #{medium_cnn_forward.2} parent=11 // pred_fallthru
        _
      // Predicated region
      $region53: #{medium_cnn_forward.2} parent=11 // pred_check
        %p368 = pneg %p276
      $region54: #{medium_cnn_forward.2} parent=11 // pred_check_branch
        %370 = sbr.rel (%p368) target = $region56
      $region55: #{medium_cnn_forward.2} parent=11 // pred_region
        _
      $region56: #{medium_cnn_forward.2} parent=11 // pred_fallthru
        _
      // Predicated region
      $region57: #{medium_cnn_forward.2} parent=11 // pred_check
        %p371 = pneg %p297
      $region58: #{medium_cnn_forward.2} parent=11 // pred_check_branch
        %373 = sbr.rel (%p371) target = $region60
      $region59: #{medium_cnn_forward.2} parent=11 // pred_region
        _
      $region60: #{medium_cnn_forward.2} parent=11 // pred_fallthru
        _
    $region12: #{medium_cnn_forward.2} parent=5 // pred_fallthru
      _
    %p374 = scmp.lt.s32.totalorder %s19, 2
    // Predicated region
    $region61: #{medium_cnn_forward.2} parent=5 // pred_check
      %p375 = pneg %p374
    $region62: #{medium_cnn_forward.2} parent=5 // pred_check_branch
      %377 = sbr.rel (%p375) target = $region64
    $region63: #{medium_cnn_forward.2} parent=5 // pred_region
      // Predicated region
      $region65: #{medium_cnn_forward.2} parent=63 // pred_check
        %p378 = pneg %p39
      $region66: #{medium_cnn_forward.2} parent=63 // pred_check_branch
        %380 = sbr.rel (%p378) target = $region68
      $region67: #{medium_cnn_forward.2} parent=63 // pred_region
        %p381 = scmp.lt.s32.totalorder %s19, 1
        %s382 = scalar_select %p381, %s19, 1
        %s383 = smul.addr %s382, 54
        %s384 = smul.addr %s383, 4
        %s385 = scalar_lea.vmem %s0, %s384
      $region68: #{medium_cnn_forward.2} parent=63 // pred_fallthru
        _
    $region64: #{medium_cnn_forward.2} parent=5 // pred_fallthru
      _
    %p386 = scmp.le.s32.totalorder 1, %s19
    %p387 = scmp.lt.s32.totalorder %s19, 3
    %p388 = pnand %p386, %p387
    %p389 = pneg %p388
    // Predicated region
    $region69: #{medium_cnn_forward.2} parent=5 // pred_check
      _
    $region70: #{medium_cnn_forward.2} parent=5 // pred_check_branch
      %391 = sbr.rel (%p388) target = $region72
    $region71: #{medium_cnn_forward.2} parent=5 // pred_region
      %s392 = ssub.s32 %s19, 1
      %p393 = scmp.lt.s32.totalorder %s24, 1
      %s394 = scalar_select %p393, %s24, 1
      %s395 = smul.addr %s394, 54
      %s396 = smul.addr %s395, 4
      %s397 = scalar_lea.vmem %s0, %s396
      %p398 = pneg %p45
      %p399 = pneg %p42
      %p400 = pneg %p66
      %p401 = pneg %p63
      %p402 = pneg %p87
      %p403 = pneg %p84
      %p404 = pneg %p108
      %p405 = pneg %p105
      %p406 = pneg %p129
      %p407 = pneg %p126
      %p408 = pneg %p150
      %p409 = pneg %p147
      %p410 = pneg %p171
      %p411 = pneg %p168
      %p412 = pneg %p192
      %p413 = pneg %p189
      %p414 = pneg %p213
      %p415 = pneg %p210
      %p416 = pneg %p234
      %p417 = pneg %p231
      %p418 = pneg %p255
      %p419 = pneg %p252
      %p420 = pneg %p276
      %p421 = pneg %p273
      %p422 = pneg %p297
      %p423 = pneg %p294
      %p424 = pneg %p323
      %p425 = pneg %p320
      %p426 = scmp.lt.s32.totalorder %s24, 1
      %s427 = scalar_select %p426, %s24, 1
      %s428 = smul.addr %s427, 4
      %s429 = smul.addr %s428, 2
      %s430 = scalar_lea.vmem %s13, %s429
      %p431 = scmp.lt.s32.totalorder %s24, 1
      %s432 = scalar_select %p431, %s24, 1
      %s433 = smul.addr %s432, 54
      %s434 = smul.addr %s433, 4
      %s435 = scalar_lea.vmem %s0, %s434
      %p436 = scmp.lt.s32.totalorder %s24, 1
      %s437 = scalar_select %p436, %s24, 1
      %s438 = smul.addr %s437, 4
      %s439 = smul.addr %s438, 2
      %s440 = scalar_lea.vmem %s13, %s439
      %v442 = vld [vmem:[%s435] sm:$0xf]
      %v443 = vld [vmem:[%s435 + $0x4] sm:$0xf]
      %v444 = vld [vmem:[%s435 + $0xc] sm:$0xf]
      %v445 = vld [vmem:[%s435 + $0x10] sm:$0xf]
      %v446 = vld [vmem:[%s435 + $0x18] sm:$0xf]
      %v447 = vld [vmem:[%s435 + $0x1c] sm:$0xf]
      %v448 = vld [vmem:[%s435 + $0x24] sm:$0xf]
      %v449 = vld [vmem:[%s435 + $0x28] sm:$0xf]
      %v450 = vld [vmem:[%s435 + $0x30] sm:$0xf]
      %v451 = vld [vmem:[%s435 + $0x34] sm:$0xf]
      %v452 = vld [vmem:[%s435 + $0x3c] sm:$0xf]
      %v453 = vld [vmem:[%s435 + $0x40] sm:$0xf]
      %v454 = vld [vmem:[%s435 + $0x48] sm:$0xf]
      %v455 = vld [vmem:[%s435 + $0x4c] sm:$0xf]
      %v456 = vld [vmem:[%s435 + $0x54] sm:$0xf]
      %v457 = vld [vmem:[%s435 + $0x58] sm:$0xf]
      %v458 = vld [vmem:[%s435 + $0x60] sm:$0xf]
      %v459 = vld [vmem:[%s435 + $0x64] sm:$0xf]
      %v460 = vld [vmem:[%s435 + $0x6c] sm:$0xf]
      %v461 = vld [vmem:[%s435 + $0x70] sm:$0xf]
      %v462 = vld [vmem:[%s435 + $0x78] sm:$0xf]
      %v463 = vld [vmem:[%s435 + $0x7c] sm:$0xf]
      %v464 = vld [vmem:[%s435 + $0x84] sm:$0xf]
      %v465 = vld [vmem:[%s435 + $0x88] sm:$0xf]
      %v466 = vld [vmem:[%s435 + $0x90] sm:$0xf]
      %v467 = vld [vmem:[%s435 + $0x94] sm:$0xf]
      %v468 = vld [vmem:[%s435 + $0x9c] sm:$0xf]
      %v469 = vld [vmem:[%s435 + $0xa0] sm:$0xf]
      %v470 = vld [vmem:[%s435 + $0xa8] sm:$0xf]
      %v471 = vld [vmem:[%s435 + $0xac] sm:$0xf]
      %v472 = vld [vmem:[%s435 + $0xb4] sm:$0xf]
      %v473 = vld [vmem:[%s435 + $0xb8] sm:$0xf]
      %v474 = vld [vmem:[%s435 + $0x8] sm:$0x1]
      %v475 = vld [vmem:[%s435 + $0x14] sm:$0x1]
      %v476 = vld [vmem:[%s435 + $0x20] sm:$0x1]
      %v477 = vld [vmem:[%s435 + $0x2c] sm:$0x1]
      %v478 = vld [vmem:[%s435 + $0x38] sm:$0x1]
      %v479 = vld [vmem:[%s435 + $0x44] sm:$0x1]
      %v480 = vld [vmem:[%s435 + $0x50] sm:$0x1]
      %v481 = vld [vmem:[%s435 + $0x5c] sm:$0x1]
      %v482 = vld [vmem:[%s435 + $0x68] sm:$0x1]
      %v483 = vld [vmem:[%s435 + $0x74] sm:$0x1]
      %v484 = vld [vmem:[%s435 + $0x80] sm:$0x1]
      %v485 = vld [vmem:[%s435 + $0x8c] sm:$0x1]
      %v486 = vld [vmem:[%s435 + $0x98] sm:$0x1]
      %v487 = vld [vmem:[%s435 + $0xa4] sm:$0x1]
      %v488 = vld [vmem:[%s435 + $0xb0] sm:$0x1]
      %v489 = vld [vmem:[%s435 + $0xbc] sm:$0x1]
      %v490 = vld [vmem:[%s435] sm:$0xe]
      %v491 = vld [vmem:[%s435 + $0xc] sm:$0xe]
      %v492 = vld [vmem:[%s435 + $0x18] sm:$0xe]
      %v493 = vld [vmem:[%s435 + $0x24] sm:$0xe]
      %v494 = vld [vmem:[%s435 + $0x30] sm:$0xe]
      %v495 = vld [vmem:[%s435 + $0x3c] sm:$0xe]
      %v496 = vld [vmem:[%s435 + $0x48] sm:$0xe]
      %v497 = vld [vmem:[%s435 + $0x54] sm:$0xe]
      %v498 = vld [vmem:[%s435 + $0x60] sm:$0xe]
      %v499 = vld [vmem:[%s435 + $0x6c] sm:$0xe]
      %v500 = vld [vmem:[%s435 + $0x78] sm:$0xe]
      %v501 = vld [vmem:[%s435 + $0x84] sm:$0xe]
      %v502 = vld [vmem:[%s435 + $0x90] sm:$0xe]
      %v503 = vld [vmem:[%s435 + $0x9c] sm:$0xe]
      %v504 = vld [vmem:[%s435 + $0xa8] sm:$0xe]
      %v505 = vld [vmem:[%s435 + $0xb4] sm:$0xe]
      %s506 = scalar_lea.vmem %s435, 12
      %v507 = vld [vmem:[%s506] sm:$0xf]
      %v508 = vld [vmem:[%s506 + $0x4] sm:$0xf]
      %v509 = vld [vmem:[%s506 + $0xc] sm:$0xf]
      %v510 = vld [vmem:[%s506 + $0x10] sm:$0xf]
      %v511 = vld [vmem:[%s506 + $0x18] sm:$0xf]
      %v512 = vld [vmem:[%s506 + $0x1c] sm:$0xf]
      %v513 = vld [vmem:[%s506 + $0x24] sm:$0xf]
      %v514 = vld [vmem:[%s506 + $0x28] sm:$0xf]
      %v515 = vld [vmem:[%s506 + $0x30] sm:$0xf]
      %v516 = vld [vmem:[%s506 + $0x34] sm:$0xf]
      %v517 = vld [vmem:[%s506 + $0x3c] sm:$0xf]
      %v518 = vld [vmem:[%s506 + $0x40] sm:$0xf]
      %v519 = vld [vmem:[%s506 + $0x48] sm:$0xf]
      %v520 = vld [vmem:[%s506 + $0x4c] sm:$0xf]
      %v521 = vld [vmem:[%s506 + $0x54] sm:$0xf]
      %v522 = vld [vmem:[%s506 + $0x58] sm:$0xf]
      %v523 = vld [vmem:[%s506 + $0x60] sm:$0xf]
      %v524 = vld [vmem:[%s506 + $0x64] sm:$0xf]
      %v525 = vld [vmem:[%s506 + $0x6c] sm:$0xf]
      %v526 = vld [vmem:[%s506 + $0x70] sm:$0xf]
      %v527 = vld [vmem:[%s506 + $0x78] sm:$0xf]
      %v528 = vld [vmem:[%s506 + $0x7c] sm:$0xf]
      %v529 = vld [vmem:[%s506 + $0x84] sm:$0xf]
      %v530 = vld [vmem:[%s506 + $0x88] sm:$0xf]
      %v531 = vld [vmem:[%s506 + $0x90] sm:$0xf]
      %v532 = vld [vmem:[%s506 + $0x94] sm:$0xf]
      %v533 = vld [vmem:[%s506 + $0x9c] sm:$0xf]
      %v534 = vld [vmem:[%s506 + $0xa0] sm:$0xf]
      %v535 = vld [vmem:[%s506 + $0xa8] sm:$0xf]
      %v536 = vld [vmem:[%s506 + $0xac] sm:$0xf]
      %v537 = vld [vmem:[%s506 + $0xb4] sm:$0xf]
      %v538 = vld [vmem:[%s506 + $0xb8] sm:$0xf]
      %v539 = vld [vmem:[%s506 + $0x8] sm:$0x1]
      %v540 = vld [vmem:[%s506 + $0x14] sm:$0x1]
      %v541 = vld [vmem:[%s506 + $0x20] sm:$0x1]
      %v542 = vld [vmem:[%s506 + $0x2c] sm:$0x1]
      %v543 = vld [vmem:[%s506 + $0x38] sm:$0x1]
      %v544 = vld [vmem:[%s506 + $0x44] sm:$0x1]
      %v545 = vld [vmem:[%s506 + $0x50] sm:$0x1]
      %v546 = vld [vmem:[%s506 + $0x5c] sm:$0x1]
      %v547 = vld [vmem:[%s506 + $0x68] sm:$0x1]
      %v548 = vld [vmem:[%s506 + $0x74] sm:$0x1]
      %v549 = vld [vmem:[%s506 + $0x80] sm:$0x1]
      %v550 = vld [vmem:[%s506 + $0x8c] sm:$0x1]
      %v551 = vld [vmem:[%s506 + $0x98] sm:$0x1]
      %v552 = vld [vmem:[%s506 + $0xa4] sm:$0x1]
      %v553 = vld [vmem:[%s506 + $0xb0] sm:$0x1]
      %v554 = vld [vmem:[%s506 + $0xbc] sm:$0x1]
      %v555 = vld [vmem:[%s506] sm:$0xe]
      %v556 = vld [vmem:[%s506 + $0xc] sm:$0xe]
      %v557 = vld [vmem:[%s506 + $0x18] sm:$0xe]
      %v558 = vld [vmem:[%s506 + $0x24] sm:$0xe]
      %v559 = vld [vmem:[%s506 + $0x30] sm:$0xe]
      %v560 = vld [vmem:[%s506 + $0x3c] sm:$0xe]
      %v561 = vld [vmem:[%s506 + $0x48] sm:$0xe]
      %v562 = vld [vmem:[%s506 + $0x54] sm:$0xe]
      %v563 = vld [vmem:[%s506 + $0x60] sm:$0xe]
      %v564 = vld [vmem:[%s506 + $0x6c] sm:$0xe]
      %v565 = vld [vmem:[%s506 + $0x78] sm:$0xe]
      %v566 = vld [vmem:[%s506 + $0x84] sm:$0xe]
      %v567 = vld [vmem:[%s506 + $0x90] sm:$0xe]
      %v568 = vld [vmem:[%s506 + $0x9c] sm:$0xe]
      %v569 = vld [vmem:[%s506 + $0xa8] sm:$0xe]
      %v570 = vld [vmem:[%s506 + $0xb4] sm:$0xe]
      %s571 = scalar_lea.vmem %s435, 24
      %v572 = vld [vmem:[%s571] sm:$0xf]
      %v573 = vld [vmem:[%s571 + $0x4] sm:$0xf]
      %v574 = vld [vmem:[%s571 + $0xc] sm:$0xf]
      %v575 = vld [vmem:[%s571 + $0x10] sm:$0xf]
      %v576 = vld [vmem:[%s571 + $0x18] sm:$0xf]
      %v577 = vld [vmem:[%s571 + $0x1c] sm:$0xf]
      %v578 = vld [vmem:[%s571 + $0x24] sm:$0xf]
      %v579 = vld [vmem:[%s571 + $0x28] sm:$0xf]
      %v580 = vld [vmem:[%s571 + $0x30] sm:$0xf]
      %v581 = vld [vmem:[%s571 + $0x34] sm:$0xf]
      %v582 = vld [vmem:[%s571 + $0x3c] sm:$0xf]
      %v583 = vld [vmem:[%s571 + $0x40] sm:$0xf]
      %v584 = vld [vmem:[%s571 + $0x48] sm:$0xf]
      %v585 = vld [vmem:[%s571 + $0x4c] sm:$0xf]
      %v586 = vld [vmem:[%s571 + $0x54] sm:$0xf]
      %v587 = vld [vmem:[%s571 + $0x58] sm:$0xf]
      %v588 = vld [vmem:[%s571 + $0x60] sm:$0xf]
      %v589 = vld [vmem:[%s571 + $0x64] sm:$0xf]
      %v590 = vld [vmem:[%s571 + $0x6c] sm:$0xf]
      %v591 = vld [vmem:[%s571 + $0x70] sm:$0xf]
      %v592 = vld [vmem:[%s571 + $0x78] sm:$0xf]
      %v593 = vld [vmem:[%s571 + $0x7c] sm:$0xf]
      %v594 = vld [vmem:[%s571 + $0x84] sm:$0xf]
      %v595 = vld [vmem:[%s571 + $0x88] sm:$0xf]
      %v596 = vld [vmem:[%s571 + $0x90] sm:$0xf]
      %v597 = vld [vmem:[%s571 + $0x94] sm:$0xf]
      %v598 = vld [vmem:[%s571 + $0x9c] sm:$0xf]
      %v599 = vld [vmem:[%s571 + $0xa0] sm:$0xf]
      %v600 = vld [vmem:[%s571 + $0xa8] sm:$0xf]
      %v601 = vld [vmem:[%s571 + $0xac] sm:$0xf]
      %v602 = vld [vmem:[%s571 + $0xb4] sm:$0xf]
      %v603 = vld [vmem:[%s571 + $0xb8] sm:$0xf]
      %v604 = vld [vmem:[%s571 + $0x8] sm:$0x1]
      %v605 = vld [vmem:[%s571 + $0x14] sm:$0x1]
      %v606 = vld [vmem:[%s571 + $0x20] sm:$0x1]
      %v607 = vld [vmem:[%s571 + $0x2c] sm:$0x1]
      %v608 = vld [vmem:[%s571 + $0x38] sm:$0x1]
      %v609 = vld [vmem:[%s571 + $0x44] sm:$0x1]
      %v610 = vld [vmem:[%s571 + $0x50] sm:$0x1]
      %v611 = vld [vmem:[%s571 + $0x5c] sm:$0x1]
      %v612 = vld [vmem:[%s571 + $0x68] sm:$0x1]
      %v613 = vld [vmem:[%s571 + $0x74] sm:$0x1]
      %v614 = vld [vmem:[%s571 + $0x80] sm:$0x1]
      %v615 = vld [vmem:[%s571 + $0x8c] sm:$0x1]
      %v616 = vld [vmem:[%s571 + $0x98] sm:$0x1]
      %v617 = vld [vmem:[%s571 + $0xa4] sm:$0x1]
      %v618 = vld [vmem:[%s571 + $0xb0] sm:$0x1]
      %v619 = vld [vmem:[%s571 + $0xbc] sm:$0x1]
      %v620 = vld [vmem:[%s571] sm:$0xe]
      %v621 = vld [vmem:[%s571 + $0xc] sm:$0xe]
      %v622 = vld [vmem:[%s571 + $0x18] sm:$0xe]
      %v623 = vld [vmem:[%s571 + $0x24] sm:$0xe]
      %v624 = vld [vmem:[%s571 + $0x30] sm:$0xe]
      %v625 = vld [vmem:[%s571 + $0x3c] sm:$0xe]
      %v626 = vld [vmem:[%s571 + $0x48] sm:$0xe]
      %v627 = vld [vmem:[%s571 + $0x54] sm:$0xe]
      %v628 = vld [vmem:[%s571 + $0x60] sm:$0xe]
      %v629 = vld [vmem:[%s571 + $0x6c] sm:$0xe]
      %v630 = vld [vmem:[%s571 + $0x78] sm:$0xe]
      %v631 = vld [vmem:[%s571 + $0x84] sm:$0xe]
      %v632 = vld [vmem:[%s571 + $0x90] sm:$0xe]
      %v633 = vld [vmem:[%s571 + $0x9c] sm:$0xe]
      %v634 = vld [vmem:[%s571 + $0xa8] sm:$0xe]
      %v635 = vld [vmem:[%s571 + $0xb4] sm:$0xe]
      %v668 = vunpack.c.l.b16 %v442
      %v669 = vunpack.c.l.b16 %v443
      %v670 = vunpack.c.l.b16 %v444
      %v671 = vunpack.c.l.b16 %v445
      %v672 = vunpack.c.l.b16 %v446
      %v673 = vunpack.c.l.b16 %v447
      %v674 = vunpack.c.l.b16 %v448
      %v675 = vunpack.c.l.b16 %v449
      %v676 = vunpack.c.l.b16 %v450
      %v677 = vunpack.c.l.b16 %v451
      %v678 = vunpack.c.l.b16 %v452
      %v679 = vunpack.c.l.b16 %v453
      %v680 = vunpack.c.l.b16 %v454
      %v681 = vunpack.c.l.b16 %v455
      %v682 = vunpack.c.l.b16 %v456
      %v683 = vunpack.c.l.b16 %v457
      %v684 = vunpack.c.l.b16 %v458
      %v685 = vunpack.c.l.b16 %v459
      %v686 = vunpack.c.l.b16 %v460
      %v687 = vunpack.c.l.b16 %v461
      %v688 = vunpack.c.l.b16 %v462
      %v689 = vunpack.c.l.b16 %v463
      %v690 = vunpack.c.l.b16 %v464
      %v691 = vunpack.c.l.b16 %v465
      %v692 = vunpack.c.l.b16 %v466
      %v693 = vunpack.c.l.b16 %v467
      %v694 = vunpack.c.l.b16 %v468
      %v695 = vunpack.c.l.b16 %v469
      %v696 = vunpack.c.l.b16 %v470
      %v697 = vunpack.c.l.b16 %v471
      %v698 = vunpack.c.l.b16 %v472
      %v699 = vunpack.c.l.b16 %v473
      %v700 = vpack.c.b16 %v669, %v668
      %v701 = vpack.c.b16 %v671, %v670
      %v702 = vpack.c.b16 %v673, %v672
      %v703 = vpack.c.b16 %v675, %v674
      %v704 = vpack.c.b16 %v677, %v676
      %v705 = vpack.c.b16 %v679, %v678
      %v706 = vpack.c.b16 %v681, %v680
      %v707 = vpack.c.b16 %v683, %v682
      %v708 = vpack.c.b16 %v685, %v684
      %v709 = vpack.c.b16 %v687, %v686
      %v710 = vpack.c.b16 %v689, %v688
      %v711 = vpack.c.b16 %v691, %v690
      %v712 = vpack.c.b16 %v693, %v692
      %v713 = vpack.c.b16 %v695, %v694
      %v714 = vpack.c.b16 %v697, %v696
      %v715 = vpack.c.b16 %v699, %v698
      %v732 = vunpack.c.l.b16 %v474
      %v733 = vunpack.c.l.b16 %v475
      %v734 = vunpack.c.l.b16 %v476
      %v735 = vunpack.c.l.b16 %v477
      %v736 = vunpack.c.l.b16 %v478
      %v737 = vunpack.c.l.b16 %v479
      %v738 = vunpack.c.l.b16 %v480
      %v739 = vunpack.c.l.b16 %v481
      %v740 = vunpack.c.l.b16 %v482
      %v741 = vunpack.c.l.b16 %v483
      %v742 = vunpack.c.l.b16 %v484
      %v743 = vunpack.c.l.b16 %v485
      %v744 = vunpack.c.l.b16 %v486
      %v745 = vunpack.c.l.b16 %v487
      %v746 = vunpack.c.l.b16 %v488
      %v747 = vunpack.c.l.b16 %v489
      %v748 = vpack.c.b16 %v732, %v732
      %v749 = vpack.c.b16 %v733, %v733
      %v750 = vpack.c.b16 %v734, %v734
      %v751 = vpack.c.b16 %v735, %v735
      %v752 = vpack.c.b16 %v736, %v736
      %v753 = vpack.c.b16 %v737, %v737
      %v754 = vpack.c.b16 %v738, %v738
      %v755 = vpack.c.b16 %v739, %v739
      %v756 = vpack.c.b16 %v740, %v740
      %v757 = vpack.c.b16 %v741, %v741
      %v758 = vpack.c.b16 %v742, %v742
      %v759 = vpack.c.b16 %v743, %v743
      %v760 = vpack.c.b16 %v744, %v744
      %v761 = vpack.c.b16 %v745, %v745
      %v762 = vpack.c.b16 %v746, %v746
      %v763 = vpack.c.b16 %v747, %v747
      %vm764 = vsmask.f32 7424
      %v766 = vshrl.u32 %v700, 16
      %v768 = vshll.u32 %v700, 16
      %v770 = vrot.slane %v768, 1
      %v771 = vor.u32 %v766, %v770
      %v773 = vshll.u32 %v748, 16
      %v775 = vrot.slane %v773, 1
      %v776 = vsel %vm764, %v771, %v775
      %v778 = vshrl.u32 %v701, 16
      %v780 = vshll.u32 %v701, 16
      %v782 = vrot.slane %v780, 1
      %v783 = vor.u32 %v778, %v782
      %v785 = vshll.u32 %v749, 16
      %v787 = vrot.slane %v785, 1
      %v788 = vsel %vm764, %v783, %v787
      %v790 = vshrl.u32 %v702, 16
      %v792 = vshll.u32 %v702, 16
      %v794 = vrot.slane %v792, 1
      %v795 = vor.u32 %v790, %v794
      %v797 = vshll.u32 %v750, 16
      %v799 = vrot.slane %v797, 1
      %v800 = vsel %vm764, %v795, %v799
      %v802 = vshrl.u32 %v703, 16
      %v804 = vshll.u32 %v703, 16
      %v806 = vrot.slane %v804, 1
      %v807 = vor.u32 %v802, %v806
      %v809 = vshll.u32 %v751, 16
      %v811 = vrot.slane %v809, 1
      %v812 = vsel %vm764, %v807, %v811
      %v814 = vshrl.u32 %v704, 16
      %v816 = vshll.u32 %v704, 16
      %v818 = vrot.slane %v816, 1
      %v819 = vor.u32 %v814, %v818
      %v821 = vshll.u32 %v752, 16
      %v823 = vrot.slane %v821, 1
      %v824 = vsel %vm764, %v819, %v823
      %v826 = vshrl.u32 %v705, 16
      %v828 = vshll.u32 %v705, 16
      %v830 = vrot.slane %v828, 1
      %v831 = vor.u32 %v826, %v830
      %v833 = vshll.u32 %v753, 16
      %v835 = vrot.slane %v833, 1
      %v836 = vsel %vm764, %v831, %v835
      %v838 = vshrl.u32 %v706, 16
      %v840 = vshll.u32 %v706, 16
      %v842 = vrot.slane %v840, 1
      %v843 = vor.u32 %v838, %v842
      %v845 = vshll.u32 %v754, 16
      %v847 = vrot.slane %v845, 1
      %v848 = vsel %vm764, %v843, %v847
      %v850 = vshrl.u32 %v707, 16
      %v852 = vshll.u32 %v707, 16
      %v854 = vrot.slane %v852, 1
      %v855 = vor.u32 %v850, %v854
      %v857 = vshll.u32 %v755, 16
      %v859 = vrot.slane %v857, 1
      %v860 = vsel %vm764, %v855, %v859
      %v862 = vshrl.u32 %v708, 16
      %v864 = vshll.u32 %v708, 16
      %v866 = vrot.slane %v864, 1
      %v867 = vor.u32 %v862, %v866
      %v869 = vshll.u32 %v756, 16
      %v871 = vrot.slane %v869, 1
      %v872 = vsel %vm764, %v867, %v871
      %v874 = vshrl.u32 %v709, 16
      %v876 = vshll.u32 %v709, 16
      %v878 = vrot.slane %v876, 1
      %v879 = vor.u32 %v874, %v878
      %v881 = vshll.u32 %v757, 16
      %v883 = vrot.slane %v881, 1
      %v884 = vsel %vm764, %v879, %v883
      %v886 = vshrl.u32 %v710, 16
      %v888 = vshll.u32 %v710, 16
      %v890 = vrot.slane %v888, 1
      %v891 = vor.u32 %v886, %v890
      %v893 = vshll.u32 %v758, 16
      %v895 = vrot.slane %v893, 1
      %v896 = vsel %vm764, %v891, %v895
      %v898 = vshrl.u32 %v711, 16
      %v900 = vshll.u32 %v711, 16
      %v902 = vrot.slane %v900, 1
      %v903 = vor.u32 %v898, %v902
      %v905 = vshll.u32 %v759, 16
      %v907 = vrot.slane %v905, 1
      %v908 = vsel %vm764, %v903, %v907
      %v910 = vshrl.u32 %v712, 16
      %v912 = vshll.u32 %v712, 16
      %v914 = vrot.slane %v912, 1
      %v915 = vor.u32 %v910, %v914
      %v917 = vshll.u32 %v760, 16
      %v919 = vrot.slane %v917, 1
      %v920 = vsel %vm764, %v915, %v919
      %v922 = vshrl.u32 %v713, 16
      %v924 = vshll.u32 %v713, 16
      %v926 = vrot.slane %v924, 1
      %v927 = vor.u32 %v922, %v926
      %v929 = vshll.u32 %v761, 16
      %v931 = vrot.slane %v929, 1
      %v932 = vsel %vm764, %v927, %v931
      %v934 = vshrl.u32 %v714, 16
      %v936 = vshll.u32 %v714, 16
      %v938 = vrot.slane %v936, 1
      %v939 = vor.u32 %v934, %v938
      %v941 = vshll.u32 %v762, 16
      %v943 = vrot.slane %v941, 1
      %v944 = vsel %vm764, %v939, %v943
      %v946 = vshrl.u32 %v715, 16
      %v948 = vshll.u32 %v715, 16
      %v950 = vrot.slane %v948, 1
      %v951 = vor.u32 %v946, %v950
      %v953 = vshll.u32 %v763, 16
      %v955 = vrot.slane %v953, 1
      %v956 = vsel %vm764, %v951, %v955
      %957 = vrot.lane.b32.xlu0 %v776, 8
      %v958 = vpop.permute.xlu0 %957
      %959 = vrot.lane.b32.xlu0 %v788, 8
      %v960 = vpop.permute.xlu0 %959
      %961 = vrot.lane.b32.xlu0 %v800, 8
      %v962 = vpop.permute.xlu0 %961
      %963 = vrot.lane.b32.xlu0 %v812, 8
      %v964 = vpop.permute.xlu0 %963
      %965 = vrot.lane.b32.xlu0 %v824, 8
      %v966 = vpop.permute.xlu0 %965
      %967 = vrot.lane.b32.xlu0 %v836, 8
      %v968 = vpop.permute.xlu0 %967
      %969 = vrot.lane.b32.xlu0 %v848, 8
      %v970 = vpop.permute.xlu0 %969
      %971 = vrot.lane.b32.xlu0 %v860, 8
      %v972 = vpop.permute.xlu0 %971
      %973 = vrot.lane.b32.xlu0 %v872, 8
      %v974 = vpop.permute.xlu0 %973
      %975 = vrot.lane.b32.xlu0 %v884, 8
      %v976 = vpop.permute.xlu0 %975
      %977 = vrot.lane.b32.xlu0 %v896, 8
      %v978 = vpop.permute.xlu0 %977
      %979 = vrot.lane.b32.xlu0 %v908, 8
      %v980 = vpop.permute.xlu0 %979
      %981 = vrot.lane.b32.xlu0 %v920, 8
      %v982 = vpop.permute.xlu0 %981
      %983 = vrot.lane.b32.xlu0 %v932, 8
      %v984 = vpop.permute.xlu0 %983
      %985 = vrot.lane.b32.xlu0 %v944, 8
      %v986 = vpop.permute.xlu0 %985
      %987 = vrot.lane.b32.xlu0 %v956, 8
      %v988 = vpop.permute.xlu0 %987
      %v1005 = vunpack.c.l.b16 %v490
      %v1006 = vunpack.c.l.b16 %v491
      %v1007 = vunpack.c.l.b16 %v492
      %v1008 = vunpack.c.l.b16 %v493
      %v1009 = vunpack.c.l.b16 %v494
      %v1010 = vunpack.c.l.b16 %v495
      %v1011 = vunpack.c.l.b16 %v496
      %v1012 = vunpack.c.l.b16 %v497
      %v1013 = vunpack.c.l.b16 %v498
      %v1014 = vunpack.c.l.b16 %v499
      %v1015 = vunpack.c.l.b16 %v500
      %v1016 = vunpack.c.l.b16 %v501
      %v1017 = vunpack.c.l.b16 %v502
      %v1018 = vunpack.c.l.b16 %v503
      %v1019 = vunpack.c.l.b16 %v504
      %v1020 = vunpack.c.l.b16 %v505
      %v1021 = vpack.c.b16 %v669, %v1005
      %v1022 = vpack.c.b16 %v671, %v1006
      %v1023 = vpack.c.b16 %v673, %v1007
      %v1024 = vpack.c.b16 %v675, %v1008
      %v1025 = vpack.c.b16 %v677, %v1009
      %v1026 = vpack.c.b16 %v679, %v1010
      %v1027 = vpack.c.b16 %v681, %v1011
      %v1028 = vpack.c.b16 %v683, %v1012
      %v1029 = vpack.c.b16 %v685, %v1013
      %v1030 = vpack.c.b16 %v687, %v1014
      %v1031 = vpack.c.b16 %v689, %v1015
      %v1032 = vpack.c.b16 %v691, %v1016
      %v1033 = vpack.c.b16 %v693, %v1017
      %v1034 = vpack.c.b16 %v695, %v1018
      %v1035 = vpack.c.b16 %v697, %v1019
      %v1036 = vpack.c.b16 %v699, %v1020
      %vm1037 = vcmask 1046528
      %v1038 = vrot.slane %v1021, 1
      %v1039 = vrot.slane %v748, 1
      %v1040 = vsel %vm1037, %v1038, %v1039
      %v1041 = vrot.slane %v1022, 1
      %v1042 = vrot.slane %v749, 1
      %v1043 = vsel %vm1037, %v1041, %v1042
      %v1044 = vrot.slane %v1023, 1
      %v1045 = vrot.slane %v750, 1
      %v1046 = vsel %vm1037, %v1044, %v1045
      %v1047 = vrot.slane %v1024, 1
      %v1048 = vrot.slane %v751, 1
      %v1049 = vsel %vm1037, %v1047, %v1048
      %v1050 = vrot.slane %v1025, 1
      %v1051 = vrot.slane %v752, 1
      %v1052 = vsel %vm1037, %v1050, %v1051
      %v1053 = vrot.slane %v1026, 1
      %v1054 = vrot.slane %v753, 1
      %v1055 = vsel %vm1037, %v1053, %v1054
      %v1056 = vrot.slane %v1027, 1
      %v1057 = vrot.slane %v754, 1
      %v1058 = vsel %vm1037, %v1056, %v1057
      %v1059 = vrot.slane %v1028, 1
      %v1060 = vrot.slane %v755, 1
      %v1061 = vsel %vm1037, %v1059, %v1060
      %v1062 = vrot.slane %v1029, 1
      %v1063 = vrot.slane %v756, 1
      %v1064 = vsel %vm1037, %v1062, %v1063
      %v1065 = vrot.slane %v1030, 1
      %v1066 = vrot.slane %v757, 1
      %v1067 = vsel %vm1037, %v1065, %v1066
      %v1068 = vrot.slane %v1031, 1
      %v1069 = vrot.slane %v758, 1
      %v1070 = vsel %vm1037, %v1068, %v1069
      %v1071 = vrot.slane %v1032, 1
      %v1072 = vrot.slane %v759, 1
      %v1073 = vsel %vm1037, %v1071, %v1072
      %v1074 = vrot.slane %v1033, 1
      %v1075 = vrot.slane %v760, 1
      %v1076 = vsel %vm1037, %v1074, %v1075
      %v1077 = vrot.slane %v1034, 1
      %v1078 = vrot.slane %v761, 1
      %v1079 = vsel %vm1037, %v1077, %v1078
      %v1080 = vrot.slane %v1035, 1
      %v1081 = vrot.slane %v762, 1
      %v1082 = vsel %vm1037, %v1080, %v1081
      %v1083 = vrot.slane %v1036, 1
      %v1084 = vrot.slane %v763, 1
      %v1085 = vsel %vm1037, %v1083, %v1084
      %1086 = vrot.lane.b32.xlu0 %v1040, 16
      %v1087 = vpop.permute.xlu0 %1086
      %1088 = vrot.lane.b32.xlu0 %v1043, 16
      %v1089 = vpop.permute.xlu0 %1088
      %1090 = vrot.lane.b32.xlu0 %v1046, 16
      %v1091 = vpop.permute.xlu0 %1090
      %1092 = vrot.lane.b32.xlu0 %v1049, 16
      %v1093 = vpop.permute.xlu0 %1092
      %1094 = vrot.lane.b32.xlu0 %v1052, 16
      %v1095 = vpop.permute.xlu0 %1094
      %1096 = vrot.lane.b32.xlu0 %v1055, 16
      %v1097 = vpop.permute.xlu0 %1096
      %1098 = vrot.lane.b32.xlu0 %v1058, 16
      %v1099 = vpop.permute.xlu0 %1098
      %1100 = vrot.lane.b32.xlu0 %v1061, 16
      %v1101 = vpop.permute.xlu0 %1100
      %1102 = vrot.lane.b32.xlu0 %v1064, 16
      %v1103 = vpop.permute.xlu0 %1102
      %1104 = vrot.lane.b32.xlu0 %v1067, 16
      %v1105 = vpop.permute.xlu0 %1104
      %1106 = vrot.lane.b32.xlu0 %v1070, 16
      %v1107 = vpop.permute.xlu0 %1106
      %1108 = vrot.lane.b32.xlu0 %v1073, 16
      %v1109 = vpop.permute.xlu0 %1108
      %1110 = vrot.lane.b32.xlu0 %v1076, 16
      %v1111 = vpop.permute.xlu0 %1110
      %1112 = vrot.lane.b32.xlu0 %v1079, 16
      %v1113 = vpop.permute.xlu0 %1112
      %1114 = vrot.lane.b32.xlu0 %v1082, 16
      %v1115 = vpop.permute.xlu0 %1114
      %1116 = vrot.lane.b32.xlu0 %v1085, 16
      %v1117 = vpop.permute.xlu0 %1116
      %v1150 = vunpack.c.l.b16 %v507
      %v1151 = vunpack.c.l.b16 %v508
      %v1152 = vunpack.c.l.b16 %v509
      %v1153 = vunpack.c.l.b16 %v510
      %v1154 = vunpack.c.l.b16 %v511
      %v1155 = vunpack.c.l.b16 %v512
      %v1156 = vunpack.c.l.b16 %v513
      %v1157 = vunpack.c.l.b16 %v514
      %v1158 = vunpack.c.l.b16 %v515
      %v1159 = vunpack.c.l.b16 %v516
      %v1160 = vunpack.c.l.b16 %v517
      %v1161 = vunpack.c.l.b16 %v518
      %v1162 = vunpack.c.l.b16 %v519
      %v1163 = vunpack.c.l.b16 %v520
      %v1164 = vunpack.c.l.b16 %v521
      %v1165 = vunpack.c.l.b16 %v522
      %v1166 = vunpack.c.l.b16 %v523
      %v1167 = vunpack.c.l.b16 %v524
      %v1168 = vunpack.c.l.b16 %v525
      %v1169 = vunpack.c.l.b16 %v526
      %v1170 = vunpack.c.l.b16 %v527
      %v1171 = vunpack.c.l.b16 %v528
      %v1172 = vunpack.c.l.b16 %v529
      %v1173 = vunpack.c.l.b16 %v530
      %v1174 = vunpack.c.l.b16 %v531
      %v1175 = vunpack.c.l.b16 %v532
      %v1176 = vunpack.c.l.b16 %v533
      %v1177 = vunpack.c.l.b16 %v534
      %v1178 = vunpack.c.l.b16 %v535
      %v1179 = vunpack.c.l.b16 %v536
      %v1180 = vunpack.c.l.b16 %v537
      %v1181 = vunpack.c.l.b16 %v538
      %v1182 = vpack.c.b16 %v1151, %v1150
      %v1183 = vpack.c.b16 %v1153, %v1152
      %v1184 = vpack.c.b16 %v1155, %v1154
      %v1185 = vpack.c.b16 %v1157, %v1156
      %v1186 = vpack.c.b16 %v1159, %v1158
      %v1187 = vpack.c.b16 %v1161, %v1160
      %v1188 = vpack.c.b16 %v1163, %v1162
      %v1189 = vpack.c.b16 %v1165, %v1164
      %v1190 = vpack.c.b16 %v1167, %v1166
      %v1191 = vpack.c.b16 %v1169, %v1168
      %v1192 = vpack.c.b16 %v1171, %v1170
      %v1193 = vpack.c.b16 %v1173, %v1172
      %v1194 = vpack.c.b16 %v1175, %v1174
      %v1195 = vpack.c.b16 %v1177, %v1176
      %v1196 = vpack.c.b16 %v1179, %v1178
      %v1197 = vpack.c.b16 %v1181, %v1180
      %1198 = vrot.lane.b32.xlu0 %v1182, 24
      %v1199 = vpop.permute.xlu0 %1198
      %1200 = vrot.lane.b32.xlu0 %v1183, 24
      %v1201 = vpop.permute.xlu0 %1200
      %1202 = vrot.lane.b32.xlu0 %v1184, 24
      %v1203 = vpop.permute.xlu0 %1202
      %1204 = vrot.lane.b32.xlu0 %v1185, 24
      %v1205 = vpop.permute.xlu0 %1204
      %1206 = vrot.lane.b32.xlu0 %v1186, 24
      %v1207 = vpop.permute.xlu0 %1206
      %1208 = vrot.lane.b32.xlu0 %v1187, 24
      %v1209 = vpop.permute.xlu0 %1208
      %1210 = vrot.lane.b32.xlu0 %v1188, 24
      %v1211 = vpop.permute.xlu0 %1210
      %1212 = vrot.lane.b32.xlu0 %v1189, 24
      %v1213 = vpop.permute.xlu0 %1212
      %1214 = vrot.lane.b32.xlu0 %v1190, 24
      %v1215 = vpop.permute.xlu0 %1214
      %1216 = vrot.lane.b32.xlu0 %v1191, 24
      %v1217 = vpop.permute.xlu0 %1216
      %1218 = vrot.lane.b32.xlu0 %v1192, 24
      %v1219 = vpop.permute.xlu0 %1218
      %1220 = vrot.lane.b32.xlu0 %v1193, 24
      %v1221 = vpop.permute.xlu0 %1220
      %1222 = vrot.lane.b32.xlu0 %v1194, 24
      %v1223 = vpop.permute.xlu0 %1222
      %1224 = vrot.lane.b32.xlu0 %v1195, 24
      %v1225 = vpop.permute.xlu0 %1224
      %1226 = vrot.lane.b32.xlu0 %v1196, 24
      %v1227 = vpop.permute.xlu0 %1226
      %1228 = vrot.lane.b32.xlu0 %v1197, 24
      %v1229 = vpop.permute.xlu0 %1228
      %v1246 = vunpack.c.l.b16 %v539
      %v1247 = vunpack.c.l.b16 %v540
      %v1248 = vunpack.c.l.b16 %v541
      %v1249 = vunpack.c.l.b16 %v542
      %v1250 = vunpack.c.l.b16 %v543
      %v1251 = vunpack.c.l.b16 %v544
      %v1252 = vunpack.c.l.b16 %v545
      %v1253 = vunpack.c.l.b16 %v546
      %v1254 = vunpack.c.l.b16 %v547
      %v1255 = vunpack.c.l.b16 %v548
      %v1256 = vunpack.c.l.b16 %v549
      %v1257 = vunpack.c.l.b16 %v550
      %v1258 = vunpack.c.l.b16 %v551
      %v1259 = vunpack.c.l.b16 %v552
      %v1260 = vunpack.c.l.b16 %v553
      %v1261 = vunpack.c.l.b16 %v554
      %v1262 = vpack.c.b16 %v1246, %v1246
      %v1263 = vpack.c.b16 %v1247, %v1247
      %v1264 = vpack.c.b16 %v1248, %v1248
      %v1265 = vpack.c.b16 %v1249, %v1249
      %v1266 = vpack.c.b16 %v1250, %v1250
      %v1267 = vpack.c.b16 %v1251, %v1251
      %v1268 = vpack.c.b16 %v1252, %v1252
      %v1269 = vpack.c.b16 %v1253, %v1253
      %v1270 = vpack.c.b16 %v1254, %v1254
      %v1271 = vpack.c.b16 %v1255, %v1255
      %v1272 = vpack.c.b16 %v1256, %v1256
      %v1273 = vpack.c.b16 %v1257, %v1257
      %v1274 = vpack.c.b16 %v1258, %v1258
      %v1275 = vpack.c.b16 %v1259, %v1259
      %v1276 = vpack.c.b16 %v1260, %v1260
      %v1277 = vpack.c.b16 %v1261, %v1261
      %v1279 = vshrl.u32 %v1182, 16
      %v1281 = vshll.u32 %v1182, 16
      %v1283 = vrot.slane %v1281, 1
      %v1284 = vor.u32 %v1279, %v1283
      %v1286 = vshll.u32 %v1262, 16
      %v1288 = vrot.slane %v1286, 1
      %v1289 = vsel %vm764, %v1284, %v1288
      %v1291 = vshrl.u32 %v1183, 16
      %v1293 = vshll.u32 %v1183, 16
      %v1295 = vrot.slane %v1293, 1
      %v1296 = vor.u32 %v1291, %v1295
      %v1298 = vshll.u32 %v1263, 16
      %v1300 = vrot.slane %v1298, 1
      %v1301 = vsel %vm764, %v1296, %v1300
      %v1303 = vshrl.u32 %v1184, 16
      %v1305 = vshll.u32 %v1184, 16
      %v1307 = vrot.slane %v1305, 1
      %v1308 = vor.u32 %v1303, %v1307
      %v1310 = vshll.u32 %v1264, 16
      %v1312 = vrot.slane %v1310, 1
      %v1313 = vsel %vm764, %v1308, %v1312
      %v1315 = vshrl.u32 %v1185, 16
      %v1317 = vshll.u32 %v1185, 16
      %v1319 = vrot.slane %v1317, 1
      %v1320 = vor.u32 %v1315, %v1319
      %v1322 = vshll.u32 %v1265, 16
      %v1324 = vrot.slane %v1322, 1
      %v1325 = vsel %vm764, %v1320, %v1324
      %v1327 = vshrl.u32 %v1186, 16
      %v1329 = vshll.u32 %v1186, 16
      %v1331 = vrot.slane %v1329, 1
      %v1332 = vor.u32 %v1327, %v1331
      %v1334 = vshll.u32 %v1266, 16
      %v1336 = vrot.slane %v1334, 1
      %v1337 = vsel %vm764, %v1332, %v1336
      %v1339 = vshrl.u32 %v1187, 16
      %v1341 = vshll.u32 %v1187, 16
      %v1343 = vrot.slane %v1341, 1
      %v1344 = vor.u32 %v1339, %v1343
      %v1346 = vshll.u32 %v1267, 16
      %v1348 = vrot.slane %v1346, 1
      %v1349 = vsel %vm764, %v1344, %v1348
      %v1351 = vshrl.u32 %v1188, 16
      %v1353 = vshll.u32 %v1188, 16
      %v1355 = vrot.slane %v1353, 1
      %v1356 = vor.u32 %v1351, %v1355
      %v1358 = vshll.u32 %v1268, 16
      %v1360 = vrot.slane %v1358, 1
      %v1361 = vsel %vm764, %v1356, %v1360
      %v1363 = vshrl.u32 %v1189, 16
      %v1365 = vshll.u32 %v1189, 16
      %v1367 = vrot.slane %v1365, 1
      %v1368 = vor.u32 %v1363, %v1367
      %v1370 = vshll.u32 %v1269, 16
      %v1372 = vrot.slane %v1370, 1
      %v1373 = vsel %vm764, %v1368, %v1372
      %v1375 = vshrl.u32 %v1190, 16
      %v1377 = vshll.u32 %v1190, 16
      %v1379 = vrot.slane %v1377, 1
      %v1380 = vor.u32 %v1375, %v1379
      %v1382 = vshll.u32 %v1270, 16
      %v1384 = vrot.slane %v1382, 1
      %v1385 = vsel %vm764, %v1380, %v1384
      %v1387 = vshrl.u32 %v1191, 16
      %v1389 = vshll.u32 %v1191, 16
      %v1391 = vrot.slane %v1389, 1
      %v1392 = vor.u32 %v1387, %v1391
      %v1394 = vshll.u32 %v1271, 16
      %v1396 = vrot.slane %v1394, 1
      %v1397 = vsel %vm764, %v1392, %v1396
      %v1399 = vshrl.u32 %v1192, 16
      %v1401 = vshll.u32 %v1192, 16
      %v1403 = vrot.slane %v1401, 1
      %v1404 = vor.u32 %v1399, %v1403
      %v1406 = vshll.u32 %v1272, 16
      %v1408 = vrot.slane %v1406, 1
      %v1409 = vsel %vm764, %v1404, %v1408
      %v1411 = vshrl.u32 %v1193, 16
      %v1413 = vshll.u32 %v1193, 16
      %v1415 = vrot.slane %v1413, 1
      %v1416 = vor.u32 %v1411, %v1415
      %v1418 = vshll.u32 %v1273, 16
      %v1420 = vrot.slane %v1418, 1
      %v1421 = vsel %vm764, %v1416, %v1420
      %v1423 = vshrl.u32 %v1194, 16
      %v1425 = vshll.u32 %v1194, 16
      %v1427 = vrot.slane %v1425, 1
      %v1428 = vor.u32 %v1423, %v1427
      %v1430 = vshll.u32 %v1274, 16
      %v1432 = vrot.slane %v1430, 1
      %v1433 = vsel %vm764, %v1428, %v1432
      %v1435 = vshrl.u32 %v1195, 16
      %v1437 = vshll.u32 %v1195, 16
      %v1439 = vrot.slane %v1437, 1
      %v1440 = vor.u32 %v1435, %v1439
      %v1442 = vshll.u32 %v1275, 16
      %v1444 = vrot.slane %v1442, 1
      %v1445 = vsel %vm764, %v1440, %v1444
      %v1447 = vshrl.u32 %v1196, 16
      %v1449 = vshll.u32 %v1196, 16
      %v1451 = vrot.slane %v1449, 1
      %v1452 = vor.u32 %v1447, %v1451
      %v1454 = vshll.u32 %v1276, 16
      %v1456 = vrot.slane %v1454, 1
      %v1457 = vsel %vm764, %v1452, %v1456
      %v1459 = vshrl.u32 %v1197, 16
      %v1461 = vshll.u32 %v1197, 16
      %v1463 = vrot.slane %v1461, 1
      %v1464 = vor.u32 %v1459, %v1463
      %v1466 = vshll.u32 %v1277, 16
      %v1468 = vrot.slane %v1466, 1
      %v1469 = vsel %vm764, %v1464, %v1468
      %1470 = vrot.lane.b32.xlu0 %v1289, 32
      %v1471 = vpop.permute.xlu0 %1470
      %1472 = vrot.lane.b32.xlu0 %v1301, 32
      %v1473 = vpop.permute.xlu0 %1472
      %1474 = vrot.lane.b32.xlu0 %v1313, 32
      %v1475 = vpop.permute.xlu0 %1474
      %1476 = vrot.lane.b32.xlu0 %v1325, 32
      %v1477 = vpop.permute.xlu0 %1476
      %1478 = vrot.lane.b32.xlu0 %v1337, 32
      %v1479 = vpop.permute.xlu0 %1478
      %1480 = vrot.lane.b32.xlu0 %v1349, 32
      %v1481 = vpop.permute.xlu0 %1480
      %1482 = vrot.lane.b32.xlu0 %v1361, 32
      %v1483 = vpop.permute.xlu0 %1482
      %1484 = vrot.lane.b32.xlu0 %v1373, 32
      %v1485 = vpop.permute.xlu0 %1484
      %1486 = vrot.lane.b32.xlu0 %v1385, 32
      %v1487 = vpop.permute.xlu0 %1486
      %1488 = vrot.lane.b32.xlu0 %v1397, 32
      %v1489 = vpop.permute.xlu0 %1488
      %1490 = vrot.lane.b32.xlu0 %v1409, 32
      %v1491 = vpop.permute.xlu0 %1490
      %1492 = vrot.lane.b32.xlu0 %v1421, 32
      %v1493 = vpop.permute.xlu0 %1492
      %1494 = vrot.lane.b32.xlu0 %v1433, 32
      %v1495 = vpop.permute.xlu0 %1494
      %1496 = vrot.lane.b32.xlu0 %v1445, 32
      %v1497 = vpop.permute.xlu0 %1496
      %1498 = vrot.lane.b32.xlu0 %v1457, 32
      %v1499 = vpop.permute.xlu0 %1498
      %1500 = vrot.lane.b32.xlu0 %v1469, 32
      %v1501 = vpop.permute.xlu0 %1500
      %v1518 = vunpack.c.l.b16 %v555
      %v1519 = vunpack.c.l.b16 %v556
      %v1520 = vunpack.c.l.b16 %v557
      %v1521 = vunpack.c.l.b16 %v558
      %v1522 = vunpack.c.l.b16 %v559
      %v1523 = vunpack.c.l.b16 %v560
      %v1524 = vunpack.c.l.b16 %v561
      %v1525 = vunpack.c.l.b16 %v562
      %v1526 = vunpack.c.l.b16 %v563
      %v1527 = vunpack.c.l.b16 %v564
      %v1528 = vunpack.c.l.b16 %v565
      %v1529 = vunpack.c.l.b16 %v566
      %v1530 = vunpack.c.l.b16 %v567
      %v1531 = vunpack.c.l.b16 %v568
      %v1532 = vunpack.c.l.b16 %v569
      %v1533 = vunpack.c.l.b16 %v570
      %v1534 = vpack.c.b16 %v1151, %v1518
      %v1535 = vpack.c.b16 %v1153, %v1519
      %v1536 = vpack.c.b16 %v1155, %v1520
      %v1537 = vpack.c.b16 %v1157, %v1521
      %v1538 = vpack.c.b16 %v1159, %v1522
      %v1539 = vpack.c.b16 %v1161, %v1523
      %v1540 = vpack.c.b16 %v1163, %v1524
      %v1541 = vpack.c.b16 %v1165, %v1525
      %v1542 = vpack.c.b16 %v1167, %v1526
      %v1543 = vpack.c.b16 %v1169, %v1527
      %v1544 = vpack.c.b16 %v1171, %v1528
      %v1545 = vpack.c.b16 %v1173, %v1529
      %v1546 = vpack.c.b16 %v1175, %v1530
      %v1547 = vpack.c.b16 %v1177, %v1531
      %v1548 = vpack.c.b16 %v1179, %v1532
      %v1549 = vpack.c.b16 %v1181, %v1533
      %v1550 = vrot.slane %v1534, 1
      %v1551 = vrot.slane %v1262, 1
      %v1552 = vsel %vm1037, %v1550, %v1551
      %v1553 = vrot.slane %v1535, 1
      %v1554 = vrot.slane %v1263, 1
      %v1555 = vsel %vm1037, %v1553, %v1554
      %v1556 = vrot.slane %v1536, 1
      %v1557 = vrot.slane %v1264, 1
      %v1558 = vsel %vm1037, %v1556, %v1557
      %v1559 = vrot.slane %v1537, 1
      %v1560 = vrot.slane %v1265, 1
      %v1561 = vsel %vm1037, %v1559, %v1560
      %v1562 = vrot.slane %v1538, 1
      %v1563 = vrot.slane %v1266, 1
      %v1564 = vsel %vm1037, %v1562, %v1563
      %v1565 = vrot.slane %v1539, 1
      %v1566 = vrot.slane %v1267, 1
      %v1567 = vsel %vm1037, %v1565, %v1566
      %v1568 = vrot.slane %v1540, 1
      %v1569 = vrot.slane %v1268, 1
      %v1570 = vsel %vm1037, %v1568, %v1569
      %v1571 = vrot.slane %v1541, 1
      %v1572 = vrot.slane %v1269, 1
      %v1573 = vsel %vm1037, %v1571, %v1572
      %v1574 = vrot.slane %v1542, 1
      %v1575 = vrot.slane %v1270, 1
      %v1576 = vsel %vm1037, %v1574, %v1575
      %v1577 = vrot.slane %v1543, 1
      %v1578 = vrot.slane %v1271, 1
      %v1579 = vsel %vm1037, %v1577, %v1578
      %v1580 = vrot.slane %v1544, 1
      %v1581 = vrot.slane %v1272, 1
      %v1582 = vsel %vm1037, %v1580, %v1581
      %v1583 = vrot.slane %v1545, 1
      %v1584 = vrot.slane %v1273, 1
      %v1585 = vsel %vm1037, %v1583, %v1584
      %v1586 = vrot.slane %v1546, 1
      %v1587 = vrot.slane %v1274, 1
      %v1588 = vsel %vm1037, %v1586, %v1587
      %v1589 = vrot.slane %v1547, 1
      %v1590 = vrot.slane %v1275, 1
      %v1591 = vsel %vm1037, %v1589, %v1590
      %v1592 = vrot.slane %v1548, 1
      %v1593 = vrot.slane %v1276, 1
      %v1594 = vsel %vm1037, %v1592, %v1593
      %v1595 = vrot.slane %v1549, 1
      %v1596 = vrot.slane %v1277, 1
      %v1597 = vsel %vm1037, %v1595, %v1596
      %1598 = vrot.lane.b32.xlu0 %v1552, 40
      %v1599 = vpop.permute.xlu0 %1598
      %1600 = vrot.lane.b32.xlu0 %v1555, 40
      %v1601 = vpop.permute.xlu0 %1600
      %1602 = vrot.lane.b32.xlu0 %v1558, 40
      %v1603 = vpop.permute.xlu0 %1602
      %1604 = vrot.lane.b32.xlu0 %v1561, 40
      %v1605 = vpop.permute.xlu0 %1604
      %1606 = vrot.lane.b32.xlu0 %v1564, 40
      %v1607 = vpop.permute.xlu0 %1606
      %1608 = vrot.lane.b32.xlu0 %v1567, 40
      %v1609 = vpop.permute.xlu0 %1608
      %1610 = vrot.lane.b32.xlu0 %v1570, 40
      %v1611 = vpop.permute.xlu0 %1610
      %1612 = vrot.lane.b32.xlu0 %v1573, 40
      %v1613 = vpop.permute.xlu0 %1612
      %1614 = vrot.lane.b32.xlu0 %v1576, 40
      %v1615 = vpop.permute.xlu0 %1614
      %1616 = vrot.lane.b32.xlu0 %v1579, 40
      %v1617 = vpop.permute.xlu0 %1616
      %1618 = vrot.lane.b32.xlu0 %v1582, 40
      %v1619 = vpop.permute.xlu0 %1618
      %1620 = vrot.lane.b32.xlu0 %v1585, 40
      %v1621 = vpop.permute.xlu0 %1620
      %1622 = vrot.lane.b32.xlu0 %v1588, 40
      %v1623 = vpop.permute.xlu0 %1622
      %1624 = vrot.lane.b32.xlu0 %v1591, 40
      %v1625 = vpop.permute.xlu0 %1624
      %1626 = vrot.lane.b32.xlu0 %v1594, 40
      %v1627 = vpop.permute.xlu0 %1626
      %1628 = vrot.lane.b32.xlu0 %v1597, 40
      %v1629 = vpop.permute.xlu0 %1628
      %v1662 = vunpack.c.l.b16 %v572
      %v1663 = vunpack.c.l.b16 %v573
      %v1664 = vunpack.c.l.b16 %v574
      %v1665 = vunpack.c.l.b16 %v575
      %v1666 = vunpack.c.l.b16 %v576
      %v1667 = vunpack.c.l.b16 %v577
      %v1668 = vunpack.c.l.b16 %v578
      %v1669 = vunpack.c.l.b16 %v579
      %v1670 = vunpack.c.l.b16 %v580
      %v1671 = vunpack.c.l.b16 %v581
      %v1672 = vunpack.c.l.b16 %v582
      %v1673 = vunpack.c.l.b16 %v583
      %v1674 = vunpack.c.l.b16 %v584
      %v1675 = vunpack.c.l.b16 %v585
      %v1676 = vunpack.c.l.b16 %v586
      %v1677 = vunpack.c.l.b16 %v587
      %v1678 = vunpack.c.l.b16 %v588
      %v1679 = vunpack.c.l.b16 %v589
      %v1680 = vunpack.c.l.b16 %v590
      %v1681 = vunpack.c.l.b16 %v591
      %v1682 = vunpack.c.l.b16 %v592
      %v1683 = vunpack.c.l.b16 %v593
      %v1684 = vunpack.c.l.b16 %v594
      %v1685 = vunpack.c.l.b16 %v595
      %v1686 = vunpack.c.l.b16 %v596
      %v1687 = vunpack.c.l.b16 %v597
      %v1688 = vunpack.c.l.b16 %v598
      %v1689 = vunpack.c.l.b16 %v599
      %v1690 = vunpack.c.l.b16 %v600
      %v1691 = vunpack.c.l.b16 %v601
      %v1692 = vunpack.c.l.b16 %v602
      %v1693 = vunpack.c.l.b16 %v603
      %v1694 = vpack.c.b16 %v1663, %v1662
      %v1695 = vpack.c.b16 %v1665, %v1664
      %v1696 = vpack.c.b16 %v1667, %v1666
      %v1697 = vpack.c.b16 %v1669, %v1668
      %v1698 = vpack.c.b16 %v1671, %v1670
      %v1699 = vpack.c.b16 %v1673, %v1672
      %v1700 = vpack.c.b16 %v1675, %v1674
      %v1701 = vpack.c.b16 %v1677, %v1676
      %v1702 = vpack.c.b16 %v1679, %v1678
      %v1703 = vpack.c.b16 %v1681, %v1680
      %v1704 = vpack.c.b16 %v1683, %v1682
      %v1705 = vpack.c.b16 %v1685, %v1684
      %v1706 = vpack.c.b16 %v1687, %v1686
      %v1707 = vpack.c.b16 %v1689, %v1688
      %v1708 = vpack.c.b16 %v1691, %v1690
      %v1709 = vpack.c.b16 %v1693, %v1692
      %1710 = vrot.lane.b32.xlu0 %v1694, 48
      %v1711 = vpop.permute.xlu0 %1710
      %1712 = vrot.lane.b32.xlu0 %v1695, 48
      %v1713 = vpop.permute.xlu0 %1712
      %1714 = vrot.lane.b32.xlu0 %v1696, 48
      %v1715 = vpop.permute.xlu0 %1714
      %1716 = vrot.lane.b32.xlu0 %v1697, 48
      %v1717 = vpop.permute.xlu0 %1716
      %1718 = vrot.lane.b32.xlu0 %v1698, 48
      %v1719 = vpop.permute.xlu0 %1718
      %1720 = vrot.lane.b32.xlu0 %v1699, 48
      %v1721 = vpop.permute.xlu0 %1720
      %1722 = vrot.lane.b32.xlu0 %v1700, 48
      %v1723 = vpop.permute.xlu0 %1722
      %1724 = vrot.lane.b32.xlu0 %v1701, 48
      %v1725 = vpop.permute.xlu0 %1724
      %1726 = vrot.lane.b32.xlu0 %v1702, 48
      %v1727 = vpop.permute.xlu0 %1726
      %1728 = vrot.lane.b32.xlu0 %v1703, 48
      %v1729 = vpop.permute.xlu0 %1728
      %1730 = vrot.lane.b32.xlu0 %v1704, 48
      %v1731 = vpop.permute.xlu0 %1730
      %1732 = vrot.lane.b32.xlu0 %v1705, 48
      %v1733 = vpop.permute.xlu0 %1732
      %1734 = vrot.lane.b32.xlu0 %v1706, 48
      %v1735 = vpop.permute.xlu0 %1734
      %1736 = vrot.lane.b32.xlu0 %v1707, 48
      %v1737 = vpop.permute.xlu0 %1736
      %1738 = vrot.lane.b32.xlu0 %v1708, 48
      %v1739 = vpop.permute.xlu0 %1738
      %1740 = vrot.lane.b32.xlu0 %v1709, 48
      %v1741 = vpop.permute.xlu0 %1740
      %v1758 = vunpack.c.l.b16 %v604
      %v1759 = vunpack.c.l.b16 %v605
      %v1760 = vunpack.c.l.b16 %v606
      %v1761 = vunpack.c.l.b16 %v607
      %v1762 = vunpack.c.l.b16 %v608
      %v1763 = vunpack.c.l.b16 %v609
      %v1764 = vunpack.c.l.b16 %v610
      %v1765 = vunpack.c.l.b16 %v611
      %v1766 = vunpack.c.l.b16 %v612
      %v1767 = vunpack.c.l.b16 %v613
      %v1768 = vunpack.c.l.b16 %v614
      %v1769 = vunpack.c.l.b16 %v615
      %v1770 = vunpack.c.l.b16 %v616
      %v1771 = vunpack.c.l.b16 %v617
      %v1772 = vunpack.c.l.b16 %v618
      %v1773 = vunpack.c.l.b16 %v619
      %v1774 = vpack.c.b16 %v1758, %v1758
      %v1775 = vpack.c.b16 %v1759, %v1759
      %v1776 = vpack.c.b16 %v1760, %v1760
      %v1777 = vpack.c.b16 %v1761, %v1761
      %v1778 = vpack.c.b16 %v1762, %v1762
      %v1779 = vpack.c.b16 %v1763, %v1763
      %v1780 = vpack.c.b16 %v1764, %v1764
      %v1781 = vpack.c.b16 %v1765, %v1765
      %v1782 = vpack.c.b16 %v1766, %v1766
      %v1783 = vpack.c.b16 %v1767, %v1767
      %v1784 = vpack.c.b16 %v1768, %v1768
      %v1785 = vpack.c.b16 %v1769, %v1769
      %v1786 = vpack.c.b16 %v1770, %v1770
      %v1787 = vpack.c.b16 %v1771, %v1771
      %v1788 = vpack.c.b16 %v1772, %v1772
      %v1789 = vpack.c.b16 %v1773, %v1773
      %v1791 = vshrl.u32 %v1694, 16
      %v1793 = vshll.u32 %v1694, 16
      %v1795 = vrot.slane %v1793, 1
      %v1796 = vor.u32 %v1791, %v1795
      %v1798 = vshll.u32 %v1774, 16
      %v1800 = vrot.slane %v1798, 1
      %v1801 = vsel %vm764, %v1796, %v1800
      %v1803 = vshrl.u32 %v1695, 16
      %v1805 = vshll.u32 %v1695, 16
      %v1807 = vrot.slane %v1805, 1
      %v1808 = vor.u32 %v1803, %v1807
      %v1810 = vshll.u32 %v1775, 16
      %v1812 = vrot.slane %v1810, 1
      %v1813 = vsel %vm764, %v1808, %v1812
      %v1815 = vshrl.u32 %v1696, 16
      %v1817 = vshll.u32 %v1696, 16
      %v1819 = vrot.slane %v1817, 1
      %v1820 = vor.u32 %v1815, %v1819
      %v1822 = vshll.u32 %v1776, 16
      %v1824 = vrot.slane %v1822, 1
      %v1825 = vsel %vm764, %v1820, %v1824
      %v1827 = vshrl.u32 %v1697, 16
      %v1829 = vshll.u32 %v1697, 16
      %v1831 = vrot.slane %v1829, 1
      %v1832 = vor.u32 %v1827, %v1831
      %v1834 = vshll.u32 %v1777, 16
      %v1836 = vrot.slane %v1834, 1
      %v1837 = vsel %vm764, %v1832, %v1836
      %v1839 = vshrl.u32 %v1698, 16
      %v1841 = vshll.u32 %v1698, 16
      %v1843 = vrot.slane %v1841, 1
      %v1844 = vor.u32 %v1839, %v1843
      %v1846 = vshll.u32 %v1778, 16
      %v1848 = vrot.slane %v1846, 1
      %v1849 = vsel %vm764, %v1844, %v1848
      %v1851 = vshrl.u32 %v1699, 16
      %v1853 = vshll.u32 %v1699, 16
      %v1855 = vrot.slane %v1853, 1
      %v1856 = vor.u32 %v1851, %v1855
      %v1858 = vshll.u32 %v1779, 16
      %v1860 = vrot.slane %v1858, 1
      %v1861 = vsel %vm764, %v1856, %v1860
      %v1863 = vshrl.u32 %v1700, 16
      %v1865 = vshll.u32 %v1700, 16
      %v1867 = vrot.slane %v1865, 1
      %v1868 = vor.u32 %v1863, %v1867
      %v1870 = vshll.u32 %v1780, 16
      %v1872 = vrot.slane %v1870, 1
      %v1873 = vsel %vm764, %v1868, %v1872
      %v1875 = vshrl.u32 %v1701, 16
      %v1877 = vshll.u32 %v1701, 16
      %v1879 = vrot.slane %v1877, 1
      %v1880 = vor.u32 %v1875, %v1879
      %v1882 = vshll.u32 %v1781, 16
      %v1884 = vrot.slane %v1882, 1
      %v1885 = vsel %vm764, %v1880, %v1884
      %v1887 = vshrl.u32 %v1702, 16
      %v1889 = vshll.u32 %v1702, 16
      %v1891 = vrot.slane %v1889, 1
      %v1892 = vor.u32 %v1887, %v1891
      %v1894 = vshll.u32 %v1782, 16
      %v1896 = vrot.slane %v1894, 1
      %v1897 = vsel %vm764, %v1892, %v1896
      %v1899 = vshrl.u32 %v1703, 16
      %v1901 = vshll.u32 %v1703, 16
      %v1903 = vrot.slane %v1901, 1
      %v1904 = vor.u32 %v1899, %v1903
      %v1906 = vshll.u32 %v1783, 16
      %v1908 = vrot.slane %v1906, 1
      %v1909 = vsel %vm764, %v1904, %v1908
      %v1911 = vshrl.u32 %v1704, 16
      %v1913 = vshll.u32 %v1704, 16
      %v1915 = vrot.slane %v1913, 1
      %v1916 = vor.u32 %v1911, %v1915
      %v1918 = vshll.u32 %v1784, 16
      %v1920 = vrot.slane %v1918, 1
      %v1921 = vsel %vm764, %v1916, %v1920
      %v1923 = vshrl.u32 %v1705, 16
      %v1925 = vshll.u32 %v1705, 16
      %v1927 = vrot.slane %v1925, 1
      %v1928 = vor.u32 %v1923, %v1927
      %v1930 = vshll.u32 %v1785, 16
      %v1932 = vrot.slane %v1930, 1
      %v1933 = vsel %vm764, %v1928, %v1932
      %v1935 = vshrl.u32 %v1706, 16
      %v1937 = vshll.u32 %v1706, 16
      %v1939 = vrot.slane %v1937, 1
      %v1940 = vor.u32 %v1935, %v1939
      %v1942 = vshll.u32 %v1786, 16
      %v1944 = vrot.slane %v1942, 1
      %v1945 = vsel %vm764, %v1940, %v1944
      %v1947 = vshrl.u32 %v1707, 16
      %v1949 = vshll.u32 %v1707, 16
      %v1951 = vrot.slane %v1949, 1
      %v1952 = vor.u32 %v1947, %v1951
      %v1954 = vshll.u32 %v1787, 16
      %v1956 = vrot.slane %v1954, 1
      %v1957 = vsel %vm764, %v1952, %v1956
      %v1959 = vshrl.u32 %v1708, 16
      %v1961 = vshll.u32 %v1708, 16
      %v1963 = vrot.slane %v1961, 1
      %v1964 = vor.u32 %v1959, %v1963
      %v1966 = vshll.u32 %v1788, 16
      %v1968 = vrot.slane %v1966, 1
      %v1969 = vsel %vm764, %v1964, %v1968
      %v1971 = vshrl.u32 %v1709, 16
      %v1973 = vshll.u32 %v1709, 16
      %v1975 = vrot.slane %v1973, 1
      %v1976 = vor.u32 %v1971, %v1975
      %v1978 = vshll.u32 %v1789, 16
      %v1980 = vrot.slane %v1978, 1
      %v1981 = vsel %vm764, %v1976, %v1980
      %1982 = vrot.lane.b32.xlu0 %v1801, 56
      %v1983 = vpop.permute.xlu0 %1982
      %1984 = vrot.lane.b32.xlu0 %v1813, 56
      %v1985 = vpop.permute.xlu0 %1984
      %1986 = vrot.lane.b32.xlu0 %v1825, 56
      %v1987 = vpop.permute.xlu0 %1986
      %1988 = vrot.lane.b32.xlu0 %v1837, 56
      %v1989 = vpop.permute.xlu0 %1988
      %1990 = vrot.lane.b32.xlu0 %v1849, 56
      %v1991 = vpop.permute.xlu0 %1990
      %1992 = vrot.lane.b32.xlu0 %v1861, 56
      %v1993 = vpop.permute.xlu0 %1992
      %1994 = vrot.lane.b32.xlu0 %v1873, 56
      %v1995 = vpop.permute.xlu0 %1994
      %1996 = vrot.lane.b32.xlu0 %v1885, 56
      %v1997 = vpop.permute.xlu0 %1996
      %1998 = vrot.lane.b32.xlu0 %v1897, 56
      %v1999 = vpop.permute.xlu0 %1998
      %2000 = vrot.lane.b32.xlu0 %v1909, 56
      %v2001 = vpop.permute.xlu0 %2000
      %2002 = vrot.lane.b32.xlu0 %v1921, 56
      %v2003 = vpop.permute.xlu0 %2002
      %2004 = vrot.lane.b32.xlu0 %v1933, 56
      %v2005 = vpop.permute.xlu0 %2004
      %2006 = vrot.lane.b32.xlu0 %v1945, 56
      %v2007 = vpop.permute.xlu0 %2006
      %2008 = vrot.lane.b32.xlu0 %v1957, 56
      %v2009 = vpop.permute.xlu0 %2008
      %2010 = vrot.lane.b32.xlu0 %v1969, 56
      %v2011 = vpop.permute.xlu0 %2010
      %2012 = vrot.lane.b32.xlu0 %v1981, 56
      %v2013 = vpop.permute.xlu0 %2012
      %v2030 = vunpack.c.l.b16 %v620
      %v2031 = vunpack.c.l.b16 %v621
      %v2032 = vunpack.c.l.b16 %v622
      %v2033 = vunpack.c.l.b16 %v623
      %v2034 = vunpack.c.l.b16 %v624
      %v2035 = vunpack.c.l.b16 %v625
      %v2036 = vunpack.c.l.b16 %v626
      %v2037 = vunpack.c.l.b16 %v627
      %v2038 = vunpack.c.l.b16 %v628
      %v2039 = vunpack.c.l.b16 %v629
      %v2040 = vunpack.c.l.b16 %v630
      %v2041 = vunpack.c.l.b16 %v631
      %v2042 = vunpack.c.l.b16 %v632
      %v2043 = vunpack.c.l.b16 %v633
      %v2044 = vunpack.c.l.b16 %v634
      %v2045 = vunpack.c.l.b16 %v635
      %v2046 = vpack.c.b16 %v1663, %v2030
      %v2047 = vpack.c.b16 %v1665, %v2031
      %v2048 = vpack.c.b16 %v1667, %v2032
      %v2049 = vpack.c.b16 %v1669, %v2033
      %v2050 = vpack.c.b16 %v1671, %v2034
      %v2051 = vpack.c.b16 %v1673, %v2035
      %v2052 = vpack.c.b16 %v1675, %v2036
      %v2053 = vpack.c.b16 %v1677, %v2037
      %v2054 = vpack.c.b16 %v1679, %v2038
      %v2055 = vpack.c.b16 %v1681, %v2039
      %v2056 = vpack.c.b16 %v1683, %v2040
      %v2057 = vpack.c.b16 %v1685, %v2041
      %v2058 = vpack.c.b16 %v1687, %v2042
      %v2059 = vpack.c.b16 %v1689, %v2043
      %v2060 = vpack.c.b16 %v1691, %v2044
      %v2061 = vpack.c.b16 %v1693, %v2045
      %v2062 = vrot.slane %v2046, 1
      %v2063 = vrot.slane %v1774, 1
      %v2064 = vsel %vm1037, %v2062, %v2063
      %v2065 = vrot.slane %v2047, 1
      %v2066 = vrot.slane %v1775, 1
      %v2067 = vsel %vm1037, %v2065, %v2066
      %v2068 = vrot.slane %v2048, 1
      %v2069 = vrot.slane %v1776, 1
      %v2070 = vsel %vm1037, %v2068, %v2069
      %v2071 = vrot.slane %v2049, 1
      %v2072 = vrot.slane %v1777, 1
      %v2073 = vsel %vm1037, %v2071, %v2072
      %v2074 = vrot.slane %v2050, 1
      %v2075 = vrot.slane %v1778, 1
      %v2076 = vsel %vm1037, %v2074, %v2075
      %v2077 = vrot.slane %v2051, 1
      %v2078 = vrot.slane %v1779, 1
      %v2079 = vsel %vm1037, %v2077, %v2078
      %v2080 = vrot.slane %v2052, 1
      %v2081 = vrot.slane %v1780, 1
      %v2082 = vsel %vm1037, %v2080, %v2081
      %v2083 = vrot.slane %v2053, 1
      %v2084 = vrot.slane %v1781, 1
      %v2085 = vsel %vm1037, %v2083, %v2084
      %v2086 = vrot.slane %v2054, 1
      %v2087 = vrot.slane %v1782, 1
      %v2088 = vsel %vm1037, %v2086, %v2087
      %v2089 = vrot.slane %v2055, 1
      %v2090 = vrot.slane %v1783, 1
      %v2091 = vsel %vm1037, %v2089, %v2090
      %v2092 = vrot.slane %v2056, 1
      %v2093 = vrot.slane %v1784, 1
      %v2094 = vsel %vm1037, %v2092, %v2093
      %v2095 = vrot.slane %v2057, 1
      %v2096 = vrot.slane %v1785, 1
      %v2097 = vsel %vm1037, %v2095, %v2096
      %v2098 = vrot.slane %v2058, 1
      %v2099 = vrot.slane %v1786, 1
      %v2100 = vsel %vm1037, %v2098, %v2099
      %v2101 = vrot.slane %v2059, 1
      %v2102 = vrot.slane %v1787, 1
      %v2103 = vsel %vm1037, %v2101, %v2102
      %v2104 = vrot.slane %v2060, 1
      %v2105 = vrot.slane %v1788, 1
      %v2106 = vsel %vm1037, %v2104, %v2105
      %v2107 = vrot.slane %v2061, 1
      %v2108 = vrot.slane %v1789, 1
      %v2109 = vsel %vm1037, %v2107, %v2108
      %2110 = vrot.lane.b32.xlu0 %v2064, 64
      %v2111 = vpop.permute.xlu0 %2110
      %2112 = vrot.lane.b32.xlu0 %v2067, 64
      %v2113 = vpop.permute.xlu0 %2112
      %2114 = vrot.lane.b32.xlu0 %v2070, 64
      %v2115 = vpop.permute.xlu0 %2114
      %2116 = vrot.lane.b32.xlu0 %v2073, 64
      %v2117 = vpop.permute.xlu0 %2116
      %2118 = vrot.lane.b32.xlu0 %v2076, 64
      %v2119 = vpop.permute.xlu0 %2118
      %2120 = vrot.lane.b32.xlu0 %v2079, 64
      %v2121 = vpop.permute.xlu0 %2120
      %2122 = vrot.lane.b32.xlu0 %v2082, 64
      %v2123 = vpop.permute.xlu0 %2122
      %2124 = vrot.lane.b32.xlu0 %v2085, 64
      %v2125 = vpop.permute.xlu0 %2124
      %2126 = vrot.lane.b32.xlu0 %v2088, 64
      %v2127 = vpop.permute.xlu0 %2126
      %2128 = vrot.lane.b32.xlu0 %v2091, 64
      %v2129 = vpop.permute.xlu0 %2128
      %2130 = vrot.lane.b32.xlu0 %v2094, 64
      %v2131 = vpop.permute.xlu0 %2130
      %2132 = vrot.lane.b32.xlu0 %v2097, 64
      %v2133 = vpop.permute.xlu0 %2132
      %2134 = vrot.lane.b32.xlu0 %v2100, 64
      %v2135 = vpop.permute.xlu0 %2134
      %2136 = vrot.lane.b32.xlu0 %v2103, 64
      %v2137 = vpop.permute.xlu0 %2136
      %2138 = vrot.lane.b32.xlu0 %v2106, 64
      %v2139 = vpop.permute.xlu0 %2138
      %2140 = vrot.lane.b32.xlu0 %v2109, 64
      %v2141 = vpop.permute.xlu0 %2140
      %vm2142 = vcmask 64512
      %v2144 = vsel %vm2142, %v700, %v958
      %v2146 = vsel %vm2142, %v701, %v960
      %v2148 = vsel %vm2142, %v702, %v962
      %v2150 = vsel %vm2142, %v703, %v964
      %v2152 = vsel %vm2142, %v704, %v966
      %v2154 = vsel %vm2142, %v705, %v968
      %v2156 = vsel %vm2142, %v706, %v970
      %v2158 = vsel %vm2142, %v707, %v972
      %v2160 = vsel %vm2142, %v708, %v974
      %v2162 = vsel %vm2142, %v709, %v976
      %v2164 = vsel %vm2142, %v710, %v978
      %v2166 = vsel %vm2142, %v711, %v980
      %v2168 = vsel %vm2142, %v712, %v982
      %v2170 = vsel %vm2142, %v713, %v984
      %v2172 = vsel %vm2142, %v714, %v986
      %v2174 = vsel %vm2142, %v715, %v988
      %vm2175 = vcmask 130048
      %v2177 = vsel %vm2175, %v2144, %v1087
      %v2179 = vsel %vm2175, %v2146, %v1089
      %v2181 = vsel %vm2175, %v2148, %v1091
      %v2183 = vsel %vm2175, %v2150, %v1093
      %v2185 = vsel %vm2175, %v2152, %v1095
      %v2187 = vsel %vm2175, %v2154, %v1097
      %v2189 = vsel %vm2175, %v2156, %v1099
      %v2191 = vsel %vm2175, %v2158, %v1101
      %v2193 = vsel %vm2175, %v2160, %v1103
      %v2195 = vsel %vm2175, %v2162, %v1105
      %v2197 = vsel %vm2175, %v2164, %v1107
      %v2199 = vsel %vm2175, %v2166, %v1109
      %v2201 = vsel %vm2175, %v2168, %v1111
      %v2203 = vsel %vm2175, %v2170, %v1113
      %v2205 = vsel %vm2175, %v2172, %v1115
      %v2207 = vsel %vm2175, %v2174, %v1117
      %vm2208 = vcmask 195584
      %v2210 = vsel %vm2208, %v2177, %v1199
      %v2212 = vsel %vm2208, %v2179, %v1201
      %v2214 = vsel %vm2208, %v2181, %v1203
      %v2216 = vsel %vm2208, %v2183, %v1205
      %v2218 = vsel %vm2208, %v2185, %v1207
      %v2220 = vsel %vm2208, %v2187, %v1209
      %v2222 = vsel %vm2208, %v2189, %v1211
      %v2224 = vsel %vm2208, %v2191, %v1213
      %v2226 = vsel %vm2208, %v2193, %v1215
      %v2228 = vsel %vm2208, %v2195, %v1217
      %v2230 = vsel %vm2208, %v2197, %v1219
      %v2232 = vsel %vm2208, %v2199, %v1221
      %v2234 = vsel %vm2208, %v2201, %v1223
      %v2236 = vsel %vm2208, %v2203, %v1225
      %v2238 = vsel %vm2208, %v2205, %v1227
      %v2240 = vsel %vm2208, %v2207, %v1229
      %vm2241 = vcmask 261120
      %v2243 = vsel %vm2241, %v2210, %v1471
      %v2245 = vsel %vm2241, %v2212, %v1473
      %v2247 = vsel %vm2241, %v2214, %v1475
      %v2249 = vsel %vm2241, %v2216, %v1477
      %v2251 = vsel %vm2241, %v2218, %v1479
      %v2253 = vsel %vm2241, %v2220, %v1481
      %v2255 = vsel %vm2241, %v2222, %v1483
      %v2257 = vsel %vm2241, %v2224, %v1485
      %v2259 = vsel %vm2241, %v2226, %v1487
      %v2261 = vsel %vm2241, %v2228, %v1489
      %v2263 = vsel %vm2241, %v2230, %v1491
      %v2265 = vsel %vm2241, %v2232, %v1493
      %v2267 = vsel %vm2241, %v2234, %v1495
      %v2269 = vsel %vm2241, %v2236, %v1497
      %v2271 = vsel %vm2241, %v2238, %v1499
      %v2273 = vsel %vm2241, %v2240, %v1501
      %vm2274 = vcmask 326656
      %v2276 = vsel %vm2274, %v2243, %v1599
      %v2278 = vsel %vm2274, %v2245, %v1601
      %v2280 = vsel %vm2274, %v2247, %v1603
      %v2282 = vsel %vm2274, %v2249, %v1605
      %v2284 = vsel %vm2274, %v2251, %v1607
      %v2286 = vsel %vm2274, %v2253, %v1609
      %v2288 = vsel %vm2274, %v2255, %v1611
      %v2290 = vsel %vm2274, %v2257, %v1613
      %v2292 = vsel %vm2274, %v2259, %v1615
      %v2294 = vsel %vm2274, %v2261, %v1617
      %v2296 = vsel %vm2274, %v2263, %v1619
      %v2298 = vsel %vm2274, %v2265, %v1621
      %v2300 = vsel %vm2274, %v2267, %v1623
      %v2302 = vsel %vm2274, %v2269, %v1625
      %v2304 = vsel %vm2274, %v2271, %v1627
      %v2306 = vsel %vm2274, %v2273, %v1629
      %vm2307 = vcmask 392192
      %v2309 = vsel %vm2307, %v2276, %v1711
      %v2311 = vsel %vm2307, %v2278, %v1713
      %v2313 = vsel %vm2307, %v2280, %v1715
      %v2315 = vsel %vm2307, %v2282, %v1717
      %v2317 = vsel %vm2307, %v2284, %v1719
      %v2319 = vsel %vm2307, %v2286, %v1721
      %v2321 = vsel %vm2307, %v2288, %v1723
      %v2323 = vsel %vm2307, %v2290, %v1725
      %v2325 = vsel %vm2307, %v2292, %v1727
      %v2327 = vsel %vm2307, %v2294, %v1729
      %v2329 = vsel %vm2307, %v2296, %v1731
      %v2331 = vsel %vm2307, %v2298, %v1733
      %v2333 = vsel %vm2307, %v2300, %v1735
      %v2335 = vsel %vm2307, %v2302, %v1737
      %v2337 = vsel %vm2307, %v2304, %v1739
      %v2339 = vsel %vm2307, %v2306, %v1741
      %vm2340 = vcmask 457728
      %v2342 = vsel %vm2340, %v2309, %v1983
      %v2344 = vsel %vm2340, %v2311, %v1985
      %v2346 = vsel %vm2340, %v2313, %v1987
      %v2348 = vsel %vm2340, %v2315, %v1989
      %v2350 = vsel %vm2340, %v2317, %v1991
      %v2352 = vsel %vm2340, %v2319, %v1993
      %v2354 = vsel %vm2340, %v2321, %v1995
      %v2356 = vsel %vm2340, %v2323, %v1997
      %v2358 = vsel %vm2340, %v2325, %v1999
      %v2360 = vsel %vm2340, %v2327, %v2001
      %v2362 = vsel %vm2340, %v2329, %v2003
      %v2364 = vsel %vm2340, %v2331, %v2005
      %v2366 = vsel %vm2340, %v2333, %v2007
      %v2368 = vsel %vm2340, %v2335, %v2009
      %v2370 = vsel %vm2340, %v2337, %v2011
      %v2372 = vsel %vm2340, %v2339, %v2013
      %vm2373 = vcmask 523264
      %v2375 = vsel %vm2373, %v2342, %v2111
      %v2377 = vsel %vm2373, %v2344, %v2113
      %v2379 = vsel %vm2373, %v2346, %v2115
      %v2381 = vsel %vm2373, %v2348, %v2117
      %v2383 = vsel %vm2373, %v2350, %v2119
      %v2385 = vsel %vm2373, %v2352, %v2121
      %v2387 = vsel %vm2373, %v2354, %v2123
      %v2389 = vsel %vm2373, %v2356, %v2125
      %v2391 = vsel %vm2373, %v2358, %v2127
      %v2393 = vsel %vm2373, %v2360, %v2129
      %v2395 = vsel %vm2373, %v2362, %v2131
      %v2397 = vsel %vm2373, %v2364, %v2133
      %v2399 = vsel %vm2373, %v2366, %v2135
      %v2401 = vsel %vm2373, %v2368, %v2137
      %v2403 = vsel %vm2373, %v2370, %v2139
      %v2405 = vsel %vm2373, %v2372, %v2141
      %v2406 = vld [vmem:[%s1] sm:$0xf]
      %v2407 = vld [vmem:[%s1 + $0x4] sm:$0xf]
      %v2408 = vld [vmem:[%s1 + $0x8] sm:$0xf]
      %v2409 = vld [vmem:[%s1 + $0xc] sm:$0xf]
      %v2410 = vld [vmem:[%s1 + $0x10] sm:$0xf]
      %v2411 = vld [vmem:[%s1 + $0x14] sm:$0xf]
      %v2412 = vld [vmem:[%s1 + $0x18] sm:$0xf]
      %v2413 = vld [vmem:[%s1 + $0x1c] sm:$0xf]
      %v2414 = vld [vmem:[%s1 + $0x20] sm:$0xf]
      %v2424 = vunpack.c.l.b16 %v2406
      %v2425 = vunpack.c.l.b16 %v2407
      %v2426 = vunpack.c.l.b16 %v2408
      %v2427 = vunpack.c.l.b16 %v2409
      %v2428 = vunpack.c.l.b16 %v2410
      %v2429 = vunpack.c.l.b16 %v2411
      %v2430 = vunpack.c.l.b16 %v2412
      %v2431 = vunpack.c.l.b16 %v2413
      %v2432 = vunpack.c.l.b16 %v2414
      %v2433 = vpack.c.b16 %v2425, %v2424
      %v2434 = vpack.c.b16 %v2427, %v2426
      %v2435 = vpack.c.b16 %v2429, %v2428
      %v2436 = vpack.c.b16 %v2431, %v2430
      %v2437 = vpack.c.b16 %v2432, %v2432
      %vm2442 = vcmask 588800
      %v2443 = vsel %vm2442, %v2375, 0
      %v2445 = vsel %vm2442, %v2377, 0
      %v2447 = vsel %vm2442, %v2379, 0
      %v2449 = vsel %vm2442, %v2381, 0
      %v2451 = vsel %vm2442, %v2383, 0
      %v2453 = vsel %vm2442, %v2385, 0
      %v2455 = vsel %vm2442, %v2387, 0
      %v2457 = vsel %vm2442, %v2389, 0
      %v2459 = vsel %vm2442, %v2391, 0
      %v2461 = vsel %vm2442, %v2393, 0
      %v2463 = vsel %vm2442, %v2395, 0
      %v2465 = vsel %vm2442, %v2397, 0
      %v2467 = vsel %vm2442, %v2399, 0
      %v2469 = vsel %vm2442, %v2401, 0
      %v2471 = vsel %vm2442, %v2403, 0
      %v2473 = vsel %vm2442, %v2405, 0
      %vm2475 = vcmask 1043456
      %v2477 = vsel %vm2475, %v2437, 0
      %2479 = vmatprep.subr.bf16.mxu0 0
      %2480 = vmatpush1.bf16.msra.mxu0 %v2433
      %2481 = vmatprep.subr.bf16.mxu0 0
      %2482 = vmatpush1.bf16.msra.mxu0 %v2434
      %2483 = vmatprep.subr.bf16.mxu0 0
      %2484 = vmatpush1.bf16.msra.mxu0 %v2435
      %2485 = vmatprep.subr.bf16.mxu0 0
      %2486 = vmatpush1.bf16.msra.mxu0 %v2436
      %2487 = vmatprep.subr.bf16.mxu0 0
      %2488 = vmatpush1.bf16.msra.mxu0 %v2477
      %2489 = vmatprep.subr.bf16.mxu0 0
      %2490 = vmatpush1.bf16.msra.mxu0 0
      %2491 = vmatprep.subr.bf16.mxu0 0
      %2492 = vmatpush1.bf16.msra.mxu0 0
      %2493 = vmatprep.subr.bf16.mxu0 0
      %2494 = vmatpush1.bf16.msra.mxu0 0
      %2495 = vmatprep.subr.bf16.mxu0 0
      %2496 = vmatpush1.bf16.msra.mxu0 0
      %2497 = vmatprep.subr.bf16.mxu0 0
      %2498 = vmatpush1.bf16.msra.mxu0 0
      %2499 = vmatprep.subr.bf16.mxu0 0
      %2500 = vmatpush1.bf16.msra.mxu0 0
      %2501 = vmatprep.subr.bf16.mxu0 0
      %2502 = vmatpush1.bf16.msra.mxu0 0
      %2503 = vmatprep.subr.bf16.mxu0 0
      %2504 = vmatpush1.bf16.msra.mxu0 0
      %2505 = vmatprep.subr.bf16.mxu0 0
      %2506 = vmatpush1.bf16.msra.mxu0 0
      %2507 = vmatprep.subr.bf16.mxu0 0
      %2508 = vmatpush1.bf16.msra.mxu0 0
      %2509 = vmatprep.subr.bf16.mxu0 0
      %2510 = vmatpush1.bf16.msra.mxu0 0
      %2511 = vmatprep.mubr.bf16.mxu0 0
      %2512 = vmatmul.mubr.bf16.gmra.mrb[0].mxu0 %v2443
      %v2513 = vpop.f32.mrb[0].mxu0
      %v2514 = vadd.f32 0.0, %v2513
      %v2515 = vpop.f32.mrb[0].mxu0
      %v2516 = vpop.f32.mrb[0].mxu0
      %v2517 = vadd.f32 0.0, %v2516
      %v2518 = vpop.f32.mrb[0].mxu0
      %2519 = vmatprep.mubr.bf16.mxu0 0
      %2520 = vmatmul.mubr.bf16.gmra.mrb[0].mxu0 %v2445
      %v2521 = vpop.f32.mrb[0].mxu0
      %v2522 = vadd.f32 0.0, %v2521
      %v2523 = vpop.f32.mrb[0].mxu0
      %v2524 = vpop.f32.mrb[0].mxu0
      %v2525 = vadd.f32 0.0, %v2524
      %v2526 = vpop.f32.mrb[0].mxu0
      %2527 = vmatprep.mubr.bf16.mxu0 0
      %2528 = vmatmul.mubr.bf16.gmra.mrb[0].mxu0 %v2447
      %v2529 = vpop.f32.mrb[0].mxu0
      %v2530 = vadd.f32 0.0, %v2529
      %v2531 = vpop.f32.mrb[0].mxu0
      %v2532 = vpop.f32.mrb[0].mxu0
      %v2533 = vadd.f32 0.0, %v2532
      %v2534 = vpop.f32.mrb[0].mxu0
      %2535 = vmatprep.mubr.bf16.mxu0 0
      %2536 = vmatmul.mubr.bf16.gmra.mrb[0].mxu0 %v2449
      %v2537 = vpop.f32.mrb[0].mxu0
      %v2538 = vadd.f32 0.0, %v2537
      %v2539 = vpop.f32.mrb[0].mxu0
      %v2540 = vpop.f32.mrb[0].mxu0
      %v2541 = vadd.f32 0.0, %v2540
      %v2542 = vpop.f32.mrb[0].mxu0
      %2543 = vmatprep.mubr.bf16.mxu0 0
      %2544 = vmatmul.mubr.bf16.gmra.mrb[0].mxu0 %v2451
      %v2545 = vpop.f32.mrb[0].mxu0
      %v2546 = vadd.f32 0.0, %v2545
      %v2547 = vpop.f32.mrb[0].mxu0
      %v2548 = vpop.f32.mrb[0].mxu0
      %v2549 = vadd.f32 0.0, %v2548
      %v2550 = vpop.f32.mrb[0].mxu0
      %2551 = vmatprep.mubr.bf16.mxu0 0
      %2552 = vmatmul.mubr.bf16.gmra.mrb[0].mxu0 %v2453
      %v2553 = vpop.f32.mrb[0].mxu0
      %v2554 = vadd.f32 0.0, %v2553
      %v2555 = vpop.f32.mrb[0].mxu0
      %v2556 = vpop.f32.mrb[0].mxu0
      %v2557 = vadd.f32 0.0, %v2556
      %v2558 = vpop.f32.mrb[0].mxu0
      %2559 = vmatprep.mubr.bf16.mxu0 0
      %2560 = vmatmul.mubr.bf16.gmra.mrb[0].mxu0 %v2455
      %v2561 = vpop.f32.mrb[0].mxu0
      %v2562 = vadd.f32 0.0, %v2561
      %v2563 = vpop.f32.mrb[0].mxu0
      %v2564 = vpop.f32.mrb[0].mxu0
      %v2565 = vadd.f32 0.0, %v2564
      %v2566 = vpop.f32.mrb[0].mxu0
      %2567 = vmatprep.mubr.bf16.mxu0 0
      %2568 = vmatmul.mubr.bf16.gmra.mrb[0].mxu0 %v2457
      %v2569 = vpop.f32.mrb[0].mxu0
      %v2570 = vadd.f32 0.0, %v2569
      %v2571 = vpop.f32.mrb[0].mxu0
      %v2572 = vpop.f32.mrb[0].mxu0
      %v2573 = vadd.f32 0.0, %v2572
      %v2574 = vpop.f32.mrb[0].mxu0
      %2575 = vmatprep.mubr.bf16.mxu0 0
      %2576 = vmatmul.mubr.bf16.gmra.mrb[0].mxu0 %v2459
      %v2577 = vpop.f32.mrb[0].mxu0
      %v2578 = vadd.f32 0.0, %v2577
      %v2579 = vpop.f32.mrb[0].mxu0
      %v2580 = vpop.f32.mrb[0].mxu0
      %v2581 = vadd.f32 0.0, %v2580
      %v2582 = vpop.f32.mrb[0].mxu0
      %2583 = vmatprep.mubr.bf16.mxu0 0
      %2584 = vmatmul.mubr.bf16.gmra.mrb[0].mxu0 %v2461
      %v2585 = vpop.f32.mrb[0].mxu0
      %v2586 = vadd.f32 0.0, %v2585
      %v2587 = vpop.f32.mrb[0].mxu0
      %v2588 = vpop.f32.mrb[0].mxu0
      %v2589 = vadd.f32 0.0, %v2588
      %v2590 = vpop.f32.mrb[0].mxu0
      %2591 = vmatprep.mubr.bf16.mxu0 0
      %2592 = vmatmul.mubr.bf16.gmra.mrb[0].mxu0 %v2463
      %v2593 = vpop.f32.mrb[0].mxu0
      %v2594 = vadd.f32 0.0, %v2593
      %v2595 = vpop.f32.mrb[0].mxu0
      %v2596 = vpop.f32.mrb[0].mxu0
      %v2597 = vadd.f32 0.0, %v2596
      %v2598 = vpop.f32.mrb[0].mxu0
      %2599 = vmatprep.mubr.bf16.mxu0 0
      %2600 = vmatmul.mubr.bf16.gmra.mrb[0].mxu0 %v2465
      %v2601 = vpop.f32.mrb[0].mxu0
      %v2602 = vadd.f32 0.0, %v2601
      %v2603 = vpop.f32.mrb[0].mxu0
      %v2604 = vpop.f32.mrb[0].mxu0
      %v2605 = vadd.f32 0.0, %v2604
      %v2606 = vpop.f32.mrb[0].mxu0
      %2607 = vmatprep.mubr.bf16.mxu0 0
      %2608 = vmatmul.mubr.bf16.gmra.mrb[0].mxu0 %v2467
      %v2609 = vpop.f32.mrb[0].mxu0
      %v2610 = vadd.f32 0.0, %v2609
      %v2611 = vpop.f32.mrb[0].mxu0
      %v2612 = vpop.f32.mrb[0].mxu0
      %v2613 = vadd.f32 0.0, %v2612
      %v2614 = vpop.f32.mrb[0].mxu0
      %2615 = vmatprep.mubr.bf16.mxu0 0
      %2616 = vmatmul.mubr.bf16.gmra.mrb[0].mxu0 %v2469
      %v2617 = vpop.f32.mrb[0].mxu0
      %v2618 = vadd.f32 0.0, %v2617
      %v2619 = vpop.f32.mrb[0].mxu0
      %v2620 = vpop.f32.mrb[0].mxu0
      %v2621 = vadd.f32 0.0, %v2620
      %v2622 = vpop.f32.mrb[0].mxu0
      %2623 = vmatprep.mubr.bf16.mxu0 0
      %2624 = vmatmul.mubr.bf16.gmra.mrb[0].mxu0 %v2471
      %v2625 = vpop.f32.mrb[0].mxu0
      %v2626 = vadd.f32 0.0, %v2625
      %v2627 = vpop.f32.mrb[0].mxu0
      %v2628 = vpop.f32.mrb[0].mxu0
      %v2629 = vadd.f32 0.0, %v2628
      %v2630 = vpop.f32.mrb[0].mxu0
      %2631 = vmatprep.mubr.bf16.mxu0 0
      %2632 = vmatmul.mubr.bf16.gmra.mrb[0].mxu0 %v2473
      %v2633 = vpop.f32.mrb[0].mxu0
      %v2634 = vadd.f32 0.0, %v2633
      %v2635 = vpop.f32.mrb[0].mxu0
      %v2636 = vpop.f32.mrb[0].mxu0
      %v2637 = vadd.f32 0.0, %v2636
      %v2638 = vpop.f32.mrb[0].mxu0
      %2639 = vdwg.mxu0
      %v2640 = vld [vmem:[%s2] sm:$0x1]
      %v2642 = vlaneseq
      %v2643 = vshrl.u32 %v2642, 7
      %v2644 = vsub.s32 0, %v2643
      %v2645 = vrot.slane %v2640, %v2644
      %v2647 = vmul.f32 %v2514, %v2645
      %v2648 = vmul.f32 %v2517, %v2645
      %v2649 = vmul.f32 %v2522, %v2645
      %v2650 = vmul.f32 %v2525, %v2645
      %v2651 = vmul.f32 %v2530, %v2645
      %v2652 = vmul.f32 %v2533, %v2645
      %v2653 = vmul.f32 %v2538, %v2645
      %v2654 = vmul.f32 %v2541, %v2645
      %v2655 = vmul.f32 %v2546, %v2645
      %v2656 = vmul.f32 %v2549, %v2645
      %v2657 = vmul.f32 %v2554, %v2645
      %v2658 = vmul.f32 %v2557, %v2645
      %v2659 = vmul.f32 %v2562, %v2645
      %v2660 = vmul.f32 %v2565, %v2645
      %v2661 = vmul.f32 %v2570, %v2645
      %v2662 = vmul.f32 %v2573, %v2645
      %v2663 = vmul.f32 %v2578, %v2645
      %v2664 = vmul.f32 %v2581, %v2645
      %v2665 = vmul.f32 %v2586, %v2645
      %v2666 = vmul.f32 %v2589, %v2645
      %v2667 = vmul.f32 %v2594, %v2645
      %v2668 = vmul.f32 %v2597, %v2645
      %v2669 = vmul.f32 %v2602, %v2645
      %v2670 = vmul.f32 %v2605, %v2645
      %v2671 = vmul.f32 %v2610, %v2645
      %v2672 = vmul.f32 %v2613, %v2645
      %v2673 = vmul.f32 %v2618, %v2645
      %v2674 = vmul.f32 %v2621, %v2645
      %v2675 = vmul.f32 %v2626, %v2645
      %v2676 = vmul.f32 %v2629, %v2645
      %v2677 = vmul.f32 %v2634, %v2645
      %v2678 = vmul.f32 %v2637, %v2645
      %v2679 = vld [vmem:[%s3] sm:$0x1]
      %v2681 = vlaneseq
      %v2682 = vshrl.u32 %v2681, 7
      %v2683 = vsub.s32 0, %v2682
      %v2684 = vrot.slane %v2679, %v2683
      %v2686 = vadd.f32 %v2647, %v2684
      %v2687 = vadd.f32 %v2648, %v2684
      %v2688 = vadd.f32 %v2649, %v2684
      %v2689 = vadd.f32 %v2650, %v2684
      %v2690 = vadd.f32 %v2651, %v2684
      %v2691 = vadd.f32 %v2652, %v2684
      %v2692 = vadd.f32 %v2653, %v2684
      %v2693 = vadd.f32 %v2654, %v2684
      %v2694 = vadd.f32 %v2655, %v2684
      %v2695 = vadd.f32 %v2656, %v2684
      %v2696 = vadd.f32 %v2657, %v2684
      %v2697 = vadd.f32 %v2658, %v2684
      %v2698 = vadd.f32 %v2659, %v2684
      %v2699 = vadd.f32 %v2660, %v2684
      %v2700 = vadd.f32 %v2661, %v2684
      %v2701 = vadd.f32 %v2662, %v2684
      %v2702 = vadd.f32 %v2663, %v2684
      %v2703 = vadd.f32 %v2664, %v2684
      %v2704 = vadd.f32 %v2665, %v2684
      %v2705 = vadd.f32 %v2666, %v2684
      %v2706 = vadd.f32 %v2667, %v2684
      %v2707 = vadd.f32 %v2668, %v2684
      %v2708 = vadd.f32 %v2669, %v2684
      %v2709 = vadd.f32 %v2670, %v2684
      %v2710 = vadd.f32 %v2671, %v2684
      %v2711 = vadd.f32 %v2672, %v2684
      %v2712 = vadd.f32 %v2673, %v2684
      %v2713 = vadd.f32 %v2674, %v2684
      %v2714 = vadd.f32 %v2675, %v2684
      %v2715 = vadd.f32 %v2676, %v2684
      %v2716 = vadd.f32 %v2677, %v2684
      %v2717 = vadd.f32 %v2678, %v2684
      %v2718 = vmax.f32 %v2686, 0.0
      %v2719 = vmax.f32 %v2687, 0.0
      %v2720 = vmax.f32 %v2688, 0.0
      %v2721 = vmax.f32 %v2689, 0.0
      %v2722 = vmax.f32 %v2690, 0.0
      %v2723 = vmax.f32 %v2691, 0.0
      %v2724 = vmax.f32 %v2692, 0.0
      %v2725 = vmax.f32 %v2693, 0.0
      %v2726 = vmax.f32 %v2694, 0.0
      %v2727 = vmax.f32 %v2695, 0.0
      %v2728 = vmax.f32 %v2696, 0.0
      %v2729 = vmax.f32 %v2697, 0.0
      %v2730 = vmax.f32 %v2698, 0.0
      %v2731 = vmax.f32 %v2699, 0.0
      %v2732 = vmax.f32 %v2700, 0.0
      %v2733 = vmax.f32 %v2701, 0.0
      %v2734 = vmax.f32 %v2702, 0.0
      %v2735 = vmax.f32 %v2703, 0.0
      %v2736 = vmax.f32 %v2704, 0.0
      %v2737 = vmax.f32 %v2705, 0.0
      %v2738 = vmax.f32 %v2706, 0.0
      %v2739 = vmax.f32 %v2707, 0.0
      %v2740 = vmax.f32 %v2708, 0.0
      %v2741 = vmax.f32 %v2709, 0.0
      %v2742 = vmax.f32 %v2710, 0.0
      %v2743 = vmax.f32 %v2711, 0.0
      %v2744 = vmax.f32 %v2712, 0.0
      %v2745 = vmax.f32 %v2713, 0.0
      %v2746 = vmax.f32 %v2714, 0.0
      %v2747 = vmax.f32 %v2715, 0.0
      %v2748 = vmax.f32 %v2716, 0.0
      %v2749 = vmax.f32 %v2717, 0.0
      %vm2750 = vcmask 257024
      %2751 = vst.msk [vmem:[#allocation2] sm:$0xf] %vm2750, 0
      %2752 = vst.msk [vmem:[#allocation2 + $0x4] sm:$0xf] %vm2750, 0
      %vm2753 = vcmask 253952
      %2754 = vst.msk [vmem:[#allocation2 + $0x8] sm:$0x1] %vm2753, 0
      %2755 = vst.msk [vmem:[#allocation2 + $0xc] sm:$0xf] %vm2750, 0
      %2756 = vst.msk [vmem:[#allocation2 + $0x10] sm:$0xf] %vm2750, 0
      %2757 = vst.msk [vmem:[#allocation2 + $0x14] sm:$0x1] %vm2753, 0
      %2758 = vst.msk [vmem:[#allocation2 + $0x18] sm:$0xf] %vm2750, 0
      %2759 = vst.msk [vmem:[#allocation2 + $0x1c] sm:$0xf] %vm2750, 0
      %2760 = vst.msk [vmem:[#allocation2 + $0x20] sm:$0x1] %vm2753, 0
      %2761 = vst.msk [vmem:[#allocation2 + $0x24] sm:$0xf] %vm2750, 0
      %2762 = vst.msk [vmem:[#allocation2 + $0x28] sm:$0xf] %vm2750, 0
      %2763 = vst.msk [vmem:[#allocation2 + $0x2c] sm:$0x1] %vm2753, 0
      %2764 = vst.msk [vmem:[#allocation2 + $0x30] sm:$0xf] %vm2750, 0
      %2765 = vst.msk [vmem:[#allocation2 + $0x34] sm:$0xf] %vm2750, 0
      %2766 = vst.msk [vmem:[#allocation2 + $0x38] sm:$0x1] %vm2753, 0
      %2767 = vst.msk [vmem:[#allocation2 + $0x3c] sm:$0xf] %vm2750, 0
      %2768 = vst.msk [vmem:[#allocation2 + $0x40] sm:$0xf] %vm2750, 0
      %2769 = vst.msk [vmem:[#allocation2 + $0x44] sm:$0x1] %vm2753, 0
      %2770 = vst.msk [vmem:[#allocation2 + $0x48] sm:$0xf] %vm2750, 0
      %2771 = vst.msk [vmem:[#allocation2 + $0x4c] sm:$0xf] %vm2750, 0
      %2772 = vst.msk [vmem:[#allocation2 + $0x50] sm:$0x1] %vm2753, 0
      %2773 = vst.msk [vmem:[#allocation2 + $0x54] sm:$0xf] %vm2750, 0
      %2774 = vst.msk [vmem:[#allocation2 + $0x58] sm:$0xf] %vm2750, 0
      %2775 = vst.msk [vmem:[#allocation2 + $0x5c] sm:$0x1] %vm2753, 0
      %2776 = vst.msk [vmem:[#allocation2 + $0x60] sm:$0xf] %vm2750, 0
      %2777 = vst.msk [vmem:[#allocation2 + $0x64] sm:$0xf] %vm2750, 0
      %2778 = vst.msk [vmem:[#allocation2 + $0x68] sm:$0x1] %vm2753, 0
      %2779 = vst.msk [vmem:[#allocation2 + $0x6c] sm:$0xf] %vm2750, 0
      %2780 = vst.msk [vmem:[#allocation2 + $0x70] sm:$0xf] %vm2750, 0
      %2781 = vst.msk [vmem:[#allocation2 + $0x74] sm:$0x1] %vm2753, 0
      %2782 = vst.msk [vmem:[#allocation2 + $0x78] sm:$0xf] %vm2750, 0
      %2783 = vst.msk [vmem:[#allocation2 + $0x7c] sm:$0xf] %vm2750, 0
      %2784 = vst.msk [vmem:[#allocation2 + $0x80] sm:$0x1] %vm2753, 0
      %2785 = vst.msk [vmem:[#allocation2 + $0x84] sm:$0xf] %vm2750, 0
      %2786 = vst.msk [vmem:[#allocation2 + $0x88] sm:$0xf] %vm2750, 0
      %2787 = vst.msk [vmem:[#allocation2 + $0x8c] sm:$0x1] %vm2753, 0
      %2788 = vst.msk [vmem:[#allocation2 + $0x90] sm:$0xf] %vm2750, 0
      %2789 = vst.msk [vmem:[#allocation2 + $0x94] sm:$0xf] %vm2750, 0
      %2790 = vst.msk [vmem:[#allocation2 + $0x98] sm:$0x1] %vm2753, 0
      %2791 = vst.msk [vmem:[#allocation2 + $0x9c] sm:$0xf] %vm2750, 0
      %2792 = vst.msk [vmem:[#allocation2 + $0xa0] sm:$0xf] %vm2750, 0
      %2793 = vst.msk [vmem:[#allocation2 + $0xa4] sm:$0x1] %vm2753, 0
      %2794 = vst.msk [vmem:[#allocation2 + $0xa8] sm:$0xf] %vm2750, 0
      %2795 = vst.msk [vmem:[#allocation2 + $0xac] sm:$0xf] %vm2750, 0
      %2796 = vst.msk [vmem:[#allocation2 + $0xb0] sm:$0x1] %vm2753, 0
      %2797 = vst.msk [vmem:[#allocation2 + $0xb4] sm:$0xf] %vm2750, 0
      %2798 = vst.msk [vmem:[#allocation2 + $0xb8] sm:$0xf] %vm2750, 0
      %2799 = vst.msk [vmem:[#allocation2 + $0xbc] sm:$0x1] %vm2753, 0
      %2800 = vst.msk [vmem:[#allocation2 + $0xc0] sm:$0xf] %vm2750, 0
      %2801 = vst.msk [vmem:[#allocation2 + $0xc4] sm:$0xf] %vm2750, 0
      %2802 = vst.msk [vmem:[#allocation2 + $0xc8] sm:$0x1] %vm2753, 0
      %2803 = vst.msk [vmem:[#allocation2 + $0xcc] sm:$0xf] %vm2750, 0
      %2804 = vst.msk [vmem:[#allocation2 + $0xd0] sm:$0xf] %vm2750, 0
      %2805 = vst.msk [vmem:[#allocation2 + $0xd4] sm:$0x1] %vm2753, 0
      %v2806 = vpack.c.bf16 %v2719, %v2718
      %v2807 = vpack.c.bf16 %v2721, %v2720
      %v2808 = vpack.c.bf16 %v2723, %v2722
      %v2809 = vpack.c.bf16 %v2725, %v2724
      %v2810 = vpack.c.bf16 %v2727, %v2726
      %v2811 = vpack.c.bf16 %v2729, %v2728
      %v2812 = vpack.c.bf16 %v2731, %v2730
      %v2813 = vpack.c.bf16 %v2733, %v2732
      %v2814 = vpack.c.bf16 %v2735, %v2734
      %v2815 = vpack.c.bf16 %v2737, %v2736
      %v2816 = vpack.c.bf16 %v2739, %v2738
      %v2817 = vpack.c.bf16 %v2741, %v2740
      %v2818 = vpack.c.bf16 %v2743, %v2742
      %v2819 = vpack.c.bf16 %v2745, %v2744
      %v2820 = vpack.c.bf16 %v2747, %v2746
      %v2821 = vpack.c.bf16 %v2749, %v2748
      %v2838 = vunpack.c.l.b16 %v2806
      %v2839 = vunpack.c.h.b16 %v2806
      %v2840 = vunpack.c.l.b16 %v2807
      %v2841 = vunpack.c.h.b16 %v2807
      %v2842 = vunpack.c.l.b16 %v2808
      %v2843 = vunpack.c.h.b16 %v2808
      %v2844 = vunpack.c.l.b16 %v2809
      %v2845 = vunpack.c.h.b16 %v2809
      %v2846 = vunpack.c.l.b16 %v2810
      %v2847 = vunpack.c.h.b16 %v2810
      %v2848 = vunpack.c.l.b16 %v2811
      %v2849 = vunpack.c.h.b16 %v2811
      %v2850 = vunpack.c.l.b16 %v2812
      %v2851 = vunpack.c.h.b16 %v2812
      %v2852 = vunpack.c.l.b16 %v2813
      %v2853 = vunpack.c.h.b16 %v2813
      %v2854 = vunpack.c.l.b16 %v2814
      %v2855 = vunpack.c.h.b16 %v2814
      %v2856 = vunpack.c.l.b16 %v2815
      %v2857 = vunpack.c.h.b16 %v2815
      %v2858 = vunpack.c.l.b16 %v2816
      %v2859 = vunpack.c.h.b16 %v2816
      %v2860 = vunpack.c.l.b16 %v2817
      %v2861 = vunpack.c.h.b16 %v2817
      %v2862 = vunpack.c.l.b16 %v2818
      %v2863 = vunpack.c.h.b16 %v2818
      %v2864 = vunpack.c.l.b16 %v2819
      %v2865 = vunpack.c.h.b16 %v2819
      %v2866 = vunpack.c.l.b16 %v2820
      %v2867 = vunpack.c.h.b16 %v2820
      %v2868 = vunpack.c.l.b16 %v2821
      %v2869 = vunpack.c.h.b16 %v2821
      %v2870 = vpack.c.b16 %v2838, %v2838
      %v2871 = vpack.c.b16 %v2839, %v2839
      %v2872 = vpack.c.b16 %v2840, %v2840
      %v2873 = vpack.c.b16 %v2841, %v2841
      %v2874 = vpack.c.b16 %v2842, %v2842
      %v2875 = vpack.c.b16 %v2843, %v2843
      %v2876 = vpack.c.b16 %v2844, %v2844
      %v2877 = vpack.c.b16 %v2845, %v2845
      %v2878 = vpack.c.b16 %v2846, %v2846
      %v2879 = vpack.c.b16 %v2847, %v2847
      %v2880 = vpack.c.b16 %v2848, %v2848
      %v2881 = vpack.c.b16 %v2849, %v2849
      %v2882 = vpack.c.b16 %v2850, %v2850
      %v2883 = vpack.c.b16 %v2851, %v2851
      %v2884 = vpack.c.b16 %v2852, %v2852
      %v2885 = vpack.c.b16 %v2853, %v2853
      %v2886 = vpack.c.b16 %v2854, %v2854
      %v2887 = vpack.c.b16 %v2855, %v2855
      %v2888 = vpack.c.b16 %v2856, %v2856
      %v2889 = vpack.c.b16 %v2857, %v2857
      %v2890 = vpack.c.b16 %v2858, %v2858
      %v2891 = vpack.c.b16 %v2859, %v2859
      %v2892 = vpack.c.b16 %v2860, %v2860
      %v2893 = vpack.c.b16 %v2861, %v2861
      %v2894 = vpack.c.b16 %v2862, %v2862
      %v2895 = vpack.c.b16 %v2863, %v2863
      %v2896 = vpack.c.b16 %v2864, %v2864
      %v2897 = vpack.c.b16 %v2865, %v2865
      %v2898 = vpack.c.b16 %v2866, %v2866
      %v2899 = vpack.c.b16 %v2867, %v2867
      %v2900 = vpack.c.b16 %v2868, %v2868
      %v2901 = vpack.c.b16 %v2869, %v2869
      %vm2902 = vsmask.f32 256
      %vm2903 = vsmask.f32 4368
      %vm2904 = vmor %vm2902, %vm2903
      %v2906 = vshrl.u32 %v2870, 16
      %v2908 = vrot.slane %v2906, 7
      %v2909 = vshll.u32 %v2870, 16
      %v2911 = vor.u32 %v2908, %v2909
      %v2912 = vrot.slane %v2908, 4
      %v2914 = vshrl.u32 %v2871, 16
      %v2916 = vrot.slane %v2914, 7
      %v2917 = vshll.u32 %v2871, 16
      %v2919 = vor.u32 %v2916, %v2917
      %v2920 = vsel %vm2904, %v2912, %v2919
      %v2921 = vrot.slane %v2916, 4
      %v2923 = vshrl.u32 %v2872, 16
      %v2925 = vrot.slane %v2923, 7
      %v2926 = vshll.u32 %v2872, 16
      %v2928 = vor.u32 %v2925, %v2926
      %v2929 = vrot.slane %v2925, 4
      %v2931 = vshrl.u32 %v2873, 16
      %v2933 = vrot.slane %v2931, 7
      %v2934 = vshll.u32 %v2873, 16
      %v2936 = vor.u32 %v2933, %v2934
      %v2937 = vsel %vm2904, %v2929, %v2936
      %v2938 = vrot.slane %v2933, 4
      %v2940 = vshrl.u32 %v2874, 16
      %v2942 = vrot.slane %v2940, 7
      %v2943 = vshll.u32 %v2874, 16
      %v2945 = vor.u32 %v2942, %v2943
      %v2946 = vrot.slane %v2942, 4
      %v2948 = vshrl.u32 %v2875, 16
      %v2950 = vrot.slane %v2948, 7
      %v2951 = vshll.u32 %v2875, 16
      %v2953 = vor.u32 %v2950, %v2951
      %v2954 = vsel %vm2904, %v2946, %v2953
      %v2955 = vrot.slane %v2950, 4
      %v2957 = vshrl.u32 %v2876, 16
      %v2959 = vrot.slane %v2957, 7
      %v2960 = vshll.u32 %v2876, 16
      %v2962 = vor.u32 %v2959, %v2960
      %v2963 = vrot.slane %v2959, 4
      %v2965 = vshrl.u32 %v2877, 16
      %v2967 = vrot.slane %v2965, 7
      %v2968 = vshll.u32 %v2877, 16
      %v2970 = vor.u32 %v2967, %v2968
      %v2971 = vsel %vm2904, %v2963, %v2970
      %v2972 = vrot.slane %v2967, 4
      %v2974 = vshrl.u32 %v2878, 16
      %v2976 = vrot.slane %v2974, 7
      %v2977 = vshll.u32 %v2878, 16
      %v2979 = vor.u32 %v2976, %v2977
      %v2980 = vrot.slane %v2976, 4
      %v2982 = vshrl.u32 %v2879, 16
      %v2984 = vrot.slane %v2982, 7
      %v2985 = vshll.u32 %v2879, 16
      %v2987 = vor.u32 %v2984, %v2985
      %v2988 = vsel %vm2904, %v2980, %v2987
      %v2989 = vrot.slane %v2984, 4
      %v2991 = vshrl.u32 %v2880, 16
      %v2993 = vrot.slane %v2991, 7
      %v2994 = vshll.u32 %v2880, 16
      %v2996 = vor.u32 %v2993, %v2994
      %v2997 = vrot.slane %v2993, 4
      %v2999 = vshrl.u32 %v2881, 16
      %v3001 = vrot.slane %v2999, 7
      %v3002 = vshll.u32 %v2881, 16
      %v3004 = vor.u32 %v3001, %v3002
      %v3005 = vsel %vm2904, %v2997, %v3004
      %v3006 = vrot.slane %v3001, 4
      %v3008 = vshrl.u32 %v2882, 16
      %v3010 = vrot.slane %v3008, 7
      %v3011 = vshll.u32 %v2882, 16
      %v3013 = vor.u32 %v3010, %v3011
      %v3014 = vrot.slane %v3010, 4
      %v3016 = vshrl.u32 %v2883, 16
      %v3018 = vrot.slane %v3016, 7
      %v3019 = vshll.u32 %v2883, 16
      %v3021 = vor.u32 %v3018, %v3019
      %v3022 = vsel %vm2904, %v3014, %v3021
      %v3023 = vrot.slane %v3018, 4
      %v3025 = vshrl.u32 %v2884, 16
      %v3027 = vrot.slane %v3025, 7
      %v3028 = vshll.u32 %v2884, 16
      %v3030 = vor.u32 %v3027, %v3028
      %v3031 = vrot.slane %v3027, 4
      %v3033 = vshrl.u32 %v2885, 16
      %v3035 = vrot.slane %v3033, 7
      %v3036 = vshll.u32 %v2885, 16
      %v3038 = vor.u32 %v3035, %v3036
      %v3039 = vsel %vm2904, %v3031, %v3038
      %v3040 = vrot.slane %v3035, 4
      %v3042 = vshrl.u32 %v2886, 16
      %v3044 = vrot.slane %v3042, 7
      %v3045 = vshll.u32 %v2886, 16
      %v3047 = vor.u32 %v3044, %v3045
      %v3048 = vrot.slane %v3044, 4
      %v3050 = vshrl.u32 %v2887, 16
      %v3052 = vrot.slane %v3050, 7
      %v3053 = vshll.u32 %v2887, 16
      %v3055 = vor.u32 %v3052, %v3053
      %v3056 = vsel %vm2904, %v3048, %v3055
      %v3057 = vrot.slane %v3052, 4
      %v3059 = vshrl.u32 %v2888, 16
      %v3061 = vrot.slane %v3059, 7
      %v3062 = vshll.u32 %v2888, 16
      %v3064 = vor.u32 %v3061, %v3062
      %v3065 = vrot.slane %v3061, 4
      %v3067 = vshrl.u32 %v2889, 16
      %v3069 = vrot.slane %v3067, 7
      %v3070 = vshll.u32 %v2889, 16
      %v3072 = vor.u32 %v3069, %v3070
      %v3073 = vsel %vm2904, %v3065, %v3072
      %v3074 = vrot.slane %v3069, 4
      %v3076 = vshrl.u32 %v2890, 16
      %v3078 = vrot.slane %v3076, 7
      %v3079 = vshll.u32 %v2890, 16
      %v3081 = vor.u32 %v3078, %v3079
      %v3082 = vrot.slane %v3078, 4
      %v3084 = vshrl.u32 %v2891, 16
      %v3086 = vrot.slane %v3084, 7
      %v3087 = vshll.u32 %v2891, 16
      %v3089 = vor.u32 %v3086, %v3087
      %v3090 = vsel %vm2904, %v3082, %v3089
      %v3091 = vrot.slane %v3086, 4
      %v3093 = vshrl.u32 %v2892, 16
      %v3095 = vrot.slane %v3093, 7
      %v3096 = vshll.u32 %v2892, 16
      %v3098 = vor.u32 %v3095, %v3096
      %v3099 = vrot.slane %v3095, 4
      %v3101 = vshrl.u32 %v2893, 16
      %v3103 = vrot.slane %v3101, 7
      %v3104 = vshll.u32 %v2893, 16
      %v3106 = vor.u32 %v3103, %v3104
      %v3107 = vsel %vm2904, %v3099, %v3106
      %v3108 = vrot.slane %v3103, 4
      %v3110 = vshrl.u32 %v2894, 16
      %v3112 = vrot.slane %v3110, 7
      %v3113 = vshll.u32 %v2894, 16
      %v3115 = vor.u32 %v3112, %v3113
      %v3116 = vrot.slane %v3112, 4
      %v3118 = vshrl.u32 %v2895, 16
      %v3120 = vrot.slane %v3118, 7
      %v3121 = vshll.u32 %v2895, 16
      %v3123 = vor.u32 %v3120, %v3121
      %v3124 = vsel %vm2904, %v3116, %v3123
      %v3125 = vrot.slane %v3120, 4
      %v3127 = vshrl.u32 %v2896, 16
      %v3129 = vrot.slane %v3127, 7
      %v3130 = vshll.u32 %v2896, 16
      %v3132 = vor.u32 %v3129, %v3130
      %v3133 = vrot.slane %v3129, 4
      %v3135 = vshrl.u32 %v2897, 16
      %v3137 = vrot.slane %v3135, 7
      %v3138 = vshll.u32 %v2897, 16
      %v3140 = vor.u32 %v3137, %v3138
      %v3141 = vsel %vm2904, %v3133, %v3140
      %v3142 = vrot.slane %v3137, 4
      %v3144 = vshrl.u32 %v2898, 16
      %v3146 = vrot.slane %v3144, 7
      %v3147 = vshll.u32 %v2898, 16
      %v3149 = vor.u32 %v3146, %v3147
      %v3150 = vrot.slane %v3146, 4
      %v3152 = vshrl.u32 %v2899, 16
      %v3154 = vrot.slane %v3152, 7
      %v3155 = vshll.u32 %v2899, 16
      %v3157 = vor.u32 %v3154, %v3155
      %v3158 = vsel %vm2904, %v3150, %v3157
      %v3159 = vrot.slane %v3154, 4
      %v3161 = vshrl.u32 %v2900, 16
      %v3163 = vrot.slane %v3161, 7
      %v3164 = vshll.u32 %v2900, 16
      %v3166 = vor.u32 %v3163, %v3164
      %v3167 = vrot.slane %v3163, 4
      %v3169 = vshrl.u32 %v2901, 16
      %v3171 = vrot.slane %v3169, 7
      %v3172 = vshll.u32 %v2901, 16
      %v3174 = vor.u32 %v3171, %v3172
      %v3175 = vsel %vm2904, %v3167, %v3174
      %v3176 = vrot.slane %v3171, 4
      %s3225 = scalar_lea.vmem [#allocation2], 12
      %vm3226 = vcmask 257024
      %vm3227 = vsmask.f32 7938
      %vm3228 = vmand %vm3226, %vm3227
      %v3229 = vld [vmem:[%s3225] sm:$0xf]
      %v3230 = vsel %vm3228, %v2911, %v3229
      %3231 = vst [vmem:[%s3225] sm:$0xf] %v3230
      %3232 = vst.msk [vmem:[%s3225 + $0x4] sm:$0xf] %vm2750, %v2920
      %vm3233 = vcmask 253952
      %vm3234 = vmand %vm3233, %vm2902
      %v3235 = vld [vmem:[%s3225 + $0x8] sm:$0x1]
      %v3236 = vsel %vm3234, %v2921, %v3235
      %3237 = vst [vmem:[%s3225 + $0x8] sm:$0x1] %v3236
      %v3238 = vld [vmem:[%s3225 + $0xc] sm:$0xf]
      %v3239 = vsel %vm3228, %v2928, %v3238
      %3240 = vst [vmem:[%s3225 + $0xc] sm:$0xf] %v3239
      %3241 = vst.msk [vmem:[%s3225 + $0x10] sm:$0xf] %vm2750, %v2937
      %v3242 = vld [vmem:[%s3225 + $0x14] sm:$0x1]
      %v3243 = vsel %vm3234, %v2938, %v3242
      %3244 = vst [vmem:[%s3225 + $0x14] sm:$0x1] %v3243
      %v3245 = vld [vmem:[%s3225 + $0x18] sm:$0xf]
      %v3246 = vsel %vm3228, %v2945, %v3245
      %3247 = vst [vmem:[%s3225 + $0x18] sm:$0xf] %v3246
      %3248 = vst.msk [vmem:[%s3225 + $0x1c] sm:$0xf] %vm2750, %v2954
      %v3249 = vld [vmem:[%s3225 + $0x20] sm:$0x1]
      %v3250 = vsel %vm3234, %v2955, %v3249
      %3251 = vst [vmem:[%s3225 + $0x20] sm:$0x1] %v3250
      %v3252 = vld [vmem:[%s3225 + $0x24] sm:$0xf]
      %v3253 = vsel %vm3228, %v2962, %v3252
      %3254 = vst [vmem:[%s3225 + $0x24] sm:$0xf] %v3253
      %3255 = vst.msk [vmem:[%s3225 + $0x28] sm:$0xf] %vm2750, %v2971
      %v3256 = vld [vmem:[%s3225 + $0x2c] sm:$0x1]
      %v3257 = vsel %vm3234, %v2972, %v3256
      %3258 = vst [vmem:[%s3225 + $0x2c] sm:$0x1] %v3257
      %v3259 = vld [vmem:[%s3225 + $0x30] sm:$0xf]
      %v3260 = vsel %vm3228, %v2979, %v3259
      %3261 = vst [vmem:[%s3225 + $0x30] sm:$0xf] %v3260
      %3262 = vst.msk [vmem:[%s3225 + $0x34] sm:$0xf] %vm2750, %v2988
      %v3263 = vld [vmem:[%s3225 + $0x38] sm:$0x1]
      %v3264 = vsel %vm3234, %v2989, %v3263
      %3265 = vst [vmem:[%s3225 + $0x38] sm:$0x1] %v3264
      %v3266 = vld [vmem:[%s3225 + $0x3c] sm:$0xf]
      %v3267 = vsel %vm3228, %v2996, %v3266
      %3268 = vst [vmem:[%s3225 + $0x3c] sm:$0xf] %v3267
      %3269 = vst.msk [vmem:[%s3225 + $0x40] sm:$0xf] %vm2750, %v3005
      %v3270 = vld [vmem:[%s3225 + $0x44] sm:$0x1]
      %v3271 = vsel %vm3234, %v3006, %v3270
      %3272 = vst [vmem:[%s3225 + $0x44] sm:$0x1] %v3271
      %v3273 = vld [vmem:[%s3225 + $0x48] sm:$0xf]
      %v3274 = vsel %vm3228, %v3013, %v3273
      %3275 = vst [vmem:[%s3225 + $0x48] sm:$0xf] %v3274
      %3276 = vst.msk [vmem:[%s3225 + $0x4c] sm:$0xf] %vm2750, %v3022
      %v3277 = vld [vmem:[%s3225 + $0x50] sm:$0x1]
      %v3278 = vsel %vm3234, %v3023, %v3277
      %3279 = vst [vmem:[%s3225 + $0x50] sm:$0x1] %v3278
      %v3280 = vld [vmem:[%s3225 + $0x54] sm:$0xf]
      %v3281 = vsel %vm3228, %v3030, %v3280
      %3282 = vst [vmem:[%s3225 + $0x54] sm:$0xf] %v3281
      %3283 = vst.msk [vmem:[%s3225 + $0x58] sm:$0xf] %vm2750, %v3039
      %v3284 = vld [vmem:[%s3225 + $0x5c] sm:$0x1]
      %v3285 = vsel %vm3234, %v3040, %v3284
      %3286 = vst [vmem:[%s3225 + $0x5c] sm:$0x1] %v3285
      %v3287 = vld [vmem:[%s3225 + $0x60] sm:$0xf]
      %v3288 = vsel %vm3228, %v3047, %v3287
      %3289 = vst [vmem:[%s3225 + $0x60] sm:$0xf] %v3288
      %3290 = vst.msk [vmem:[%s3225 + $0x64] sm:$0xf] %vm2750, %v3056
      %v3291 = vld [vmem:[%s3225 + $0x68] sm:$0x1]
      %v3292 = vsel %vm3234, %v3057, %v3291
      %3293 = vst [vmem:[%s3225 + $0x68] sm:$0x1] %v3292
      %v3294 = vld [vmem:[%s3225 + $0x6c] sm:$0xf]
      %v3295 = vsel %vm3228, %v3064, %v3294
      %3296 = vst [vmem:[%s3225 + $0x6c] sm:$0xf] %v3295
      %3297 = vst.msk [vmem:[%s3225 + $0x70] sm:$0xf] %vm2750, %v3073
      %v3298 = vld [vmem:[%s3225 + $0x74] sm:$0x1]
      %v3299 = vsel %vm3234, %v3074, %v3298
      %3300 = vst [vmem:[%s3225 + $0x74] sm:$0x1] %v3299
      %v3301 = vld [vmem:[%s3225 + $0x78] sm:$0xf]
      %v3302 = vsel %vm3228, %v3081, %v3301
      %3303 = vst [vmem:[%s3225 + $0x78] sm:$0xf] %v3302
      %3304 = vst.msk [vmem:[%s3225 + $0x7c] sm:$0xf] %vm2750, %v3090
      %v3305 = vld [vmem:[%s3225 + $0x80] sm:$0x1]
      %v3306 = vsel %vm3234, %v3091, %v3305
      %3307 = vst [vmem:[%s3225 + $0x80] sm:$0x1] %v3306
      %v3308 = vld [vmem:[%s3225 + $0x84] sm:$0xf]
      %v3309 = vsel %vm3228, %v3098, %v3308
      %3310 = vst [vmem:[%s3225 + $0x84] sm:$0xf] %v3309
      %3311 = vst.msk [vmem:[%s3225 + $0x88] sm:$0xf] %vm2750, %v3107
      %v3312 = vld [vmem:[%s3225 + $0x8c] sm:$0x1]
      %v3313 = vsel %vm3234, %v3108, %v3312
      %3314 = vst [vmem:[%s3225 + $0x8c] sm:$0x1] %v3313
      %v3315 = vld [vmem:[%s3225 + $0x90] sm:$0xf]
      %v3316 = vsel %vm3228, %v3115, %v3315
      %3317 = vst [vmem:[%s3225 + $0x90] sm:$0xf] %v3316
      %3318 = vst.msk [vmem:[%s3225 + $0x94] sm:$0xf] %vm2750, %v3124
      %v3319 = vld [vmem:[%s3225 + $0x98] sm:$0x1]
      %v3320 = vsel %vm3234, %v3125, %v3319
      %3321 = vst [vmem:[%s3225 + $0x98] sm:$0x1] %v3320
      %v3322 = vld [vmem:[%s3225 + $0x9c] sm:$0xf]
      %v3323 = vsel %vm3228, %v3132, %v3322
      %3324 = vst [vmem:[%s3225 + $0x9c] sm:$0xf] %v3323
      %3325 = vst.msk [vmem:[%s3225 + $0xa0] sm:$0xf] %vm2750, %v3141
      %v3326 = vld [vmem:[%s3225 + $0xa4] sm:$0x1]
      %v3327 = vsel %vm3234, %v3142, %v3326
      %3328 = vst [vmem:[%s3225 + $0xa4] sm:$0x1] %v3327
      %v3329 = vld [vmem:[%s3225 + $0xa8] sm:$0xf]
      %v3330 = vsel %vm3228, %v3149, %v3329
      %3331 = vst [vmem:[%s3225 + $0xa8] sm:$0xf] %v3330
      %3332 = vst.msk [vmem:[%s3225 + $0xac] sm:$0xf] %vm2750, %v3158
      %v3333 = vld [vmem:[%s3225 + $0xb0] sm:$0x1]
      %v3334 = vsel %vm3234, %v3159, %v3333
      %3335 = vst [vmem:[%s3225 + $0xb0] sm:$0x1] %v3334
      %v3336 = vld [vmem:[%s3225 + $0xb4] sm:$0xf]
      %v3337 = vsel %vm3228, %v3166, %v3336
      %3338 = vst [vmem:[%s3225 + $0xb4] sm:$0xf] %v3337
      %3339 = vst.msk [vmem:[%s3225 + $0xb8] sm:$0xf] %vm2750, %v3175
      %v3340 = vld [vmem:[%s3225 + $0xbc] sm:$0x1]
      %v3341 = vsel %vm3234, %v3176, %v3340
      %3342 = vst [vmem:[%s3225 + $0xbc] sm:$0x1] %v3341
      %v3343 = vld [vmem:[#allocation2] sm:$0xf]
      %v3344 = vld [vmem:[#allocation2 + $0x4] sm:$0xf]
      %v3345 = vld [vmem:[#allocation2 + $0xc] sm:$0xf]
      %v3346 = vld [vmem:[#allocation2 + $0x10] sm:$0xf]
      %v3347 = vld [vmem:[#allocation2 + $0x18] sm:$0xf]
      %v3348 = vld [vmem:[#allocation2 + $0x1c] sm:$0xf]
      %v3349 = vld [vmem:[#allocation2 + $0x24] sm:$0xf]
      %v3350 = vld [vmem:[#allocation2 + $0x28] sm:$0xf]
      %v3351 = vld [vmem:[#allocation2 + $0x30] sm:$0xf]
      %v3352 = vld [vmem:[#allocation2 + $0x34] sm:$0xf]
      %v3353 = vld [vmem:[#allocation2 + $0x3c] sm:$0xf]
      %v3354 = vld [vmem:[#allocation2 + $0x40] sm:$0xf]
      %v3355 = vld [vmem:[#allocation2 + $0x48] sm:$0xf]
      %v3356 = vld [vmem:[#allocation2 + $0x4c] sm:$0xf]
      %v3357 = vld [vmem:[#allocation2 + $0x54] sm:$0xf]
      %v3358 = vld [vmem:[#allocation2 + $0x58] sm:$0xf]
      %v3359 = vld [vmem:[#allocation2 + $0x60] sm:$0xf]
      %v3360 = vld [vmem:[#allocation2 + $0x64] sm:$0xf]
      %v3361 = vld [vmem:[#allocation2 + $0x6c] sm:$0xf]
      %v3362 = vld [vmem:[#allocation2 + $0x70] sm:$0xf]
      %v3363 = vld [vmem:[#allocation2 + $0x78] sm:$0xf]
      %v3364 = vld [vmem:[#allocation2 + $0x7c] sm:$0xf]
      %v3365 = vld [vmem:[#allocation2 + $0x84] sm:$0xf]
      %v3366 = vld [vmem:[#allocation2 + $0x88] sm:$0xf]
      %v3367 = vld [vmem:[#allocation2 + $0x90] sm:$0xf]
      %v3368 = vld [vmem:[#allocation2 + $0x94] sm:$0xf]
      %v3369 = vld [vmem:[#allocation2 + $0x9c] sm:$0xf]
      %v3370 = vld [vmem:[#allocation2 + $0xa0] sm:$0xf]
      %v3371 = vld [vmem:[#allocation2 + $0xa8] sm:$0xf]
      %v3372 = vld [vmem:[#allocation2 + $0xac] sm:$0xf]
      %v3373 = vld [vmem:[#allocation2 + $0xb4] sm:$0xf]
      %v3374 = vld [vmem:[#allocation2 + $0xb8] sm:$0xf]
      %v3375 = vld [vmem:[#allocation2 + $0x8] sm:$0x1]
      %v3376 = vld [vmem:[#allocation2 + $0x14] sm:$0x1]
      %v3377 = vld [vmem:[#allocation2 + $0x20] sm:$0x1]
      %v3378 = vld [vmem:[#allocation2 + $0x2c] sm:$0x1]
      %v3379 = vld [vmem:[#allocation2 + $0x38] sm:$0x1]
      %v3380 = vld [vmem:[#allocation2 + $0x44] sm:$0x1]
      %v3381 = vld [vmem:[#allocation2 + $0x50] sm:$0x1]
      %v3382 = vld [vmem:[#allocation2 + $0x5c] sm:$0x1]
      %v3383 = vld [vmem:[#allocation2 + $0x68] sm:$0x1]
      %v3384 = vld [vmem:[#allocation2 + $0x74] sm:$0x1]
      %v3385 = vld [vmem:[#allocation2 + $0x80] sm:$0x1]
      %v3386 = vld [vmem:[#allocation2 + $0x8c] sm:$0x1]
      %v3387 = vld [vmem:[#allocation2 + $0x98] sm:$0x1]
      %v3388 = vld [vmem:[#allocation2 + $0xa4] sm:$0x1]
      %v3389 = vld [vmem:[#allocation2 + $0xb0] sm:$0x1]
      %v3390 = vld [vmem:[#allocation2 + $0xbc] sm:$0x1]
      %v3391 = vld [vmem:[#allocation2] sm:$0xe]
      %v3392 = vld [vmem:[#allocation2 + $0xc] sm:$0xe]
      %v3393 = vld [vmem:[#allocation2 + $0x18] sm:$0xe]
      %v3394 = vld [vmem:[#allocation2 + $0x24] sm:$0xe]
      %v3395 = vld [vmem:[#allocation2 + $0x30] sm:$0xe]
      %v3396 = vld [vmem:[#allocation2 + $0x3c] sm:$0xe]
      %v3397 = vld [vmem:[#allocation2 + $0x48] sm:$0xe]
      %v3398 = vld [vmem:[#allocation2 + $0x54] sm:$0xe]
      %v3399 = vld [vmem:[#allocation2 + $0x60] sm:$0xe]
      %v3400 = vld [vmem:[#allocation2 + $0x6c] sm:$0xe]
      %v3401 = vld [vmem:[#allocation2 + $0x78] sm:$0xe]
      %v3402 = vld [vmem:[#allocation2 + $0x84] sm:$0xe]
      %v3403 = vld [vmem:[#allocation2 + $0x90] sm:$0xe]
      %v3404 = vld [vmem:[#allocation2 + $0x9c] sm:$0xe]
      %v3405 = vld [vmem:[#allocation2 + $0xa8] sm:$0xe]
      %v3406 = vld [vmem:[#allocation2 + $0xb4] sm:$0xe]
      %v3407 = vld [vmem:[%s3225] sm:$0xf]
      %v3408 = vld [vmem:[%s3225 + $0x4] sm:$0xf]
      %v3409 = vld [vmem:[%s3225 + $0xc] sm:$0xf]
      %v3410 = vld [vmem:[%s3225 + $0x10] sm:$0xf]
      %v3411 = vld [vmem:[%s3225 + $0x18] sm:$0xf]
      %v3412 = vld [vmem:[%s3225 + $0x1c] sm:$0xf]
      %v3413 = vld [vmem:[%s3225 + $0x24] sm:$0xf]
      %v3414 = vld [vmem:[%s3225 + $0x28] sm:$0xf]
      %v3415 = vld [vmem:[%s3225 + $0x30] sm:$0xf]
      %v3416 = vld [vmem:[%s3225 + $0x34] sm:$0xf]
      %v3417 = vld [vmem:[%s3225 + $0x3c] sm:$0xf]
      %v3418 = vld [vmem:[%s3225 + $0x40] sm:$0xf]
      %v3419 = vld [vmem:[%s3225 + $0x48] sm:$0xf]
      %v3420 = vld [vmem:[%s3225 + $0x4c] sm:$0xf]
      %v3421 = vld [vmem:[%s3225 + $0x54] sm:$0xf]
      %v3422 = vld [vmem:[%s3225 + $0x58] sm:$0xf]
      %v3423 = vld [vmem:[%s3225 + $0x60] sm:$0xf]
      %v3424 = vld [vmem:[%s3225 + $0x64] sm:$0xf]
      %v3425 = vld [vmem:[%s3225 + $0x6c] sm:$0xf]
      %v3426 = vld [vmem:[%s3225 + $0x70] sm:$0xf]
      %v3427 = vld [vmem:[%s3225 + $0x78] sm:$0xf]
      %v3428 = vld [vmem:[%s3225 + $0x7c] sm:$0xf]
      %v3429 = vld [vmem:[%s3225 + $0x84] sm:$0xf]
      %v3430 = vld [vmem:[%s3225 + $0x88] sm:$0xf]
      %v3431 = vld [vmem:[%s3225 + $0x90] sm:$0xf]
      %v3432 = vld [vmem:[%s3225 + $0x94] sm:$0xf]
      %v3433 = vld [vmem:[%s3225 + $0x9c] sm:$0xf]
      %v3434 = vld [vmem:[%s3225 + $0xa0] sm:$0xf]
      %v3435 = vld [vmem:[%s3225 + $0xa8] sm:$0xf]
      %v3436 = vld [vmem:[%s3225 + $0xac] sm:$0xf]
      %v3437 = vld [vmem:[%s3225 + $0xb4] sm:$0xf]
      %v3438 = vld [vmem:[%s3225 + $0xb8] sm:$0xf]
      %v3439 = vld [vmem:[%s3225 + $0x8] sm:$0x1]
      %v3440 = vld [vmem:[%s3225 + $0x14] sm:$0x1]
      %v3441 = vld [vmem:[%s3225 + $0x20] sm:$0x1]
      %v3442 = vld [vmem:[%s3225 + $0x2c] sm:$0x1]
      %v3443 = vld [vmem:[%s3225 + $0x38] sm:$0x1]
      %v3444 = vld [vmem:[%s3225 + $0x44] sm:$0x1]
      %v3445 = vld [vmem:[%s3225 + $0x50] sm:$0x1]
      %v3446 = vld [vmem:[%s3225 + $0x5c] sm:$0x1]
      %v3447 = vld [vmem:[%s3225 + $0x68] sm:$0x1]
      %v3448 = vld [vmem:[%s3225 + $0x74] sm:$0x1]
      %v3449 = vld [vmem:[%s3225 + $0x80] sm:$0x1]
      %v3450 = vld [vmem:[%s3225 + $0x8c] sm:$0x1]
      %v3451 = vld [vmem:[%s3225 + $0x98] sm:$0x1]
      %v3452 = vld [vmem:[%s3225 + $0xa4] sm:$0x1]
      %v3453 = vld [vmem:[%s3225 + $0xb0] sm:$0x1]
      %v3454 = vld [vmem:[%s3225 + $0xbc] sm:$0x1]
      %v3455 = vld [vmem:[%s3225] sm:$0xe]
      %v3456 = vld [vmem:[%s3225 + $0xc] sm:$0xe]
      %v3457 = vld [vmem:[%s3225 + $0x18] sm:$0xe]
      %v3458 = vld [vmem:[%s3225 + $0x24] sm:$0xe]
      %v3459 = vld [vmem:[%s3225 + $0x30] sm:$0xe]
      %v3460 = vld [vmem:[%s3225 + $0x3c] sm:$0xe]
      %v3461 = vld [vmem:[%s3225 + $0x48] sm:$0xe]
      %v3462 = vld [vmem:[%s3225 + $0x54] sm:$0xe]
      %v3463 = vld [vmem:[%s3225 + $0x60] sm:$0xe]
      %v3464 = vld [vmem:[%s3225 + $0x6c] sm:$0xe]
      %v3465 = vld [vmem:[%s3225 + $0x78] sm:$0xe]
      %v3466 = vld [vmem:[%s3225 + $0x84] sm:$0xe]
      %v3467 = vld [vmem:[%s3225 + $0x90] sm:$0xe]
      %v3468 = vld [vmem:[%s3225 + $0x9c] sm:$0xe]
      %v3469 = vld [vmem:[%s3225 + $0xa8] sm:$0xe]
      %v3470 = vld [vmem:[%s3225 + $0xb4] sm:$0xe]
      %s3471 = scalar_lea.vmem [#allocation2], 24
      %v3472 = vld [vmem:[%s3471] sm:$0xf]
      %v3473 = vld [vmem:[%s3471 + $0x4] sm:$0xf]
      %v3474 = vld [vmem:[%s3471 + $0xc] sm:$0xf]
      %v3475 = vld [vmem:[%s3471 + $0x10] sm:$0xf]
      %v3476 = vld [vmem:[%s3471 + $0x18] sm:$0xf]
      %v3477 = vld [vmem:[%s3471 + $0x1c] sm:$0xf]
      %v3478 = vld [vmem:[%s3471 + $0x24] sm:$0xf]
      %v3479 = vld [vmem:[%s3471 + $0x28] sm:$0xf]
      %v3480 = vld [vmem:[%s3471 + $0x30] sm:$0xf]
      %v3481 = vld [vmem:[%s3471 + $0x34] sm:$0xf]
      %v3482 = vld [vmem:[%s3471 + $0x3c] sm:$0xf]
      %v3483 = vld [vmem:[%s3471 + $0x40] sm:$0xf]
      %v3484 = vld [vmem:[%s3471 + $0x48] sm:$0xf]
      %v3485 = vld [vmem:[%s3471 + $0x4c] sm:$0xf]
      %v3486 = vld [vmem:[%s3471 + $0x54] sm:$0xf]
      %v3487 = vld [vmem:[%s3471 + $0x58] sm:$0xf]
      %v3488 = vld [vmem:[%s3471 + $0x60] sm:$0xf]
      %v3489 = vld [vmem:[%s3471 + $0x64] sm:$0xf]
      %v3490 = vld [vmem:[%s3471 + $0x6c] sm:$0xf]
      %v3491 = vld [vmem:[%s3471 + $0x70] sm:$0xf]
      %v3492 = vld [vmem:[%s3471 + $0x78] sm:$0xf]
      %v3493 = vld [vmem:[%s3471 + $0x7c] sm:$0xf]
      %v3494 = vld [vmem:[%s3471 + $0x84] sm:$0xf]
      %v3495 = vld [vmem:[%s3471 + $0x88] sm:$0xf]
      %v3496 = vld [vmem:[%s3471 + $0x90] sm:$0xf]
      %v3497 = vld [vmem:[%s3471 + $0x94] sm:$0xf]
      %v3498 = vld [vmem:[%s3471 + $0x9c] sm:$0xf]
      %v3499 = vld [vmem:[%s3471 + $0xa0] sm:$0xf]
      %v3500 = vld [vmem:[%s3471 + $0xa8] sm:$0xf]
      %v3501 = vld [vmem:[%s3471 + $0xac] sm:$0xf]
      %v3502 = vld [vmem:[%s3471 + $0xb4] sm:$0xf]
      %v3503 = vld [vmem:[%s3471 + $0xb8] sm:$0xf]
      %v3504 = vld [vmem:[%s3471 + $0x8] sm:$0x1]
      %v3505 = vld [vmem:[%s3471 + $0x14] sm:$0x1]
      %v3506 = vld [vmem:[%s3471 + $0x20] sm:$0x1]
      %v3507 = vld [vmem:[%s3471 + $0x2c] sm:$0x1]
      %v3508 = vld [vmem:[%s3471 + $0x38] sm:$0x1]
      %v3509 = vld [vmem:[%s3471 + $0x44] sm:$0x1]
      %v3510 = vld [vmem:[%s3471 + $0x50] sm:$0x1]
      %v3511 = vld [vmem:[%s3471 + $0x5c] sm:$0x1]
      %v3512 = vld [vmem:[%s3471 + $0x68] sm:$0x1]
      %v3513 = vld [vmem:[%s3471 + $0x74] sm:$0x1]
      %v3514 = vld [vmem:[%s3471 + $0x80] sm:$0x1]
      %v3515 = vld [vmem:[%s3471 + $0x8c] sm:$0x1]
      %v3516 = vld [vmem:[%s3471 + $0x98] sm:$0x1]
      %v3517 = vld [vmem:[%s3471 + $0xa4] sm:$0x1]
      %v3518 = vld [vmem:[%s3471 + $0xb0] sm:$0x1]
      %v3519 = vld [vmem:[%s3471 + $0xbc] sm:$0x1]
      %v3520 = vld [vmem:[%s3471] sm:$0xe]
      %v3521 = vld [vmem:[%s3471 + $0xc] sm:$0xe]
      %v3522 = vld [vmem:[%s3471 + $0x18] sm:$0xe]
      %v3523 = vld [vmem:[%s3471 + $0x24] sm:$0xe]
      %v3524 = vld [vmem:[%s3471 + $0x30] sm:$0xe]
      %v3525 = vld [vmem:[%s3471 + $0x3c] sm:$0xe]
      %v3526 = vld [vmem:[%s3471 + $0x48] sm:$0xe]
      %v3527 = vld [vmem:[%s3471 + $0x54] sm:$0xe]
      %v3528 = vld [vmem:[%s3471 + $0x60] sm:$0xe]
      %v3529 = vld [vmem:[%s3471 + $0x6c] sm:$0xe]
      %v3530 = vld [vmem:[%s3471 + $0x78] sm:$0xe]
      %v3531 = vld [vmem:[%s3471 + $0x84] sm:$0xe]
      %v3532 = vld [vmem:[%s3471 + $0x90] sm:$0xe]
      %v3533 = vld [vmem:[%s3471 + $0x9c] sm:$0xe]
      %v3534 = vld [vmem:[%s3471 + $0xa8] sm:$0xe]
      %v3535 = vld [vmem:[%s3471 + $0xb4] sm:$0xe]
      %v3568 = vunpack.c.l.b16 %v3343
      %v3569 = vunpack.c.l.b16 %v3344
      %v3570 = vunpack.c.l.b16 %v3345
      %v3571 = vunpack.c.l.b16 %v3346
      %v3572 = vunpack.c.l.b16 %v3347
      %v3573 = vunpack.c.l.b16 %v3348
      %v3574 = vunpack.c.l.b16 %v3349
      %v3575 = vunpack.c.l.b16 %v3350
      %v3576 = vunpack.c.l.b16 %v3351
      %v3577 = vunpack.c.l.b16 %v3352
      %v3578 = vunpack.c.l.b16 %v3353
      %v3579 = vunpack.c.l.b16 %v3354
      %v3580 = vunpack.c.l.b16 %v3355
      %v3581 = vunpack.c.l.b16 %v3356
      %v3582 = vunpack.c.l.b16 %v3357
      %v3583 = vunpack.c.l.b16 %v3358
      %v3584 = vunpack.c.l.b16 %v3359
      %v3585 = vunpack.c.l.b16 %v3360
      %v3586 = vunpack.c.l.b16 %v3361
      %v3587 = vunpack.c.l.b16 %v3362
      %v3588 = vunpack.c.l.b16 %v3363
      %v3589 = vunpack.c.l.b16 %v3364
      %v3590 = vunpack.c.l.b16 %v3365
      %v3591 = vunpack.c.l.b16 %v3366
      %v3592 = vunpack.c.l.b16 %v3367
      %v3593 = vunpack.c.l.b16 %v3368
      %v3594 = vunpack.c.l.b16 %v3369
      %v3595 = vunpack.c.l.b16 %v3370
      %v3596 = vunpack.c.l.b16 %v3371
      %v3597 = vunpack.c.l.b16 %v3372
      %v3598 = vunpack.c.l.b16 %v3373
      %v3599 = vunpack.c.l.b16 %v3374
      %v3600 = vpack.c.b16 %v3569, %v3568
      %v3601 = vpack.c.b16 %v3571, %v3570
      %v3602 = vpack.c.b16 %v3573, %v3572
      %v3603 = vpack.c.b16 %v3575, %v3574
      %v3604 = vpack.c.b16 %v3577, %v3576
      %v3605 = vpack.c.b16 %v3579, %v3578
      %v3606 = vpack.c.b16 %v3581, %v3580
      %v3607 = vpack.c.b16 %v3583, %v3582
      %v3608 = vpack.c.b16 %v3585, %v3584
      %v3609 = vpack.c.b16 %v3587, %v3586
      %v3610 = vpack.c.b16 %v3589, %v3588
      %v3611 = vpack.c.b16 %v3591, %v3590
      %v3612 = vpack.c.b16 %v3593, %v3592
      %v3613 = vpack.c.b16 %v3595, %v3594
      %v3614 = vpack.c.b16 %v3597, %v3596
      %v3615 = vpack.c.b16 %v3599, %v3598
      %v3632 = vunpack.c.l.b16 %v3375
      %v3633 = vunpack.c.l.b16 %v3376
      %v3634 = vunpack.c.l.b16 %v3377
      %v3635 = vunpack.c.l.b16 %v3378
      %v3636 = vunpack.c.l.b16 %v3379
      %v3637 = vunpack.c.l.b16 %v3380
      %v3638 = vunpack.c.l.b16 %v3381
      %v3639 = vunpack.c.l.b16 %v3382
      %v3640 = vunpack.c.l.b16 %v3383
      %v3641 = vunpack.c.l.b16 %v3384
      %v3642 = vunpack.c.l.b16 %v3385
      %v3643 = vunpack.c.l.b16 %v3386
      %v3644 = vunpack.c.l.b16 %v3387
      %v3645 = vunpack.c.l.b16 %v3388
      %v3646 = vunpack.c.l.b16 %v3389
      %v3647 = vunpack.c.l.b16 %v3390
      %v3648 = vpack.c.b16 %v3632, %v3632
      %v3649 = vpack.c.b16 %v3633, %v3633
      %v3650 = vpack.c.b16 %v3634, %v3634
      %v3651 = vpack.c.b16 %v3635, %v3635
      %v3652 = vpack.c.b16 %v3636, %v3636
      %v3653 = vpack.c.b16 %v3637, %v3637
      %v3654 = vpack.c.b16 %v3638, %v3638
      %v3655 = vpack.c.b16 %v3639, %v3639
      %v3656 = vpack.c.b16 %v3640, %v3640
      %v3657 = vpack.c.b16 %v3641, %v3641
      %v3658 = vpack.c.b16 %v3642, %v3642
      %v3659 = vpack.c.b16 %v3643, %v3643
      %v3660 = vpack.c.b16 %v3644, %v3644
      %v3661 = vpack.c.b16 %v3645, %v3645
      %v3662 = vpack.c.b16 %v3646, %v3646
      %v3663 = vpack.c.b16 %v3647, %v3647
      %v3665 = vshrl.u32 %v3600, 16
      %v3667 = vshll.u32 %v3600, 16
      %v3669 = vrot.slane %v3667, 1
      %v3670 = vor.u32 %v3665, %v3669
      %v3672 = vshll.u32 %v3648, 16
      %v3674 = vrot.slane %v3672, 1
      %v3675 = vsel %vm764, %v3670, %v3674
      %v3677 = vshrl.u32 %v3601, 16
      %v3679 = vshll.u32 %v3601, 16
      %v3681 = vrot.slane %v3679, 1
      %v3682 = vor.u32 %v3677, %v3681
      %v3684 = vshll.u32 %v3649, 16
      %v3686 = vrot.slane %v3684, 1
      %v3687 = vsel %vm764, %v3682, %v3686
      %v3689 = vshrl.u32 %v3602, 16
      %v3691 = vshll.u32 %v3602, 16
      %v3693 = vrot.slane %v3691, 1
      %v3694 = vor.u32 %v3689, %v3693
      %v3696 = vshll.u32 %v3650, 16
      %v3698 = vrot.slane %v3696, 1
      %v3699 = vsel %vm764, %v3694, %v3698
      %v3701 = vshrl.u32 %v3603, 16
      %v3703 = vshll.u32 %v3603, 16
      %v3705 = vrot.slane %v3703, 1
      %v3706 = vor.u32 %v3701, %v3705
      %v3708 = vshll.u32 %v3651, 16
      %v3710 = vrot.slane %v3708, 1
      %v3711 = vsel %vm764, %v3706, %v3710
      %v3713 = vshrl.u32 %v3604, 16
      %v3715 = vshll.u32 %v3604, 16
      %v3717 = vrot.slane %v3715, 1
      %v3718 = vor.u32 %v3713, %v3717
      %v3720 = vshll.u32 %v3652, 16
      %v3722 = vrot.slane %v3720, 1
      %v3723 = vsel %vm764, %v3718, %v3722
      %v3725 = vshrl.u32 %v3605, 16
      %v3727 = vshll.u32 %v3605, 16
      %v3729 = vrot.slane %v3727, 1
      %v3730 = vor.u32 %v3725, %v3729
      %v3732 = vshll.u32 %v3653, 16
      %v3734 = vrot.slane %v3732, 1
      %v3735 = vsel %vm764, %v3730, %v3734
      %v3737 = vshrl.u32 %v3606, 16
      %v3739 = vshll.u32 %v3606, 16
      %v3741 = vrot.slane %v3739, 1
      %v3742 = vor.u32 %v3737, %v3741
      %v3744 = vshll.u32 %v3654, 16
      %v3746 = vrot.slane %v3744, 1
      %v3747 = vsel %vm764, %v3742, %v3746
      %v3749 = vshrl.u32 %v3607, 16
      %v3751 = vshll.u32 %v3607, 16
      %v3753 = vrot.slane %v3751, 1
      %v3754 = vor.u32 %v3749, %v3753
      %v3756 = vshll.u32 %v3655, 16
      %v3758 = vrot.slane %v3756, 1
      %v3759 = vsel %vm764, %v3754, %v3758
      %v3761 = vshrl.u32 %v3608, 16
      %v3763 = vshll.u32 %v3608, 16
      %v3765 = vrot.slane %v3763, 1
      %v3766 = vor.u32 %v3761, %v3765
      %v3768 = vshll.u32 %v3656, 16
      %v3770 = vrot.slane %v3768, 1
      %v3771 = vsel %vm764, %v3766, %v3770
      %v3773 = vshrl.u32 %v3609, 16
      %v3775 = vshll.u32 %v3609, 16
      %v3777 = vrot.slane %v3775, 1
      %v3778 = vor.u32 %v3773, %v3777
      %v3780 = vshll.u32 %v3657, 16
      %v3782 = vrot.slane %v3780, 1
      %v3783 = vsel %vm764, %v3778, %v3782
      %v3785 = vshrl.u32 %v3610, 16
      %v3787 = vshll.u32 %v3610, 16
      %v3789 = vrot.slane %v3787, 1
      %v3790 = vor.u32 %v3785, %v3789
      %v3792 = vshll.u32 %v3658, 16
      %v3794 = vrot.slane %v3792, 1
      %v3795 = vsel %vm764, %v3790, %v3794
      %v3797 = vshrl.u32 %v3611, 16
      %v3799 = vshll.u32 %v3611, 16
      %v3801 = vrot.slane %v3799, 1
      %v3802 = vor.u32 %v3797, %v3801
      %v3804 = vshll.u32 %v3659, 16
      %v3806 = vrot.slane %v3804, 1
      %v3807 = vsel %vm764, %v3802, %v3806
      %v3809 = vshrl.u32 %v3612, 16
      %v3811 = vshll.u32 %v3612, 16
      %v3813 = vrot.slane %v3811, 1
      %v3814 = vor.u32 %v3809, %v3813
      %v3816 = vshll.u32 %v3660, 16
      %v3818 = vrot.slane %v3816, 1
      %v3819 = vsel %vm764, %v3814, %v3818
      %v3821 = vshrl.u32 %v3613, 16
      %v3823 = vshll.u32 %v3613, 16
      %v3825 = vrot.slane %v3823, 1
      %v3826 = vor.u32 %v3821, %v3825
      %v3828 = vshll.u32 %v3661, 16
      %v3830 = vrot.slane %v3828, 1
      %v3831 = vsel %vm764, %v3826, %v3830
      %v3833 = vshrl.u32 %v3614, 16
      %v3835 = vshll.u32 %v3614, 16
      %v3837 = vrot.slane %v3835, 1
      %v3838 = vor.u32 %v3833, %v3837
      %v3840 = vshll.u32 %v3662, 16
      %v3842 = vrot.slane %v3840, 1
      %v3843 = vsel %vm764, %v3838, %v3842
      %v3845 = vshrl.u32 %v3615, 16
      %v3847 = vshll.u32 %v3615, 16
      %v3849 = vrot.slane %v3847, 1
      %v3850 = vor.u32 %v3845, %v3849
      %v3852 = vshll.u32 %v3663, 16
      %v3854 = vrot.slane %v3852, 1
      %v3855 = vsel %vm764, %v3850, %v3854
      %3856 = vrot.lane.b32.xlu0 %v3675, 32
      %v3857 = vpop.permute.xlu0 %3856
      %3858 = vrot.lane.b32.xlu0 %v3687, 32
      %v3859 = vpop.permute.xlu0 %3858
      %3860 = vrot.lane.b32.xlu0 %v3699, 32
      %v3861 = vpop.permute.xlu0 %3860
      %3862 = vrot.lane.b32.xlu0 %v3711, 32
      %v3863 = vpop.permute.xlu0 %3862
      %3864 = vrot.lane.b32.xlu0 %v3723, 32
      %v3865 = vpop.permute.xlu0 %3864
      %3866 = vrot.lane.b32.xlu0 %v3735, 32
      %v3867 = vpop.permute.xlu0 %3866
      %3868 = vrot.lane.b32.xlu0 %v3747, 32
      %v3869 = vpop.permute.xlu0 %3868
      %3870 = vrot.lane.b32.xlu0 %v3759, 32
      %v3871 = vpop.permute.xlu0 %3870
      %3872 = vrot.lane.b32.xlu0 %v3771, 32
      %v3873 = vpop.permute.xlu0 %3872
      %3874 = vrot.lane.b32.xlu0 %v3783, 32
      %v3875 = vpop.permute.xlu0 %3874
      %3876 = vrot.lane.b32.xlu0 %v3795, 32
      %v3877 = vpop.permute.xlu0 %3876
      %3878 = vrot.lane.b32.xlu0 %v3807, 32
      %v3879 = vpop.permute.xlu0 %3878
      %3880 = vrot.lane.b32.xlu0 %v3819, 32
      %v3881 = vpop.permute.xlu0 %3880
      %3882 = vrot.lane.b32.xlu0 %v3831, 32
      %v3883 = vpop.permute.xlu0 %3882
      %3884 = vrot.lane.b32.xlu0 %v3843, 32
      %v3885 = vpop.permute.xlu0 %3884
      %3886 = vrot.lane.b32.xlu0 %v3855, 32
      %v3887 = vpop.permute.xlu0 %3886
      %v3904 = vunpack.c.l.b16 %v3391
      %v3905 = vunpack.c.l.b16 %v3392
      %v3906 = vunpack.c.l.b16 %v3393
      %v3907 = vunpack.c.l.b16 %v3394
      %v3908 = vunpack.c.l.b16 %v3395
      %v3909 = vunpack.c.l.b16 %v3396
      %v3910 = vunpack.c.l.b16 %v3397
      %v3911 = vunpack.c.l.b16 %v3398
      %v3912 = vunpack.c.l.b16 %v3399
      %v3913 = vunpack.c.l.b16 %v3400
      %v3914 = vunpack.c.l.b16 %v3401
      %v3915 = vunpack.c.l.b16 %v3402
      %v3916 = vunpack.c.l.b16 %v3403
      %v3917 = vunpack.c.l.b16 %v3404
      %v3918 = vunpack.c.l.b16 %v3405
      %v3919 = vunpack.c.l.b16 %v3406
      %v3920 = vpack.c.b16 %v3569, %v3904
      %v3921 = vpack.c.b16 %v3571, %v3905
      %v3922 = vpack.c.b16 %v3573, %v3906
      %v3923 = vpack.c.b16 %v3575, %v3907
      %v3924 = vpack.c.b16 %v3577, %v3908
      %v3925 = vpack.c.b16 %v3579, %v3909
      %v3926 = vpack.c.b16 %v3581, %v3910
      %v3927 = vpack.c.b16 %v3583, %v3911
      %v3928 = vpack.c.b16 %v3585, %v3912
      %v3929 = vpack.c.b16 %v3587, %v3913
      %v3930 = vpack.c.b16 %v3589, %v3914
      %v3931 = vpack.c.b16 %v3591, %v3915
      %v3932 = vpack.c.b16 %v3593, %v3916
      %v3933 = vpack.c.b16 %v3595, %v3917
      %v3934 = vpack.c.b16 %v3597, %v3918
      %v3935 = vpack.c.b16 %v3599, %v3919
      %v3936 = vrot.slane %v3920, 1
      %v3937 = vrot.slane %v3648, 1
      %v3938 = vsel %vm1037, %v3936, %v3937
      %v3939 = vrot.slane %v3921, 1
      %v3940 = vrot.slane %v3649, 1
      %v3941 = vsel %vm1037, %v3939, %v3940
      %v3942 = vrot.slane %v3922, 1
      %v3943 = vrot.slane %v3650, 1
      %v3944 = vsel %vm1037, %v3942, %v3943
      %v3945 = vrot.slane %v3923, 1
      %v3946 = vrot.slane %v3651, 1
      %v3947 = vsel %vm1037, %v3945, %v3946
      %v3948 = vrot.slane %v3924, 1
      %v3949 = vrot.slane %v3652, 1
      %v3950 = vsel %vm1037, %v3948, %v3949
      %v3951 = vrot.slane %v3925, 1
      %v3952 = vrot.slane %v3653, 1
      %v3953 = vsel %vm1037, %v3951, %v3952
      %v3954 = vrot.slane %v3926, 1
      %v3955 = vrot.slane %v3654, 1
      %v3956 = vsel %vm1037, %v3954, %v3955
      %v3957 = vrot.slane %v3927, 1
      %v3958 = vrot.slane %v3655, 1
      %v3959 = vsel %vm1037, %v3957, %v3958
      %v3960 = vrot.slane %v3928, 1
      %v3961 = vrot.slane %v3656, 1
      %v3962 = vsel %vm1037, %v3960, %v3961
      %v3963 = vrot.slane %v3929, 1
      %v3964 = vrot.slane %v3657, 1
      %v3965 = vsel %vm1037, %v3963, %v3964
      %v3966 = vrot.slane %v3930, 1
      %v3967 = vrot.slane %v3658, 1
      %v3968 = vsel %vm1037, %v3966, %v3967
      %v3969 = vrot.slane %v3931, 1
      %v3970 = vrot.slane %v3659, 1
      %v3971 = vsel %vm1037, %v3969, %v3970
      %v3972 = vrot.slane %v3932, 1
      %v3973 = vrot.slane %v3660, 1
      %v3974 = vsel %vm1037, %v3972, %v3973
      %v3975 = vrot.slane %v3933, 1
      %v3976 = vrot.slane %v3661, 1
      %v3977 = vsel %vm1037, %v3975, %v3976
      %v3978 = vrot.slane %v3934, 1
      %v3979 = vrot.slane %v3662, 1
      %v3980 = vsel %vm1037, %v3978, %v3979
      %v3981 = vrot.slane %v3935, 1
      %v3982 = vrot.slane %v3663, 1
      %v3983 = vsel %vm1037, %v3981, %v3982
      %3984 = vrot.lane.b32.xlu0 %v3938, 64
      %v3985 = vpop.permute.xlu0 %3984
      %3986 = vrot.lane.b32.xlu0 %v3941, 64
      %v3987 = vpop.permute.xlu0 %3986
      %3988 = vrot.lane.b32.xlu0 %v3944, 64
      %v3989 = vpop.permute.xlu0 %3988
      %3990 = vrot.lane.b32.xlu0 %v3947, 64
      %v3991 = vpop.permute.xlu0 %3990
      %3992 = vrot.lane.b32.xlu0 %v3950, 64
      %v3993 = vpop.permute.xlu0 %3992
      %3994 = vrot.lane.b32.xlu0 %v3953, 64
      %v3995 = vpop.permute.xlu0 %3994
      %3996 = vrot.lane.b32.xlu0 %v3956, 64
      %v3997 = vpop.permute.xlu0 %3996
      %3998 = vrot.lane.b32.xlu0 %v3959, 64
      %v3999 = vpop.permute.xlu0 %3998
      %4000 = vrot.lane.b32.xlu0 %v3962, 64
      %v4001 = vpop.permute.xlu0 %4000
      %4002 = vrot.lane.b32.xlu0 %v3965, 64
      %v4003 = vpop.permute.xlu0 %4002
      %4004 = vrot.lane.b32.xlu0 %v3968, 64
      %v4005 = vpop.permute.xlu0 %4004
      %4006 = vrot.lane.b32.xlu0 %v3971, 64
      %v4007 = vpop.permute.xlu0 %4006
      %4008 = vrot.lane.b32.xlu0 %v3974, 64
      %v4009 = vpop.permute.xlu0 %4008
      %4010 = vrot.lane.b32.xlu0 %v3977, 64
      %v4011 = vpop.permute.xlu0 %4010
      %4012 = vrot.lane.b32.xlu0 %v3980, 64
      %v4013 = vpop.permute.xlu0 %4012
      %4014 = vrot.lane.b32.xlu0 %v3983, 64
      %v4015 = vpop.permute.xlu0 %4014
      %v4048 = vunpack.c.l.b16 %v3407
      %v4049 = vunpack.c.l.b16 %v3408
      %v4050 = vunpack.c.l.b16 %v3409
      %v4051 = vunpack.c.l.b16 %v3410
      %v4052 = vunpack.c.l.b16 %v3411
      %v4053 = vunpack.c.l.b16 %v3412
      %v4054 = vunpack.c.l.b16 %v3413
      %v4055 = vunpack.c.l.b16 %v3414
      %v4056 = vunpack.c.l.b16 %v3415
      %v4057 = vunpack.c.l.b16 %v3416
      %v4058 = vunpack.c.l.b16 %v3417
      %v4059 = vunpack.c.l.b16 %v3418
      %v4060 = vunpack.c.l.b16 %v3419
      %v4061 = vunpack.c.l.b16 %v3420
      %v4062 = vunpack.c.l.b16 %v3421
      %v4063 = vunpack.c.l.b16 %v3422
      %v4064 = vunpack.c.l.b16 %v3423
      %v4065 = vunpack.c.l.b16 %v3424
      %v4066 = vunpack.c.l.b16 %v3425
      %v4067 = vunpack.c.l.b16 %v3426
      %v4068 = vunpack.c.l.b16 %v3427
      %v4069 = vunpack.c.l.b16 %v3428
      %v4070 = vunpack.c.l.b16 %v3429
      %v4071 = vunpack.c.l.b16 %v3430
      %v4072 = vunpack.c.l.b16 %v3431
      %v4073 = vunpack.c.l.b16 %v3432
      %v4074 = vunpack.c.l.b16 %v3433
      %v4075 = vunpack.c.l.b16 %v3434
      %v4076 = vunpack.c.l.b16 %v3435
      %v4077 = vunpack.c.l.b16 %v3436
      %v4078 = vunpack.c.l.b16 %v3437
      %v4079 = vunpack.c.l.b16 %v3438
      %v4080 = vpack.c.b16 %v4049, %v4048
      %v4081 = vpack.c.b16 %v4051, %v4050
      %v4082 = vpack.c.b16 %v4053, %v4052
      %v4083 = vpack.c.b16 %v4055, %v4054
      %v4084 = vpack.c.b16 %v4057, %v4056
      %v4085 = vpack.c.b16 %v4059, %v4058
      %v4086 = vpack.c.b16 %v4061, %v4060
      %v4087 = vpack.c.b16 %v4063, %v4062
      %v4088 = vpack.c.b16 %v4065, %v4064
      %v4089 = vpack.c.b16 %v4067, %v4066
      %v4090 = vpack.c.b16 %v4069, %v4068
      %v4091 = vpack.c.b16 %v4071, %v4070
      %v4092 = vpack.c.b16 %v4073, %v4072
      %v4093 = vpack.c.b16 %v4075, %v4074
      %v4094 = vpack.c.b16 %v4077, %v4076
      %v4095 = vpack.c.b16 %v4079, %v4078
      %4096 = vrot.lane.b32.xlu0 %v4080, 96
      %v4097 = vpop.permute.xlu0 %4096
      %4098 = vrot.lane.b32.xlu0 %v4081, 96
      %v4099 = vpop.permute.xlu0 %4098
      %4100 = vrot.lane.b32.xlu0 %v4082, 96
      %v4101 = vpop.permute.xlu0 %4100
      %4102 = vrot.lane.b32.xlu0 %v4083, 96
      %v4103 = vpop.permute.xlu0 %4102
      %4104 = vrot.lane.b32.xlu0 %v4084, 96
      %v4105 = vpop.permute.xlu0 %4104
      %4106 = vrot.lane.b32.xlu0 %v4085, 96
      %v4107 = vpop.permute.xlu0 %4106
      %4108 = vrot.lane.b32.xlu0 %v4086, 96
      %v4109 = vpop.permute.xlu0 %4108
      %4110 = vrot.lane.b32.xlu0 %v4087, 96
      %v4111 = vpop.permute.xlu0 %4110
      %4112 = vrot.lane.b32.xlu0 %v4088, 96
      %v4113 = vpop.permute.xlu0 %4112
      %4114 = vrot.lane.b32.xlu0 %v4089, 96
      %v4115 = vpop.permute.xlu0 %4114
      %4116 = vrot.lane.b32.xlu0 %v4090, 96
      %v4117 = vpop.permute.xlu0 %4116
      %4118 = vrot.lane.b32.xlu0 %v4091, 96
      %v4119 = vpop.permute.xlu0 %4118
      %4120 = vrot.lane.b32.xlu0 %v4092, 96
      %v4121 = vpop.permute.xlu0 %4120
      %4122 = vrot.lane.b32.xlu0 %v4093, 96
      %v4123 = vpop.permute.xlu0 %4122
      %4124 = vrot.lane.b32.xlu0 %v4094, 96
      %v4125 = vpop.permute.xlu0 %4124
      %4126 = vrot.lane.b32.xlu0 %v4095, 96
      %v4127 = vpop.permute.xlu0 %4126
      %v4144 = vunpack.c.l.b16 %v3439
      %v4145 = vunpack.c.l.b16 %v3440
      %v4146 = vunpack.c.l.b16 %v3441
      %v4147 = vunpack.c.l.b16 %v3442
      %v4148 = vunpack.c.l.b16 %v3443
      %v4149 = vunpack.c.l.b16 %v3444
      %v4150 = vunpack.c.l.b16 %v3445
      %v4151 = vunpack.c.l.b16 %v3446
      %v4152 = vunpack.c.l.b16 %v3447
      %v4153 = vunpack.c.l.b16 %v3448
      %v4154 = vunpack.c.l.b16 %v3449
      %v4155 = vunpack.c.l.b16 %v3450
      %v4156 = vunpack.c.l.b16 %v3451
      %v4157 = vunpack.c.l.b16 %v3452
      %v4158 = vunpack.c.l.b16 %v3453
      %v4159 = vunpack.c.l.b16 %v3454
      %v4160 = vpack.c.b16 %v4144, %v4144
      %v4161 = vpack.c.b16 %v4145, %v4145
      %v4162 = vpack.c.b16 %v4146, %v4146
      %v4163 = vpack.c.b16 %v4147, %v4147
      %v4164 = vpack.c.b16 %v4148, %v4148
      %v4165 = vpack.c.b16 %v4149, %v4149
      %v4166 = vpack.c.b16 %v4150, %v4150
      %v4167 = vpack.c.b16 %v4151, %v4151
      %v4168 = vpack.c.b16 %v4152, %v4152
      %v4169 = vpack.c.b16 %v4153, %v4153
      %v4170 = vpack.c.b16 %v4154, %v4154
      %v4171 = vpack.c.b16 %v4155, %v4155
      %v4172 = vpack.c.b16 %v4156, %v4156
      %v4173 = vpack.c.b16 %v4157, %v4157
      %v4174 = vpack.c.b16 %v4158, %v4158
      %v4175 = vpack.c.b16 %v4159, %v4159
      %v4177 = vshrl.u32 %v4080, 16
      %v4179 = vshll.u32 %v4080, 16
      %v4181 = vrot.slane %v4179, 1
      %v4182 = vor.u32 %v4177, %v4181
      %v4184 = vshll.u32 %v4160, 16
      %v4186 = vrot.slane %v4184, 1
      %v4187 = vsel %vm764, %v4182, %v4186
      %v4189 = vshrl.u32 %v4081, 16
      %v4191 = vshll.u32 %v4081, 16
      %v4193 = vrot.slane %v4191, 1
      %v4194 = vor.u32 %v4189, %v4193
      %v4196 = vshll.u32 %v4161, 16
      %v4198 = vrot.slane %v4196, 1
      %v4199 = vsel %vm764, %v4194, %v4198
      %v4201 = vshrl.u32 %v4082, 16
      %v4203 = vshll.u32 %v4082, 16
      %v4205 = vrot.slane %v4203, 1
      %v4206 = vor.u32 %v4201, %v4205
      %v4208 = vshll.u32 %v4162, 16
      %v4210 = vrot.slane %v4208, 1
      %v4211 = vsel %vm764, %v4206, %v4210
      %v4213 = vshrl.u32 %v4083, 16
      %v4215 = vshll.u32 %v4083, 16
      %v4217 = vrot.slane %v4215, 1
      %v4218 = vor.u32 %v4213, %v4217
      %v4220 = vshll.u32 %v4163, 16
      %v4222 = vrot.slane %v4220, 1
      %v4223 = vsel %vm764, %v4218, %v4222
      %v4225 = vshrl.u32 %v4084, 16
      %v4227 = vshll.u32 %v4084, 16
      %v4229 = vrot.slane %v4227, 1
      %v4230 = vor.u32 %v4225, %v4229
      %v4232 = vshll.u32 %v4164, 16
      %v4234 = vrot.slane %v4232, 1
      %v4235 = vsel %vm764, %v4230, %v4234
      %v4237 = vshrl.u32 %v4085, 16
      %v4239 = vshll.u32 %v4085, 16
      %v4241 = vrot.slane %v4239, 1
      %v4242 = vor.u32 %v4237, %v4241
      %v4244 = vshll.u32 %v4165, 16
      %v4246 = vrot.slane %v4244, 1
      %v4247 = vsel %vm764, %v4242, %v4246
      %v4249 = vshrl.u32 %v4086, 16
      %v4251 = vshll.u32 %v4086, 16
      %v4253 = vrot.slane %v4251, 1
      %v4254 = vor.u32 %v4249, %v4253
      %v4256 = vshll.u32 %v4166, 16
      %v4258 = vrot.slane %v4256, 1
      %v4259 = vsel %vm764, %v4254, %v4258
      %v4261 = vshrl.u32 %v4087, 16
      %v4263 = vshll.u32 %v4087, 16
      %v4265 = vrot.slane %v4263, 1
      %v4266 = vor.u32 %v4261, %v4265
      %v4268 = vshll.u32 %v4167, 16
      %v4270 = vrot.slane %v4268, 1
      %v4271 = vsel %vm764, %v4266, %v4270
      %v4273 = vshrl.u32 %v4088, 16
      %v4275 = vshll.u32 %v4088, 16
      %v4277 = vrot.slane %v4275, 1
      %v4278 = vor.u32 %v4273, %v4277
      %v4280 = vshll.u32 %v4168, 16
      %v4282 = vrot.slane %v4280, 1
      %v4283 = vsel %vm764, %v4278, %v4282
      %v4285 = vshrl.u32 %v4089, 16
      %v4287 = vshll.u32 %v4089, 16
      %v4289 = vrot.slane %v4287, 1
      %v4290 = vor.u32 %v4285, %v4289
      %v4292 = vshll.u32 %v4169, 16
      %v4294 = vrot.slane %v4292, 1
      %v4295 = vsel %vm764, %v4290, %v4294
      %v4297 = vshrl.u32 %v4090, 16
      %v4299 = vshll.u32 %v4090, 16
      %v4301 = vrot.slane %v4299, 1
      %v4302 = vor.u32 %v4297, %v4301
      %v4304 = vshll.u32 %v4170, 16
      %v4306 = vrot.slane %v4304, 1
      %v4307 = vsel %vm764, %v4302, %v4306
      %v4309 = vshrl.u32 %v4091, 16
      %v4311 = vshll.u32 %v4091, 16
      %v4313 = vrot.slane %v4311, 1
      %v4314 = vor.u32 %v4309, %v4313
      %v4316 = vshll.u32 %v4171, 16
      %v4318 = vrot.slane %v4316, 1
      %v4319 = vsel %vm764, %v4314, %v4318
      %v4321 = vshrl.u32 %v4092, 16
      %v4323 = vshll.u32 %v4092, 16
      %v4325 = vrot.slane %v4323, 1
      %v4326 = vor.u32 %v4321, %v4325
      %v4328 = vshll.u32 %v4172, 16
      %v4330 = vrot.slane %v4328, 1
      %v4331 = vsel %vm764, %v4326, %v4330
      %v4333 = vshrl.u32 %v4093, 16
      %v4335 = vshll.u32 %v4093, 16
      %v4337 = vrot.slane %v4335, 1
      %v4338 = vor.u32 %v4333, %v4337
      %v4340 = vshll.u32 %v4173, 16
      %v4342 = vrot.slane %v4340, 1
      %v4343 = vsel %vm764, %v4338, %v4342
      %v4345 = vshrl.u32 %v4094, 16
      %v4347 = vshll.u32 %v4094, 16
      %v4349 = vrot.slane %v4347, 1
      %v4350 = vor.u32 %v4345, %v4349
      %v4352 = vshll.u32 %v4174, 16
      %v4354 = vrot.slane %v4352, 1
      %v4355 = vsel %vm764, %v4350, %v4354
      %v4357 = vshrl.u32 %v4095, 16
      %v4359 = vshll.u32 %v4095, 16
      %v4361 = vrot.slane %v4359, 1
      %v4362 = vor.u32 %v4357, %v4361
      %v4364 = vshll.u32 %v4175, 16
      %v4366 = vrot.slane %v4364, 1
      %v4367 = vsel %vm764, %v4362, %v4366
      %v4384 = vunpack.c.l.b16 %v3455
      %v4385 = vunpack.c.l.b16 %v3456
      %v4386 = vunpack.c.l.b16 %v3457
      %v4387 = vunpack.c.l.b16 %v3458
      %v4388 = vunpack.c.l.b16 %v3459
      %v4389 = vunpack.c.l.b16 %v3460
      %v4390 = vunpack.c.l.b16 %v3461
      %v4391 = vunpack.c.l.b16 %v3462
      %v4392 = vunpack.c.l.b16 %v3463
      %v4393 = vunpack.c.l.b16 %v3464
      %v4394 = vunpack.c.l.b16 %v3465
      %v4395 = vunpack.c.l.b16 %v3466
      %v4396 = vunpack.c.l.b16 %v3467
      %v4397 = vunpack.c.l.b16 %v3468
      %v4398 = vunpack.c.l.b16 %v3469
      %v4399 = vunpack.c.l.b16 %v3470
      %v4400 = vpack.c.b16 %v4049, %v4384
      %v4401 = vpack.c.b16 %v4051, %v4385
      %v4402 = vpack.c.b16 %v4053, %v4386
      %v4403 = vpack.c.b16 %v4055, %v4387
      %v4404 = vpack.c.b16 %v4057, %v4388
      %v4405 = vpack.c.b16 %v4059, %v4389
      %v4406 = vpack.c.b16 %v4061, %v4390
      %v4407 = vpack.c.b16 %v4063, %v4391
      %v4408 = vpack.c.b16 %v4065, %v4392
      %v4409 = vpack.c.b16 %v4067, %v4393
      %v4410 = vpack.c.b16 %v4069, %v4394
      %v4411 = vpack.c.b16 %v4071, %v4395
      %v4412 = vpack.c.b16 %v4073, %v4396
      %v4413 = vpack.c.b16 %v4075, %v4397
      %v4414 = vpack.c.b16 %v4077, %v4398
      %v4415 = vpack.c.b16 %v4079, %v4399
      %v4416 = vrot.slane %v4400, 1
      %v4417 = vrot.slane %v4160, 1
      %v4418 = vsel %vm1037, %v4416, %v4417
      %v4419 = vrot.slane %v4401, 1
      %v4420 = vrot.slane %v4161, 1
      %v4421 = vsel %vm1037, %v4419, %v4420
      %v4422 = vrot.slane %v4402, 1
      %v4423 = vrot.slane %v4162, 1
      %v4424 = vsel %vm1037, %v4422, %v4423
      %v4425 = vrot.slane %v4403, 1
      %v4426 = vrot.slane %v4163, 1
      %v4427 = vsel %vm1037, %v4425, %v4426
      %v4428 = vrot.slane %v4404, 1
      %v4429 = vrot.slane %v4164, 1
      %v4430 = vsel %vm1037, %v4428, %v4429
      %v4431 = vrot.slane %v4405, 1
      %v4432 = vrot.slane %v4165, 1
      %v4433 = vsel %vm1037, %v4431, %v4432
      %v4434 = vrot.slane %v4406, 1
      %v4435 = vrot.slane %v4166, 1
      %v4436 = vsel %vm1037, %v4434, %v4435
      %v4437 = vrot.slane %v4407, 1
      %v4438 = vrot.slane %v4167, 1
      %v4439 = vsel %vm1037, %v4437, %v4438
      %v4440 = vrot.slane %v4408, 1
      %v4441 = vrot.slane %v4168, 1
      %v4442 = vsel %vm1037, %v4440, %v4441
      %v4443 = vrot.slane %v4409, 1
      %v4444 = vrot.slane %v4169, 1
      %v4445 = vsel %vm1037, %v4443, %v4444
      %v4446 = vrot.slane %v4410, 1
      %v4447 = vrot.slane %v4170, 1
      %v4448 = vsel %vm1037, %v4446, %v4447
      %v4449 = vrot.slane %v4411, 1
      %v4450 = vrot.slane %v4171, 1
      %v4451 = vsel %vm1037, %v4449, %v4450
      %v4452 = vrot.slane %v4412, 1
      %v4453 = vrot.slane %v4172, 1
      %v4454 = vsel %vm1037, %v4452, %v4453
      %v4455 = vrot.slane %v4413, 1
      %v4456 = vrot.slane %v4173, 1
      %v4457 = vsel %vm1037, %v4455, %v4456
      %v4458 = vrot.slane %v4414, 1
      %v4459 = vrot.slane %v4174, 1
      %v4460 = vsel %vm1037, %v4458, %v4459
      %v4461 = vrot.slane %v4415, 1
      %v4462 = vrot.slane %v4175, 1
      %v4463 = vsel %vm1037, %v4461, %v4462
      %4464 = vrot.lane.b32.xlu0 %v4418, 32
      %v4465 = vpop.permute.xlu0 %4464
      %4466 = vrot.lane.b32.xlu0 %v4421, 32
      %v4467 = vpop.permute.xlu0 %4466
      %4468 = vrot.lane.b32.xlu0 %v4424, 32
      %v4469 = vpop.permute.xlu0 %4468
      %4470 = vrot.lane.b32.xlu0 %v4427, 32
      %v4471 = vpop.permute.xlu0 %4470
      %4472 = vrot.lane.b32.xlu0 %v4430, 32
      %v4473 = vpop.permute.xlu0 %4472
      %4474 = vrot.lane.b32.xlu0 %v4433, 32
      %v4475 = vpop.permute.xlu0 %4474
      %4476 = vrot.lane.b32.xlu0 %v4436, 32
      %v4477 = vpop.permute.xlu0 %4476
      %4478 = vrot.lane.b32.xlu0 %v4439, 32
      %v4479 = vpop.permute.xlu0 %4478
      %4480 = vrot.lane.b32.xlu0 %v4442, 32
      %v4481 = vpop.permute.xlu0 %4480
      %4482 = vrot.lane.b32.xlu0 %v4445, 32
      %v4483 = vpop.permute.xlu0 %4482
      %4484 = vrot.lane.b32.xlu0 %v4448, 32
      %v4485 = vpop.permute.xlu0 %4484
      %4486 = vrot.lane.b32.xlu0 %v4451, 32
      %v4487 = vpop.permute.xlu0 %4486
      %4488 = vrot.lane.b32.xlu0 %v4454, 32
      %v4489 = vpop.permute.xlu0 %4488
      %4490 = vrot.lane.b32.xlu0 %v4457, 32
      %v4491 = vpop.permute.xlu0 %4490
      %4492 = vrot.lane.b32.xlu0 %v4460, 32
      %v4493 = vpop.permute.xlu0 %4492
      %4494 = vrot.lane.b32.xlu0 %v4463, 32
      %v4495 = vpop.permute.xlu0 %4494
      %v4528 = vunpack.c.l.b16 %v3472
      %v4529 = vunpack.c.l.b16 %v3473
      %v4530 = vunpack.c.l.b16 %v3474
      %v4531 = vunpack.c.l.b16 %v3475
      %v4532 = vunpack.c.l.b16 %v3476
      %v4533 = vunpack.c.l.b16 %v3477
      %v4534 = vunpack.c.l.b16 %v3478
      %v4535 = vunpack.c.l.b16 %v3479
      %v4536 = vunpack.c.l.b16 %v3480
      %v4537 = vunpack.c.l.b16 %v3481
      %v4538 = vunpack.c.l.b16 %v3482
      %v4539 = vunpack.c.l.b16 %v3483
      %v4540 = vunpack.c.l.b16 %v3484
      %v4541 = vunpack.c.l.b16 %v3485
      %v4542 = vunpack.c.l.b16 %v3486
      %v4543 = vunpack.c.l.b16 %v3487
      %v4544 = vunpack.c.l.b16 %v3488
      %v4545 = vunpack.c.l.b16 %v3489
      %v4546 = vunpack.c.l.b16 %v3490
      %v4547 = vunpack.c.l.b16 %v3491
      %v4548 = vunpack.c.l.b16 %v3492
      %v4549 = vunpack.c.l.b16 %v3493
      %v4550 = vunpack.c.l.b16 %v3494
      %v4551 = vunpack.c.l.b16 %v3495
      %v4552 = vunpack.c.l.b16 %v3496
      %v4553 = vunpack.c.l.b16 %v3497
      %v4554 = vunpack.c.l.b16 %v3498
      %v4555 = vunpack.c.l.b16 %v3499
      %v4556 = vunpack.c.l.b16 %v3500
      %v4557 = vunpack.c.l.b16 %v3501
      %v4558 = vunpack.c.l.b16 %v3502
      %v4559 = vunpack.c.l.b16 %v3503
      %v4560 = vpack.c.b16 %v4529, %v4528
      %v4561 = vpack.c.b16 %v4531, %v4530
      %v4562 = vpack.c.b16 %v4533, %v4532
      %v4563 = vpack.c.b16 %v4535, %v4534
      %v4564 = vpack.c.b16 %v4537, %v4536
      %v4565 = vpack.c.b16 %v4539, %v4538
      %v4566 = vpack.c.b16 %v4541, %v4540
      %v4567 = vpack.c.b16 %v4543, %v4542
      %v4568 = vpack.c.b16 %v4545, %v4544
      %v4569 = vpack.c.b16 %v4547, %v4546
      %v4570 = vpack.c.b16 %v4549, %v4548
      %v4571 = vpack.c.b16 %v4551, %v4550
      %v4572 = vpack.c.b16 %v4553, %v4552
      %v4573 = vpack.c.b16 %v4555, %v4554
      %v4574 = vpack.c.b16 %v4557, %v4556
      %v4575 = vpack.c.b16 %v4559, %v4558
      %4576 = vrot.lane.b32.xlu0 %v4560, 64
      %v4577 = vpop.permute.xlu0 %4576
      %4578 = vrot.lane.b32.xlu0 %v4561, 64
      %v4579 = vpop.permute.xlu0 %4578
      %4580 = vrot.lane.b32.xlu0 %v4562, 64
      %v4581 = vpop.permute.xlu0 %4580
      %4582 = vrot.lane.b32.xlu0 %v4563, 64
      %v4583 = vpop.permute.xlu0 %4582
      %4584 = vrot.lane.b32.xlu0 %v4564, 64
      %v4585 = vpop.permute.xlu0 %4584
      %4586 = vrot.lane.b32.xlu0 %v4565, 64
      %v4587 = vpop.permute.xlu0 %4586
      %4588 = vrot.lane.b32.xlu0 %v4566, 64
      %v4589 = vpop.permute.xlu0 %4588
      %4590 = vrot.lane.b32.xlu0 %v4567, 64
      %v4591 = vpop.permute.xlu0 %4590
      %4592 = vrot.lane.b32.xlu0 %v4568, 64
      %v4593 = vpop.permute.xlu0 %4592
      %4594 = vrot.lane.b32.xlu0 %v4569, 64
      %v4595 = vpop.permute.xlu0 %4594
      %4596 = vrot.lane.b32.xlu0 %v4570, 64
      %v4597 = vpop.permute.xlu0 %4596
      %4598 = vrot.lane.b32.xlu0 %v4571, 64
      %v4599 = vpop.permute.xlu0 %4598
      %4600 = vrot.lane.b32.xlu0 %v4572, 64
      %v4601 = vpop.permute.xlu0 %4600
      %4602 = vrot.lane.b32.xlu0 %v4573, 64
      %v4603 = vpop.permute.xlu0 %4602
      %4604 = vrot.lane.b32.xlu0 %v4574, 64
      %v4605 = vpop.permute.xlu0 %4604
      %4606 = vrot.lane.b32.xlu0 %v4575, 64
      %v4607 = vpop.permute.xlu0 %4606
      %v4624 = vunpack.c.l.b16 %v3504
      %v4625 = vunpack.c.l.b16 %v3505
      %v4626 = vunpack.c.l.b16 %v3506
      %v4627 = vunpack.c.l.b16 %v3507
      %v4628 = vunpack.c.l.b16 %v3508
      %v4629 = vunpack.c.l.b16 %v3509
      %v4630 = vunpack.c.l.b16 %v3510
      %v4631 = vunpack.c.l.b16 %v3511
      %v4632 = vunpack.c.l.b16 %v3512
      %v4633 = vunpack.c.l.b16 %v3513
      %v4634 = vunpack.c.l.b16 %v3514
      %v4635 = vunpack.c.l.b16 %v3515
      %v4636 = vunpack.c.l.b16 %v3516
      %v4637 = vunpack.c.l.b16 %v3517
      %v4638 = vunpack.c.l.b16 %v3518
      %v4639 = vunpack.c.l.b16 %v3519
      %v4640 = vpack.c.b16 %v4624, %v4624
      %v4641 = vpack.c.b16 %v4625, %v4625
      %v4642 = vpack.c.b16 %v4626, %v4626
      %v4643 = vpack.c.b16 %v4627, %v4627
      %v4644 = vpack.c.b16 %v4628, %v4628
      %v4645 = vpack.c.b16 %v4629, %v4629
      %v4646 = vpack.c.b16 %v4630, %v4630
      %v4647 = vpack.c.b16 %v4631, %v4631
      %v4648 = vpack.c.b16 %v4632, %v4632
      %v4649 = vpack.c.b16 %v4633, %v4633
      %v4650 = vpack.c.b16 %v4634, %v4634
      %v4651 = vpack.c.b16 %v4635, %v4635
      %v4652 = vpack.c.b16 %v4636, %v4636
      %v4653 = vpack.c.b16 %v4637, %v4637
      %v4654 = vpack.c.b16 %v4638, %v4638
      %v4655 = vpack.c.b16 %v4639, %v4639
      %v4657 = vshrl.u32 %v4560, 16
      %v4659 = vshll.u32 %v4560, 16
      %v4661 = vrot.slane %v4659, 1
      %v4662 = vor.u32 %v4657, %v4661
      %v4664 = vshll.u32 %v4640, 16
      %v4666 = vrot.slane %v4664, 1
      %v4667 = vsel %vm764, %v4662, %v4666
      %v4669 = vshrl.u32 %v4561, 16
      %v4671 = vshll.u32 %v4561, 16
      %v4673 = vrot.slane %v4671, 1
      %v4674 = vor.u32 %v4669, %v4673
      %v4676 = vshll.u32 %v4641, 16
      %v4678 = vrot.slane %v4676, 1
      %v4679 = vsel %vm764, %v4674, %v4678
      %v4681 = vshrl.u32 %v4562, 16
      %v4683 = vshll.u32 %v4562, 16
      %v4685 = vrot.slane %v4683, 1
      %v4686 = vor.u32 %v4681, %v4685
      %v4688 = vshll.u32 %v4642, 16
      %v4690 = vrot.slane %v4688, 1
      %v4691 = vsel %vm764, %v4686, %v4690
      %v4693 = vshrl.u32 %v4563, 16
      %v4695 = vshll.u32 %v4563, 16
      %v4697 = vrot.slane %v4695, 1
      %v4698 = vor.u32 %v4693, %v4697
      %v4700 = vshll.u32 %v4643, 16
      %v4702 = vrot.slane %v4700, 1
      %v4703 = vsel %vm764, %v4698, %v4702
      %v4705 = vshrl.u32 %v4564, 16
      %v4707 = vshll.u32 %v4564, 16
      %v4709 = vrot.slane %v4707, 1
      %v4710 = vor.u32 %v4705, %v4709
      %v4712 = vshll.u32 %v4644, 16
      %v4714 = vrot.slane %v4712, 1
      %v4715 = vsel %vm764, %v4710, %v4714
      %v4717 = vshrl.u32 %v4565, 16
      %v4719 = vshll.u32 %v4565, 16
      %v4721 = vrot.slane %v4719, 1
      %v4722 = vor.u32 %v4717, %v4721
      %v4724 = vshll.u32 %v4645, 16
      %v4726 = vrot.slane %v4724, 1
      %v4727 = vsel %vm764, %v4722, %v4726
      %v4729 = vshrl.u32 %v4566, 16
      %v4731 = vshll.u32 %v4566, 16
      %v4733 = vrot.slane %v4731, 1
      %v4734 = vor.u32 %v4729, %v4733
      %v4736 = vshll.u32 %v4646, 16
      %v4738 = vrot.slane %v4736, 1
      %v4739 = vsel %vm764, %v4734, %v4738
      %v4741 = vshrl.u32 %v4567, 16
      %v4743 = vshll.u32 %v4567, 16
      %v4745 = vrot.slane %v4743, 1
      %v4746 = vor.u32 %v4741, %v4745
      %v4748 = vshll.u32 %v4647, 16
      %v4750 = vrot.slane %v4748, 1
      %v4751 = vsel %vm764, %v4746, %v4750
      %v4753 = vshrl.u32 %v4568, 16
      %v4755 = vshll.u32 %v4568, 16
      %v4757 = vrot.slane %v4755, 1
      %v4758 = vor.u32 %v4753, %v4757
      %v4760 = vshll.u32 %v4648, 16
      %v4762 = vrot.slane %v4760, 1
      %v4763 = vsel %vm764, %v4758, %v4762
      %v4765 = vshrl.u32 %v4569, 16
      %v4767 = vshll.u32 %v4569, 16
      %v4769 = vrot.slane %v4767, 1
      %v4770 = vor.u32 %v4765, %v4769
      %v4772 = vshll.u32 %v4649, 16
      %v4774 = vrot.slane %v4772, 1
      %v4775 = vsel %vm764, %v4770, %v4774
      %v4777 = vshrl.u32 %v4570, 16
      %v4779 = vshll.u32 %v4570, 16
      %v4781 = vrot.slane %v4779, 1
      %v4782 = vor.u32 %v4777, %v4781
      %v4784 = vshll.u32 %v4650, 16
      %v4786 = vrot.slane %v4784, 1
      %v4787 = vsel %vm764, %v4782, %v4786
      %v4789 = vshrl.u32 %v4571, 16
      %v4791 = vshll.u32 %v4571, 16
      %v4793 = vrot.slane %v4791, 1
      %v4794 = vor.u32 %v4789, %v4793
      %v4796 = vshll.u32 %v4651, 16
      %v4798 = vrot.slane %v4796, 1
      %v4799 = vsel %vm764, %v4794, %v4798
      %v4801 = vshrl.u32 %v4572, 16
      %v4803 = vshll.u32 %v4572, 16
      %v4805 = vrot.slane %v4803, 1
      %v4806 = vor.u32 %v4801, %v4805
      %v4808 = vshll.u32 %v4652, 16
      %v4810 = vrot.slane %v4808, 1
      %v4811 = vsel %vm764, %v4806, %v4810
      %v4813 = vshrl.u32 %v4573, 16
      %v4815 = vshll.u32 %v4573, 16
      %v4817 = vrot.slane %v4815, 1
      %v4818 = vor.u32 %v4813, %v4817
      %v4820 = vshll.u32 %v4653, 16
      %v4822 = vrot.slane %v4820, 1
      %v4823 = vsel %vm764, %v4818, %v4822
      %v4825 = vshrl.u32 %v4574, 16
      %v4827 = vshll.u32 %v4574, 16
      %v4829 = vrot.slane %v4827, 1
      %v4830 = vor.u32 %v4825, %v4829
      %v4832 = vshll.u32 %v4654, 16
      %v4834 = vrot.slane %v4832, 1
      %v4835 = vsel %vm764, %v4830, %v4834
      %v4837 = vshrl.u32 %v4575, 16
      %v4839 = vshll.u32 %v4575, 16
      %v4841 = vrot.slane %v4839, 1
      %v4842 = vor.u32 %v4837, %v4841
      %v4844 = vshll.u32 %v4655, 16
      %v4846 = vrot.slane %v4844, 1
      %v4847 = vsel %vm764, %v4842, %v4846
      %4848 = vrot.lane.b32.xlu0 %v4667, 96
      %v4849 = vpop.permute.xlu0 %4848
      %4850 = vrot.lane.b32.xlu0 %v4679, 96
      %v4851 = vpop.permute.xlu0 %4850
      %4852 = vrot.lane.b32.xlu0 %v4691, 96
      %v4853 = vpop.permute.xlu0 %4852
      %4854 = vrot.lane.b32.xlu0 %v4703, 96
      %v4855 = vpop.permute.xlu0 %4854
      %4856 = vrot.lane.b32.xlu0 %v4715, 96
      %v4857 = vpop.permute.xlu0 %4856
      %4858 = vrot.lane.b32.xlu0 %v4727, 96
      %v4859 = vpop.permute.xlu0 %4858
      %4860 = vrot.lane.b32.xlu0 %v4739, 96
      %v4861 = vpop.permute.xlu0 %4860
      %4862 = vrot.lane.b32.xlu0 %v4751, 96
      %v4863 = vpop.permute.xlu0 %4862
      %4864 = vrot.lane.b32.xlu0 %v4763, 96
      %v4865 = vpop.permute.xlu0 %4864
      %4866 = vrot.lane.b32.xlu0 %v4775, 96
      %v4867 = vpop.permute.xlu0 %4866
      %4868 = vrot.lane.b32.xlu0 %v4787, 96
      %v4869 = vpop.permute.xlu0 %4868
      %4870 = vrot.lane.b32.xlu0 %v4799, 96
      %v4871 = vpop.permute.xlu0 %4870
      %4872 = vrot.lane.b32.xlu0 %v4811, 96
      %v4873 = vpop.permute.xlu0 %4872
      %4874 = vrot.lane.b32.xlu0 %v4823, 96
      %v4875 = vpop.permute.xlu0 %4874
      %4876 = vrot.lane.b32.xlu0 %v4835, 96
      %v4877 = vpop.permute.xlu0 %4876
      %4878 = vrot.lane.b32.xlu0 %v4847, 96
      %v4879 = vpop.permute.xlu0 %4878
      %v4896 = vunpack.c.l.b16 %v3520
      %v4897 = vunpack.c.l.b16 %v3521
      %v4898 = vunpack.c.l.b16 %v3522
      %v4899 = vunpack.c.l.b16 %v3523
      %v4900 = vunpack.c.l.b16 %v3524
      %v4901 = vunpack.c.l.b16 %v3525
      %v4902 = vunpack.c.l.b16 %v3526
      %v4903 = vunpack.c.l.b16 %v3527
      %v4904 = vunpack.c.l.b16 %v3528
      %v4905 = vunpack.c.l.b16 %v3529
      %v4906 = vunpack.c.l.b16 %v3530
      %v4907 = vunpack.c.l.b16 %v3531
      %v4908 = vunpack.c.l.b16 %v3532
      %v4909 = vunpack.c.l.b16 %v3533
      %v4910 = vunpack.c.l.b16 %v3534
      %v4911 = vunpack.c.l.b16 %v3535
      %v4912 = vpack.c.b16 %v4529, %v4896
      %v4913 = vpack.c.b16 %v4531, %v4897
      %v4914 = vpack.c.b16 %v4533, %v4898
      %v4915 = vpack.c.b16 %v4535, %v4899
      %v4916 = vpack.c.b16 %v4537, %v4900
      %v4917 = vpack.c.b16 %v4539, %v4901
      %v4918 = vpack.c.b16 %v4541, %v4902
      %v4919 = vpack.c.b16 %v4543, %v4903
      %v4920 = vpack.c.b16 %v4545, %v4904
      %v4921 = vpack.c.b16 %v4547, %v4905
      %v4922 = vpack.c.b16 %v4549, %v4906
      %v4923 = vpack.c.b16 %v4551, %v4907
      %v4924 = vpack.c.b16 %v4553, %v4908
      %v4925 = vpack.c.b16 %v4555, %v4909
      %v4926 = vpack.c.b16 %v4557, %v4910
      %v4927 = vpack.c.b16 %v4559, %v4911
      %v4928 = vrot.slane %v4912, 1
      %v4929 = vrot.slane %v4640, 1
      %v4930 = vsel %vm1037, %v4928, %v4929
      %v4931 = vrot.slane %v4913, 1
      %v4932 = vrot.slane %v4641, 1
      %v4933 = vsel %vm1037, %v4931, %v4932
      %v4934 = vrot.slane %v4914, 1
      %v4935 = vrot.slane %v4642, 1
      %v4936 = vsel %vm1037, %v4934, %v4935
      %v4937 = vrot.slane %v4915, 1
      %v4938 = vrot.slane %v4643, 1
      %v4939 = vsel %vm1037, %v4937, %v4938
      %v4940 = vrot.slane %v4916, 1
      %v4941 = vrot.slane %v4644, 1
      %v4942 = vsel %vm1037, %v4940, %v4941
      %v4943 = vrot.slane %v4917, 1
      %v4944 = vrot.slane %v4645, 1
      %v4945 = vsel %vm1037, %v4943, %v4944
      %v4946 = vrot.slane %v4918, 1
      %v4947 = vrot.slane %v4646, 1
      %v4948 = vsel %vm1037, %v4946, %v4947
      %v4949 = vrot.slane %v4919, 1
      %v4950 = vrot.slane %v4647, 1
      %v4951 = vsel %vm1037, %v4949, %v4950
      %v4952 = vrot.slane %v4920, 1
      %v4953 = vrot.slane %v4648, 1
      %v4954 = vsel %vm1037, %v4952, %v4953
      %v4955 = vrot.slane %v4921, 1
      %v4956 = vrot.slane %v4649, 1
      %v4957 = vsel %vm1037, %v4955, %v4956
      %v4958 = vrot.slane %v4922, 1
      %v4959 = vrot.slane %v4650, 1
      %v4960 = vsel %vm1037, %v4958, %v4959
      %v4961 = vrot.slane %v4923, 1
      %v4962 = vrot.slane %v4651, 1
      %v4963 = vsel %vm1037, %v4961, %v4962
      %v4964 = vrot.slane %v4924, 1
      %v4965 = vrot.slane %v4652, 1
      %v4966 = vsel %vm1037, %v4964, %v4965
      %v4967 = vrot.slane %v4925, 1
      %v4968 = vrot.slane %v4653, 1
      %v4969 = vsel %vm1037, %v4967, %v4968
      %v4970 = vrot.slane %v4926, 1
      %v4971 = vrot.slane %v4654, 1
      %v4972 = vsel %vm1037, %v4970, %v4971
      %v4973 = vrot.slane %v4927, 1
      %v4974 = vrot.slane %v4655, 1
      %v4975 = vsel %vm1037, %v4973, %v4974
      %v4977 = vsel %vm2241, %v3600, %v3857
      %v4979 = vsel %vm2241, %v3601, %v3859
      %v4981 = vsel %vm2241, %v3602, %v3861
      %v4983 = vsel %vm2241, %v3603, %v3863
      %v4985 = vsel %vm2241, %v3604, %v3865
      %v4987 = vsel %vm2241, %v3605, %v3867
      %v4989 = vsel %vm2241, %v3606, %v3869
      %v4991 = vsel %vm2241, %v3607, %v3871
      %v4993 = vsel %vm2241, %v3608, %v3873
      %v4995 = vsel %vm2241, %v3609, %v3875
      %v4997 = vsel %vm2241, %v3610, %v3877
      %v4999 = vsel %vm2241, %v3611, %v3879
      %v5001 = vsel %vm2241, %v3612, %v3881
      %v5003 = vsel %vm2241, %v3613, %v3883
      %v5005 = vsel %vm2241, %v3614, %v3885
      %v5007 = vsel %vm2241, %v3615, %v3887
      %v5009 = vsel %vm2373, %v4977, %v3985
      %v5011 = vsel %vm2373, %v4979, %v3987
      %v5013 = vsel %vm2373, %v4981, %v3989
      %v5015 = vsel %vm2373, %v4983, %v3991
      %v5017 = vsel %vm2373, %v4985, %v3993
      %v5019 = vsel %vm2373, %v4987, %v3995
      %v5021 = vsel %vm2373, %v4989, %v3997
      %v5023 = vsel %vm2373, %v4991, %v3999
      %v5025 = vsel %vm2373, %v4993, %v4001
      %v5027 = vsel %vm2373, %v4995, %v4003
      %v5029 = vsel %vm2373, %v4997, %v4005
      %v5031 = vsel %vm2373, %v4999, %v4007
      %v5033 = vsel %vm2373, %v5001, %v4009
      %v5035 = vsel %vm2373, %v5003, %v4011
      %v5037 = vsel %vm2373, %v5005, %v4013
      %v5039 = vsel %vm2373, %v5007, %v4015
      %vm5040 = vcmask 785408
      %v5042 = vsel %vm5040, %v5009, %v4097
      %v5045 = vsel %vm5040, %v5011, %v4099
      %v5048 = vsel %vm5040, %v5013, %v4101
      %v5051 = vsel %vm5040, %v5015, %v4103
      %v5054 = vsel %vm5040, %v5017, %v4105
      %v5057 = vsel %vm5040, %v5019, %v4107
      %v5060 = vsel %vm5040, %v5021, %v4109
      %v5063 = vsel %vm5040, %v5023, %v4111
      %v5066 = vsel %vm5040, %v5025, %v4113
      %v5069 = vsel %vm5040, %v5027, %v4115
      %v5072 = vsel %vm5040, %v5029, %v4117
      %v5075 = vsel %vm5040, %v5031, %v4119
      %v5078 = vsel %vm5040, %v5033, %v4121
      %v5081 = vsel %vm5040, %v5035, %v4123
      %v5084 = vsel %vm5040, %v5037, %v4125
      %v5087 = vsel %vm5040, %v5039, %v4127
      %v5091 = vsel %vm2241, %v4187, %v4465
      %v5094 = vsel %vm2241, %v4199, %v4467
      %v5097 = vsel %vm2241, %v4211, %v4469
      %v5100 = vsel %vm2241, %v4223, %v4471
      %v5103 = vsel %vm2241, %v4235, %v4473
      %v5106 = vsel %vm2241, %v4247, %v4475
      %v5109 = vsel %vm2241, %v4259, %v4477
      %v5112 = vsel %vm2241, %v4271, %v4479
      %v5115 = vsel %vm2241, %v4283, %v4481
      %v5118 = vsel %vm2241, %v4295, %v4483
      %v5121 = vsel %vm2241, %v4307, %v4485
      %v5124 = vsel %vm2241, %v4319, %v4487
      %v5127 = vsel %vm2241, %v4331, %v4489
      %v5130 = vsel %vm2241, %v4343, %v4491
      %v5133 = vsel %vm2241, %v4355, %v4493
      %v5136 = vsel %vm2241, %v4367, %v4495
      %v5138 = vsel %vm2373, %v5091, %v4577
      %v5140 = vsel %vm2373, %v5094, %v4579
      %v5142 = vsel %vm2373, %v5097, %v4581
      %v5144 = vsel %vm2373, %v5100, %v4583
      %v5146 = vsel %vm2373, %v5103, %v4585
      %v5148 = vsel %vm2373, %v5106, %v4587
      %v5150 = vsel %vm2373, %v5109, %v4589
      %v5152 = vsel %vm2373, %v5112, %v4591
      %v5154 = vsel %vm2373, %v5115, %v4593
      %v5156 = vsel %vm2373, %v5118, %v4595
      %v5158 = vsel %vm2373, %v5121, %v4597
      %v5160 = vsel %vm2373, %v5124, %v4599
      %v5162 = vsel %vm2373, %v5127, %v4601
      %v5164 = vsel %vm2373, %v5130, %v4603
      %v5166 = vsel %vm2373, %v5133, %v4605
      %v5168 = vsel %vm2373, %v5136, %v4607
      %v5170 = vsel %vm5040, %v5138, %v4849
      %v5173 = vsel %vm5040, %v5140, %v4851
      %v5176 = vsel %vm5040, %v5142, %v4853
      %v5179 = vsel %vm5040, %v5144, %v4855
      %v5182 = vsel %vm5040, %v5146, %v4857
      %v5185 = vsel %vm5040, %v5148, %v4859
      %v5188 = vsel %vm5040, %v5150, %v4861
      %v5191 = vsel %vm5040, %v5152, %v4863
      %v5194 = vsel %vm5040, %v5154, %v4865
      %v5197 = vsel %vm5040, %v5156, %v4867
      %v5200 = vsel %vm5040, %v5158, %v4869
      %v5203 = vsel %vm5040, %v5160, %v4871
      %v5206 = vsel %vm5040, %v5162, %v4873
      %v5209 = vsel %vm5040, %v5164, %v4875
      %v5212 = vsel %vm5040, %v5166, %v4877
      %v5215 = vsel %vm5040, %v5168, %v4879
      %v5217 = vld [vmem:[%s4] sm:$0xf]
      %v5218 = vld [vmem:[%s4 + $0x4] sm:$0xf]
      %v5219 = vld [vmem:[%s4 + $0x8] sm:$0xf]
      %v5220 = vld [vmem:[%s4 + $0xc] sm:$0xf]
      %v5221 = vld [vmem:[%s4 + $0x10] sm:$0xf]
      %v5222 = vld [vmem:[%s4 + $0x14] sm:$0xf]
      %v5223 = vld [vmem:[%s4 + $0x18] sm:$0xf]
      %v5224 = vld [vmem:[%s4 + $0x1c] sm:$0xf]
      %v5225 = vld [vmem:[%s4 + $0x20] sm:$0xf]
      %v5226 = vld [vmem:[%s4 + $0x24] sm:$0xf]
      %v5227 = vld [vmem:[%s4 + $0x28] sm:$0xf]
      %v5228 = vld [vmem:[%s4 + $0x2c] sm:$0xf]
      %v5229 = vld [vmem:[%s4 + $0x30] sm:$0xf]
      %v5230 = vld [vmem:[%s4 + $0x34] sm:$0xf]
      %v5231 = vld [vmem:[%s4 + $0x38] sm:$0xf]
      %v5232 = vld [vmem:[%s4 + $0x3c] sm:$0xf]
      %v5233 = vld [vmem:[%s4 + $0x40] sm:$0xf]
      %v5234 = vld [vmem:[%s4 + $0x44] sm:$0xf]
      %v5235 = vld [vmem:[%s4 + $0x48] sm:$0xf]
      %v5236 = vld [vmem:[%s4 + $0x4c] sm:$0xf]
      %v5237 = vld [vmem:[%s4 + $0x50] sm:$0xf]
      %v5238 = vld [vmem:[%s4 + $0x54] sm:$0xf]
      %v5239 = vld [vmem:[%s4 + $0x58] sm:$0xf]
      %v5240 = vld [vmem:[%s4 + $0x5c] sm:$0xf]
      %v5241 = vld [vmem:[%s4 + $0x60] sm:$0xf]
      %v5242 = vld [vmem:[%s4 + $0x64] sm:$0xf]
      %v5243 = vld [vmem:[%s4 + $0x68] sm:$0xf]
      %v5244 = vld [vmem:[%s4 + $0x6c] sm:$0xf]
      %v5245 = vld [vmem:[%s4 + $0x70] sm:$0xf]
      %v5246 = vld [vmem:[%s4 + $0x74] sm:$0xf]
      %v5247 = vld [vmem:[%s4 + $0x78] sm:$0xf]
      %v5248 = vld [vmem:[%s4 + $0x7c] sm:$0xf]
      %v5249 = vld [vmem:[%s4 + $0x80] sm:$0xf]
      %v5250 = vld [vmem:[%s4 + $0x84] sm:$0xf]
      %v5251 = vld [vmem:[%s4 + $0x88] sm:$0xf]
      %v5252 = vld [vmem:[%s4 + $0x8c] sm:$0xf]
      %v5289 = vunpack.c.l.b16 %v5217
      %v5290 = vunpack.c.l.b16 %v5218
      %v5291 = vunpack.c.l.b16 %v5219
      %v5292 = vunpack.c.l.b16 %v5220
      %v5293 = vunpack.c.l.b16 %v5221
      %v5294 = vunpack.c.l.b16 %v5222
      %v5295 = vunpack.c.l.b16 %v5223
      %v5296 = vunpack.c.l.b16 %v5224
      %v5297 = vunpack.c.l.b16 %v5225
      %v5298 = vunpack.c.l.b16 %v5226
      %v5299 = vunpack.c.l.b16 %v5227
      %v5300 = vunpack.c.l.b16 %v5228
      %v5301 = vunpack.c.l.b16 %v5229
      %v5302 = vunpack.c.l.b16 %v5230
      %v5303 = vunpack.c.l.b16 %v5231
      %v5304 = vunpack.c.l.b16 %v5232
      %v5305 = vunpack.c.l.b16 %v5233
      %v5306 = vunpack.c.l.b16 %v5234
      %v5307 = vunpack.c.l.b16 %v5235
      %v5308 = vunpack.c.l.b16 %v5236
      %v5309 = vunpack.c.l.b16 %v5237
      %v5310 = vunpack.c.l.b16 %v5238
      %v5311 = vunpack.c.l.b16 %v5239
      %v5312 = vunpack.c.l.b16 %v5240
      %v5313 = vunpack.c.l.b16 %v5241
      %v5314 = vunpack.c.l.b16 %v5242
      %v5315 = vunpack.c.l.b16 %v5243
      %v5316 = vunpack.c.l.b16 %v5244
      %v5317 = vunpack.c.l.b16 %v5245
      %v5318 = vunpack.c.l.b16 %v5246
      %v5319 = vunpack.c.l.b16 %v5247
      %v5320 = vunpack.c.l.b16 %v5248
      %v5321 = vunpack.c.l.b16 %v5249
      %v5322 = vunpack.c.l.b16 %v5250
      %v5323 = vunpack.c.l.b16 %v5251
      %v5324 = vunpack.c.l.b16 %v5252
      %v5325 = vpack.c.b16 %v5290, %v5289
      %v5326 = vpack.c.b16 %v5292, %v5291
      %v5327 = vpack.c.b16 %v5294, %v5293
      %v5328 = vpack.c.b16 %v5296, %v5295
      %v5329 = vpack.c.b16 %v5298, %v5297
      %v5330 = vpack.c.b16 %v5300, %v5299
      %v5331 = vpack.c.b16 %v5302, %v5301
      %v5332 = vpack.c.b16 %v5304, %v5303
      %v5333 = vpack.c.b16 %v5306, %v5305
      %v5334 = vpack.c.b16 %v5308, %v5307
      %v5335 = vpack.c.b16 %v5310, %v5309
      %v5336 = vpack.c.b16 %v5312, %v5311
      %v5337 = vpack.c.b16 %v5314, %v5313
      %v5338 = vpack.c.b16 %v5316, %v5315
      %v5339 = vpack.c.b16 %v5318, %v5317
      %v5340 = vpack.c.b16 %v5320, %v5319
      %v5341 = vpack.c.b16 %v5322, %v5321
      %v5342 = vpack.c.b16 %v5324, %v5323
      %v5362 = vsel %vm2241, %v4930, 0
      %v5365 = vsel %vm2241, %v4933, 0
      %v5368 = vsel %vm2241, %v4936, 0
      %v5371 = vsel %vm2241, %v4939, 0
      %v5374 = vsel %vm2241, %v4942, 0
      %v5377 = vsel %vm2241, %v4945, 0
      %v5380 = vsel %vm2241, %v4948, 0
      %v5383 = vsel %vm2241, %v4951, 0
      %v5386 = vsel %vm2241, %v4954, 0
      %v5389 = vsel %vm2241, %v4957, 0
      %v5392 = vsel %vm2241, %v4960, 0
      %v5395 = vsel %vm2241, %v4963, 0
      %v5398 = vsel %vm2241, %v4966, 0
      %v5401 = vsel %vm2241, %v4969, 0
      %v5404 = vsel %vm2241, %v4972, 0
      %v5407 = vsel %vm2241, %v4975, 0
      %5409 = vmatprep.subr.bf16.mxu0 0
      %5410 = vmatpush1.bf16.msra.mxu0 %v5325
      %5411 = vmatprep.subr.bf16.mxu0 0
      %5412 = vmatpush1.bf16.msra.mxu0 %v5326
      %5413 = vmatprep.subr.bf16.mxu0 0
      %5414 = vmatpush1.bf16.msra.mxu0 %v5327
      %5415 = vmatprep.subr.bf16.mxu0 0
      %5416 = vmatpush1.bf16.msra.mxu0 %v5328
      %5417 = vmatprep.subr.bf16.mxu0 0
      %5418 = vmatpush1.bf16.msra.mxu0 %v5329
      %5419 = vmatprep.subr.bf16.mxu0 0
      %5420 = vmatpush1.bf16.msra.mxu0 %v5330
      %5421 = vmatprep.subr.bf16.mxu0 0
      %5422 = vmatpush1.bf16.msra.mxu0 %v5331
      %5423 = vmatprep.subr.bf16.mxu0 0
      %5424 = vmatpush1.bf16.msra.mxu0 %v5332
      %5425 = vmatprep.subr.bf16.mxu0 0
      %5426 = vmatpush1.bf16.msra.mxu0 %v5333
      %5427 = vmatprep.subr.bf16.mxu0 0
      %5428 = vmatpush1.bf16.msra.mxu0 %v5334
      %5429 = vmatprep.subr.bf16.mxu0 0
      %5430 = vmatpush1.bf16.msra.mxu0 %v5335
      %5431 = vmatprep.subr.bf16.mxu0 0
      %5432 = vmatpush1.bf16.msra.mxu0 %v5336
      %5433 = vmatprep.subr.bf16.mxu0 0
      %5434 = vmatpush1.bf16.msra.mxu0 %v5337
      %5435 = vmatprep.subr.bf16.mxu0 0
      %5436 = vmatpush1.bf16.msra.mxu0 %v5338
      %5437 = vmatprep.subr.bf16.mxu0 0
      %5438 = vmatpush1.bf16.msra.mxu0 %v5339
      %5439 = vmatprep.subr.bf16.mxu0 0
      %5440 = vmatpush1.bf16.msra.mxu0 %v5340
      %5441 = vmatprep.mubr.bf16.mxu0 %v5170
      %5442 = vmatmul.mubr.bf16.gmra.mrb[0].mxu0 %v5042
      %v5443 = vpop.f32.mrb[0].mxu0
      %v5444 = vadd.f32 0.0, %v5443
      %v5445 = vpop.f32.mrb[0].mxu0
      %v5446 = vpop.f32.mrb[0].mxu0
      %v5447 = vadd.f32 0.0, %v5446
      %v5448 = vpop.f32.mrb[0].mxu0
      %5449 = vmatprep.mubr.bf16.mxu0 %v5173
      %5450 = vmatmul.mubr.bf16.gmra.mrb[0].mxu0 %v5045
      %v5451 = vpop.f32.mrb[0].mxu0
      %v5452 = vadd.f32 0.0, %v5451
      %v5453 = vpop.f32.mrb[0].mxu0
      %v5454 = vpop.f32.mrb[0].mxu0
      %v5455 = vadd.f32 0.0, %v5454
      %v5456 = vpop.f32.mrb[0].mxu0
      %5457 = vmatprep.mubr.bf16.mxu0 %v5176
      %5458 = vmatmul.mubr.bf16.gmra.mrb[0].mxu0 %v5048
      %v5459 = vpop.f32.mrb[0].mxu0
      %v5460 = vadd.f32 0.0, %v5459
      %v5461 = vpop.f32.mrb[0].mxu0
      %v5462 = vpop.f32.mrb[0].mxu0
      %v5463 = vadd.f32 0.0, %v5462
      %v5464 = vpop.f32.mrb[0].mxu0
      %5465 = vmatprep.mubr.bf16.mxu0 %v5179
      %5466 = vmatmul.mubr.bf16.gmra.mrb[0].mxu0 %v5051
      %v5467 = vpop.f32.mrb[0].mxu0
      %v5468 = vadd.f32 0.0, %v5467
      %v5469 = vpop.f32.mrb[0].mxu0
      %v5470 = vpop.f32.mrb[0].mxu0
      %v5471 = vadd.f32 0.0, %v5470
      %v5472 = vpop.f32.mrb[0].mxu0
      %5473 = vmatprep.mubr.bf16.mxu0 %v5182
      %5474 = vmatmul.mubr.bf16.gmra.mrb[0].mxu0 %v5054
      %v5475 = vpop.f32.mrb[0].mxu0
      %v5476 = vadd.f32 0.0, %v5475
      %v5477 = vpop.f32.mrb[0].mxu0
      %v5478 = vpop.f32.mrb[0].mxu0
      %v5479 = vadd.f32 0.0, %v5478
      %v5480 = vpop.f32.mrb[0].mxu0
      %5481 = vmatprep.mubr.bf16.mxu0 %v5185
      %5482 = vmatmul.mubr.bf16.gmra.mrb[0].mxu0 %v5057
      %v5483 = vpop.f32.mrb[0].mxu0
      %v5484 = vadd.f32 0.0, %v5483
      %v5485 = vpop.f32.mrb[0].mxu0
      %v5486 = vpop.f32.mrb[0].mxu0
      %v5487 = vadd.f32 0.0, %v5486
      %v5488 = vpop.f32.mrb[0].mxu0
      %5489 = vmatprep.mubr.bf16.mxu0 %v5188
      %5490 = vmatmul.mubr.bf16.gmra.mrb[0].mxu0 %v5060
      %v5491 = vpop.f32.mrb[0].mxu0
      %v5492 = vadd.f32 0.0, %v5491
      %v5493 = vpop.f32.mrb[0].mxu0
      %v5494 = vpop.f32.mrb[0].mxu0
      %v5495 = vadd.f32 0.0, %v5494
      %v5496 = vpop.f32.mrb[0].mxu0
      %5497 = vmatprep.mubr.bf16.mxu0 %v5191
      %5498 = vmatmul.mubr.bf16.gmra.mrb[0].mxu0 %v5063
      %v5499 = vpop.f32.mrb[0].mxu0
      %v5500 = vadd.f32 0.0, %v5499
      %v5501 = vpop.f32.mrb[0].mxu0
      %v5502 = vpop.f32.mrb[0].mxu0
      %v5503 = vadd.f32 0.0, %v5502
      %v5504 = vpop.f32.mrb[0].mxu0
      %5505 = vmatprep.mubr.bf16.mxu0 %v5194
      %5506 = vmatmul.mubr.bf16.gmra.mrb[0].mxu0 %v5066
      %v5507 = vpop.f32.mrb[0].mxu0
      %v5508 = vadd.f32 0.0, %v5507
      %v5509 = vpop.f32.mrb[0].mxu0
      %v5510 = vpop.f32.mrb[0].mxu0
      %v5511 = vadd.f32 0.0, %v5510
      %v5512 = vpop.f32.mrb[0].mxu0
      %5513 = vmatprep.mubr.bf16.mxu0 %v5197
      %5514 = vmatmul.mubr.bf16.gmra.mrb[0].mxu0 %v5069
      %v5515 = vpop.f32.mrb[0].mxu0
      %v5516 = vadd.f32 0.0, %v5515
      %v5517 = vpop.f32.mrb[0].mxu0
      %v5518 = vpop.f32.mrb[0].mxu0
      %v5519 = vadd.f32 0.0, %v5518
      %v5520 = vpop.f32.mrb[0].mxu0
      %5521 = vmatprep.mubr.bf16.mxu0 %v5200
      %5522 = vmatmul.mubr.bf16.gmra.mrb[0].mxu0 %v5072
      %v5523 = vpop.f32.mrb[0].mxu0
      %v5524 = vadd.f32 0.0, %v5523
      %v5525 = vpop.f32.mrb[0].mxu0
      %v5526 = vpop.f32.mrb[0].mxu0
      %v5527 = vadd.f32 0.0, %v5526
      %v5528 = vpop.f32.mrb[0].mxu0
      %5529 = vmatprep.mubr.bf16.mxu0 %v5203
      %5530 = vmatmul.mubr.bf16.gmra.mrb[0].mxu0 %v5075
      %v5531 = vpop.f32.mrb[0].mxu0
      %v5532 = vadd.f32 0.0, %v5531
      %v5533 = vpop.f32.mrb[0].mxu0
      %v5534 = vpop.f32.mrb[0].mxu0
      %v5535 = vadd.f32 0.0, %v5534
      %v5536 = vpop.f32.mrb[0].mxu0
      %5537 = vmatprep.mubr.bf16.mxu0 %v5206
      %5538 = vmatmul.mubr.bf16.gmra.mrb[0].mxu0 %v5078
      %v5539 = vpop.f32.mrb[0].mxu0
      %v5540 = vadd.f32 0.0, %v5539
      %v5541 = vpop.f32.mrb[0].mxu0
      %v5542 = vpop.f32.mrb[0].mxu0
      %v5543 = vadd.f32 0.0, %v5542
      %v5544 = vpop.f32.mrb[0].mxu0
      %5545 = vmatprep.mubr.bf16.mxu0 %v5209
      %5546 = vmatmul.mubr.bf16.gmra.mrb[0].mxu0 %v5081
      %v5547 = vpop.f32.mrb[0].mxu0
      %v5548 = vadd.f32 0.0, %v5547
      %v5549 = vpop.f32.mrb[0].mxu0
      %v5550 = vpop.f32.mrb[0].mxu0
      %v5551 = vadd.f32 0.0, %v5550
      %v5552 = vpop.f32.mrb[0].mxu0
      %5553 = vmatprep.mubr.bf16.mxu0 %v5212
      %5554 = vmatmul.mubr.bf16.gmra.mrb[0].mxu0 %v5084
      %v5555 = vpop.f32.mrb[0].mxu0
      %v5556 = vadd.f32 0.0, %v5555
      %v5557 = vpop.f32.mrb[0].mxu0
      %v5558 = vpop.f32.mrb[0].mxu0
      %v5559 = vadd.f32 0.0, %v5558
      %v5560 = vpop.f32.mrb[0].mxu0
      %5561 = vmatprep.mubr.bf16.mxu0 %v5215
      %5562 = vmatmul.mubr.bf16.gmra.mrb[0].mxu0 %v5087
      %v5563 = vpop.f32.mrb[0].mxu0
      %v5564 = vadd.f32 0.0, %v5563
      %v5565 = vpop.f32.mrb[0].mxu0
      %v5566 = vpop.f32.mrb[0].mxu0
      %v5567 = vadd.f32 0.0, %v5566
      %v5568 = vpop.f32.mrb[0].mxu0
      %5569 = vdwg.mxu0
      %5570 = vmatprep.subr.bf16.mxu0 0
      %5571 = vmatpush1.bf16.msra.mxu0 %v5341
      %5572 = vmatprep.subr.bf16.mxu0 0
      %5573 = vmatpush1.bf16.msra.mxu0 %v5342
      %5574 = vmatprep.subr.bf16.mxu0 0
      %5575 = vmatpush1.bf16.msra.mxu0 0
      %5576 = vmatprep.subr.bf16.mxu0 0
      %5577 = vmatpush1.bf16.msra.mxu0 0
      %5578 = vmatprep.subr.bf16.mxu0 0
      %5579 = vmatpush1.bf16.msra.mxu0 0
      %5580 = vmatprep.subr.bf16.mxu0 0
      %5581 = vmatpush1.bf16.msra.mxu0 0
      %5582 = vmatprep.subr.bf16.mxu0 0
      %5583 = vmatpush1.bf16.msra.mxu0 0
      %5584 = vmatprep.subr.bf16.mxu0 0
      %5585 = vmatpush1.bf16.msra.mxu0 0
      %5586 = vmatprep.subr.bf16.mxu0 0
      %5587 = vmatpush1.bf16.msra.mxu0 0
      %5588 = vmatprep.subr.bf16.mxu0 0
      %5589 = vmatpush1.bf16.msra.mxu0 0
      %5590 = vmatprep.subr.bf16.mxu0 0
      %5591 = vmatpush1.bf16.msra.mxu0 0
      %5592 = vmatprep.subr.bf16.mxu0 0
      %5593 = vmatpush1.bf16.msra.mxu0 0
      %5594 = vmatprep.subr.bf16.mxu0 0
      %5595 = vmatpush1.bf16.msra.mxu0 0
      %5596 = vmatprep.subr.bf16.mxu0 0
      %5597 = vmatpush1.bf16.msra.mxu0 0
      %5598 = vmatprep.subr.bf16.mxu0 0
      %5599 = vmatpush1.bf16.msra.mxu0 0
      %5600 = vmatprep.subr.bf16.mxu0 0
      %5601 = vmatpush1.bf16.msra.mxu0 0
      %5602 = vmatprep.mubr.bf16.mxu0 0
      %5603 = vmatmul.mubr.bf16.gmra.mrb[0].mxu0 %v5362
      %v5604 = vpop.f32.mrb[0].mxu0
      %v5605 = vadd.f32 %v5444, %v5604
      %v5606 = vpop.f32.mrb[0].mxu0
      %v5607 = vpop.f32.mrb[0].mxu0
      %v5608 = vadd.f32 %v5447, %v5607
      %v5609 = vpop.f32.mrb[0].mxu0
      %5610 = vmatprep.mubr.bf16.mxu0 0
      %5611 = vmatmul.mubr.bf16.gmra.mrb[0].mxu0 %v5365
      %v5612 = vpop.f32.mrb[0].mxu0
      %v5613 = vadd.f32 %v5452, %v5612
      %v5614 = vpop.f32.mrb[0].mxu0
      %v5615 = vpop.f32.mrb[0].mxu0
      %v5616 = vadd.f32 %v5455, %v5615
      %v5617 = vpop.f32.mrb[0].mxu0
      %5618 = vmatprep.mubr.bf16.mxu0 0
      %5619 = vmatmul.mubr.bf16.gmra.mrb[0].mxu0 %v5368
      %v5620 = vpop.f32.mrb[0].mxu0
      %v5621 = vadd.f32 %v5460, %v5620
      %v5622 = vpop.f32.mrb[0].mxu0
      %v5623 = vpop.f32.mrb[0].mxu0
      %v5624 = vadd.f32 %v5463, %v5623
      %v5625 = vpop.f32.mrb[0].mxu0
      %5626 = vmatprep.mubr.bf16.mxu0 0
      %5627 = vmatmul.mubr.bf16.gmra.mrb[0].mxu0 %v5371
      %v5628 = vpop.f32.mrb[0].mxu0
      %v5629 = vadd.f32 %v5468, %v5628
      %v5630 = vpop.f32.mrb[0].mxu0
      %v5631 = vpop.f32.mrb[0].mxu0
      %v5632 = vadd.f32 %v5471, %v5631
      %v5633 = vpop.f32.mrb[0].mxu0
      %5634 = vmatprep.mubr.bf16.mxu0 0
      %5635 = vmatmul.mubr.bf16.gmra.mrb[0].mxu0 %v5374
      %v5636 = vpop.f32.mrb[0].mxu0
      %v5637 = vadd.f32 %v5476, %v5636
      %v5638 = vpop.f32.mrb[0].mxu0
      %v5639 = vpop.f32.mrb[0].mxu0
      %v5640 = vadd.f32 %v5479, %v5639
      %v5641 = vpop.f32.mrb[0].mxu0
      %5642 = vmatprep.mubr.bf16.mxu0 0
      %5643 = vmatmul.mubr.bf16.gmra.mrb[0].mxu0 %v5377
      %v5644 = vpop.f32.mrb[0].mxu0
      %v5645 = vadd.f32 %v5484, %v5644
      %v5646 = vpop.f32.mrb[0].mxu0
      %v5647 = vpop.f32.mrb[0].mxu0
      %v5648 = vadd.f32 %v5487, %v5647
      %v5649 = vpop.f32.mrb[0].mxu0
      %5650 = vmatprep.mubr.bf16.mxu0 0
      %5651 = vmatmul.mubr.bf16.gmra.mrb[0].mxu0 %v5380
      %v5652 = vpop.f32.mrb[0].mxu0
      %v5653 = vadd.f32 %v5492, %v5652
      %v5654 = vpop.f32.mrb[0].mxu0
      %v5655 = vpop.f32.mrb[0].mxu0
      %v5656 = vadd.f32 %v5495, %v5655
      %v5657 = vpop.f32.mrb[0].mxu0
      %5658 = vmatprep.mubr.bf16.mxu0 0
      %5659 = vmatmul.mubr.bf16.gmra.mrb[0].mxu0 %v5383
      %v5660 = vpop.f32.mrb[0].mxu0
      %v5661 = vadd.f32 %v5500, %v5660
      %v5662 = vpop.f32.mrb[0].mxu0
      %v5663 = vpop.f32.mrb[0].mxu0
      %v5664 = vadd.f32 %v5503, %v5663
      %v5665 = vpop.f32.mrb[0].mxu0
      %5666 = vmatprep.mubr.bf16.mxu0 0
      %5667 = vmatmul.mubr.bf16.gmra.mrb[0].mxu0 %v5386
      %v5668 = vpop.f32.mrb[0].mxu0
      %v5669 = vadd.f32 %v5508, %v5668
      %v5670 = vpop.f32.mrb[0].mxu0
      %v5671 = vpop.f32.mrb[0].mxu0
      %v5672 = vadd.f32 %v5511, %v5671
      %v5673 = vpop.f32.mrb[0].mxu0
      %5674 = vmatprep.mubr.bf16.mxu0 0
      %5675 = vmatmul.mubr.bf16.gmra.mrb[0].mxu0 %v5389
      %v5676 = vpop.f32.mrb[0].mxu0
      %v5677 = vadd.f32 %v5516, %v5676
      %v5678 = vpop.f32.mrb[0].mxu0
      %v5679 = vpop.f32.mrb[0].mxu0
      %v5680 = vadd.f32 %v5519, %v5679
      %v5681 = vpop.f32.mrb[0].mxu0
      %5682 = vmatprep.mubr.bf16.mxu0 0
      %5683 = vmatmul.mubr.bf16.gmra.mrb[0].mxu0 %v5392
      %v5684 = vpop.f32.mrb[0].mxu0
      %v5685 = vadd.f32 %v5524, %v5684
      %v5686 = vpop.f32.mrb[0].mxu0
      %v5687 = vpop.f32.mrb[0].mxu0
      %v5688 = vadd.f32 %v5527, %v5687
      %v5689 = vpop.f32.mrb[0].mxu0
      %5690 = vmatprep.mubr.bf16.mxu0 0
      %5691 = vmatmul.mubr.bf16.gmra.mrb[0].mxu0 %v5395
      %v5692 = vpop.f32.mrb[0].mxu0
      %v5693 = vadd.f32 %v5532, %v5692
      %v5694 = vpop.f32.mrb[0].mxu0
      %v5695 = vpop.f32.mrb[0].mxu0
      %v5696 = vadd.f32 %v5535, %v5695
      %v5697 = vpop.f32.mrb[0].mxu0
      %5698 = vmatprep.mubr.bf16.mxu0 0
      %5699 = vmatmul.mubr.bf16.gmra.mrb[0].mxu0 %v5398
      %v5700 = vpop.f32.mrb[0].mxu0
      %v5701 = vadd.f32 %v5540, %v5700
      %v5702 = vpop.f32.mrb[0].mxu0
      %v5703 = vpop.f32.mrb[0].mxu0
      %v5704 = vadd.f32 %v5543, %v5703
      %v5705 = vpop.f32.mrb[0].mxu0
      %5706 = vmatprep.mubr.bf16.mxu0 0
      %5707 = vmatmul.mubr.bf16.gmra.mrb[0].mxu0 %v5401
      %v5708 = vpop.f32.mrb[0].mxu0
      %v5709 = vadd.f32 %v5548, %v5708
      %v5710 = vpop.f32.mrb[0].mxu0
      %v5711 = vpop.f32.mrb[0].mxu0
      %v5712 = vadd.f32 %v5551, %v5711
      %v5713 = vpop.f32.mrb[0].mxu0
      %5714 = vmatprep.mubr.bf16.mxu0 0
      %5715 = vmatmul.mubr.bf16.gmra.mrb[0].mxu0 %v5404
      %v5716 = vpop.f32.mrb[0].mxu0
      %v5717 = vadd.f32 %v5556, %v5716
      %v5718 = vpop.f32.mrb[0].mxu0
      %v5719 = vpop.f32.mrb[0].mxu0
      %v5720 = vadd.f32 %v5559, %v5719
      %v5721 = vpop.f32.mrb[0].mxu0
      %5722 = vmatprep.mubr.bf16.mxu0 0
      %5723 = vmatmul.mubr.bf16.gmra.mrb[0].mxu0 %v5407
      %v5724 = vpop.f32.mrb[0].mxu0
      %v5725 = vadd.f32 %v5564, %v5724
      %v5726 = vpop.f32.mrb[0].mxu0
      %v5727 = vpop.f32.mrb[0].mxu0
      %v5728 = vadd.f32 %v5567, %v5727
      %v5729 = vpop.f32.mrb[0].mxu0
      %5730 = vdwg.mxu0
      %v5731 = vld [vmem:[%s5] sm:$0x1]
      %v5733 = vlaneseq
      %v5734 = vshrl.u32 %v5733, 7
      %v5735 = vsub.s32 0, %v5734
      %v5736 = vrot.slane %v5731, %v5735
      %v5738 = vmul.f32 %v5605, %v5736
      %v5739 = vmul.f32 %v5608, %v5736
      %v5740 = vmul.f32 %v5613, %v5736
      %v5741 = vmul.f32 %v5616, %v5736
      %v5742 = vmul.f32 %v5621, %v5736
      %v5743 = vmul.f32 %v5624, %v5736
      %v5744 = vmul.f32 %v5629, %v5736
      %v5745 = vmul.f32 %v5632, %v5736
      %v5746 = vmul.f32 %v5637, %v5736
      %v5747 = vmul.f32 %v5640, %v5736
      %v5748 = vmul.f32 %v5645, %v5736
      %v5749 = vmul.f32 %v5648, %v5736
      %v5750 = vmul.f32 %v5653, %v5736
      %v5751 = vmul.f32 %v5656, %v5736
      %v5752 = vmul.f32 %v5661, %v5736
      %v5753 = vmul.f32 %v5664, %v5736
      %v5754 = vmul.f32 %v5669, %v5736
      %v5755 = vmul.f32 %v5672, %v5736
      %v5756 = vmul.f32 %v5677, %v5736
      %v5757 = vmul.f32 %v5680, %v5736
      %v5758 = vmul.f32 %v5685, %v5736
      %v5759 = vmul.f32 %v5688, %v5736
      %v5760 = vmul.f32 %v5693, %v5736
      %v5761 = vmul.f32 %v5696, %v5736
      %v5762 = vmul.f32 %v5701, %v5736
      %v5763 = vmul.f32 %v5704, %v5736
      %v5764 = vmul.f32 %v5709, %v5736
      %v5765 = vmul.f32 %v5712, %v5736
      %v5766 = vmul.f32 %v5717, %v5736
      %v5767 = vmul.f32 %v5720, %v5736
      %v5768 = vmul.f32 %v5725, %v5736
      %v5769 = vmul.f32 %v5728, %v5736
      %v5770 = vld [vmem:[%s6] sm:$0x1]
      %v5772 = vlaneseq
      %v5773 = vshrl.u32 %v5772, 7
      %v5774 = vsub.s32 0, %v5773
      %v5775 = vrot.slane %v5770, %v5774
      %v5777 = vadd.f32 %v5738, %v5775
      %v5778 = vadd.f32 %v5739, %v5775
      %v5779 = vadd.f32 %v5740, %v5775
      %v5780 = vadd.f32 %v5741, %v5775
      %v5781 = vadd.f32 %v5742, %v5775
      %v5782 = vadd.f32 %v5743, %v5775
      %v5783 = vadd.f32 %v5744, %v5775
      %v5784 = vadd.f32 %v5745, %v5775
      %v5785 = vadd.f32 %v5746, %v5775
      %v5786 = vadd.f32 %v5747, %v5775
      %v5787 = vadd.f32 %v5748, %v5775
      %v5788 = vadd.f32 %v5749, %v5775
      %v5789 = vadd.f32 %v5750, %v5775
      %v5790 = vadd.f32 %v5751, %v5775
      %v5791 = vadd.f32 %v5752, %v5775
      %v5792 = vadd.f32 %v5753, %v5775
      %v5793 = vadd.f32 %v5754, %v5775
      %v5794 = vadd.f32 %v5755, %v5775
      %v5795 = vadd.f32 %v5756, %v5775
      %v5796 = vadd.f32 %v5757, %v5775
      %v5797 = vadd.f32 %v5758, %v5775
      %v5798 = vadd.f32 %v5759, %v5775
      %v5799 = vadd.f32 %v5760, %v5775
      %v5800 = vadd.f32 %v5761, %v5775
      %v5801 = vadd.f32 %v5762, %v5775
      %v5802 = vadd.f32 %v5763, %v5775
      %v5803 = vadd.f32 %v5764, %v5775
      %v5804 = vadd.f32 %v5765, %v5775
      %v5805 = vadd.f32 %v5766, %v5775
      %v5806 = vadd.f32 %v5767, %v5775
      %v5807 = vadd.f32 %v5768, %v5775
      %v5808 = vadd.f32 %v5769, %v5775
      %v5809 = vmax.f32 %v5777, 0.0
      %v5810 = vmax.f32 %v5778, 0.0
      %v5811 = vmax.f32 %v5779, 0.0
      %v5812 = vmax.f32 %v5780, 0.0
      %v5813 = vmax.f32 %v5781, 0.0
      %v5814 = vmax.f32 %v5782, 0.0
      %v5815 = vmax.f32 %v5783, 0.0
      %v5816 = vmax.f32 %v5784, 0.0
      %v5817 = vmax.f32 %v5785, 0.0
      %v5818 = vmax.f32 %v5786, 0.0
      %v5819 = vmax.f32 %v5787, 0.0
      %v5820 = vmax.f32 %v5788, 0.0
      %v5821 = vmax.f32 %v5789, 0.0
      %v5822 = vmax.f32 %v5790, 0.0
      %v5823 = vmax.f32 %v5791, 0.0
      %v5824 = vmax.f32 %v5792, 0.0
      %v5825 = vmax.f32 %v5793, 0.0
      %v5826 = vmax.f32 %v5794, 0.0
      %v5827 = vmax.f32 %v5795, 0.0
      %v5828 = vmax.f32 %v5796, 0.0
      %v5829 = vmax.f32 %v5797, 0.0
      %v5830 = vmax.f32 %v5798, 0.0
      %v5831 = vmax.f32 %v5799, 0.0
      %v5832 = vmax.f32 %v5800, 0.0
      %v5833 = vmax.f32 %v5801, 0.0
      %v5834 = vmax.f32 %v5802, 0.0
      %v5835 = vmax.f32 %v5803, 0.0
      %v5836 = vmax.f32 %v5804, 0.0
      %v5837 = vmax.f32 %v5805, 0.0
      %v5838 = vmax.f32 %v5806, 0.0
      %v5839 = vmax.f32 %v5807, 0.0
      %v5840 = vmax.f32 %v5808, 0.0
      %v5873 = vcombine.high %v5809, %v5809
      %v5875 = vunpack.c.l.s4 1983009808
      %v5876 = vunpack.c.0.s8 %v5875
      %v5877 = vlaneseq
      %v5878 = vshrl.u32 %v5877, 7
      %v5879 = vsub.s32 %v5876, %v5878
      %v5880 = vrot.slane %v5809, %v5879
      %v5882 = vunpack.c.l.s4 1983009808
      %v5883 = vunpack.c.0.s8 %v5882
      %v5884 = vlaneseq
      %v5885 = vshrl.u32 %v5884, 7
      %v5886 = vsub.s32 %v5883, %v5885
      %v5887 = vrot.slane %v5873, %v5886
      %v5888 = vcombine.high %v5880, %v5880
      %v5889 = vcombine.high %v5887, %v5887
      %v5890 = vcombine.high %v5810, %v5810
      %v5892 = vunpack.c.l.s4 1983009808
      %v5893 = vunpack.c.0.s8 %v5892
      %v5894 = vlaneseq
      %v5895 = vshrl.u32 %v5894, 7
      %v5896 = vsub.s32 %v5893, %v5895
      %v5897 = vrot.slane %v5810, %v5896
      %v5899 = vunpack.c.l.s4 1983009808
      %v5900 = vunpack.c.0.s8 %v5899
      %v5901 = vlaneseq
      %v5902 = vshrl.u32 %v5901, 7
      %v5903 = vsub.s32 %v5900, %v5902
      %v5904 = vrot.slane %v5890, %v5903
      %v5905 = vcombine.high %v5897, %v5897
      %v5906 = vcombine.high %v5904, %v5904
      %v5907 = vcombine.high %v5811, %v5811
      %v5909 = vunpack.c.l.s4 1983009808
      %v5910 = vunpack.c.0.s8 %v5909
      %v5911 = vlaneseq
      %v5912 = vshrl.u32 %v5911, 7
      %v5913 = vsub.s32 %v5910, %v5912
      %v5914 = vrot.slane %v5811, %v5913
      %v5916 = vunpack.c.l.s4 1983009808
      %v5917 = vunpack.c.0.s8 %v5916
      %v5918 = vlaneseq
      %v5919 = vshrl.u32 %v5918, 7
      %v5920 = vsub.s32 %v5917, %v5919
      %v5921 = vrot.slane %v5907, %v5920
      %v5922 = vcombine.high %v5914, %v5914
      %v5923 = vcombine.high %v5921, %v5921
      %v5924 = vcombine.high %v5812, %v5812
      %v5926 = vunpack.c.l.s4 1983009808
      %v5927 = vunpack.c.0.s8 %v5926
      %v5928 = vlaneseq
      %v5929 = vshrl.u32 %v5928, 7
      %v5930 = vsub.s32 %v5927, %v5929
      %v5931 = vrot.slane %v5812, %v5930
      %v5933 = vunpack.c.l.s4 1983009808
      %v5934 = vunpack.c.0.s8 %v5933
      %v5935 = vlaneseq
      %v5936 = vshrl.u32 %v5935, 7
      %v5937 = vsub.s32 %v5934, %v5936
      %v5938 = vrot.slane %v5924, %v5937
      %v5939 = vcombine.high %v5931, %v5931
      %v5940 = vcombine.high %v5938, %v5938
      %v5941 = vcombine.high %v5813, %v5813
      %v5943 = vunpack.c.l.s4 1983009808
      %v5944 = vunpack.c.0.s8 %v5943
      %v5945 = vlaneseq
      %v5946 = vshrl.u32 %v5945, 7
      %v5947 = vsub.s32 %v5944, %v5946
      %v5948 = vrot.slane %v5813, %v5947
      %v5950 = vunpack.c.l.s4 1983009808
      %v5951 = vunpack.c.0.s8 %v5950
      %v5952 = vlaneseq
      %v5953 = vshrl.u32 %v5952, 7
      %v5954 = vsub.s32 %v5951, %v5953
      %v5955 = vrot.slane %v5941, %v5954
      %v5956 = vcombine.high %v5948, %v5948
      %v5957 = vcombine.high %v5955, %v5955
      %v5958 = vcombine.high %v5814, %v5814
      %v5960 = vunpack.c.l.s4 1983009808
      %v5961 = vunpack.c.0.s8 %v5960
      %v5962 = vlaneseq
      %v5963 = vshrl.u32 %v5962, 7
      %v5964 = vsub.s32 %v5961, %v5963
      %v5965 = vrot.slane %v5814, %v5964
      %v5967 = vunpack.c.l.s4 1983009808
      %v5968 = vunpack.c.0.s8 %v5967
      %v5969 = vlaneseq
      %v5970 = vshrl.u32 %v5969, 7
      %v5971 = vsub.s32 %v5968, %v5970
      %v5972 = vrot.slane %v5958, %v5971
      %v5973 = vcombine.high %v5965, %v5965
      %v5974 = vcombine.high %v5972, %v5972
      %v5975 = vcombine.high %v5815, %v5815
      %v5977 = vunpack.c.l.s4 1983009808
      %v5978 = vunpack.c.0.s8 %v5977
      %v5979 = vlaneseq
      %v5980 = vshrl.u32 %v5979, 7
      %v5981 = vsub.s32 %v5978, %v5980
      %v5982 = vrot.slane %v5815, %v5981
      %v5984 = vunpack.c.l.s4 1983009808
      %v5985 = vunpack.c.0.s8 %v5984
      %v5986 = vlaneseq
      %v5987 = vshrl.u32 %v5986, 7
      %v5988 = vsub.s32 %v5985, %v5987
      %v5989 = vrot.slane %v5975, %v5988
      %v5990 = vcombine.high %v5982, %v5982
      %v5991 = vcombine.high %v5989, %v5989
      %v5992 = vcombine.high %v5816, %v5816
      %v5994 = vunpack.c.l.s4 1983009808
      %v5995 = vunpack.c.0.s8 %v5994
      %v5996 = vlaneseq
      %v5997 = vshrl.u32 %v5996, 7
      %v5998 = vsub.s32 %v5995, %v5997
      %v5999 = vrot.slane %v5816, %v5998
      %v6001 = vunpack.c.l.s4 1983009808
      %v6002 = vunpack.c.0.s8 %v6001
      %v6003 = vlaneseq
      %v6004 = vshrl.u32 %v6003, 7
      %v6005 = vsub.s32 %v6002, %v6004
      %v6006 = vrot.slane %v5992, %v6005
      %v6007 = vcombine.high %v5999, %v5999
      %v6008 = vcombine.high %v6006, %v6006
      %v6009 = vcombine.high %v5817, %v5817
      %v6011 = vunpack.c.l.s4 1983009808
      %v6012 = vunpack.c.0.s8 %v6011
      %v6013 = vlaneseq
      %v6014 = vshrl.u32 %v6013, 7
      %v6015 = vsub.s32 %v6012, %v6014
      %v6016 = vrot.slane %v5817, %v6015
      %v6018 = vunpack.c.l.s4 1983009808
      %v6019 = vunpack.c.0.s8 %v6018
      %v6020 = vlaneseq
      %v6021 = vshrl.u32 %v6020, 7
      %v6022 = vsub.s32 %v6019, %v6021
      %v6023 = vrot.slane %v6009, %v6022
      %v6024 = vcombine.high %v6016, %v6016
      %v6025 = vcombine.high %v6023, %v6023
      %v6026 = vcombine.high %v5818, %v5818
      %v6028 = vunpack.c.l.s4 1983009808
      %v6029 = vunpack.c.0.s8 %v6028
      %v6030 = vlaneseq
      %v6031 = vshrl.u32 %v6030, 7
      %v6032 = vsub.s32 %v6029, %v6031
      %v6033 = vrot.slane %v5818, %v6032
      %v6035 = vunpack.c.l.s4 1983009808
      %v6036 = vunpack.c.0.s8 %v6035
      %v6037 = vlaneseq
      %v6038 = vshrl.u32 %v6037, 7
      %v6039 = vsub.s32 %v6036, %v6038
      %v6040 = vrot.slane %v6026, %v6039
      %v6041 = vcombine.high %v6033, %v6033
      %v6042 = vcombine.high %v6040, %v6040
      %v6043 = vcombine.high %v5819, %v5819
      %v6045 = vunpack.c.l.s4 1983009808
      %v6046 = vunpack.c.0.s8 %v6045
      %v6047 = vlaneseq
      %v6048 = vshrl.u32 %v6047, 7
      %v6049 = vsub.s32 %v6046, %v6048
      %v6050 = vrot.slane %v5819, %v6049
      %v6052 = vunpack.c.l.s4 1983009808
      %v6053 = vunpack.c.0.s8 %v6052
      %v6054 = vlaneseq
      %v6055 = vshrl.u32 %v6054, 7
      %v6056 = vsub.s32 %v6053, %v6055
      %v6057 = vrot.slane %v6043, %v6056
      %v6058 = vcombine.high %v6050, %v6050
      %v6059 = vcombine.high %v6057, %v6057
      %v6060 = vcombine.high %v5820, %v5820
      %v6062 = vunpack.c.l.s4 1983009808
      %v6063 = vunpack.c.0.s8 %v6062
      %v6064 = vlaneseq
      %v6065 = vshrl.u32 %v6064, 7
      %v6066 = vsub.s32 %v6063, %v6065
      %v6067 = vrot.slane %v5820, %v6066
      %v6069 = vunpack.c.l.s4 1983009808
      %v6070 = vunpack.c.0.s8 %v6069
      %v6071 = vlaneseq
      %v6072 = vshrl.u32 %v6071, 7
      %v6073 = vsub.s32 %v6070, %v6072
      %v6074 = vrot.slane %v6060, %v6073
      %v6075 = vcombine.high %v6067, %v6067
      %v6076 = vcombine.high %v6074, %v6074
      %v6077 = vcombine.high %v5821, %v5821
      %v6079 = vunpack.c.l.s4 1983009808
      %v6080 = vunpack.c.0.s8 %v6079
      %v6081 = vlaneseq
      %v6082 = vshrl.u32 %v6081, 7
      %v6083 = vsub.s32 %v6080, %v6082
      %v6084 = vrot.slane %v5821, %v6083
      %v6086 = vunpack.c.l.s4 1983009808
      %v6087 = vunpack.c.0.s8 %v6086
      %v6088 = vlaneseq
      %v6089 = vshrl.u32 %v6088, 7
      %v6090 = vsub.s32 %v6087, %v6089
      %v6091 = vrot.slane %v6077, %v6090
      %v6092 = vcombine.high %v6084, %v6084
      %v6093 = vcombine.high %v6091, %v6091
      %v6094 = vcombine.high %v5822, %v5822
      %v6096 = vunpack.c.l.s4 1983009808
      %v6097 = vunpack.c.0.s8 %v6096
      %v6098 = vlaneseq
      %v6099 = vshrl.u32 %v6098, 7
      %v6100 = vsub.s32 %v6097, %v6099
      %v6101 = vrot.slane %v5822, %v6100
      %v6103 = vunpack.c.l.s4 1983009808
      %v6104 = vunpack.c.0.s8 %v6103
      %v6105 = vlaneseq
      %v6106 = vshrl.u32 %v6105, 7
      %v6107 = vsub.s32 %v6104, %v6106
      %v6108 = vrot.slane %v6094, %v6107
      %v6109 = vcombine.high %v6101, %v6101
      %v6110 = vcombine.high %v6108, %v6108
      %v6111 = vcombine.high %v5823, %v5823
      %v6113 = vunpack.c.l.s4 1983009808
      %v6114 = vunpack.c.0.s8 %v6113
      %v6115 = vlaneseq
      %v6116 = vshrl.u32 %v6115, 7
      %v6117 = vsub.s32 %v6114, %v6116
      %v6118 = vrot.slane %v5823, %v6117
      %v6120 = vunpack.c.l.s4 1983009808
      %v6121 = vunpack.c.0.s8 %v6120
      %v6122 = vlaneseq
      %v6123 = vshrl.u32 %v6122, 7
      %v6124 = vsub.s32 %v6121, %v6123
      %v6125 = vrot.slane %v6111, %v6124
      %v6126 = vcombine.high %v6118, %v6118
      %v6127 = vcombine.high %v6125, %v6125
      %v6128 = vcombine.high %v5824, %v5824
      %v6130 = vunpack.c.l.s4 1983009808
      %v6131 = vunpack.c.0.s8 %v6130
      %v6132 = vlaneseq
      %v6133 = vshrl.u32 %v6132, 7
      %v6134 = vsub.s32 %v6131, %v6133
      %v6135 = vrot.slane %v5824, %v6134
      %v6137 = vunpack.c.l.s4 1983009808
      %v6138 = vunpack.c.0.s8 %v6137
      %v6139 = vlaneseq
      %v6140 = vshrl.u32 %v6139, 7
      %v6141 = vsub.s32 %v6138, %v6140
      %v6142 = vrot.slane %v6128, %v6141
      %v6143 = vcombine.high %v6135, %v6135
      %v6144 = vcombine.high %v6142, %v6142
      %v6145 = vcombine.high %v5825, %v5825
      %v6147 = vunpack.c.l.s4 1983009808
      %v6148 = vunpack.c.0.s8 %v6147
      %v6149 = vlaneseq
      %v6150 = vshrl.u32 %v6149, 7
      %v6151 = vsub.s32 %v6148, %v6150
      %v6152 = vrot.slane %v5825, %v6151
      %v6154 = vunpack.c.l.s4 1983009808
      %v6155 = vunpack.c.0.s8 %v6154
      %v6156 = vlaneseq
      %v6157 = vshrl.u32 %v6156, 7
      %v6158 = vsub.s32 %v6155, %v6157
      %v6159 = vrot.slane %v6145, %v6158
      %v6160 = vcombine.high %v6152, %v6152
      %v6161 = vcombine.high %v6159, %v6159
      %v6162 = vcombine.high %v5826, %v5826
      %v6164 = vunpack.c.l.s4 1983009808
      %v6165 = vunpack.c.0.s8 %v6164
      %v6166 = vlaneseq
      %v6167 = vshrl.u32 %v6166, 7
      %v6168 = vsub.s32 %v6165, %v6167
      %v6169 = vrot.slane %v5826, %v6168
      %v6171 = vunpack.c.l.s4 1983009808
      %v6172 = vunpack.c.0.s8 %v6171
      %v6173 = vlaneseq
      %v6174 = vshrl.u32 %v6173, 7
      %v6175 = vsub.s32 %v6172, %v6174
      %v6176 = vrot.slane %v6162, %v6175
      %v6177 = vcombine.high %v6169, %v6169
      %v6178 = vcombine.high %v6176, %v6176
      %v6179 = vcombine.high %v5827, %v5827
      %v6181 = vunpack.c.l.s4 1983009808
      %v6182 = vunpack.c.0.s8 %v6181
      %v6183 = vlaneseq
      %v6184 = vshrl.u32 %v6183, 7
      %v6185 = vsub.s32 %v6182, %v6184
      %v6186 = vrot.slane %v5827, %v6185
      %v6188 = vunpack.c.l.s4 1983009808
      %v6189 = vunpack.c.0.s8 %v6188
      %v6190 = vlaneseq
      %v6191 = vshrl.u32 %v6190, 7
      %v6192 = vsub.s32 %v6189, %v6191
      %v6193 = vrot.slane %v6179, %v6192
      %v6194 = vcombine.high %v6186, %v6186
      %v6195 = vcombine.high %v6193, %v6193
      %v6196 = vcombine.high %v5828, %v5828
      %v6198 = vunpack.c.l.s4 1983009808
      %v6199 = vunpack.c.0.s8 %v6198
      %v6200 = vlaneseq
      %v6201 = vshrl.u32 %v6200, 7
      %v6202 = vsub.s32 %v6199, %v6201
      %v6203 = vrot.slane %v5828, %v6202
      %v6205 = vunpack.c.l.s4 1983009808
      %v6206 = vunpack.c.0.s8 %v6205
      %v6207 = vlaneseq
      %v6208 = vshrl.u32 %v6207, 7
      %v6209 = vsub.s32 %v6206, %v6208
      %v6210 = vrot.slane %v6196, %v6209
      %v6211 = vcombine.high %v6203, %v6203
      %v6212 = vcombine.high %v6210, %v6210
      %v6213 = vcombine.high %v5829, %v5829
      %v6215 = vunpack.c.l.s4 1983009808
      %v6216 = vunpack.c.0.s8 %v6215
      %v6217 = vlaneseq
      %v6218 = vshrl.u32 %v6217, 7
      %v6219 = vsub.s32 %v6216, %v6218
      %v6220 = vrot.slane %v5829, %v6219
      %v6222 = vunpack.c.l.s4 1983009808
      %v6223 = vunpack.c.0.s8 %v6222
      %v6224 = vlaneseq
      %v6225 = vshrl.u32 %v6224, 7
      %v6226 = vsub.s32 %v6223, %v6225
      %v6227 = vrot.slane %v6213, %v6226
      %v6228 = vcombine.high %v6220, %v6220
      %v6229 = vcombine.high %v6227, %v6227
      %v6230 = vcombine.high %v5830, %v5830
      %v6232 = vunpack.c.l.s4 1983009808
      %v6233 = vunpack.c.0.s8 %v6232
      %v6234 = vlaneseq
      %v6235 = vshrl.u32 %v6234, 7
      %v6236 = vsub.s32 %v6233, %v6235
      %v6237 = vrot.slane %v5830, %v6236
      %v6239 = vunpack.c.l.s4 1983009808
      %v6240 = vunpack.c.0.s8 %v6239
      %v6241 = vlaneseq
      %v6242 = vshrl.u32 %v6241, 7
      %v6243 = vsub.s32 %v6240, %v6242
      %v6244 = vrot.slane %v6230, %v6243
      %v6245 = vcombine.high %v6237, %v6237
      %v6246 = vcombine.high %v6244, %v6244
      %v6247 = vcombine.high %v5831, %v5831
      %v6249 = vunpack.c.l.s4 1983009808
      %v6250 = vunpack.c.0.s8 %v6249
      %v6251 = vlaneseq
      %v6252 = vshrl.u32 %v6251, 7
      %v6253 = vsub.s32 %v6250, %v6252
      %v6254 = vrot.slane %v5831, %v6253
      %v6256 = vunpack.c.l.s4 1983009808
      %v6257 = vunpack.c.0.s8 %v6256
      %v6258 = vlaneseq
      %v6259 = vshrl.u32 %v6258, 7
      %v6260 = vsub.s32 %v6257, %v6259
      %v6261 = vrot.slane %v6247, %v6260
      %v6262 = vcombine.high %v6254, %v6254
      %v6263 = vcombine.high %v6261, %v6261
      %v6264 = vcombine.high %v5832, %v5832
      %v6266 = vunpack.c.l.s4 1983009808
      %v6267 = vunpack.c.0.s8 %v6266
      %v6268 = vlaneseq
      %v6269 = vshrl.u32 %v6268, 7
      %v6270 = vsub.s32 %v6267, %v6269
      %v6271 = vrot.slane %v5832, %v6270
      %v6273 = vunpack.c.l.s4 1983009808
      %v6274 = vunpack.c.0.s8 %v6273
      %v6275 = vlaneseq
      %v6276 = vshrl.u32 %v6275, 7
      %v6277 = vsub.s32 %v6274, %v6276
      %v6278 = vrot.slane %v6264, %v6277
      %v6279 = vcombine.high %v6271, %v6271
      %v6280 = vcombine.high %v6278, %v6278
      %v6281 = vcombine.high %v5833, %v5833
      %v6283 = vunpack.c.l.s4 1983009808
      %v6284 = vunpack.c.0.s8 %v6283
      %v6285 = vlaneseq
      %v6286 = vshrl.u32 %v6285, 7
      %v6287 = vsub.s32 %v6284, %v6286
      %v6288 = vrot.slane %v5833, %v6287
      %v6290 = vunpack.c.l.s4 1983009808
      %v6291 = vunpack.c.0.s8 %v6290
      %v6292 = vlaneseq
      %v6293 = vshrl.u32 %v6292, 7
      %v6294 = vsub.s32 %v6291, %v6293
      %v6295 = vrot.slane %v6281, %v6294
      %v6296 = vcombine.high %v6288, %v6288
      %v6297 = vcombine.high %v6295, %v6295
      %v6298 = vcombine.high %v5834, %v5834
      %v6300 = vunpack.c.l.s4 1983009808
      %v6301 = vunpack.c.0.s8 %v6300
      %v6302 = vlaneseq
      %v6303 = vshrl.u32 %v6302, 7
      %v6304 = vsub.s32 %v6301, %v6303
      %v6305 = vrot.slane %v5834, %v6304
      %v6307 = vunpack.c.l.s4 1983009808
      %v6308 = vunpack.c.0.s8 %v6307
      %v6309 = vlaneseq
      %v6310 = vshrl.u32 %v6309, 7
      %v6311 = vsub.s32 %v6308, %v6310
      %v6312 = vrot.slane %v6298, %v6311
      %v6313 = vcombine.high %v6305, %v6305
      %v6314 = vcombine.high %v6312, %v6312
      %v6315 = vcombine.high %v5835, %v5835
      %v6317 = vunpack.c.l.s4 1983009808
      %v6318 = vunpack.c.0.s8 %v6317
      %v6319 = vlaneseq
      %v6320 = vshrl.u32 %v6319, 7
      %v6321 = vsub.s32 %v6318, %v6320
      %v6322 = vrot.slane %v5835, %v6321
      %v6324 = vunpack.c.l.s4 1983009808
      %v6325 = vunpack.c.0.s8 %v6324
      %v6326 = vlaneseq
      %v6327 = vshrl.u32 %v6326, 7
      %v6328 = vsub.s32 %v6325, %v6327
      %v6329 = vrot.slane %v6315, %v6328
      %v6330 = vcombine.high %v6322, %v6322
      %v6331 = vcombine.high %v6329, %v6329
      %v6332 = vcombine.high %v5836, %v5836
      %v6334 = vunpack.c.l.s4 1983009808
      %v6335 = vunpack.c.0.s8 %v6334
      %v6336 = vlaneseq
      %v6337 = vshrl.u32 %v6336, 7
      %v6338 = vsub.s32 %v6335, %v6337
      %v6339 = vrot.slane %v5836, %v6338
      %v6341 = vunpack.c.l.s4 1983009808
      %v6342 = vunpack.c.0.s8 %v6341
      %v6343 = vlaneseq
      %v6344 = vshrl.u32 %v6343, 7
      %v6345 = vsub.s32 %v6342, %v6344
      %v6346 = vrot.slane %v6332, %v6345
      %v6347 = vcombine.high %v6339, %v6339
      %v6348 = vcombine.high %v6346, %v6346
      %v6349 = vcombine.high %v5837, %v5837
      %v6351 = vunpack.c.l.s4 1983009808
      %v6352 = vunpack.c.0.s8 %v6351
      %v6353 = vlaneseq
      %v6354 = vshrl.u32 %v6353, 7
      %v6355 = vsub.s32 %v6352, %v6354
      %v6356 = vrot.slane %v5837, %v6355
      %v6358 = vunpack.c.l.s4 1983009808
      %v6359 = vunpack.c.0.s8 %v6358
      %v6360 = vlaneseq
      %v6361 = vshrl.u32 %v6360, 7
      %v6362 = vsub.s32 %v6359, %v6361
      %v6363 = vrot.slane %v6349, %v6362
      %v6364 = vcombine.high %v6356, %v6356
      %v6365 = vcombine.high %v6363, %v6363
      %v6366 = vcombine.high %v5838, %v5838
      %v6368 = vunpack.c.l.s4 1983009808
      %v6369 = vunpack.c.0.s8 %v6368
      %v6370 = vlaneseq
      %v6371 = vshrl.u32 %v6370, 7
      %v6372 = vsub.s32 %v6369, %v6371
      %v6373 = vrot.slane %v5838, %v6372
      %v6375 = vunpack.c.l.s4 1983009808
      %v6376 = vunpack.c.0.s8 %v6375
      %v6377 = vlaneseq
      %v6378 = vshrl.u32 %v6377, 7
      %v6379 = vsub.s32 %v6376, %v6378
      %v6380 = vrot.slane %v6366, %v6379
      %v6381 = vcombine.high %v6373, %v6373
      %v6382 = vcombine.high %v6380, %v6380
      %v6383 = vcombine.high %v5839, %v5839
      %v6385 = vunpack.c.l.s4 1983009808
      %v6386 = vunpack.c.0.s8 %v6385
      %v6387 = vlaneseq
      %v6388 = vshrl.u32 %v6387, 7
      %v6389 = vsub.s32 %v6386, %v6388
      %v6390 = vrot.slane %v5839, %v6389
      %v6392 = vunpack.c.l.s4 1983009808
      %v6393 = vunpack.c.0.s8 %v6392
      %v6394 = vlaneseq
      %v6395 = vshrl.u32 %v6394, 7
      %v6396 = vsub.s32 %v6393, %v6395
      %v6397 = vrot.slane %v6383, %v6396
      %v6398 = vcombine.high %v6390, %v6390
      %v6399 = vcombine.high %v6397, %v6397
      %v6400 = vcombine.high %v5840, %v5840
      %v6402 = vunpack.c.l.s4 1983009808
      %v6403 = vunpack.c.0.s8 %v6402
      %v6404 = vlaneseq
      %v6405 = vshrl.u32 %v6404, 7
      %v6406 = vsub.s32 %v6403, %v6405
      %v6407 = vrot.slane %v5840, %v6406
      %v6409 = vunpack.c.l.s4 1983009808
      %v6410 = vunpack.c.0.s8 %v6409
      %v6411 = vlaneseq
      %v6412 = vshrl.u32 %v6411, 7
      %v6413 = vsub.s32 %v6410, %v6412
      %v6414 = vrot.slane %v6400, %v6413
      %v6415 = vcombine.high %v6407, %v6407
      %v6416 = vcombine.high %v6414, %v6414
      %v6545 = vrot.slane %v5880, 7
      %v6546 = vrot.slane %v6545, 2
      %v6547 = vrot.slane %v5888, 7
      %v6548 = vrot.slane %v6547, 2
      %v6549 = vrot.slane %v5887, 7
      %v6550 = vrot.slane %v6549, 2
      %v6551 = vrot.slane %v5889, 7
      %v6552 = vrot.slane %v6551, 2
      %v6553 = vrot.slane %v5897, 7
      %v6554 = vrot.slane %v6553, 2
      %v6555 = vrot.slane %v5905, 7
      %v6556 = vrot.slane %v6555, 2
      %v6557 = vrot.slane %v5904, 7
      %v6558 = vrot.slane %v6557, 2
      %v6559 = vrot.slane %v5906, 7
      %v6560 = vrot.slane %v6559, 2
      %v6561 = vrot.slane %v5914, 7
      %v6562 = vrot.slane %v6561, 2
      %v6563 = vrot.slane %v5922, 7
      %v6564 = vrot.slane %v6563, 2
      %v6565 = vrot.slane %v5921, 7
      %v6566 = vrot.slane %v6565, 2
      %v6567 = vrot.slane %v5923, 7
      %v6568 = vrot.slane %v6567, 2
      %v6569 = vrot.slane %v5931, 7
      %v6570 = vrot.slane %v6569, 2
      %v6571 = vrot.slane %v5939, 7
      %v6572 = vrot.slane %v6571, 2
      %v6573 = vrot.slane %v5938, 7
      %v6574 = vrot.slane %v6573, 2
      %v6575 = vrot.slane %v5940, 7
      %v6576 = vrot.slane %v6575, 2
      %v6577 = vrot.slane %v5948, 7
      %v6578 = vrot.slane %v6577, 2
      %v6579 = vrot.slane %v5956, 7
      %v6580 = vrot.slane %v6579, 2
      %v6581 = vrot.slane %v5955, 7
      %v6582 = vrot.slane %v6581, 2
      %v6583 = vrot.slane %v5957, 7
      %v6584 = vrot.slane %v6583, 2
      %v6585 = vrot.slane %v5965, 7
      %v6586 = vrot.slane %v6585, 2
      %v6587 = vrot.slane %v5973, 7
      %v6588 = vrot.slane %v6587, 2
      %v6589 = vrot.slane %v5972, 7
      %v6590 = vrot.slane %v6589, 2
      %v6591 = vrot.slane %v5974, 7
      %v6592 = vrot.slane %v6591, 2
      %v6593 = vrot.slane %v5982, 7
      %v6594 = vrot.slane %v6593, 2
      %v6595 = vrot.slane %v5990, 7
      %v6596 = vrot.slane %v6595, 2
      %v6597 = vrot.slane %v5989, 7
      %v6598 = vrot.slane %v6597, 2
      %v6599 = vrot.slane %v5991, 7
      %v6600 = vrot.slane %v6599, 2
      %v6601 = vrot.slane %v5999, 7
      %v6602 = vrot.slane %v6601, 2
      %v6603 = vrot.slane %v6007, 7
      %v6604 = vrot.slane %v6603, 2
      %v6605 = vrot.slane %v6006, 7
      %v6606 = vrot.slane %v6605, 2
      %v6607 = vrot.slane %v6008, 7
      %v6608 = vrot.slane %v6607, 2
      %v6609 = vrot.slane %v6016, 7
      %v6610 = vrot.slane %v6609, 2
      %v6611 = vrot.slane %v6024, 7
      %v6612 = vrot.slane %v6611, 2
      %v6613 = vrot.slane %v6023, 7
      %v6614 = vrot.slane %v6613, 2
      %v6615 = vrot.slane %v6025, 7
      %v6616 = vrot.slane %v6615, 2
      %v6617 = vrot.slane %v6033, 7
      %v6618 = vrot.slane %v6617, 2
      %v6619 = vrot.slane %v6041, 7
      %v6620 = vrot.slane %v6619, 2
      %v6621 = vrot.slane %v6040, 7
      %v6622 = vrot.slane %v6621, 2
      %v6623 = vrot.slane %v6042, 7
      %v6624 = vrot.slane %v6623, 2
      %v6625 = vrot.slane %v6050, 7
      %v6626 = vrot.slane %v6625, 2
      %v6627 = vrot.slane %v6058, 7
      %v6628 = vrot.slane %v6627, 2
      %v6629 = vrot.slane %v6057, 7
      %v6630 = vrot.slane %v6629, 2
      %v6631 = vrot.slane %v6059, 7
      %v6632 = vrot.slane %v6631, 2
      %v6633 = vrot.slane %v6067, 7
      %v6634 = vrot.slane %v6633, 2
      %v6635 = vrot.slane %v6075, 7
      %v6636 = vrot.slane %v6635, 2
      %v6637 = vrot.slane %v6074, 7
      %v6638 = vrot.slane %v6637, 2
      %v6639 = vrot.slane %v6076, 7
      %v6640 = vrot.slane %v6639, 2
      %v6641 = vrot.slane %v6084, 7
      %v6642 = vrot.slane %v6641, 2
      %v6643 = vrot.slane %v6092, 7
      %v6644 = vrot.slane %v6643, 2
      %v6645 = vrot.slane %v6091, 7
      %v6646 = vrot.slane %v6645, 2
      %v6647 = vrot.slane %v6093, 7
      %v6648 = vrot.slane %v6647, 2
      %v6649 = vrot.slane %v6101, 7
      %v6650 = vrot.slane %v6649, 2
      %v6651 = vrot.slane %v6109, 7
      %v6652 = vrot.slane %v6651, 2
      %v6653 = vrot.slane %v6108, 7
      %v6654 = vrot.slane %v6653, 2
      %v6655 = vrot.slane %v6110, 7
      %v6656 = vrot.slane %v6655, 2
      %v6657 = vrot.slane %v6118, 7
      %v6658 = vrot.slane %v6657, 2
      %v6659 = vrot.slane %v6126, 7
      %v6660 = vrot.slane %v6659, 2
      %v6661 = vrot.slane %v6125, 7
      %v6662 = vrot.slane %v6661, 2
      %v6663 = vrot.slane %v6127, 7
      %v6664 = vrot.slane %v6663, 2
      %v6665 = vrot.slane %v6135, 7
      %v6666 = vrot.slane %v6665, 2
      %v6667 = vrot.slane %v6143, 7
      %v6668 = vrot.slane %v6667, 2
      %v6669 = vrot.slane %v6142, 7
      %v6670 = vrot.slane %v6669, 2
      %v6671 = vrot.slane %v6144, 7
      %v6672 = vrot.slane %v6671, 2
      %v6673 = vrot.slane %v6152, 7
      %v6674 = vrot.slane %v6673, 2
      %v6675 = vrot.slane %v6160, 7
      %v6676 = vrot.slane %v6675, 2
      %v6677 = vrot.slane %v6159, 7
      %v6678 = vrot.slane %v6677, 2
      %v6679 = vrot.slane %v6161, 7
      %v6680 = vrot.slane %v6679, 2
      %v6681 = vrot.slane %v6169, 7
      %v6682 = vrot.slane %v6681, 2
      %v6683 = vrot.slane %v6177, 7
      %v6684 = vrot.slane %v6683, 2
      %v6685 = vrot.slane %v6176, 7
      %v6686 = vrot.slane %v6685, 2
      %v6687 = vrot.slane %v6178, 7
      %v6688 = vrot.slane %v6687, 2
      %v6689 = vrot.slane %v6186, 7
      %v6690 = vrot.slane %v6689, 2
      %v6691 = vrot.slane %v6194, 7
      %v6692 = vrot.slane %v6691, 2
      %v6693 = vrot.slane %v6193, 7
      %v6694 = vrot.slane %v6693, 2
      %v6695 = vrot.slane %v6195, 7
      %v6696 = vrot.slane %v6695, 2
      %v6697 = vrot.slane %v6203, 7
      %v6698 = vrot.slane %v6697, 2
      %v6699 = vrot.slane %v6211, 7
      %v6700 = vrot.slane %v6699, 2
      %v6701 = vrot.slane %v6210, 7
      %v6702 = vrot.slane %v6701, 2
      %v6703 = vrot.slane %v6212, 7
      %v6704 = vrot.slane %v6703, 2
      %v6705 = vrot.slane %v6220, 7
      %v6706 = vrot.slane %v6705, 2
      %v6707 = vrot.slane %v6228, 7
      %v6708 = vrot.slane %v6707, 2
      %v6709 = vrot.slane %v6227, 7
      %v6710 = vrot.slane %v6709, 2
      %v6711 = vrot.slane %v6229, 7
      %v6712 = vrot.slane %v6711, 2
      %v6713 = vrot.slane %v6237, 7
      %v6714 = vrot.slane %v6713, 2
      %v6715 = vrot.slane %v6245, 7
      %v6716 = vrot.slane %v6715, 2
      %v6717 = vrot.slane %v6244, 7
      %v6718 = vrot.slane %v6717, 2
      %v6719 = vrot.slane %v6246, 7
      %v6720 = vrot.slane %v6719, 2
      %v6721 = vrot.slane %v6254, 7
      %v6722 = vrot.slane %v6721, 2
      %v6723 = vrot.slane %v6262, 7
      %v6724 = vrot.slane %v6723, 2
      %v6725 = vrot.slane %v6261, 7
      %v6726 = vrot.slane %v6725, 2
      %v6727 = vrot.slane %v6263, 7
      %v6728 = vrot.slane %v6727, 2
      %v6729 = vrot.slane %v6271, 7
      %v6730 = vrot.slane %v6729, 2
      %v6731 = vrot.slane %v6279, 7
      %v6732 = vrot.slane %v6731, 2
      %v6733 = vrot.slane %v6278, 7
      %v6734 = vrot.slane %v6733, 2
      %v6735 = vrot.slane %v6280, 7
      %v6736 = vrot.slane %v6735, 2
      %v6737 = vrot.slane %v6288, 7
      %v6738 = vrot.slane %v6737, 2
      %v6739 = vrot.slane %v6296, 7
      %v6740 = vrot.slane %v6739, 2
      %v6741 = vrot.slane %v6295, 7
      %v6742 = vrot.slane %v6741, 2
      %v6743 = vrot.slane %v6297, 7
      %v6744 = vrot.slane %v6743, 2
      %v6745 = vrot.slane %v6305, 7
      %v6746 = vrot.slane %v6745, 2
      %v6747 = vrot.slane %v6313, 7
      %v6748 = vrot.slane %v6747, 2
      %v6749 = vrot.slane %v6312, 7
      %v6750 = vrot.slane %v6749, 2
      %v6751 = vrot.slane %v6314, 7
      %v6752 = vrot.slane %v6751, 2
      %v6753 = vrot.slane %v6322, 7
      %v6754 = vrot.slane %v6753, 2
      %v6755 = vrot.slane %v6330, 7
      %v6756 = vrot.slane %v6755, 2
      %v6757 = vrot.slane %v6329, 7
      %v6758 = vrot.slane %v6757, 2
      %v6759 = vrot.slane %v6331, 7
      %v6760 = vrot.slane %v6759, 2
      %v6761 = vrot.slane %v6339, 7
      %v6762 = vrot.slane %v6761, 2
      %v6763 = vrot.slane %v6347, 7
      %v6764 = vrot.slane %v6763, 2
      %v6765 = vrot.slane %v6346, 7
      %v6766 = vrot.slane %v6765, 2
      %v6767 = vrot.slane %v6348, 7
      %v6768 = vrot.slane %v6767, 2
      %v6769 = vrot.slane %v6356, 7
      %v6770 = vrot.slane %v6769, 2
      %v6771 = vrot.slane %v6364, 7
      %v6772 = vrot.slane %v6771, 2
      %v6773 = vrot.slane %v6363, 7
      %v6774 = vrot.slane %v6773, 2
      %v6775 = vrot.slane %v6365, 7
      %v6776 = vrot.slane %v6775, 2
      %v6777 = vrot.slane %v6373, 7
      %v6778 = vrot.slane %v6777, 2
      %v6779 = vrot.slane %v6381, 7
      %v6780 = vrot.slane %v6779, 2
      %v6781 = vrot.slane %v6380, 7
      %v6782 = vrot.slane %v6781, 2
      %v6783 = vrot.slane %v6382, 7
      %v6784 = vrot.slane %v6783, 2
      %v6785 = vrot.slane %v6390, 7
      %v6786 = vrot.slane %v6785, 2
      %v6787 = vrot.slane %v6398, 7
      %v6788 = vrot.slane %v6787, 2
      %v6789 = vrot.slane %v6397, 7
      %v6790 = vrot.slane %v6789, 2
      %v6791 = vrot.slane %v6399, 7
      %v6792 = vrot.slane %v6791, 2
      %v6793 = vrot.slane %v6407, 7
      %v6794 = vrot.slane %v6793, 2
      %v6795 = vrot.slane %v6415, 7
      %v6796 = vrot.slane %v6795, 2
      %v6797 = vrot.slane %v6414, 7
      %v6798 = vrot.slane %v6797, 2
      %v6799 = vrot.slane %v6416, 7
      %v6800 = vrot.slane %v6799, 2
      %v6929 = vmax.f32 %v5880, %v6546
      %v6930 = vmax.f32 %v5888, %v6548
      %v6931 = vmax.f32 %v5887, %v6550
      %v6932 = vmax.f32 %v5889, %v6552
      %v6933 = vmax.f32 %v5897, %v6554
      %v6934 = vmax.f32 %v5905, %v6556
      %v6935 = vmax.f32 %v5904, %v6558
      %v6936 = vmax.f32 %v5906, %v6560
      %v6937 = vmax.f32 %v5914, %v6562
      %v6938 = vmax.f32 %v5922, %v6564
      %v6939 = vmax.f32 %v5921, %v6566
      %v6940 = vmax.f32 %v5923, %v6568
      %v6941 = vmax.f32 %v5931, %v6570
      %v6942 = vmax.f32 %v5939, %v6572
      %v6943 = vmax.f32 %v5938, %v6574
      %v6944 = vmax.f32 %v5940, %v6576
      %v6945 = vmax.f32 %v5948, %v6578
      %v6946 = vmax.f32 %v5956, %v6580
      %v6947 = vmax.f32 %v5955, %v6582
      %v6948 = vmax.f32 %v5957, %v6584
      %v6949 = vmax.f32 %v5965, %v6586
      %v6950 = vmax.f32 %v5973, %v6588
      %v6951 = vmax.f32 %v5972, %v6590
      %v6952 = vmax.f32 %v5974, %v6592
      %v6953 = vmax.f32 %v5982, %v6594
      %v6954 = vmax.f32 %v5990, %v6596
      %v6955 = vmax.f32 %v5989, %v6598
      %v6956 = vmax.f32 %v5991, %v6600
      %v6957 = vmax.f32 %v5999, %v6602
      %v6958 = vmax.f32 %v6007, %v6604
      %v6959 = vmax.f32 %v6006, %v6606
      %v6960 = vmax.f32 %v6008, %v6608
      %v6961 = vmax.f32 %v6016, %v6610
      %v6962 = vmax.f32 %v6024, %v6612
      %v6963 = vmax.f32 %v6023, %v6614
      %v6964 = vmax.f32 %v6025, %v6616
      %v6965 = vmax.f32 %v6033, %v6618
      %v6966 = vmax.f32 %v6041, %v6620
      %v6967 = vmax.f32 %v6040, %v6622
      %v6968 = vmax.f32 %v6042, %v6624
      %v6969 = vmax.f32 %v6050, %v6626
      %v6970 = vmax.f32 %v6058, %v6628
      %v6971 = vmax.f32 %v6057, %v6630
      %v6972 = vmax.f32 %v6059, %v6632
      %v6973 = vmax.f32 %v6067, %v6634
      %v6974 = vmax.f32 %v6075, %v6636
      %v6975 = vmax.f32 %v6074, %v6638
      %v6976 = vmax.f32 %v6076, %v6640
      %v6977 = vmax.f32 %v6084, %v6642
      %v6978 = vmax.f32 %v6092, %v6644
      %v6979 = vmax.f32 %v6091, %v6646
      %v6980 = vmax.f32 %v6093, %v6648
      %v6981 = vmax.f32 %v6101, %v6650
      %v6982 = vmax.f32 %v6109, %v6652
      %v6983 = vmax.f32 %v6108, %v6654
      %v6984 = vmax.f32 %v6110, %v6656
      %v6985 = vmax.f32 %v6118, %v6658
      %v6986 = vmax.f32 %v6126, %v6660
      %v6987 = vmax.f32 %v6125, %v6662
      %v6988 = vmax.f32 %v6127, %v6664
      %v6989 = vmax.f32 %v6135, %v6666
      %v6990 = vmax.f32 %v6143, %v6668
      %v6991 = vmax.f32 %v6142, %v6670
      %v6992 = vmax.f32 %v6144, %v6672
      %v6993 = vmax.f32 %v6152, %v6674
      %v6994 = vmax.f32 %v6160, %v6676
      %v6995 = vmax.f32 %v6159, %v6678
      %v6996 = vmax.f32 %v6161, %v6680
      %v6997 = vmax.f32 %v6169, %v6682
      %v6998 = vmax.f32 %v6177, %v6684
      %v6999 = vmax.f32 %v6176, %v6686
      %v7000 = vmax.f32 %v6178, %v6688
      %v7001 = vmax.f32 %v6186, %v6690
      %v7002 = vmax.f32 %v6194, %v6692
      %v7003 = vmax.f32 %v6193, %v6694
      %v7004 = vmax.f32 %v6195, %v6696
      %v7005 = vmax.f32 %v6203, %v6698
      %v7006 = vmax.f32 %v6211, %v6700
      %v7007 = vmax.f32 %v6210, %v6702
      %v7008 = vmax.f32 %v6212, %v6704
      %v7009 = vmax.f32 %v6220, %v6706
      %v7010 = vmax.f32 %v6228, %v6708
      %v7011 = vmax.f32 %v6227, %v6710
      %v7012 = vmax.f32 %v6229, %v6712
      %v7013 = vmax.f32 %v6237, %v6714
      %v7014 = vmax.f32 %v6245, %v6716
      %v7015 = vmax.f32 %v6244, %v6718
      %v7016 = vmax.f32 %v6246, %v6720
      %v7017 = vmax.f32 %v6254, %v6722
      %v7018 = vmax.f32 %v6262, %v6724
      %v7019 = vmax.f32 %v6261, %v6726
      %v7020 = vmax.f32 %v6263, %v6728
      %v7021 = vmax.f32 %v6271, %v6730
      %v7022 = vmax.f32 %v6279, %v6732
      %v7023 = vmax.f32 %v6278, %v6734
      %v7024 = vmax.f32 %v6280, %v6736
      %v7025 = vmax.f32 %v6288, %v6738
      %v7026 = vmax.f32 %v6296, %v6740
      %v7027 = vmax.f32 %v6295, %v6742
      %v7028 = vmax.f32 %v6297, %v6744
      %v7029 = vmax.f32 %v6305, %v6746
      %v7030 = vmax.f32 %v6313, %v6748
      %v7031 = vmax.f32 %v6312, %v6750
      %v7032 = vmax.f32 %v6314, %v6752
      %v7033 = vmax.f32 %v6322, %v6754
      %v7034 = vmax.f32 %v6330, %v6756
      %v7035 = vmax.f32 %v6329, %v6758
      %v7036 = vmax.f32 %v6331, %v6760
      %v7037 = vmax.f32 %v6339, %v6762
      %v7038 = vmax.f32 %v6347, %v6764
      %v7039 = vmax.f32 %v6346, %v6766
      %v7040 = vmax.f32 %v6348, %v6768
      %v7041 = vmax.f32 %v6356, %v6770
      %v7042 = vmax.f32 %v6364, %v6772
      %v7043 = vmax.f32 %v6363, %v6774
      %v7044 = vmax.f32 %v6365, %v6776
      %v7045 = vmax.f32 %v6373, %v6778
      %v7046 = vmax.f32 %v6381, %v6780
      %v7047 = vmax.f32 %v6380, %v6782
      %v7048 = vmax.f32 %v6382, %v6784
      %v7049 = vmax.f32 %v6390, %v6786
      %v7050 = vmax.f32 %v6398, %v6788
      %v7051 = vmax.f32 %v6397, %v6790
      %v7052 = vmax.f32 %v6399, %v6792
      %v7053 = vmax.f32 %v6407, %v6794
      %v7054 = vmax.f32 %v6415, %v6796
      %v7055 = vmax.f32 %v6414, %v6798
      %v7056 = vmax.f32 %v6416, %v6800
      %v7057 = vmax.f32 %v6929, %v6937
      %v7058 = vmax.f32 %v6930, %v6938
      %v7059 = vmax.f32 %v6931, %v6939
      %v7060 = vmax.f32 %v6932, %v6940
      %v7061 = vmax.f32 %v6933, %v6941
      %v7062 = vmax.f32 %v6934, %v6942
      %v7063 = vmax.f32 %v6935, %v6943
      %v7064 = vmax.f32 %v6936, %v6944
      %v7065 = vmax.f32 %v6945, %v6953
      %v7066 = vmax.f32 %v6946, %v6954
      %v7067 = vmax.f32 %v6947, %v6955
      %v7068 = vmax.f32 %v6948, %v6956
      %v7069 = vmax.f32 %v6949, %v6957
      %v7070 = vmax.f32 %v6950, %v6958
      %v7071 = vmax.f32 %v6951, %v6959
      %v7072 = vmax.f32 %v6952, %v6960
      %v7073 = vmax.f32 %v6961, %v6969
      %v7074 = vmax.f32 %v6962, %v6970
      %v7075 = vmax.f32 %v6963, %v6971
      %v7076 = vmax.f32 %v6964, %v6972
      %v7077 = vmax.f32 %v6965, %v6973
      %v7078 = vmax.f32 %v6966, %v6974
      %v7079 = vmax.f32 %v6967, %v6975
      %v7080 = vmax.f32 %v6968, %v6976
      %v7081 = vmax.f32 %v6977, %v6985
      %v7082 = vmax.f32 %v6978, %v6986
      %v7083 = vmax.f32 %v6979, %v6987
      %v7084 = vmax.f32 %v6980, %v6988
      %v7085 = vmax.f32 %v6981, %v6989
      %v7086 = vmax.f32 %v6982, %v6990
      %v7087 = vmax.f32 %v6983, %v6991
      %v7088 = vmax.f32 %v6984, %v6992
      %v7089 = vmax.f32 %v6993, %v7001
      %v7090 = vmax.f32 %v6994, %v7002
      %v7091 = vmax.f32 %v6995, %v7003
      %v7092 = vmax.f32 %v6996, %v7004
      %v7093 = vmax.f32 %v6997, %v7005
      %v7094 = vmax.f32 %v6998, %v7006
      %v7095 = vmax.f32 %v6999, %v7007
      %v7096 = vmax.f32 %v7000, %v7008
      %v7097 = vmax.f32 %v7009, %v7017
      %v7098 = vmax.f32 %v7010, %v7018
      %v7099 = vmax.f32 %v7011, %v7019
      %v7100 = vmax.f32 %v7012, %v7020
      %v7101 = vmax.f32 %v7013, %v7021
      %v7102 = vmax.f32 %v7014, %v7022
      %v7103 = vmax.f32 %v7015, %v7023
      %v7104 = vmax.f32 %v7016, %v7024
      %v7105 = vmax.f32 %v7025, %v7033
      %v7106 = vmax.f32 %v7026, %v7034
      %v7107 = vmax.f32 %v7027, %v7035
      %v7108 = vmax.f32 %v7028, %v7036
      %v7109 = vmax.f32 %v7029, %v7037
      %v7110 = vmax.f32 %v7030, %v7038
      %v7111 = vmax.f32 %v7031, %v7039
      %v7112 = vmax.f32 %v7032, %v7040
      %v7113 = vmax.f32 %v7041, %v7049
      %v7114 = vmax.f32 %v7042, %v7050
      %v7115 = vmax.f32 %v7043, %v7051
      %v7116 = vmax.f32 %v7044, %v7052
      %v7117 = vmax.f32 %v7045, %v7053
      %v7118 = vmax.f32 %v7046, %v7054
      %v7119 = vmax.f32 %v7047, %v7055
      %v7120 = vmax.f32 %v7048, %v7056
      %7121 = vst.msk [vmem:[#allocation3] sm:$0xf] %vm2750, 0
      %7122 = vst.msk [vmem:[#allocation3 + $0x4] sm:$0x1] %vm2753, 0
      %7123 = vst.msk [vmem:[#allocation3 + $0x8] sm:$0xf] %vm2750, 0
      %7124 = vst.msk [vmem:[#allocation3 + $0xc] sm:$0x1] %vm2753, 0
      %7125 = vst.msk [vmem:[#allocation3 + $0x10] sm:$0xf] %vm2750, 0
      %7126 = vst.msk [vmem:[#allocation3 + $0x14] sm:$0x1] %vm2753, 0
      %7127 = vst.msk [vmem:[#allocation3 + $0x18] sm:$0xf] %vm2750, 0
      %7128 = vst.msk [vmem:[#allocation3 + $0x1c] sm:$0x1] %vm2753, 0
      %7129 = vst.msk [vmem:[#allocation3 + $0x20] sm:$0xf] %vm2750, 0
      %7130 = vst.msk [vmem:[#allocation3 + $0x24] sm:$0x1] %vm2753, 0
      %7131 = vst.msk [vmem:[#allocation3 + $0x28] sm:$0xf] %vm2750, 0
      %7132 = vst.msk [vmem:[#allocation3 + $0x2c] sm:$0x1] %vm2753, 0
      %7133 = vst.msk [vmem:[#allocation3 + $0x30] sm:$0xf] %vm2750, 0
      %7134 = vst.msk [vmem:[#allocation3 + $0x34] sm:$0x1] %vm2753, 0
      %7135 = vst.msk [vmem:[#allocation3 + $0x38] sm:$0xf] %vm2750, 0
      %7136 = vst.msk [vmem:[#allocation3 + $0x3c] sm:$0x1] %vm2753, 0
      %7137 = vst.msk [vmem:[#allocation3 + $0x40] sm:$0xf] %vm2750, 0
      %7138 = vst.msk [vmem:[#allocation3 + $0x44] sm:$0x1] %vm2753, 0
      %7139 = vst.msk [vmem:[#allocation3 + $0x48] sm:$0xf] %vm2750, 0
      %7140 = vst.msk [vmem:[#allocation3 + $0x4c] sm:$0x1] %vm2753, 0
      %v7141 = vpack.c.bf16 %v7057, %v7057
      %v7142 = vpack.c.bf16 %v7058, %v7058
      %v7143 = vpack.c.bf16 %v7059, %v7059
      %v7144 = vpack.c.bf16 %v7060, %v7060
      %v7145 = vpack.c.bf16 %v7061, %v7061
      %v7146 = vpack.c.bf16 %v7062, %v7062
      %v7147 = vpack.c.bf16 %v7063, %v7063
      %v7148 = vpack.c.bf16 %v7064, %v7064
      %v7149 = vpack.c.bf16 %v7065, %v7065
      %v7150 = vpack.c.bf16 %v7066, %v7066
      %v7151 = vpack.c.bf16 %v7067, %v7067
      %v7152 = vpack.c.bf16 %v7068, %v7068
      %v7153 = vpack.c.bf16 %v7069, %v7069
      %v7154 = vpack.c.bf16 %v7070, %v7070
      %v7155 = vpack.c.bf16 %v7071, %v7071
      %v7156 = vpack.c.bf16 %v7072, %v7072
      %v7157 = vpack.c.bf16 %v7073, %v7073
      %v7158 = vpack.c.bf16 %v7074, %v7074
      %v7159 = vpack.c.bf16 %v7075, %v7075
      %v7160 = vpack.c.bf16 %v7076, %v7076
      %v7161 = vpack.c.bf16 %v7077, %v7077
      %v7162 = vpack.c.bf16 %v7078, %v7078
      %v7163 = vpack.c.bf16 %v7079, %v7079
      %v7164 = vpack.c.bf16 %v7080, %v7080
      %v7165 = vpack.c.bf16 %v7081, %v7081
      %v7166 = vpack.c.bf16 %v7082, %v7082
      %v7167 = vpack.c.bf16 %v7083, %v7083
      %v7168 = vpack.c.bf16 %v7084, %v7084
      %v7169 = vpack.c.bf16 %v7085, %v7085
      %v7170 = vpack.c.bf16 %v7086, %v7086
      %v7171 = vpack.c.bf16 %v7087, %v7087
      %v7172 = vpack.c.bf16 %v7088, %v7088
      %v7173 = vpack.c.bf16 %v7089, %v7089
      %v7174 = vpack.c.bf16 %v7090, %v7090
      %v7175 = vpack.c.bf16 %v7091, %v7091
      %v7176 = vpack.c.bf16 %v7092, %v7092
      %v7177 = vpack.c.bf16 %v7093, %v7093
      %v7178 = vpack.c.bf16 %v7094, %v7094
      %v7179 = vpack.c.bf16 %v7095, %v7095
      %v7180 = vpack.c.bf16 %v7096, %v7096
      %v7181 = vpack.c.bf16 %v7097, %v7097
      %v7182 = vpack.c.bf16 %v7098, %v7098
      %v7183 = vpack.c.bf16 %v7099, %v7099
      %v7184 = vpack.c.bf16 %v7100, %v7100
      %v7185 = vpack.c.bf16 %v7101, %v7101
      %v7186 = vpack.c.bf16 %v7102, %v7102
      %v7187 = vpack.c.bf16 %v7103, %v7103
      %v7188 = vpack.c.bf16 %v7104, %v7104
      %v7189 = vpack.c.bf16 %v7105, %v7105
      %v7190 = vpack.c.bf16 %v7106, %v7106
      %v7191 = vpack.c.bf16 %v7107, %v7107
      %v7192 = vpack.c.bf16 %v7108, %v7108
      %v7193 = vpack.c.bf16 %v7109, %v7109
      %v7194 = vpack.c.bf16 %v7110, %v7110
      %v7195 = vpack.c.bf16 %v7111, %v7111
      %v7196 = vpack.c.bf16 %v7112, %v7112
      %v7197 = vpack.c.bf16 %v7113, %v7113
      %v7198 = vpack.c.bf16 %v7114, %v7114
      %v7199 = vpack.c.bf16 %v7115, %v7115
      %v7200 = vpack.c.bf16 %v7116, %v7116
      %v7201 = vpack.c.bf16 %v7117, %v7117
      %v7202 = vpack.c.bf16 %v7118, %v7118
      %v7203 = vpack.c.bf16 %v7119, %v7119
      %v7204 = vpack.c.bf16 %v7120, %v7120
      %v7269 = vunpack.c.l.b16 %v7141
      %v7270 = vunpack.c.l.b16 %v7142
      %v7271 = vunpack.c.l.b16 %v7143
      %v7272 = vunpack.c.l.b16 %v7144
      %v7273 = vunpack.c.l.b16 %v7145
      %v7274 = vunpack.c.l.b16 %v7146
      %v7275 = vunpack.c.l.b16 %v7147
      %v7276 = vunpack.c.l.b16 %v7148
      %v7277 = vunpack.c.l.b16 %v7149
      %v7278 = vunpack.c.l.b16 %v7150
      %v7279 = vunpack.c.l.b16 %v7151
      %v7280 = vunpack.c.l.b16 %v7152
      %v7281 = vunpack.c.l.b16 %v7153
      %v7282 = vunpack.c.l.b16 %v7154
      %v7283 = vunpack.c.l.b16 %v7155
      %v7284 = vunpack.c.l.b16 %v7156
      %v7285 = vunpack.c.l.b16 %v7157
      %v7286 = vunpack.c.l.b16 %v7158
      %v7287 = vunpack.c.l.b16 %v7159
      %v7288 = vunpack.c.l.b16 %v7160
      %v7289 = vunpack.c.l.b16 %v7161
      %v7290 = vunpack.c.l.b16 %v7162
      %v7291 = vunpack.c.l.b16 %v7163
      %v7292 = vunpack.c.l.b16 %v7164
      %v7293 = vunpack.c.l.b16 %v7165
      %v7294 = vunpack.c.l.b16 %v7166
      %v7295 = vunpack.c.l.b16 %v7167
      %v7296 = vunpack.c.l.b16 %v7168
      %v7297 = vunpack.c.l.b16 %v7169
      %v7298 = vunpack.c.l.b16 %v7170
      %v7299 = vunpack.c.l.b16 %v7171
      %v7300 = vunpack.c.l.b16 %v7172
      %v7301 = vunpack.c.l.b16 %v7173
      %v7302 = vunpack.c.l.b16 %v7174
      %v7303 = vunpack.c.l.b16 %v7175
      %v7304 = vunpack.c.l.b16 %v7176
      %v7305 = vunpack.c.l.b16 %v7177
      %v7306 = vunpack.c.l.b16 %v7178
      %v7307 = vunpack.c.l.b16 %v7179
      %v7308 = vunpack.c.l.b16 %v7180
      %v7309 = vunpack.c.l.b16 %v7181
      %v7310 = vunpack.c.l.b16 %v7182
      %v7311 = vunpack.c.l.b16 %v7183
      %v7312 = vunpack.c.l.b16 %v7184
      %v7313 = vunpack.c.l.b16 %v7185
      %v7314 = vunpack.c.l.b16 %v7186
      %v7315 = vunpack.c.l.b16 %v7187
      %v7316 = vunpack.c.l.b16 %v7188
      %v7317 = vunpack.c.l.b16 %v7189
      %v7318 = vunpack.c.l.b16 %v7190
      %v7319 = vunpack.c.l.b16 %v7191
      %v7320 = vunpack.c.l.b16 %v7192
      %v7321 = vunpack.c.l.b16 %v7193
      %v7322 = vunpack.c.l.b16 %v7194
      %v7323 = vunpack.c.l.b16 %v7195
      %v7324 = vunpack.c.l.b16 %v7196
      %v7325 = vunpack.c.l.b16 %v7197
      %v7326 = vunpack.c.l.b16 %v7198
      %v7327 = vunpack.c.l.b16 %v7199
      %v7328 = vunpack.c.l.b16 %v7200
      %v7329 = vunpack.c.l.b16 %v7201
      %v7330 = vunpack.c.l.b16 %v7202
      %v7331 = vunpack.c.l.b16 %v7203
      %v7332 = vunpack.c.l.b16 %v7204
      %v7333 = vpack.c.b16 %v7269, %v7269
      %v7334 = vpack.c.b16 %v7270, %v7270
      %v7335 = vpack.c.b16 %v7271, %v7271
      %v7336 = vpack.c.b16 %v7272, %v7272
      %v7337 = vpack.c.b16 %v7273, %v7273
      %v7338 = vpack.c.b16 %v7274, %v7274
      %v7339 = vpack.c.b16 %v7275, %v7275
      %v7340 = vpack.c.b16 %v7276, %v7276
      %v7341 = vpack.c.b16 %v7277, %v7277
      %v7342 = vpack.c.b16 %v7278, %v7278
      %v7343 = vpack.c.b16 %v7279, %v7279
      %v7344 = vpack.c.b16 %v7280, %v7280
      %v7345 = vpack.c.b16 %v7281, %v7281
      %v7346 = vpack.c.b16 %v7282, %v7282
      %v7347 = vpack.c.b16 %v7283, %v7283
      %v7348 = vpack.c.b16 %v7284, %v7284
      %v7349 = vpack.c.b16 %v7285, %v7285
      %v7350 = vpack.c.b16 %v7286, %v7286
      %v7351 = vpack.c.b16 %v7287, %v7287
      %v7352 = vpack.c.b16 %v7288, %v7288
      %v7353 = vpack.c.b16 %v7289, %v7289
      %v7354 = vpack.c.b16 %v7290, %v7290
      %v7355 = vpack.c.b16 %v7291, %v7291
      %v7356 = vpack.c.b16 %v7292, %v7292
      %v7357 = vpack.c.b16 %v7293, %v7293
      %v7358 = vpack.c.b16 %v7294, %v7294
      %v7359 = vpack.c.b16 %v7295, %v7295
      %v7360 = vpack.c.b16 %v7296, %v7296
      %v7361 = vpack.c.b16 %v7297, %v7297
      %v7362 = vpack.c.b16 %v7298, %v7298
      %v7363 = vpack.c.b16 %v7299, %v7299
      %v7364 = vpack.c.b16 %v7300, %v7300
      %v7365 = vpack.c.b16 %v7301, %v7301
      %v7366 = vpack.c.b16 %v7302, %v7302
      %v7367 = vpack.c.b16 %v7303, %v7303
      %v7368 = vpack.c.b16 %v7304, %v7304
      %v7369 = vpack.c.b16 %v7305, %v7305
      %v7370 = vpack.c.b16 %v7306, %v7306
      %v7371 = vpack.c.b16 %v7307, %v7307
      %v7372 = vpack.c.b16 %v7308, %v7308
      %v7373 = vpack.c.b16 %v7309, %v7309
      %v7374 = vpack.c.b16 %v7310, %v7310
      %v7375 = vpack.c.b16 %v7311, %v7311
      %v7376 = vpack.c.b16 %v7312, %v7312
      %v7377 = vpack.c.b16 %v7313, %v7313
      %v7378 = vpack.c.b16 %v7314, %v7314
      %v7379 = vpack.c.b16 %v7315, %v7315
      %v7380 = vpack.c.b16 %v7316, %v7316
      %v7381 = vpack.c.b16 %v7317, %v7317
      %v7382 = vpack.c.b16 %v7318, %v7318
      %v7383 = vpack.c.b16 %v7319, %v7319
      %v7384 = vpack.c.b16 %v7320, %v7320
      %v7385 = vpack.c.b16 %v7321, %v7321
      %v7386 = vpack.c.b16 %v7322, %v7322
      %v7387 = vpack.c.b16 %v7323, %v7323
      %v7388 = vpack.c.b16 %v7324, %v7324
      %v7389 = vpack.c.b16 %v7325, %v7325
      %v7390 = vpack.c.b16 %v7326, %v7326
      %v7391 = vpack.c.b16 %v7327, %v7327
      %v7392 = vpack.c.b16 %v7328, %v7328
      %v7393 = vpack.c.b16 %v7329, %v7329
      %v7394 = vpack.c.b16 %v7330, %v7330
      %v7395 = vpack.c.b16 %v7331, %v7331
      %v7396 = vpack.c.b16 %v7332, %v7332
      %v7397 = vunpack.c.l.b16 %v7333
      %v7398 = vunpack.c.l.b16 %v7334
      %v7399 = vunpack.c.l.b16 %v7335
      %v7400 = vunpack.c.l.b16 %v7336
      %v7401 = vunpack.c.l.b16 %v7337
      %v7402 = vunpack.c.l.b16 %v7338
      %v7403 = vunpack.c.l.b16 %v7339
      %v7404 = vunpack.c.l.b16 %v7340
      %v7405 = vunpack.c.l.b16 %v7341
      %v7406 = vunpack.c.l.b16 %v7342
      %v7407 = vunpack.c.l.b16 %v7343
      %v7408 = vunpack.c.l.b16 %v7344
      %v7409 = vunpack.c.l.b16 %v7345
      %v7410 = vunpack.c.l.b16 %v7346
      %v7411 = vunpack.c.l.b16 %v7347
      %v7412 = vunpack.c.l.b16 %v7348
      %v7413 = vunpack.c.l.b16 %v7349
      %v7414 = vunpack.c.l.b16 %v7350
      %v7415 = vunpack.c.l.b16 %v7351
      %v7416 = vunpack.c.l.b16 %v7352
      %v7417 = vunpack.c.l.b16 %v7353
      %v7418 = vunpack.c.l.b16 %v7354
      %v7419 = vunpack.c.l.b16 %v7355
      %v7420 = vunpack.c.l.b16 %v7356
      %v7421 = vunpack.c.l.b16 %v7357
      %v7422 = vunpack.c.l.b16 %v7358
      %v7423 = vunpack.c.l.b16 %v7359
      %v7424 = vunpack.c.l.b16 %v7360
      %v7425 = vunpack.c.l.b16 %v7361
      %v7426 = vunpack.c.l.b16 %v7362
      %v7427 = vunpack.c.l.b16 %v7363
      %v7428 = vunpack.c.l.b16 %v7364
      %v7429 = vunpack.c.l.b16 %v7365
      %v7430 = vunpack.c.l.b16 %v7366
      %v7431 = vunpack.c.l.b16 %v7367
      %v7432 = vunpack.c.l.b16 %v7368
      %v7433 = vunpack.c.l.b16 %v7369
      %v7434 = vunpack.c.l.b16 %v7370
      %v7435 = vunpack.c.l.b16 %v7371
      %v7436 = vunpack.c.l.b16 %v7372
      %v7437 = vunpack.c.l.b16 %v7373
      %v7438 = vunpack.c.l.b16 %v7374
      %v7439 = vunpack.c.l.b16 %v7375
      %v7440 = vunpack.c.l.b16 %v7376
      %v7441 = vunpack.c.l.b16 %v7377
      %v7442 = vunpack.c.l.b16 %v7378
      %v7443 = vunpack.c.l.b16 %v7379
      %v7444 = vunpack.c.l.b16 %v7380
      %v7445 = vunpack.c.l.b16 %v7381
      %v7446 = vunpack.c.l.b16 %v7382
      %v7447 = vunpack.c.l.b16 %v7383
      %v7448 = vunpack.c.l.b16 %v7384
      %v7449 = vunpack.c.l.b16 %v7385
      %v7450 = vunpack.c.l.b16 %v7386
      %v7451 = vunpack.c.l.b16 %v7387
      %v7452 = vunpack.c.l.b16 %v7388
      %v7453 = vunpack.c.l.b16 %v7389
      %v7454 = vunpack.c.l.b16 %v7390
      %v7455 = vunpack.c.l.b16 %v7391
      %v7456 = vunpack.c.l.b16 %v7392
      %v7457 = vunpack.c.l.b16 %v7393
      %v7458 = vunpack.c.l.b16 %v7394
      %v7459 = vunpack.c.l.b16 %v7395
      %v7460 = vunpack.c.l.b16 %v7396
      %v7461 = vrot.slane %v7397, 7
      %v7462 = vrot.slane %v7398, 6
      %vm7463 = vcmask 1042434
      %v7464 = vsel %vm7463, %v7462, %v7461
      %v7465 = vrot.slane %v7399, 5
      %vm7466 = vcmask 1043459
      %v7467 = vsel %vm7466, %v7465, %v7464
      %v7468 = vrot.slane %v7400, 4
      %vm7469 = vcmask 1044484
      %v7470 = vsel %vm7469, %v7468, %v7467
      %v7471 = vrot.slane %v7401, 3
      %vm7472 = vcmask 1045509
      %v7473 = vsel %vm7472, %v7471, %v7470
      %v7474 = vrot.slane %v7402, 2
      %vm7475 = vcmask 1046534
      %v7476 = vsel %vm7475, %v7474, %v7473
      %v7477 = vrot.slane %v7403, 1
      %vm7478 = vcmask 1047559
      %v7479 = vsel %vm7478, %v7477, %v7476
      %v7480 = vrot.slane %v7405, 7
      %v7481 = vrot.slane %v7406, 6
      %v7482 = vsel %vm7463, %v7481, %v7480
      %v7483 = vrot.slane %v7407, 5
      %v7484 = vsel %vm7466, %v7483, %v7482
      %v7485 = vrot.slane %v7408, 4
      %v7486 = vsel %vm7469, %v7485, %v7484
      %v7487 = vrot.slane %v7409, 3
      %v7488 = vsel %vm7472, %v7487, %v7486
      %v7489 = vrot.slane %v7410, 2
      %v7490 = vsel %vm7475, %v7489, %v7488
      %v7491 = vrot.slane %v7411, 1
      %v7492 = vsel %vm7478, %v7491, %v7490
      %v7493 = vrot.slane %v7413, 7
      %v7494 = vrot.slane %v7414, 6
      %v7495 = vsel %vm7463, %v7494, %v7493
      %v7496 = vrot.slane %v7415, 5
      %v7497 = vsel %vm7466, %v7496, %v7495
      %v7498 = vrot.slane %v7416, 4
      %v7499 = vsel %vm7469, %v7498, %v7497
      %v7500 = vrot.slane %v7417, 3
      %v7501 = vsel %vm7472, %v7500, %v7499
      %v7502 = vrot.slane %v7418, 2
      %v7503 = vsel %vm7475, %v7502, %v7501
      %v7504 = vrot.slane %v7419, 1
      %v7505 = vsel %vm7478, %v7504, %v7503
      %v7506 = vrot.slane %v7421, 7
      %v7507 = vrot.slane %v7422, 6
      %v7508 = vsel %vm7463, %v7507, %v7506
      %v7509 = vrot.slane %v7423, 5
      %v7510 = vsel %vm7466, %v7509, %v7508
      %v7511 = vrot.slane %v7424, 4
      %v7512 = vsel %vm7469, %v7511, %v7510
      %v7513 = vrot.slane %v7425, 3
      %v7514 = vsel %vm7472, %v7513, %v7512
      %v7515 = vrot.slane %v7426, 2
      %v7516 = vsel %vm7475, %v7515, %v7514
      %v7517 = vrot.slane %v7427, 1
      %v7518 = vsel %vm7478, %v7517, %v7516
      %v7519 = vrot.slane %v7429, 7
      %v7520 = vrot.slane %v7430, 6
      %v7521 = vsel %vm7463, %v7520, %v7519
      %v7522 = vrot.slane %v7431, 5
      %v7523 = vsel %vm7466, %v7522, %v7521
      %v7524 = vrot.slane %v7432, 4
      %v7525 = vsel %vm7469, %v7524, %v7523
      %v7526 = vrot.slane %v7433, 3
      %v7527 = vsel %vm7472, %v7526, %v7525
      %v7528 = vrot.slane %v7434, 2
      %v7529 = vsel %vm7475, %v7528, %v7527
      %v7530 = vrot.slane %v7435, 1
      %v7531 = vsel %vm7478, %v7530, %v7529
      %v7532 = vrot.slane %v7437, 7
      %v7533 = vrot.slane %v7438, 6
      %v7534 = vsel %vm7463, %v7533, %v7532
      %v7535 = vrot.slane %v7439, 5
      %v7536 = vsel %vm7466, %v7535, %v7534
      %v7537 = vrot.slane %v7440, 4
      %v7538 = vsel %vm7469, %v7537, %v7536
      %v7539 = vrot.slane %v7441, 3
      %v7540 = vsel %vm7472, %v7539, %v7538
      %v7541 = vrot.slane %v7442, 2
      %v7542 = vsel %vm7475, %v7541, %v7540
      %v7543 = vrot.slane %v7443, 1
      %v7544 = vsel %vm7478, %v7543, %v7542
      %v7545 = vrot.slane %v7445, 7
      %v7546 = vrot.slane %v7446, 6
      %v7547 = vsel %vm7463, %v7546, %v7545
      %v7548 = vrot.slane %v7447, 5
      %v7549 = vsel %vm7466, %v7548, %v7547
      %v7550 = vrot.slane %v7448, 4
      %v7551 = vsel %vm7469, %v7550, %v7549
      %v7552 = vrot.slane %v7449, 3
      %v7553 = vsel %vm7472, %v7552, %v7551
      %v7554 = vrot.slane %v7450, 2
      %v7555 = vsel %vm7475, %v7554, %v7553
      %v7556 = vrot.slane %v7451, 1
      %v7557 = vsel %vm7478, %v7556, %v7555
      %v7558 = vrot.slane %v7453, 7
      %v7559 = vrot.slane %v7454, 6
      %v7560 = vsel %vm7463, %v7559, %v7558
      %v7561 = vrot.slane %v7455, 5
      %v7562 = vsel %vm7466, %v7561, %v7560
      %v7563 = vrot.slane %v7456, 4
      %v7564 = vsel %vm7469, %v7563, %v7562
      %v7565 = vrot.slane %v7457, 3
      %v7566 = vsel %vm7472, %v7565, %v7564
      %v7567 = vrot.slane %v7458, 2
      %v7568 = vsel %vm7475, %v7567, %v7566
      %v7569 = vrot.slane %v7459, 1
      %v7570 = vsel %vm7478, %v7569, %v7568
      %v7571 = vpack.c.b16 %v7479, %v7479
      %v7572 = vpack.c.b16 %v7404, %v7404
      %v7573 = vpack.c.b16 %v7492, %v7492
      %v7574 = vpack.c.b16 %v7412, %v7412
      %v7575 = vpack.c.b16 %v7505, %v7505
      %v7576 = vpack.c.b16 %v7420, %v7420
      %v7577 = vpack.c.b16 %v7518, %v7518
      %v7578 = vpack.c.b16 %v7428, %v7428
      %v7579 = vpack.c.b16 %v7531, %v7531
      %v7580 = vpack.c.b16 %v7436, %v7436
      %v7581 = vpack.c.b16 %v7544, %v7544
      %v7582 = vpack.c.b16 %v7444, %v7444
      %v7583 = vpack.c.b16 %v7557, %v7557
      %v7584 = vpack.c.b16 %v7452, %v7452
      %v7585 = vpack.c.b16 %v7570, %v7570
      %v7586 = vpack.c.b16 %v7460, %v7460
      %s7603 = scalar_lea.vmem [#allocation3], 8
      %v7604 = vld [vmem:[%s7603] sm:$0xf]
      %v7605 = vsel %vm3228, %v7571, %v7604
      %7606 = vst [vmem:[%s7603] sm:$0xf] %v7605
      %v7607 = vld [vmem:[%s7603 + $0x4] sm:$0x1]
      %v7608 = vsel %vm3234, %v7572, %v7607
      %7609 = vst [vmem:[%s7603 + $0x4] sm:$0x1] %v7608
      %v7610 = vld [vmem:[%s7603 + $0x8] sm:$0xf]
      %v7611 = vsel %vm3228, %v7573, %v7610
      %7612 = vst [vmem:[%s7603 + $0x8] sm:$0xf] %v7611
      %v7613 = vld [vmem:[%s7603 + $0xc] sm:$0x1]
      %v7614 = vsel %vm3234, %v7574, %v7613
      %7615 = vst [vmem:[%s7603 + $0xc] sm:$0x1] %v7614
      %v7616 = vld [vmem:[%s7603 + $0x10] sm:$0xf]
      %v7617 = vsel %vm3228, %v7575, %v7616
      %7618 = vst [vmem:[%s7603 + $0x10] sm:$0xf] %v7617
      %v7619 = vld [vmem:[%s7603 + $0x14] sm:$0x1]
      %v7620 = vsel %vm3234, %v7576, %v7619
      %7621 = vst [vmem:[%s7603 + $0x14] sm:$0x1] %v7620
      %v7622 = vld [vmem:[%s7603 + $0x18] sm:$0xf]
      %v7623 = vsel %vm3228, %v7577, %v7622
      %7624 = vst [vmem:[%s7603 + $0x18] sm:$0xf] %v7623
      %v7625 = vld [vmem:[%s7603 + $0x1c] sm:$0x1]
      %v7626 = vsel %vm3234, %v7578, %v7625
      %7627 = vst [vmem:[%s7603 + $0x1c] sm:$0x1] %v7626
      %v7628 = vld [vmem:[%s7603 + $0x20] sm:$0xf]
      %v7629 = vsel %vm3228, %v7579, %v7628
      %7630 = vst [vmem:[%s7603 + $0x20] sm:$0xf] %v7629
      %v7631 = vld [vmem:[%s7603 + $0x24] sm:$0x1]
      %v7632 = vsel %vm3234, %v7580, %v7631
      %7633 = vst [vmem:[%s7603 + $0x24] sm:$0x1] %v7632
      %v7634 = vld [vmem:[%s7603 + $0x28] sm:$0xf]
      %v7635 = vsel %vm3228, %v7581, %v7634
      %7636 = vst [vmem:[%s7603 + $0x28] sm:$0xf] %v7635
      %v7637 = vld [vmem:[%s7603 + $0x2c] sm:$0x1]
      %v7638 = vsel %vm3234, %v7582, %v7637
      %7639 = vst [vmem:[%s7603 + $0x2c] sm:$0x1] %v7638
      %v7640 = vld [vmem:[%s7603 + $0x30] sm:$0xf]
      %v7641 = vsel %vm3228, %v7583, %v7640
      %7642 = vst [vmem:[%s7603 + $0x30] sm:$0xf] %v7641
      %v7643 = vld [vmem:[%s7603 + $0x34] sm:$0x1]
      %v7644 = vsel %vm3234, %v7584, %v7643
      %7645 = vst [vmem:[%s7603 + $0x34] sm:$0x1] %v7644
      %v7646 = vld [vmem:[%s7603 + $0x38] sm:$0xf]
      %v7647 = vsel %vm3228, %v7585, %v7646
      %7648 = vst [vmem:[%s7603 + $0x38] sm:$0xf] %v7647
      %v7649 = vld [vmem:[%s7603 + $0x3c] sm:$0x1]
      %v7650 = vsel %vm3234, %v7586, %v7649
      %7651 = vst [vmem:[%s7603 + $0x3c] sm:$0x1] %v7650
      %v7652 = vld [vmem:[#allocation3] sm:$0xf]
      %v7653 = vld [vmem:[#allocation3 + $0x8] sm:$0xf]
      %v7654 = vld [vmem:[#allocation3 + $0x10] sm:$0xf]
      %v7655 = vld [vmem:[#allocation3 + $0x18] sm:$0xf]
      %v7656 = vld [vmem:[#allocation3 + $0x20] sm:$0xf]
      %v7657 = vld [vmem:[#allocation3 + $0x28] sm:$0xf]
      %v7658 = vld [vmem:[#allocation3 + $0x30] sm:$0xf]
      %v7659 = vld [vmem:[#allocation3 + $0x38] sm:$0xf]
      %v7660 = vld [vmem:[#allocation3 + $0x4] sm:$0x1]
      %v7661 = vld [vmem:[#allocation3 + $0xc] sm:$0x1]
      %v7662 = vld [vmem:[#allocation3 + $0x14] sm:$0x1]
      %v7663 = vld [vmem:[#allocation3 + $0x1c] sm:$0x1]
      %v7664 = vld [vmem:[#allocation3 + $0x24] sm:$0x1]
      %v7665 = vld [vmem:[#allocation3 + $0x2c] sm:$0x1]
      %v7666 = vld [vmem:[#allocation3 + $0x34] sm:$0x1]
      %v7667 = vld [vmem:[#allocation3 + $0x3c] sm:$0x1]
      %v7668 = vld [vmem:[#allocation3] sm:$0xe]
      %v7669 = vld [vmem:[#allocation3 + $0x8] sm:$0xe]
      %v7670 = vld [vmem:[#allocation3 + $0x10] sm:$0xe]
      %v7671 = vld [vmem:[#allocation3 + $0x18] sm:$0xe]
      %v7672 = vld [vmem:[#allocation3 + $0x20] sm:$0xe]
      %v7673 = vld [vmem:[#allocation3 + $0x28] sm:$0xe]
      %v7674 = vld [vmem:[#allocation3 + $0x30] sm:$0xe]
      %v7675 = vld [vmem:[#allocation3 + $0x38] sm:$0xe]
      %v7676 = vld [vmem:[%s7603] sm:$0xf]
      %v7677 = vld [vmem:[%s7603 + $0x8] sm:$0xf]
      %v7678 = vld [vmem:[%s7603 + $0x10] sm:$0xf]
      %v7679 = vld [vmem:[%s7603 + $0x18] sm:$0xf]
      %v7680 = vld [vmem:[%s7603 + $0x20] sm:$0xf]
      %v7681 = vld [vmem:[%s7603 + $0x28] sm:$0xf]
      %v7682 = vld [vmem:[%s7603 + $0x30] sm:$0xf]
      %v7683 = vld [vmem:[%s7603 + $0x38] sm:$0xf]
      %v7684 = vld [vmem:[%s7603 + $0x4] sm:$0x1]
      %v7685 = vld [vmem:[%s7603 + $0xc] sm:$0x1]
      %v7686 = vld [vmem:[%s7603 + $0x14] sm:$0x1]
      %v7687 = vld [vmem:[%s7603 + $0x1c] sm:$0x1]
      %v7688 = vld [vmem:[%s7603 + $0x24] sm:$0x1]
      %v7689 = vld [vmem:[%s7603 + $0x2c] sm:$0x1]
      %v7690 = vld [vmem:[%s7603 + $0x34] sm:$0x1]
      %v7691 = vld [vmem:[%s7603 + $0x3c] sm:$0x1]
      %v7692 = vld [vmem:[%s7603] sm:$0xe]
      %v7693 = vld [vmem:[%s7603 + $0x8] sm:$0xe]
      %v7694 = vld [vmem:[%s7603 + $0x10] sm:$0xe]
      %v7695 = vld [vmem:[%s7603 + $0x18] sm:$0xe]
      %v7696 = vld [vmem:[%s7603 + $0x20] sm:$0xe]
      %v7697 = vld [vmem:[%s7603 + $0x28] sm:$0xe]
      %v7698 = vld [vmem:[%s7603 + $0x30] sm:$0xe]
      %v7699 = vld [vmem:[%s7603 + $0x38] sm:$0xe]
      %s7700 = scalar_lea.vmem [#allocation3], 16
      %v7701 = vld [vmem:[%s7700] sm:$0xf]
      %v7702 = vld [vmem:[%s7700 + $0x8] sm:$0xf]
      %v7703 = vld [vmem:[%s7700 + $0x10] sm:$0xf]
      %v7704 = vld [vmem:[%s7700 + $0x18] sm:$0xf]
      %v7705 = vld [vmem:[%s7700 + $0x20] sm:$0xf]
      %v7706 = vld [vmem:[%s7700 + $0x28] sm:$0xf]
      %v7707 = vld [vmem:[%s7700 + $0x30] sm:$0xf]
      %v7708 = vld [vmem:[%s7700 + $0x38] sm:$0xf]
      %v7709 = vld [vmem:[%s7700 + $0x4] sm:$0x1]
      %v7710 = vld [vmem:[%s7700 + $0xc] sm:$0x1]
      %v7711 = vld [vmem:[%s7700 + $0x14] sm:$0x1]
      %v7712 = vld [vmem:[%s7700 + $0x1c] sm:$0x1]
      %v7713 = vld [vmem:[%s7700 + $0x24] sm:$0x1]
      %v7714 = vld [vmem:[%s7700 + $0x2c] sm:$0x1]
      %v7715 = vld [vmem:[%s7700 + $0x34] sm:$0x1]
      %v7716 = vld [vmem:[%s7700 + $0x3c] sm:$0x1]
      %v7717 = vld [vmem:[%s7700] sm:$0xe]
      %v7718 = vld [vmem:[%s7700 + $0x8] sm:$0xe]
      %v7719 = vld [vmem:[%s7700 + $0x10] sm:$0xe]
      %v7720 = vld [vmem:[%s7700 + $0x18] sm:$0xe]
      %v7721 = vld [vmem:[%s7700 + $0x20] sm:$0xe]
      %v7722 = vld [vmem:[%s7700 + $0x28] sm:$0xe]
      %v7723 = vld [vmem:[%s7700 + $0x30] sm:$0xe]
      %v7724 = vld [vmem:[%s7700 + $0x38] sm:$0xe]
      %v7741 = vunpack.c.l.b16 %v7652
      %v7742 = vunpack.c.l.b16 %v7660
      %v7743 = vunpack.c.l.b16 %v7653
      %v7744 = vunpack.c.l.b16 %v7661
      %v7745 = vunpack.c.l.b16 %v7654
      %v7746 = vunpack.c.l.b16 %v7662
      %v7747 = vunpack.c.l.b16 %v7655
      %v7748 = vunpack.c.l.b16 %v7663
      %v7749 = vunpack.c.l.b16 %v7656
      %v7750 = vunpack.c.l.b16 %v7664
      %v7751 = vunpack.c.l.b16 %v7657
      %v7752 = vunpack.c.l.b16 %v7665
      %v7753 = vunpack.c.l.b16 %v7658
      %v7754 = vunpack.c.l.b16 %v7666
      %v7755 = vunpack.c.l.b16 %v7659
      %v7756 = vunpack.c.l.b16 %v7667
      %v7757 = vpack.c.b16 %v7742, %v7741
      %v7758 = vpack.c.b16 %v7744, %v7743
      %v7759 = vpack.c.b16 %v7746, %v7745
      %v7760 = vpack.c.b16 %v7748, %v7747
      %v7761 = vpack.c.b16 %v7750, %v7749
      %v7762 = vpack.c.b16 %v7752, %v7751
      %v7763 = vpack.c.b16 %v7754, %v7753
      %v7764 = vpack.c.b16 %v7756, %v7755
      %v7766 = vshrl.u32 %v7757, 16
      %v7768 = vshll.u32 %v7757, 16
      %v7770 = vrot.slane %v7768, 1
      %v7771 = vor.u32 %v7766, %v7770
      %v7773 = vshrl.u32 %v7758, 16
      %v7775 = vshll.u32 %v7758, 16
      %v7777 = vrot.slane %v7775, 1
      %v7778 = vor.u32 %v7773, %v7777
      %v7780 = vshrl.u32 %v7759, 16
      %v7782 = vshll.u32 %v7759, 16
      %v7784 = vrot.slane %v7782, 1
      %v7785 = vor.u32 %v7780, %v7784
      %v7787 = vshrl.u32 %v7760, 16
      %v7789 = vshll.u32 %v7760, 16
      %v7791 = vrot.slane %v7789, 1
      %v7792 = vor.u32 %v7787, %v7791
      %v7794 = vshrl.u32 %v7761, 16
      %v7796 = vshll.u32 %v7761, 16
      %v7798 = vrot.slane %v7796, 1
      %v7799 = vor.u32 %v7794, %v7798
      %v7801 = vshrl.u32 %v7762, 16
      %v7803 = vshll.u32 %v7762, 16
      %v7805 = vrot.slane %v7803, 1
      %v7806 = vor.u32 %v7801, %v7805
      %v7808 = vshrl.u32 %v7763, 16
      %v7810 = vshll.u32 %v7763, 16
      %v7812 = vrot.slane %v7810, 1
      %v7813 = vor.u32 %v7808, %v7812
      %v7815 = vshrl.u32 %v7764, 16
      %v7817 = vshll.u32 %v7764, 16
      %v7819 = vrot.slane %v7817, 1
      %v7820 = vor.u32 %v7815, %v7819
      %7821 = vrot.lane.b32.xlu0 %v7771, 32
      %v7822 = vpop.permute.xlu0 %7821
      %7823 = vrot.lane.b32.xlu0 %v7778, 32
      %v7824 = vpop.permute.xlu0 %7823
      %7825 = vrot.lane.b32.xlu0 %v7785, 32
      %v7826 = vpop.permute.xlu0 %7825
      %7827 = vrot.lane.b32.xlu0 %v7792, 32
      %v7828 = vpop.permute.xlu0 %7827
      %7829 = vrot.lane.b32.xlu0 %v7799, 32
      %v7830 = vpop.permute.xlu0 %7829
      %7831 = vrot.lane.b32.xlu0 %v7806, 32
      %v7832 = vpop.permute.xlu0 %7831
      %7833 = vrot.lane.b32.xlu0 %v7813, 32
      %v7834 = vpop.permute.xlu0 %7833
      %7835 = vrot.lane.b32.xlu0 %v7820, 32
      %v7836 = vpop.permute.xlu0 %7835
      %v7845 = vunpack.c.l.b16 %v7668
      %v7846 = vunpack.c.l.b16 %v7669
      %v7847 = vunpack.c.l.b16 %v7670
      %v7848 = vunpack.c.l.b16 %v7671
      %v7849 = vunpack.c.l.b16 %v7672
      %v7850 = vunpack.c.l.b16 %v7673
      %v7851 = vunpack.c.l.b16 %v7674
      %v7852 = vunpack.c.l.b16 %v7675
      %v7853 = vpack.c.b16 %v7742, %v7845
      %v7854 = vpack.c.b16 %v7744, %v7846
      %v7855 = vpack.c.b16 %v7746, %v7847
      %v7856 = vpack.c.b16 %v7748, %v7848
      %v7857 = vpack.c.b16 %v7750, %v7849
      %v7858 = vpack.c.b16 %v7752, %v7850
      %v7859 = vpack.c.b16 %v7754, %v7851
      %v7860 = vpack.c.b16 %v7756, %v7852
      %v7861 = vrot.slane %v7853, 1
      %v7862 = vrot.slane %v7854, 1
      %v7863 = vrot.slane %v7855, 1
      %v7864 = vrot.slane %v7856, 1
      %v7865 = vrot.slane %v7857, 1
      %v7866 = vrot.slane %v7858, 1
      %v7867 = vrot.slane %v7859, 1
      %v7868 = vrot.slane %v7860, 1
      %7869 = vrot.lane.b32.xlu0 %v7861, 64
      %v7870 = vpop.permute.xlu0 %7869
      %7871 = vrot.lane.b32.xlu0 %v7862, 64
      %v7872 = vpop.permute.xlu0 %7871
      %7873 = vrot.lane.b32.xlu0 %v7863, 64
      %v7874 = vpop.permute.xlu0 %7873
      %7875 = vrot.lane.b32.xlu0 %v7864, 64
      %v7876 = vpop.permute.xlu0 %7875
      %7877 = vrot.lane.b32.xlu0 %v7865, 64
      %v7878 = vpop.permute.xlu0 %7877
      %7879 = vrot.lane.b32.xlu0 %v7866, 64
      %v7880 = vpop.permute.xlu0 %7879
      %7881 = vrot.lane.b32.xlu0 %v7867, 64
      %v7882 = vpop.permute.xlu0 %7881
      %7883 = vrot.lane.b32.xlu0 %v7868, 64
      %v7884 = vpop.permute.xlu0 %7883
      %v7893 = vunpack.c.l.b16 %v7676
      %v7894 = vunpack.c.l.b16 %v7677
      %v7895 = vunpack.c.l.b16 %v7678
      %v7896 = vunpack.c.l.b16 %v7679
      %v7897 = vunpack.c.l.b16 %v7680
      %v7898 = vunpack.c.l.b16 %v7681
      %v7899 = vunpack.c.l.b16 %v7682
      %v7900 = vunpack.c.l.b16 %v7683
      %v7901 = vpack.c.b16 %v7893, %v7893
      %v7902 = vpack.c.b16 %v7894, %v7894
      %v7903 = vpack.c.b16 %v7895, %v7895
      %v7904 = vpack.c.b16 %v7896, %v7896
      %v7905 = vpack.c.b16 %v7897, %v7897
      %v7906 = vpack.c.b16 %v7898, %v7898
      %v7907 = vpack.c.b16 %v7899, %v7899
      %v7908 = vpack.c.b16 %v7900, %v7900
      %7909 = vrot.lane.b32.xlu0 %v7901, 96
      %v7910 = vpop.permute.xlu0 %7909
      %7911 = vrot.lane.b32.xlu0 %v7902, 96
      %v7912 = vpop.permute.xlu0 %7911
      %7913 = vrot.lane.b32.xlu0 %v7903, 96
      %v7914 = vpop.permute.xlu0 %7913
      %7915 = vrot.lane.b32.xlu0 %v7904, 96
      %v7916 = vpop.permute.xlu0 %7915
      %7917 = vrot.lane.b32.xlu0 %v7905, 96
      %v7918 = vpop.permute.xlu0 %7917
      %7919 = vrot.lane.b32.xlu0 %v7906, 96
      %v7920 = vpop.permute.xlu0 %7919
      %7921 = vrot.lane.b32.xlu0 %v7907, 96
      %v7922 = vpop.permute.xlu0 %7921
      %7923 = vrot.lane.b32.xlu0 %v7908, 96
      %v7924 = vpop.permute.xlu0 %7923
      %v7933 = vunpack.c.l.b16 %v7684
      %v7934 = vunpack.c.l.b16 %v7685
      %v7935 = vunpack.c.l.b16 %v7686
      %v7936 = vunpack.c.l.b16 %v7687
      %v7937 = vunpack.c.l.b16 %v7688
      %v7938 = vunpack.c.l.b16 %v7689
      %v7939 = vunpack.c.l.b16 %v7690
      %v7940 = vunpack.c.l.b16 %v7691
      %v7941 = vpack.c.b16 %v7933, %v7893
      %v7942 = vpack.c.b16 %v7934, %v7894
      %v7943 = vpack.c.b16 %v7935, %v7895
      %v7944 = vpack.c.b16 %v7936, %v7896
      %v7945 = vpack.c.b16 %v7937, %v7897
      %v7946 = vpack.c.b16 %v7938, %v7898
      %v7947 = vpack.c.b16 %v7939, %v7899
      %v7948 = vpack.c.b16 %v7940, %v7900
      %v7950 = vshrl.u32 %v7941, 16
      %v7952 = vshll.u32 %v7941, 16
      %v7954 = vrot.slane %v7952, 1
      %v7955 = vor.u32 %v7950, %v7954
      %v7957 = vshrl.u32 %v7942, 16
      %v7959 = vshll.u32 %v7942, 16
      %v7961 = vrot.slane %v7959, 1
      %v7962 = vor.u32 %v7957, %v7961
      %v7964 = vshrl.u32 %v7943, 16
      %v7966 = vshll.u32 %v7943, 16
      %v7968 = vrot.slane %v7966, 1
      %v7969 = vor.u32 %v7964, %v7968
      %v7971 = vshrl.u32 %v7944, 16
      %v7973 = vshll.u32 %v7944, 16
      %v7975 = vrot.slane %v7973, 1
      %v7976 = vor.u32 %v7971, %v7975
      %v7978 = vshrl.u32 %v7945, 16
      %v7980 = vshll.u32 %v7945, 16
      %v7982 = vrot.slane %v7980, 1
      %v7983 = vor.u32 %v7978, %v7982
      %v7985 = vshrl.u32 %v7946, 16
      %v7987 = vshll.u32 %v7946, 16
      %v7989 = vrot.slane %v7987, 1
      %v7990 = vor.u32 %v7985, %v7989
      %v7992 = vshrl.u32 %v7947, 16
      %v7994 = vshll.u32 %v7947, 16
      %v7996 = vrot.slane %v7994, 1
      %v7997 = vor.u32 %v7992, %v7996
      %v7999 = vshrl.u32 %v7948, 16
      %v8001 = vshll.u32 %v7948, 16
      %v8003 = vrot.slane %v8001, 1
      %v8004 = vor.u32 %v7999, %v8003
      %v8013 = vunpack.c.l.b16 %v7692
      %v8014 = vunpack.c.l.b16 %v7693
      %v8015 = vunpack.c.l.b16 %v7694
      %v8016 = vunpack.c.l.b16 %v7695
      %v8017 = vunpack.c.l.b16 %v7696
      %v8018 = vunpack.c.l.b16 %v7697
      %v8019 = vunpack.c.l.b16 %v7698
      %v8020 = vunpack.c.l.b16 %v7699
      %v8021 = vpack.c.b16 %v7933, %v8013
      %v8022 = vpack.c.b16 %v7934, %v8014
      %v8023 = vpack.c.b16 %v7935, %v8015
      %v8024 = vpack.c.b16 %v7936, %v8016
      %v8025 = vpack.c.b16 %v7937, %v8017
      %v8026 = vpack.c.b16 %v7938, %v8018
      %v8027 = vpack.c.b16 %v7939, %v8019
      %v8028 = vpack.c.b16 %v7940, %v8020
      %v8029 = vrot.slane %v8021, 1
      %v8030 = vrot.slane %v8022, 1
      %v8031 = vrot.slane %v8023, 1
      %v8032 = vrot.slane %v8024, 1
      %v8033 = vrot.slane %v8025, 1
      %v8034 = vrot.slane %v8026, 1
      %v8035 = vrot.slane %v8027, 1
      %v8036 = vrot.slane %v8028, 1
      %8037 = vrot.lane.b32.xlu0 %v8029, 32
      %v8038 = vpop.permute.xlu0 %8037
      %8039 = vrot.lane.b32.xlu0 %v8030, 32
      %v8040 = vpop.permute.xlu0 %8039
      %8041 = vrot.lane.b32.xlu0 %v8031, 32
      %v8042 = vpop.permute.xlu0 %8041
      %8043 = vrot.lane.b32.xlu0 %v8032, 32
      %v8044 = vpop.permute.xlu0 %8043
      %8045 = vrot.lane.b32.xlu0 %v8033, 32
      %v8046 = vpop.permute.xlu0 %8045
      %8047 = vrot.lane.b32.xlu0 %v8034, 32
      %v8048 = vpop.permute.xlu0 %8047
      %8049 = vrot.lane.b32.xlu0 %v8035, 32
      %v8050 = vpop.permute.xlu0 %8049
      %8051 = vrot.lane.b32.xlu0 %v8036, 32
      %v8052 = vpop.permute.xlu0 %8051
      %v8061 = vunpack.c.l.b16 %v7701
      %v8062 = vunpack.c.l.b16 %v7702
      %v8063 = vunpack.c.l.b16 %v7703
      %v8064 = vunpack.c.l.b16 %v7704
      %v8065 = vunpack.c.l.b16 %v7705
      %v8066 = vunpack.c.l.b16 %v7706
      %v8067 = vunpack.c.l.b16 %v7707
      %v8068 = vunpack.c.l.b16 %v7708
      %v8069 = vpack.c.b16 %v8061, %v8061
      %v8070 = vpack.c.b16 %v8062, %v8062
      %v8071 = vpack.c.b16 %v8063, %v8063
      %v8072 = vpack.c.b16 %v8064, %v8064
      %v8073 = vpack.c.b16 %v8065, %v8065
      %v8074 = vpack.c.b16 %v8066, %v8066
      %v8075 = vpack.c.b16 %v8067, %v8067
      %v8076 = vpack.c.b16 %v8068, %v8068
      %8077 = vrot.lane.b32.xlu0 %v8069, 64
      %v8078 = vpop.permute.xlu0 %8077
      %8079 = vrot.lane.b32.xlu0 %v8070, 64
      %v8080 = vpop.permute.xlu0 %8079
      %8081 = vrot.lane.b32.xlu0 %v8071, 64
      %v8082 = vpop.permute.xlu0 %8081
      %8083 = vrot.lane.b32.xlu0 %v8072, 64
      %v8084 = vpop.permute.xlu0 %8083
      %8085 = vrot.lane.b32.xlu0 %v8073, 64
      %v8086 = vpop.permute.xlu0 %8085
      %8087 = vrot.lane.b32.xlu0 %v8074, 64
      %v8088 = vpop.permute.xlu0 %8087
      %8089 = vrot.lane.b32.xlu0 %v8075, 64
      %v8090 = vpop.permute.xlu0 %8089
      %8091 = vrot.lane.b32.xlu0 %v8076, 64
      %v8092 = vpop.permute.xlu0 %8091
      %v8101 = vunpack.c.l.b16 %v7709
      %v8102 = vunpack.c.l.b16 %v7710
      %v8103 = vunpack.c.l.b16 %v7711
      %v8104 = vunpack.c.l.b16 %v7712
      %v8105 = vunpack.c.l.b16 %v7713
      %v8106 = vunpack.c.l.b16 %v7714
      %v8107 = vunpack.c.l.b16 %v7715
      %v8108 = vunpack.c.l.b16 %v7716
      %v8109 = vpack.c.b16 %v8101, %v8061
      %v8110 = vpack.c.b16 %v8102, %v8062
      %v8111 = vpack.c.b16 %v8103, %v8063
      %v8112 = vpack.c.b16 %v8104, %v8064
      %v8113 = vpack.c.b16 %v8105, %v8065
      %v8114 = vpack.c.b16 %v8106, %v8066
      %v8115 = vpack.c.b16 %v8107, %v8067
      %v8116 = vpack.c.b16 %v8108, %v8068
      %v8118 = vshrl.u32 %v8109, 16
      %v8120 = vshll.u32 %v8109, 16
      %v8122 = vrot.slane %v8120, 1
      %v8123 = vor.u32 %v8118, %v8122
      %v8125 = vshrl.u32 %v8110, 16
      %v8127 = vshll.u32 %v8110, 16
      %v8129 = vrot.slane %v8127, 1
      %v8130 = vor.u32 %v8125, %v8129
      %v8132 = vshrl.u32 %v8111, 16
      %v8134 = vshll.u32 %v8111, 16
      %v8136 = vrot.slane %v8134, 1
      %v8137 = vor.u32 %v8132, %v8136
      %v8139 = vshrl.u32 %v8112, 16
      %v8141 = vshll.u32 %v8112, 16
      %v8143 = vrot.slane %v8141, 1
      %v8144 = vor.u32 %v8139, %v8143
      %v8146 = vshrl.u32 %v8113, 16
      %v8148 = vshll.u32 %v8113, 16
      %v8150 = vrot.slane %v8148, 1
      %v8151 = vor.u32 %v8146, %v8150
      %v8153 = vshrl.u32 %v8114, 16
      %v8155 = vshll.u32 %v8114, 16
      %v8157 = vrot.slane %v8155, 1
      %v8158 = vor.u32 %v8153, %v8157
      %v8160 = vshrl.u32 %v8115, 16
      %v8162 = vshll.u32 %v8115, 16
      %v8164 = vrot.slane %v8162, 1
      %v8165 = vor.u32 %v8160, %v8164
      %v8167 = vshrl.u32 %v8116, 16
      %v8169 = vshll.u32 %v8116, 16
      %v8171 = vrot.slane %v8169, 1
      %v8172 = vor.u32 %v8167, %v8171
      %8173 = vrot.lane.b32.xlu0 %v8123, 96
      %v8174 = vpop.permute.xlu0 %8173
      %8175 = vrot.lane.b32.xlu0 %v8130, 96
      %v8176 = vpop.permute.xlu0 %8175
      %8177 = vrot.lane.b32.xlu0 %v8137, 96
      %v8178 = vpop.permute.xlu0 %8177
      %8179 = vrot.lane.b32.xlu0 %v8144, 96
      %v8180 = vpop.permute.xlu0 %8179
      %8181 = vrot.lane.b32.xlu0 %v8151, 96
      %v8182 = vpop.permute.xlu0 %8181
      %8183 = vrot.lane.b32.xlu0 %v8158, 96
      %v8184 = vpop.permute.xlu0 %8183
      %8185 = vrot.lane.b32.xlu0 %v8165, 96
      %v8186 = vpop.permute.xlu0 %8185
      %8187 = vrot.lane.b32.xlu0 %v8172, 96
      %v8188 = vpop.permute.xlu0 %8187
      %v8197 = vunpack.c.l.b16 %v7717
      %v8198 = vunpack.c.l.b16 %v7718
      %v8199 = vunpack.c.l.b16 %v7719
      %v8200 = vunpack.c.l.b16 %v7720
      %v8201 = vunpack.c.l.b16 %v7721
      %v8202 = vunpack.c.l.b16 %v7722
      %v8203 = vunpack.c.l.b16 %v7723
      %v8204 = vunpack.c.l.b16 %v7724
      %v8205 = vpack.c.b16 %v8101, %v8197
      %v8206 = vpack.c.b16 %v8102, %v8198
      %v8207 = vpack.c.b16 %v8103, %v8199
      %v8208 = vpack.c.b16 %v8104, %v8200
      %v8209 = vpack.c.b16 %v8105, %v8201
      %v8210 = vpack.c.b16 %v8106, %v8202
      %v8211 = vpack.c.b16 %v8107, %v8203
      %v8212 = vpack.c.b16 %v8108, %v8204
      %v8213 = vrot.slane %v8205, 1
      %v8214 = vrot.slane %v8206, 1
      %v8215 = vrot.slane %v8207, 1
      %v8216 = vrot.slane %v8208, 1
      %v8217 = vrot.slane %v8209, 1
      %v8218 = vrot.slane %v8210, 1
      %v8219 = vrot.slane %v8211, 1
      %v8220 = vrot.slane %v8212, 1
      %v8223 = vsel %vm2241, %v7652, %v7822
      %v8226 = vsel %vm2241, %v7653, %v7824
      %v8229 = vsel %vm2241, %v7654, %v7826
      %v8232 = vsel %vm2241, %v7655, %v7828
      %v8235 = vsel %vm2241, %v7656, %v7830
      %v8238 = vsel %vm2241, %v7657, %v7832
      %v8241 = vsel %vm2241, %v7658, %v7834
      %v8244 = vsel %vm2241, %v7659, %v7836
      %v8246 = vsel %vm2373, %v8223, %v7870
      %v8248 = vsel %vm2373, %v8226, %v7872
      %v8250 = vsel %vm2373, %v8229, %v7874
      %v8252 = vsel %vm2373, %v8232, %v7876
      %v8254 = vsel %vm2373, %v8235, %v7878
      %v8256 = vsel %vm2373, %v8238, %v7880
      %v8258 = vsel %vm2373, %v8241, %v7882
      %v8260 = vsel %vm2373, %v8244, %v7884
      %v8262 = vsel %vm5040, %v8246, %v7910
      %v8264 = vsel %vm5040, %v8248, %v7912
      %v8266 = vsel %vm5040, %v8250, %v7914
      %v8268 = vsel %vm5040, %v8252, %v7916
      %v8270 = vsel %vm5040, %v8254, %v7918
      %v8272 = vsel %vm5040, %v8256, %v7920
      %v8274 = vsel %vm5040, %v8258, %v7922
      %v8276 = vsel %vm5040, %v8260, %v7924
      %v8279 = vsel %vm2241, %v7955, %v8038
      %v8282 = vsel %vm2241, %v7962, %v8040
      %v8285 = vsel %vm2241, %v7969, %v8042
      %v8288 = vsel %vm2241, %v7976, %v8044
      %v8291 = vsel %vm2241, %v7983, %v8046
      %v8294 = vsel %vm2241, %v7990, %v8048
      %v8297 = vsel %vm2241, %v7997, %v8050
      %v8300 = vsel %vm2241, %v8004, %v8052
      %v8302 = vsel %vm2373, %v8279, %v8078
      %v8304 = vsel %vm2373, %v8282, %v8080
      %v8306 = vsel %vm2373, %v8285, %v8082
      %v8308 = vsel %vm2373, %v8288, %v8084
      %v8310 = vsel %vm2373, %v8291, %v8086
      %v8312 = vsel %vm2373, %v8294, %v8088
      %v8314 = vsel %vm2373, %v8297, %v8090
      %v8316 = vsel %vm2373, %v8300, %v8092
      %v8318 = vsel %vm5040, %v8302, %v8174
      %v8320 = vsel %vm5040, %v8304, %v8176
      %v8322 = vsel %vm5040, %v8306, %v8178
      %v8324 = vsel %vm5040, %v8308, %v8180
      %v8326 = vsel %vm5040, %v8310, %v8182
      %v8328 = vsel %vm5040, %v8312, %v8184
      %v8330 = vsel %vm5040, %v8314, %v8186
      %v8332 = vsel %vm5040, %v8316, %v8188
      %v8349 = vunpack.c.l.b16 %v8262
      %v8350 = vunpack.c.l.b16 %v8318
      %v8351 = vunpack.c.l.b16 %v8213
      %v8352 = vunpack.c.l.b16 %v8264
      %v8353 = vunpack.c.l.b16 %v8320
      %v8354 = vunpack.c.l.b16 %v8214
      %v8355 = vunpack.c.l.b16 %v8266
      %v8356 = vunpack.c.l.b16 %v8322
      %v8357 = vunpack.c.l.b16 %v8215
      %v8358 = vunpack.c.l.b16 %v8268
      %v8359 = vunpack.c.l.b16 %v8324
      %v8360 = vunpack.c.l.b16 %v8216
      %v8361 = vunpack.c.l.b16 %v8270
      %v8362 = vunpack.c.l.b16 %v8326
      %v8363 = vunpack.c.l.b16 %v8217
      %v8364 = vunpack.c.l.b16 %v8272
      %v8365 = vunpack.c.l.b16 %v8328
      %v8366 = vunpack.c.l.b16 %v8218
      %v8367 = vunpack.c.l.b16 %v8274
      %v8368 = vunpack.c.l.b16 %v8330
      %v8369 = vunpack.c.l.b16 %v8219
      %v8370 = vunpack.c.l.b16 %v8276
      %v8371 = vunpack.c.l.b16 %v8332
      %v8372 = vunpack.c.l.b16 %v8220
      %v8373 = vld [vmem:[%s7] sm:$0xf]
      %v8374 = vld [vmem:[%s7 + $0x4] sm:$0xf]
      %v8375 = vld [vmem:[%s7 + $0x8] sm:$0xf]
      %v8376 = vld [vmem:[%s7 + $0xc] sm:$0xf]
      %v8377 = vld [vmem:[%s7 + $0x10] sm:$0xf]
      %v8378 = vld [vmem:[%s7 + $0x14] sm:$0xf]
      %v8379 = vld [vmem:[%s7 + $0x18] sm:$0xf]
      %v8380 = vld [vmem:[%s7 + $0x1c] sm:$0xf]
      %v8381 = vld [vmem:[%s7 + $0x20] sm:$0xf]
      %v8382 = vld [vmem:[%s7 + $0x24] sm:$0xf]
      %v8383 = vld [vmem:[%s7 + $0x28] sm:$0xf]
      %v8384 = vld [vmem:[%s7 + $0x2c] sm:$0xf]
      %v8385 = vld [vmem:[%s7 + $0x30] sm:$0xf]
      %v8386 = vld [vmem:[%s7 + $0x34] sm:$0xf]
      %v8387 = vld [vmem:[%s7 + $0x38] sm:$0xf]
      %v8388 = vld [vmem:[%s7 + $0x3c] sm:$0xf]
      %v8389 = vld [vmem:[%s7 + $0x40] sm:$0xf]
      %v8390 = vld [vmem:[%s7 + $0x44] sm:$0xf]
      %v8391 = vld [vmem:[%s7 + $0x48] sm:$0xf]
      %v8392 = vld [vmem:[%s7 + $0x4c] sm:$0xf]
      %v8393 = vld [vmem:[%s7 + $0x50] sm:$0xf]
      %v8394 = vld [vmem:[%s7 + $0x54] sm:$0xf]
      %v8395 = vld [vmem:[%s7 + $0x58] sm:$0xf]
      %v8396 = vld [vmem:[%s7 + $0x5c] sm:$0xf]
      %v8397 = vld [vmem:[%s7 + $0x60] sm:$0xf]
      %v8398 = vld [vmem:[%s7 + $0x64] sm:$0xf]
      %v8399 = vld [vmem:[%s7 + $0x68] sm:$0xf]
      %v8400 = vld [vmem:[%s7 + $0x6c] sm:$0xf]
      %v8401 = vld [vmem:[%s7 + $0x70] sm:$0xf]
      %v8402 = vld [vmem:[%s7 + $0x74] sm:$0xf]
      %v8403 = vld [vmem:[%s7 + $0x78] sm:$0xf]
      %v8404 = vld [vmem:[%s7 + $0x7c] sm:$0xf]
      %v8405 = vld [vmem:[%s7 + $0x80] sm:$0xf]
      %v8406 = vld [vmem:[%s7 + $0x84] sm:$0xf]
      %v8407 = vld [vmem:[%s7 + $0x88] sm:$0xf]
      %v8408 = vld [vmem:[%s7 + $0x8c] sm:$0xf]
      %v8409 = vpack.c.b16 %v8352, %v8349
      %v8410 = vpack.c.b16 %v8353, %v8350
      %v8411 = vpack.c.b16 %v8354, %v8351
      %v8412 = vpack.c.b16 %v8358, %v8355
      %v8413 = vpack.c.b16 %v8359, %v8356
      %v8414 = vpack.c.b16 %v8360, %v8357
      %v8415 = vpack.c.b16 %v8364, %v8361
      %v8416 = vpack.c.b16 %v8365, %v8362
      %v8417 = vpack.c.b16 %v8366, %v8363
      %v8418 = vpack.c.b16 %v8370, %v8367
      %v8419 = vpack.c.b16 %v8371, %v8368
      %v8420 = vpack.c.b16 %v8372, %v8369
      %v8465 = vunpack.c.l.b16 %v8373
      %v8466 = vunpack.c.l.b16 %v8374
      %v8467 = vunpack.c.l.b16 %v8375
      %v8468 = vunpack.c.l.b16 %v8376
      %v8469 = vunpack.c.l.b16 %v8377
      %v8470 = vunpack.c.l.b16 %v8378
      %v8471 = vunpack.c.l.b16 %v8379
      %v8472 = vunpack.c.l.b16 %v8380
      %v8473 = vunpack.c.l.b16 %v8381
      %v8474 = vunpack.c.l.b16 %v8382
      %v8475 = vunpack.c.l.b16 %v8383
      %v8476 = vunpack.c.l.b16 %v8384
      %v8477 = vunpack.c.l.b16 %v8385
      %v8478 = vunpack.c.l.b16 %v8386
      %v8479 = vunpack.c.l.b16 %v8387
      %v8480 = vunpack.c.l.b16 %v8388
      %v8481 = vunpack.c.l.b16 %v8389
      %v8482 = vunpack.c.l.b16 %v8390
      %v8483 = vunpack.c.l.b16 %v8391
      %v8484 = vunpack.c.l.b16 %v8392
      %v8485 = vunpack.c.l.b16 %v8393
      %v8486 = vunpack.c.l.b16 %v8394
      %v8487 = vunpack.c.l.b16 %v8395
      %v8488 = vunpack.c.l.b16 %v8396
      %v8489 = vunpack.c.l.b16 %v8397
      %v8490 = vunpack.c.l.b16 %v8398
      %v8491 = vunpack.c.l.b16 %v8399
      %v8492 = vunpack.c.l.b16 %v8400
      %v8493 = vunpack.c.l.b16 %v8401
      %v8494 = vunpack.c.l.b16 %v8402
      %v8495 = vunpack.c.l.b16 %v8403
      %v8496 = vunpack.c.l.b16 %v8404
      %v8497 = vunpack.c.l.b16 %v8405
      %v8498 = vunpack.c.l.b16 %v8406
      %v8499 = vunpack.c.l.b16 %v8407
      %v8500 = vunpack.c.l.b16 %v8408
      %v8501 = vpack.c.b16 %v8466, %v8465
      %v8502 = vpack.c.b16 %v8468, %v8467
      %v8503 = vpack.c.b16 %v8470, %v8469
      %v8504 = vpack.c.b16 %v8472, %v8471
      %v8505 = vpack.c.b16 %v8474, %v8473
      %v8506 = vpack.c.b16 %v8476, %v8475
      %v8507 = vpack.c.b16 %v8478, %v8477
      %v8508 = vpack.c.b16 %v8480, %v8479
      %v8509 = vpack.c.b16 %v8482, %v8481
      %v8510 = vpack.c.b16 %v8484, %v8483
      %v8511 = vpack.c.b16 %v8486, %v8485
      %v8512 = vpack.c.b16 %v8488, %v8487
      %v8513 = vpack.c.b16 %v8490, %v8489
      %v8514 = vpack.c.b16 %v8492, %v8491
      %v8515 = vpack.c.b16 %v8494, %v8493
      %v8516 = vpack.c.b16 %v8496, %v8495
      %v8517 = vpack.c.b16 %v8498, %v8497
      %v8518 = vpack.c.b16 %v8500, %v8499
      %v8538 = vsel %vm2241, %v8411, 0
      %v8541 = vsel %vm2241, %v8414, 0
      %v8544 = vsel %vm2241, %v8417, 0
      %v8547 = vsel %vm2241, %v8420, 0
      %8549 = vmatprep.subr.bf16.mxu0 0
      %8550 = vmatpush1.bf16.msra.mxu0 %v8501
      %8551 = vmatprep.subr.bf16.mxu0 0
      %8552 = vmatpush1.bf16.msra.mxu0 %v8502
      %8553 = vmatprep.subr.bf16.mxu0 0
      %8554 = vmatpush1.bf16.msra.mxu0 %v8503
      %8555 = vmatprep.subr.bf16.mxu0 0
      %8556 = vmatpush1.bf16.msra.mxu0 %v8504
      %8557 = vmatprep.subr.bf16.mxu0 0
      %8558 = vmatpush1.bf16.msra.mxu0 %v8505
      %8559 = vmatprep.subr.bf16.mxu0 0
      %8560 = vmatpush1.bf16.msra.mxu0 %v8506
      %8561 = vmatprep.subr.bf16.mxu0 0
      %8562 = vmatpush1.bf16.msra.mxu0 %v8507
      %8563 = vmatprep.subr.bf16.mxu0 0
      %8564 = vmatpush1.bf16.msra.mxu0 %v8508
      %8565 = vmatprep.subr.bf16.mxu0 0
      %8566 = vmatpush1.bf16.msra.mxu0 %v8509
      %8567 = vmatprep.subr.bf16.mxu0 0
      %8568 = vmatpush1.bf16.msra.mxu0 %v8510
      %8569 = vmatprep.subr.bf16.mxu0 0
      %8570 = vmatpush1.bf16.msra.mxu0 %v8511
      %8571 = vmatprep.subr.bf16.mxu0 0
      %8572 = vmatpush1.bf16.msra.mxu0 %v8512
      %8573 = vmatprep.subr.bf16.mxu0 0
      %8574 = vmatpush1.bf16.msra.mxu0 %v8513
      %8575 = vmatprep.subr.bf16.mxu0 0
      %8576 = vmatpush1.bf16.msra.mxu0 %v8514
      %8577 = vmatprep.subr.bf16.mxu0 0
      %8578 = vmatpush1.bf16.msra.mxu0 %v8515
      %8579 = vmatprep.subr.bf16.mxu0 0
      %8580 = vmatpush1.bf16.msra.mxu0 %v8516
      %8581 = vmatprep.mubr.bf16.mxu0 %v8410
      %8582 = vmatmul.mubr.bf16.gmra.mrb[0].mxu0 %v8409
      %v8583 = vpop.f32.mrb[0].mxu0
      %v8584 = vadd.f32 0.0, %v8583
      %v8585 = vpop.f32.mrb[0].mxu0
      %v8586 = vpop.f32.mrb[0].mxu0
      %v8587 = vadd.f32 0.0, %v8586
      %v8588 = vpop.f32.mrb[0].mxu0
      %8589 = vmatprep.mubr.bf16.mxu0 %v8413
      %8590 = vmatmul.mubr.bf16.gmra.mrb[0].mxu0 %v8412
      %v8591 = vpop.f32.mrb[0].mxu0
      %v8592 = vadd.f32 0.0, %v8591
      %v8593 = vpop.f32.mrb[0].mxu0
      %v8594 = vpop.f32.mrb[0].mxu0
      %v8595 = vadd.f32 0.0, %v8594
      %v8596 = vpop.f32.mrb[0].mxu0
      %8597 = vmatprep.mubr.bf16.mxu0 %v8416
      %8598 = vmatmul.mubr.bf16.gmra.mrb[0].mxu0 %v8415
      %v8599 = vpop.f32.mrb[0].mxu0
      %v8600 = vadd.f32 0.0, %v8599
      %v8601 = vpop.f32.mrb[0].mxu0
      %v8602 = vpop.f32.mrb[0].mxu0
      %v8603 = vadd.f32 0.0, %v8602
      %v8604 = vpop.f32.mrb[0].mxu0
      %8605 = vmatprep.mubr.bf16.mxu0 %v8419
      %8606 = vmatmul.mubr.bf16.gmra.mrb[0].mxu0 %v8418
      %v8607 = vpop.f32.mrb[0].mxu0
      %v8608 = vadd.f32 0.0, %v8607
      %v8609 = vpop.f32.mrb[0].mxu0
      %v8610 = vpop.f32.mrb[0].mxu0
      %v8611 = vadd.f32 0.0, %v8610
      %v8612 = vpop.f32.mrb[0].mxu0
      %8613 = vdwg.mxu0
      %8614 = vmatprep.subr.bf16.mxu0 0
      %8615 = vmatpush1.bf16.msra.mxu0 %v8517
      %8616 = vmatprep.subr.bf16.mxu0 0
      %8617 = vmatpush1.bf16.msra.mxu0 %v8518
      %8618 = vmatprep.subr.bf16.mxu0 0
      %8619 = vmatpush1.bf16.msra.mxu0 0
      %8620 = vmatprep.subr.bf16.mxu0 0
      %8621 = vmatpush1.bf16.msra.mxu0 0
      %8622 = vmatprep.subr.bf16.mxu0 0
      %8623 = vmatpush1.bf16.msra.mxu0 0
      %8624 = vmatprep.subr.bf16.mxu0 0
      %8625 = vmatpush1.bf16.msra.mxu0 0
      %8626 = vmatprep.subr.bf16.mxu0 0
      %8627 = vmatpush1.bf16.msra.mxu0 0
      %8628 = vmatprep.subr.bf16.mxu0 0
      %8629 = vmatpush1.bf16.msra.mxu0 0
      %8630 = vmatprep.subr.bf16.mxu0 0
      %8631 = vmatpush1.bf16.msra.mxu0 0
      %8632 = vmatprep.subr.bf16.mxu0 0
      %8633 = vmatpush1.bf16.msra.mxu0 0
      %8634 = vmatprep.subr.bf16.mxu0 0
      %8635 = vmatpush1.bf16.msra.mxu0 0
      %8636 = vmatprep.subr.bf16.mxu0 0
      %8637 = vmatpush1.bf16.msra.mxu0 0
      %8638 = vmatprep.subr.bf16.mxu0 0
      %8639 = vmatpush1.bf16.msra.mxu0 0
      %8640 = vmatprep.subr.bf16.mxu0 0
      %8641 = vmatpush1.bf16.msra.mxu0 0
      %8642 = vmatprep.subr.bf16.mxu0 0
      %8643 = vmatpush1.bf16.msra.mxu0 0
      %8644 = vmatprep.subr.bf16.mxu0 0
      %8645 = vmatpush1.bf16.msra.mxu0 0
      %8646 = vmatprep.mubr.bf16.mxu0 0
      %8647 = vmatmul.mubr.bf16.gmra.mrb[0].mxu0 %v8538
      %v8648 = vpop.f32.mrb[0].mxu0
      %v8649 = vadd.f32 %v8584, %v8648
      %v8650 = vpop.f32.mrb[0].mxu0
      %v8651 = vpop.f32.mrb[0].mxu0
      %v8652 = vadd.f32 %v8587, %v8651
      %v8653 = vpop.f32.mrb[0].mxu0
      %8654 = vmatprep.mubr.bf16.mxu0 0
      %8655 = vmatmul.mubr.bf16.gmra.mrb[0].mxu0 %v8541
      %v8656 = vpop.f32.mrb[0].mxu0
      %v8657 = vadd.f32 %v8592, %v8656
      %v8658 = vpop.f32.mrb[0].mxu0
      %v8659 = vpop.f32.mrb[0].mxu0
      %v8660 = vadd.f32 %v8595, %v8659
      %v8661 = vpop.f32.mrb[0].mxu0
      %8662 = vmatprep.mubr.bf16.mxu0 0
      %8663 = vmatmul.mubr.bf16.gmra.mrb[0].mxu0 %v8544
      %v8664 = vpop.f32.mrb[0].mxu0
      %v8665 = vadd.f32 %v8600, %v8664
      %v8666 = vpop.f32.mrb[0].mxu0
      %v8667 = vpop.f32.mrb[0].mxu0
      %v8668 = vadd.f32 %v8603, %v8667
      %v8669 = vpop.f32.mrb[0].mxu0
      %8670 = vmatprep.mubr.bf16.mxu0 0
      %8671 = vmatmul.mubr.bf16.gmra.mrb[0].mxu0 %v8547
      %v8672 = vpop.f32.mrb[0].mxu0
      %v8673 = vadd.f32 %v8608, %v8672
      %v8674 = vpop.f32.mrb[0].mxu0
      %v8675 = vpop.f32.mrb[0].mxu0
      %v8676 = vadd.f32 %v8611, %v8675
      %v8677 = vpop.f32.mrb[0].mxu0
      %8678 = vdwg.mxu0
      %v8679 = vld [vmem:[%s8] sm:$0x1]
      %v8681 = vlaneseq
      %v8682 = vshrl.u32 %v8681, 7
      %v8683 = vsub.s32 0, %v8682
      %v8684 = vrot.slane %v8679, %v8683
      %v8686 = vmul.f32 %v8649, %v8684
      %v8687 = vmul.f32 %v8652, %v8684
      %v8688 = vmul.f32 %v8657, %v8684
      %v8689 = vmul.f32 %v8660, %v8684
      %v8690 = vmul.f32 %v8665, %v8684
      %v8691 = vmul.f32 %v8668, %v8684
      %v8692 = vmul.f32 %v8673, %v8684
      %v8693 = vmul.f32 %v8676, %v8684
      %v8694 = vld [vmem:[%s9] sm:$0x1]
      %v8696 = vlaneseq
      %v8697 = vshrl.u32 %v8696, 7
      %v8698 = vsub.s32 0, %v8697
      %v8699 = vrot.slane %v8694, %v8698
      %v8701 = vadd.f32 %v8686, %v8699
      %v8702 = vadd.f32 %v8687, %v8699
      %v8703 = vadd.f32 %v8688, %v8699
      %v8704 = vadd.f32 %v8689, %v8699
      %v8705 = vadd.f32 %v8690, %v8699
      %v8706 = vadd.f32 %v8691, %v8699
      %v8707 = vadd.f32 %v8692, %v8699
      %v8708 = vadd.f32 %v8693, %v8699
      %v8709 = vmax.f32 %v8701, 0.0
      %v8710 = vmax.f32 %v8702, 0.0
      %v8711 = vmax.f32 %v8703, 0.0
      %v8712 = vmax.f32 %v8704, 0.0
      %v8713 = vmax.f32 %v8705, 0.0
      %v8714 = vmax.f32 %v8706, 0.0
      %v8715 = vmax.f32 %v8707, 0.0
      %v8716 = vmax.f32 %v8708, 0.0
      %vm8717 = vcmask 519168
      %8718 = vst.msk [vmem:[#allocation4] sm:$0xf] %vm8717, 0
      %vm8719 = vcmask 516096
      %8720 = vst.msk [vmem:[#allocation4 + $0x4] sm:$0x1] %vm8719, 0
      %8721 = vst.msk [vmem:[#allocation4 + $0x8] sm:$0xf] %vm8717, 0
      %8722 = vst.msk [vmem:[#allocation4 + $0xc] sm:$0x1] %vm8719, 0
      %8723 = vst.msk [vmem:[#allocation4 + $0x10] sm:$0xf] %vm8717, 0
      %8724 = vst.msk [vmem:[#allocation4 + $0x14] sm:$0x1] %vm8719, 0
      %8725 = vst.msk [vmem:[#allocation4 + $0x18] sm:$0xf] %vm8717, 0
      %8726 = vst.msk [vmem:[#allocation4 + $0x1c] sm:$0x1] %vm8719, 0
      %8727 = vst.msk [vmem:[#allocation4 + $0x20] sm:$0xf] %vm8717, 0
      %8728 = vst.msk [vmem:[#allocation4 + $0x24] sm:$0x1] %vm8719, 0
      %8729 = vst.msk [vmem:[#allocation4 + $0x28] sm:$0xf] %vm8717, 0
      %8730 = vst.msk [vmem:[#allocation4 + $0x2c] sm:$0x1] %vm8719, 0
      %8731 = vst.msk [vmem:[#allocation4 + $0x30] sm:$0xf] %vm8717, 0
      %8732 = vst.msk [vmem:[#allocation4 + $0x34] sm:$0x1] %vm8719, 0
      %8733 = vst.msk [vmem:[#allocation4 + $0x38] sm:$0xf] %vm8717, 0
      %8734 = vst.msk [vmem:[#allocation4 + $0x3c] sm:$0x1] %vm8719, 0
      %8735 = vst.msk [vmem:[#allocation4 + $0x40] sm:$0xf] %vm8717, 0
      %8736 = vst.msk [vmem:[#allocation4 + $0x44] sm:$0x1] %vm8719, 0
      %8737 = vst.msk [vmem:[#allocation4 + $0x48] sm:$0xf] %vm8717, 0
      %8738 = vst.msk [vmem:[#allocation4 + $0x4c] sm:$0x1] %vm8719, 0
      %v8739 = vpack.c.bf16 %v8709, %v8709
      %v8740 = vpack.c.bf16 %v8710, %v8710
      %v8741 = vpack.c.bf16 %v8711, %v8711
      %v8742 = vpack.c.bf16 %v8712, %v8712
      %v8743 = vpack.c.bf16 %v8713, %v8713
      %v8744 = vpack.c.bf16 %v8714, %v8714
      %v8745 = vpack.c.bf16 %v8715, %v8715
      %v8746 = vpack.c.bf16 %v8716, %v8716
      %v8755 = vunpack.c.l.b16 %v8739
      %v8756 = vunpack.c.l.b16 %v8740
      %v8757 = vunpack.c.l.b16 %v8741
      %v8758 = vunpack.c.l.b16 %v8742
      %v8759 = vunpack.c.l.b16 %v8743
      %v8760 = vunpack.c.l.b16 %v8744
      %v8761 = vunpack.c.l.b16 %v8745
      %v8762 = vunpack.c.l.b16 %v8746
      %v8763 = vpack.c.b16 %v8755, %v8755
      %v8764 = vpack.c.b16 %v8756, %v8756
      %v8765 = vpack.c.b16 %v8757, %v8757
      %v8766 = vpack.c.b16 %v8758, %v8758
      %v8767 = vpack.c.b16 %v8759, %v8759
      %v8768 = vpack.c.b16 %v8760, %v8760
      %v8769 = vpack.c.b16 %v8761, %v8761
      %v8770 = vpack.c.b16 %v8762, %v8762
      %v8772 = vshrl.u32 %v8763, 16
      %v8774 = vrot.slane %v8772, 7
      %v8775 = vshll.u32 %v8763, 16
      %v8777 = vor.u32 %v8774, %v8775
      %v8778 = vrot.slane %v8774, 4
      %v8780 = vshrl.u32 %v8764, 16
      %v8782 = vrot.slane %v8780, 7
      %v8783 = vshll.u32 %v8764, 16
      %v8785 = vor.u32 %v8782, %v8783
      %v8786 = vrot.slane %v8782, 4
      %v8788 = vshrl.u32 %v8765, 16
      %v8790 = vrot.slane %v8788, 7
      %v8791 = vshll.u32 %v8765, 16
      %v8793 = vor.u32 %v8790, %v8791
      %v8794 = vrot.slane %v8790, 4
      %v8796 = vshrl.u32 %v8766, 16
      %v8798 = vrot.slane %v8796, 7
      %v8799 = vshll.u32 %v8766, 16
      %v8801 = vor.u32 %v8798, %v8799
      %v8802 = vrot.slane %v8798, 4
      %v8804 = vshrl.u32 %v8767, 16
      %v8806 = vrot.slane %v8804, 7
      %v8807 = vshll.u32 %v8767, 16
      %v8809 = vor.u32 %v8806, %v8807
      %v8810 = vrot.slane %v8806, 4
      %v8812 = vshrl.u32 %v8768, 16
      %v8814 = vrot.slane %v8812, 7
      %v8815 = vshll.u32 %v8768, 16
      %v8817 = vor.u32 %v8814, %v8815
      %v8818 = vrot.slane %v8814, 4
      %v8820 = vshrl.u32 %v8769, 16
      %v8822 = vrot.slane %v8820, 7
      %v8823 = vshll.u32 %v8769, 16
      %v8825 = vor.u32 %v8822, %v8823
      %v8826 = vrot.slane %v8822, 4
      %v8828 = vshrl.u32 %v8770, 16
      %v8830 = vrot.slane %v8828, 7
      %v8831 = vshll.u32 %v8770, 16
      %v8833 = vor.u32 %v8830, %v8831
      %v8834 = vrot.slane %v8830, 4
      %s8851 = scalar_lea.vmem [#allocation4], 8
      %vm8852 = vcmask 519168
      %vm8853 = vmand %vm8852, %vm3227
      %v8854 = vld [vmem:[%s8851] sm:$0xf]
      %v8855 = vsel %vm8853, %v8777, %v8854
      %8856 = vst [vmem:[%s8851] sm:$0xf] %v8855
      %vm8857 = vcmask 516096
      %vm8858 = vmand %vm8857, %vm2902
      %v8859 = vld [vmem:[%s8851 + $0x4] sm:$0x1]
      %v8860 = vsel %vm8858, %v8778, %v8859
      %8861 = vst [vmem:[%s8851 + $0x4] sm:$0x1] %v8860
      %v8862 = vld [vmem:[%s8851 + $0x8] sm:$0xf]
      %v8863 = vsel %vm8853, %v8785, %v8862
      %8864 = vst [vmem:[%s8851 + $0x8] sm:$0xf] %v8863
      %v8865 = vld [vmem:[%s8851 + $0xc] sm:$0x1]
      %v8866 = vsel %vm8858, %v8786, %v8865
      %8867 = vst [vmem:[%s8851 + $0xc] sm:$0x1] %v8866
      %v8868 = vld [vmem:[%s8851 + $0x10] sm:$0xf]
      %v8869 = vsel %vm8853, %v8793, %v8868
      %8870 = vst [vmem:[%s8851 + $0x10] sm:$0xf] %v8869
      %v8871 = vld [vmem:[%s8851 + $0x14] sm:$0x1]
      %v8872 = vsel %vm8858, %v8794, %v8871
      %8873 = vst [vmem:[%s8851 + $0x14] sm:$0x1] %v8872
      %v8874 = vld [vmem:[%s8851 + $0x18] sm:$0xf]
      %v8875 = vsel %vm8853, %v8801, %v8874
      %8876 = vst [vmem:[%s8851 + $0x18] sm:$0xf] %v8875
      %v8877 = vld [vmem:[%s8851 + $0x1c] sm:$0x1]
      %v8878 = vsel %vm8858, %v8802, %v8877
      %8879 = vst [vmem:[%s8851 + $0x1c] sm:$0x1] %v8878
      %v8880 = vld [vmem:[%s8851 + $0x20] sm:$0xf]
      %v8881 = vsel %vm8853, %v8809, %v8880
      %8882 = vst [vmem:[%s8851 + $0x20] sm:$0xf] %v8881
      %v8883 = vld [vmem:[%s8851 + $0x24] sm:$0x1]
      %v8884 = vsel %vm8858, %v8810, %v8883
      %8885 = vst [vmem:[%s8851 + $0x24] sm:$0x1] %v8884
      %v8886 = vld [vmem:[%s8851 + $0x28] sm:$0xf]
      %v8887 = vsel %vm8853, %v8817, %v8886
      %8888 = vst [vmem:[%s8851 + $0x28] sm:$0xf] %v8887
      %v8889 = vld [vmem:[%s8851 + $0x2c] sm:$0x1]
      %v8890 = vsel %vm8858, %v8818, %v8889
      %8891 = vst [vmem:[%s8851 + $0x2c] sm:$0x1] %v8890
      %v8892 = vld [vmem:[%s8851 + $0x30] sm:$0xf]
      %v8893 = vsel %vm8853, %v8825, %v8892
      %8894 = vst [vmem:[%s8851 + $0x30] sm:$0xf] %v8893
      %v8895 = vld [vmem:[%s8851 + $0x34] sm:$0x1]
      %v8896 = vsel %vm8858, %v8826, %v8895
      %8897 = vst [vmem:[%s8851 + $0x34] sm:$0x1] %v8896
      %v8898 = vld [vmem:[%s8851 + $0x38] sm:$0xf]
      %v8899 = vsel %vm8853, %v8833, %v8898
      %8900 = vst [vmem:[%s8851 + $0x38] sm:$0xf] %v8899
      %v8901 = vld [vmem:[%s8851 + $0x3c] sm:$0x1]
      %v8902 = vsel %vm8858, %v8834, %v8901
      %8903 = vst [vmem:[%s8851 + $0x3c] sm:$0x1] %v8902
      %v8904 = vld [vmem:[#allocation4] sm:$0xf]
      %v8905 = vld [vmem:[#allocation4 + $0x8] sm:$0xf]
      %v8906 = vld [vmem:[#allocation4 + $0x10] sm:$0xf]
      %v8907 = vld [vmem:[#allocation4 + $0x18] sm:$0xf]
      %v8908 = vld [vmem:[#allocation4 + $0x20] sm:$0xf]
      %v8909 = vld [vmem:[#allocation4 + $0x28] sm:$0xf]
      %v8910 = vld [vmem:[#allocation4 + $0x30] sm:$0xf]
      %v8911 = vld [vmem:[#allocation4 + $0x38] sm:$0xf]
      %v8912 = vld [vmem:[#allocation4 + $0x4] sm:$0x1]
      %v8913 = vld [vmem:[#allocation4 + $0xc] sm:$0x1]
      %v8914 = vld [vmem:[#allocation4 + $0x14] sm:$0x1]
      %v8915 = vld [vmem:[#allocation4 + $0x1c] sm:$0x1]
      %v8916 = vld [vmem:[#allocation4 + $0x24] sm:$0x1]
      %v8917 = vld [vmem:[#allocation4 + $0x2c] sm:$0x1]
      %v8918 = vld [vmem:[#allocation4 + $0x34] sm:$0x1]
      %v8919 = vld [vmem:[#allocation4 + $0x3c] sm:$0x1]
      %v8920 = vld [vmem:[#allocation4] sm:$0xe]
      %v8921 = vld [vmem:[#allocation4 + $0x8] sm:$0xe]
      %v8922 = vld [vmem:[#allocation4 + $0x10] sm:$0xe]
      %v8923 = vld [vmem:[#allocation4 + $0x18] sm:$0xe]
      %v8924 = vld [vmem:[#allocation4 + $0x20] sm:$0xe]
      %v8925 = vld [vmem:[#allocation4 + $0x28] sm:$0xe]
      %v8926 = vld [vmem:[#allocation4 + $0x30] sm:$0xe]
      %v8927 = vld [vmem:[#allocation4 + $0x38] sm:$0xe]
      %v8928 = vld [vmem:[%s8851] sm:$0xf]
      %v8929 = vld [vmem:[%s8851 + $0x8] sm:$0xf]
      %v8930 = vld [vmem:[%s8851 + $0x10] sm:$0xf]
      %v8931 = vld [vmem:[%s8851 + $0x18] sm:$0xf]
      %v8932 = vld [vmem:[%s8851 + $0x20] sm:$0xf]
      %v8933 = vld [vmem:[%s8851 + $0x28] sm:$0xf]
      %v8934 = vld [vmem:[%s8851 + $0x30] sm:$0xf]
      %v8935 = vld [vmem:[%s8851 + $0x38] sm:$0xf]
      %v8936 = vld [vmem:[%s8851 + $0x4] sm:$0x1]
      %v8937 = vld [vmem:[%s8851 + $0xc] sm:$0x1]
      %v8938 = vld [vmem:[%s8851 + $0x14] sm:$0x1]
      %v8939 = vld [vmem:[%s8851 + $0x1c] sm:$0x1]
      %v8940 = vld [vmem:[%s8851 + $0x24] sm:$0x1]
      %v8941 = vld [vmem:[%s8851 + $0x2c] sm:$0x1]
      %v8942 = vld [vmem:[%s8851 + $0x34] sm:$0x1]
      %v8943 = vld [vmem:[%s8851 + $0x3c] sm:$0x1]
      %v8944 = vld [vmem:[%s8851] sm:$0xe]
      %v8945 = vld [vmem:[%s8851 + $0x8] sm:$0xe]
      %v8946 = vld [vmem:[%s8851 + $0x10] sm:$0xe]
      %v8947 = vld [vmem:[%s8851 + $0x18] sm:$0xe]
      %v8948 = vld [vmem:[%s8851 + $0x20] sm:$0xe]
      %v8949 = vld [vmem:[%s8851 + $0x28] sm:$0xe]
      %v8950 = vld [vmem:[%s8851 + $0x30] sm:$0xe]
      %v8951 = vld [vmem:[%s8851 + $0x38] sm:$0xe]
      %s8952 = scalar_lea.vmem [#allocation4], 16
      %v8953 = vld [vmem:[%s8952] sm:$0xf]
      %v8954 = vld [vmem:[%s8952 + $0x8] sm:$0xf]
      %v8955 = vld [vmem:[%s8952 + $0x10] sm:$0xf]
      %v8956 = vld [vmem:[%s8952 + $0x18] sm:$0xf]
      %v8957 = vld [vmem:[%s8952 + $0x20] sm:$0xf]
      %v8958 = vld [vmem:[%s8952 + $0x28] sm:$0xf]
      %v8959 = vld [vmem:[%s8952 + $0x30] sm:$0xf]
      %v8960 = vld [vmem:[%s8952 + $0x38] sm:$0xf]
      %v8961 = vld [vmem:[%s8952 + $0x4] sm:$0x1]
      %v8962 = vld [vmem:[%s8952 + $0xc] sm:$0x1]
      %v8963 = vld [vmem:[%s8952 + $0x14] sm:$0x1]
      %v8964 = vld [vmem:[%s8952 + $0x1c] sm:$0x1]
      %v8965 = vld [vmem:[%s8952 + $0x24] sm:$0x1]
      %v8966 = vld [vmem:[%s8952 + $0x2c] sm:$0x1]
      %v8967 = vld [vmem:[%s8952 + $0x34] sm:$0x1]
      %v8968 = vld [vmem:[%s8952 + $0x3c] sm:$0x1]
      %v8969 = vld [vmem:[%s8952] sm:$0xe]
      %v8970 = vld [vmem:[%s8952 + $0x8] sm:$0xe]
      %v8971 = vld [vmem:[%s8952 + $0x10] sm:$0xe]
      %v8972 = vld [vmem:[%s8952 + $0x18] sm:$0xe]
      %v8973 = vld [vmem:[%s8952 + $0x20] sm:$0xe]
      %v8974 = vld [vmem:[%s8952 + $0x28] sm:$0xe]
      %v8975 = vld [vmem:[%s8952 + $0x30] sm:$0xe]
      %v8976 = vld [vmem:[%s8952 + $0x38] sm:$0xe]
      %v8993 = vunpack.c.l.b16 %v8904
      %v8994 = vunpack.c.l.b16 %v8912
      %v8995 = vunpack.c.l.b16 %v8905
      %v8996 = vunpack.c.l.b16 %v8913
      %v8997 = vunpack.c.l.b16 %v8906
      %v8998 = vunpack.c.l.b16 %v8914
      %v8999 = vunpack.c.l.b16 %v8907
      %v9000 = vunpack.c.l.b16 %v8915
      %v9001 = vunpack.c.l.b16 %v8908
      %v9002 = vunpack.c.l.b16 %v8916
      %v9003 = vunpack.c.l.b16 %v8909
      %v9004 = vunpack.c.l.b16 %v8917
      %v9005 = vunpack.c.l.b16 %v8910
      %v9006 = vunpack.c.l.b16 %v8918
      %v9007 = vunpack.c.l.b16 %v8911
      %v9008 = vunpack.c.l.b16 %v8919
      %v9009 = vpack.c.b16 %v8994, %v8993
      %v9010 = vpack.c.b16 %v8996, %v8995
      %v9011 = vpack.c.b16 %v8998, %v8997
      %v9012 = vpack.c.b16 %v9000, %v8999
      %v9013 = vpack.c.b16 %v9002, %v9001
      %v9014 = vpack.c.b16 %v9004, %v9003
      %v9015 = vpack.c.b16 %v9006, %v9005
      %v9016 = vpack.c.b16 %v9008, %v9007
      %v9018 = vshrl.u32 %v9009, 16
      %v9020 = vshll.u32 %v9009, 16
      %v9022 = vrot.slane %v9020, 1
      %v9023 = vor.u32 %v9018, %v9022
      %v9025 = vshrl.u32 %v9010, 16
      %v9027 = vshll.u32 %v9010, 16
      %v9029 = vrot.slane %v9027, 1
      %v9030 = vor.u32 %v9025, %v9029
      %v9032 = vshrl.u32 %v9011, 16
      %v9034 = vshll.u32 %v9011, 16
      %v9036 = vrot.slane %v9034, 1
      %v9037 = vor.u32 %v9032, %v9036
      %v9039 = vshrl.u32 %v9012, 16
      %v9041 = vshll.u32 %v9012, 16
      %v9043 = vrot.slane %v9041, 1
      %v9044 = vor.u32 %v9039, %v9043
      %v9046 = vshrl.u32 %v9013, 16
      %v9048 = vshll.u32 %v9013, 16
      %v9050 = vrot.slane %v9048, 1
      %v9051 = vor.u32 %v9046, %v9050
      %v9053 = vshrl.u32 %v9014, 16
      %v9055 = vshll.u32 %v9014, 16
      %v9057 = vrot.slane %v9055, 1
      %v9058 = vor.u32 %v9053, %v9057
      %v9060 = vshrl.u32 %v9015, 16
      %v9062 = vshll.u32 %v9015, 16
      %v9064 = vrot.slane %v9062, 1
      %v9065 = vor.u32 %v9060, %v9064
      %v9067 = vshrl.u32 %v9016, 16
      %v9069 = vshll.u32 %v9016, 16
      %v9071 = vrot.slane %v9069, 1
      %v9072 = vor.u32 %v9067, %v9071
      %9073 = vrot.lane.b32.xlu0 %v9023, 64
      %v9074 = vpop.permute.xlu0 %9073
      %9075 = vrot.lane.b32.xlu0 %v9030, 64
      %v9076 = vpop.permute.xlu0 %9075
      %9077 = vrot.lane.b32.xlu0 %v9037, 64
      %v9078 = vpop.permute.xlu0 %9077
      %9079 = vrot.lane.b32.xlu0 %v9044, 64
      %v9080 = vpop.permute.xlu0 %9079
      %9081 = vrot.lane.b32.xlu0 %v9051, 64
      %v9082 = vpop.permute.xlu0 %9081
      %9083 = vrot.lane.b32.xlu0 %v9058, 64
      %v9084 = vpop.permute.xlu0 %9083
      %9085 = vrot.lane.b32.xlu0 %v9065, 64
      %v9086 = vpop.permute.xlu0 %9085
      %9087 = vrot.lane.b32.xlu0 %v9072, 64
      %v9088 = vpop.permute.xlu0 %9087
      %v9097 = vunpack.c.l.b16 %v8920
      %v9098 = vunpack.c.l.b16 %v8921
      %v9099 = vunpack.c.l.b16 %v8922
      %v9100 = vunpack.c.l.b16 %v8923
      %v9101 = vunpack.c.l.b16 %v8924
      %v9102 = vunpack.c.l.b16 %v8925
      %v9103 = vunpack.c.l.b16 %v8926
      %v9104 = vunpack.c.l.b16 %v8927
      %v9105 = vpack.c.b16 %v8994, %v9097
      %v9106 = vpack.c.b16 %v8996, %v9098
      %v9107 = vpack.c.b16 %v8998, %v9099
      %v9108 = vpack.c.b16 %v9000, %v9100
      %v9109 = vpack.c.b16 %v9002, %v9101
      %v9110 = vpack.c.b16 %v9004, %v9102
      %v9111 = vpack.c.b16 %v9006, %v9103
      %v9112 = vpack.c.b16 %v9008, %v9104
      %v9113 = vrot.slane %v9105, 1
      %v9114 = vrot.slane %v9106, 1
      %v9115 = vrot.slane %v9107, 1
      %v9116 = vrot.slane %v9108, 1
      %v9117 = vrot.slane %v9109, 1
      %v9118 = vrot.slane %v9110, 1
      %v9119 = vrot.slane %v9111, 1
      %v9120 = vrot.slane %v9112, 1
      %v9129 = vunpack.c.l.b16 %v8928
      %v9130 = vunpack.c.l.b16 %v8929
      %v9131 = vunpack.c.l.b16 %v8930
      %v9132 = vunpack.c.l.b16 %v8931
      %v9133 = vunpack.c.l.b16 %v8932
      %v9134 = vunpack.c.l.b16 %v8933
      %v9135 = vunpack.c.l.b16 %v8934
      %v9136 = vunpack.c.l.b16 %v8935
      %v9137 = vpack.c.b16 %v9129, %v9129
      %v9138 = vpack.c.b16 %v9130, %v9130
      %v9139 = vpack.c.b16 %v9131, %v9131
      %v9140 = vpack.c.b16 %v9132, %v9132
      %v9141 = vpack.c.b16 %v9133, %v9133
      %v9142 = vpack.c.b16 %v9134, %v9134
      %v9143 = vpack.c.b16 %v9135, %v9135
      %v9144 = vpack.c.b16 %v9136, %v9136
      %9145 = vrot.lane.b32.xlu0 %v9137, 64
      %v9146 = vpop.permute.xlu0 %9145
      %9147 = vrot.lane.b32.xlu0 %v9138, 64
      %v9148 = vpop.permute.xlu0 %9147
      %9149 = vrot.lane.b32.xlu0 %v9139, 64
      %v9150 = vpop.permute.xlu0 %9149
      %9151 = vrot.lane.b32.xlu0 %v9140, 64
      %v9152 = vpop.permute.xlu0 %9151
      %9153 = vrot.lane.b32.xlu0 %v9141, 64
      %v9154 = vpop.permute.xlu0 %9153
      %9155 = vrot.lane.b32.xlu0 %v9142, 64
      %v9156 = vpop.permute.xlu0 %9155
      %9157 = vrot.lane.b32.xlu0 %v9143, 64
      %v9158 = vpop.permute.xlu0 %9157
      %9159 = vrot.lane.b32.xlu0 %v9144, 64
      %v9160 = vpop.permute.xlu0 %9159
      %v9169 = vunpack.c.l.b16 %v8936
      %v9170 = vunpack.c.l.b16 %v8937
      %v9171 = vunpack.c.l.b16 %v8938
      %v9172 = vunpack.c.l.b16 %v8939
      %v9173 = vunpack.c.l.b16 %v8940
      %v9174 = vunpack.c.l.b16 %v8941
      %v9175 = vunpack.c.l.b16 %v8942
      %v9176 = vunpack.c.l.b16 %v8943
      %v9177 = vpack.c.b16 %v9169, %v9129
      %v9178 = vpack.c.b16 %v9170, %v9130
      %v9179 = vpack.c.b16 %v9171, %v9131
      %v9180 = vpack.c.b16 %v9172, %v9132
      %v9181 = vpack.c.b16 %v9173, %v9133
      %v9182 = vpack.c.b16 %v9174, %v9134
      %v9183 = vpack.c.b16 %v9175, %v9135
      %v9184 = vpack.c.b16 %v9176, %v9136
      %v9186 = vshrl.u32 %v9177, 16
      %v9188 = vshll.u32 %v9177, 16
      %v9190 = vrot.slane %v9188, 1
      %v9191 = vor.u32 %v9186, %v9190
      %v9193 = vshrl.u32 %v9178, 16
      %v9195 = vshll.u32 %v9178, 16
      %v9197 = vrot.slane %v9195, 1
      %v9198 = vor.u32 %v9193, %v9197
      %v9200 = vshrl.u32 %v9179, 16
      %v9202 = vshll.u32 %v9179, 16
      %v9204 = vrot.slane %v9202, 1
      %v9205 = vor.u32 %v9200, %v9204
      %v9207 = vshrl.u32 %v9180, 16
      %v9209 = vshll.u32 %v9180, 16
      %v9211 = vrot.slane %v9209, 1
      %v9212 = vor.u32 %v9207, %v9211
      %v9214 = vshrl.u32 %v9181, 16
      %v9216 = vshll.u32 %v9181, 16
      %v9218 = vrot.slane %v9216, 1
      %v9219 = vor.u32 %v9214, %v9218
      %v9221 = vshrl.u32 %v9182, 16
      %v9223 = vshll.u32 %v9182, 16
      %v9225 = vrot.slane %v9223, 1
      %v9226 = vor.u32 %v9221, %v9225
      %v9228 = vshrl.u32 %v9183, 16
      %v9230 = vshll.u32 %v9183, 16
      %v9232 = vrot.slane %v9230, 1
      %v9233 = vor.u32 %v9228, %v9232
      %v9235 = vshrl.u32 %v9184, 16
      %v9237 = vshll.u32 %v9184, 16
      %v9239 = vrot.slane %v9237, 1
      %v9240 = vor.u32 %v9235, %v9239
      %v9249 = vunpack.c.l.b16 %v8944
      %v9250 = vunpack.c.l.b16 %v8945
      %v9251 = vunpack.c.l.b16 %v8946
      %v9252 = vunpack.c.l.b16 %v8947
      %v9253 = vunpack.c.l.b16 %v8948
      %v9254 = vunpack.c.l.b16 %v8949
      %v9255 = vunpack.c.l.b16 %v8950
      %v9256 = vunpack.c.l.b16 %v8951
      %v9257 = vpack.c.b16 %v9169, %v9249
      %v9258 = vpack.c.b16 %v9170, %v9250
      %v9259 = vpack.c.b16 %v9171, %v9251
      %v9260 = vpack.c.b16 %v9172, %v9252
      %v9261 = vpack.c.b16 %v9173, %v9253
      %v9262 = vpack.c.b16 %v9174, %v9254
      %v9263 = vpack.c.b16 %v9175, %v9255
      %v9264 = vpack.c.b16 %v9176, %v9256
      %v9265 = vrot.slane %v9257, 1
      %v9266 = vrot.slane %v9258, 1
      %v9267 = vrot.slane %v9259, 1
      %v9268 = vrot.slane %v9260, 1
      %v9269 = vrot.slane %v9261, 1
      %v9270 = vrot.slane %v9262, 1
      %v9271 = vrot.slane %v9263, 1
      %v9272 = vrot.slane %v9264, 1
      %9273 = vrot.lane.b32.xlu0 %v9265, 64
      %v9274 = vpop.permute.xlu0 %9273
      %9275 = vrot.lane.b32.xlu0 %v9266, 64
      %v9276 = vpop.permute.xlu0 %9275
      %9277 = vrot.lane.b32.xlu0 %v9267, 64
      %v9278 = vpop.permute.xlu0 %9277
      %9279 = vrot.lane.b32.xlu0 %v9268, 64
      %v9280 = vpop.permute.xlu0 %9279
      %9281 = vrot.lane.b32.xlu0 %v9269, 64
      %v9282 = vpop.permute.xlu0 %9281
      %9283 = vrot.lane.b32.xlu0 %v9270, 64
      %v9284 = vpop.permute.xlu0 %9283
      %9285 = vrot.lane.b32.xlu0 %v9271, 64
      %v9286 = vpop.permute.xlu0 %9285
      %9287 = vrot.lane.b32.xlu0 %v9272, 64
      %v9288 = vpop.permute.xlu0 %9287
      %v9305 = vunpack.c.l.b16 %v8953
      %v9306 = vunpack.c.l.b16 %v8961
      %v9307 = vunpack.c.l.b16 %v8954
      %v9308 = vunpack.c.l.b16 %v8962
      %v9309 = vunpack.c.l.b16 %v8955
      %v9310 = vunpack.c.l.b16 %v8963
      %v9311 = vunpack.c.l.b16 %v8956
      %v9312 = vunpack.c.l.b16 %v8964
      %v9313 = vunpack.c.l.b16 %v8957
      %v9314 = vunpack.c.l.b16 %v8965
      %v9315 = vunpack.c.l.b16 %v8958
      %v9316 = vunpack.c.l.b16 %v8966
      %v9317 = vunpack.c.l.b16 %v8959
      %v9318 = vunpack.c.l.b16 %v8967
      %v9319 = vunpack.c.l.b16 %v8960
      %v9320 = vunpack.c.l.b16 %v8968
      %v9321 = vpack.c.b16 %v9306, %v9305
      %v9322 = vpack.c.b16 %v9308, %v9307
      %v9323 = vpack.c.b16 %v9310, %v9309
      %v9324 = vpack.c.b16 %v9312, %v9311
      %v9325 = vpack.c.b16 %v9314, %v9313
      %v9326 = vpack.c.b16 %v9316, %v9315
      %v9327 = vpack.c.b16 %v9318, %v9317
      %v9328 = vpack.c.b16 %v9320, %v9319
      %v9330 = vshrl.u32 %v9321, 16
      %v9332 = vshll.u32 %v9321, 16
      %v9334 = vrot.slane %v9332, 1
      %v9335 = vor.u32 %v9330, %v9334
      %v9337 = vshrl.u32 %v9322, 16
      %v9339 = vshll.u32 %v9322, 16
      %v9341 = vrot.slane %v9339, 1
      %v9342 = vor.u32 %v9337, %v9341
      %v9344 = vshrl.u32 %v9323, 16
      %v9346 = vshll.u32 %v9323, 16
      %v9348 = vrot.slane %v9346, 1
      %v9349 = vor.u32 %v9344, %v9348
      %v9351 = vshrl.u32 %v9324, 16
      %v9353 = vshll.u32 %v9324, 16
      %v9355 = vrot.slane %v9353, 1
      %v9356 = vor.u32 %v9351, %v9355
      %v9358 = vshrl.u32 %v9325, 16
      %v9360 = vshll.u32 %v9325, 16
      %v9362 = vrot.slane %v9360, 1
      %v9363 = vor.u32 %v9358, %v9362
      %v9365 = vshrl.u32 %v9326, 16
      %v9367 = vshll.u32 %v9326, 16
      %v9369 = vrot.slane %v9367, 1
      %v9370 = vor.u32 %v9365, %v9369
      %v9372 = vshrl.u32 %v9327, 16
      %v9374 = vshll.u32 %v9327, 16
      %v9376 = vrot.slane %v9374, 1
      %v9377 = vor.u32 %v9372, %v9376
      %v9379 = vshrl.u32 %v9328, 16
      %v9381 = vshll.u32 %v9328, 16
      %v9383 = vrot.slane %v9381, 1
      %v9384 = vor.u32 %v9379, %v9383
      %9385 = vrot.lane.b32.xlu0 %v9335, 64
      %v9386 = vpop.permute.xlu0 %9385
      %9387 = vrot.lane.b32.xlu0 %v9342, 64
      %v9388 = vpop.permute.xlu0 %9387
      %9389 = vrot.lane.b32.xlu0 %v9349, 64
      %v9390 = vpop.permute.xlu0 %9389
      %9391 = vrot.lane.b32.xlu0 %v9356, 64
      %v9392 = vpop.permute.xlu0 %9391
      %9393 = vrot.lane.b32.xlu0 %v9363, 64
      %v9394 = vpop.permute.xlu0 %9393
      %9395 = vrot.lane.b32.xlu0 %v9370, 64
      %v9396 = vpop.permute.xlu0 %9395
      %9397 = vrot.lane.b32.xlu0 %v9377, 64
      %v9398 = vpop.permute.xlu0 %9397
      %9399 = vrot.lane.b32.xlu0 %v9384, 64
      %v9400 = vpop.permute.xlu0 %9399
      %v9409 = vunpack.c.l.b16 %v8969
      %v9410 = vunpack.c.l.b16 %v8970
      %v9411 = vunpack.c.l.b16 %v8971
      %v9412 = vunpack.c.l.b16 %v8972
      %v9413 = vunpack.c.l.b16 %v8973
      %v9414 = vunpack.c.l.b16 %v8974
      %v9415 = vunpack.c.l.b16 %v8975
      %v9416 = vunpack.c.l.b16 %v8976
      %v9417 = vpack.c.b16 %v9306, %v9409
      %v9418 = vpack.c.b16 %v9308, %v9410
      %v9419 = vpack.c.b16 %v9310, %v9411
      %v9420 = vpack.c.b16 %v9312, %v9412
      %v9421 = vpack.c.b16 %v9314, %v9413
      %v9422 = vpack.c.b16 %v9316, %v9414
      %v9423 = vpack.c.b16 %v9318, %v9415
      %v9424 = vpack.c.b16 %v9320, %v9416
      %v9425 = vrot.slane %v9417, 1
      %v9426 = vrot.slane %v9418, 1
      %v9427 = vrot.slane %v9419, 1
      %v9428 = vrot.slane %v9420, 1
      %v9429 = vrot.slane %v9421, 1
      %v9430 = vrot.slane %v9422, 1
      %v9431 = vrot.slane %v9423, 1
      %v9432 = vrot.slane %v9424, 1
      %v9435 = vsel %vm2373, %v8904, %v9074
      %v9438 = vsel %vm2373, %v8905, %v9076
      %v9441 = vsel %vm2373, %v8906, %v9078
      %v9444 = vsel %vm2373, %v8907, %v9080
      %v9447 = vsel %vm2373, %v8908, %v9082
      %v9450 = vsel %vm2373, %v8909, %v9084
      %v9453 = vsel %vm2373, %v8910, %v9086
      %v9456 = vsel %vm2373, %v8911, %v9088
      %v9459 = vsel %vm2373, %v9113, %v9146
      %v9462 = vsel %vm2373, %v9114, %v9148
      %v9465 = vsel %vm2373, %v9115, %v9150
      %v9468 = vsel %vm2373, %v9116, %v9152
      %v9471 = vsel %vm2373, %v9117, %v9154
      %v9474 = vsel %vm2373, %v9118, %v9156
      %v9477 = vsel %vm2373, %v9119, %v9158
      %v9480 = vsel %vm2373, %v9120, %v9160
      %v9483 = vsel %vm2373, %v9191, %v9274
      %v9486 = vsel %vm2373, %v9198, %v9276
      %v9489 = vsel %vm2373, %v9205, %v9278
      %v9492 = vsel %vm2373, %v9212, %v9280
      %v9495 = vsel %vm2373, %v9219, %v9282
      %v9498 = vsel %vm2373, %v9226, %v9284
      %v9501 = vsel %vm2373, %v9233, %v9286
      %v9504 = vsel %vm2373, %v9240, %v9288
      %v9507 = vsel %vm2373, %v8953, %v9386
      %v9510 = vsel %vm2373, %v8954, %v9388
      %v9513 = vsel %vm2373, %v8955, %v9390
      %v9516 = vsel %vm2373, %v8956, %v9392
      %v9519 = vsel %vm2373, %v8957, %v9394
      %v9522 = vsel %vm2373, %v8958, %v9396
      %v9525 = vsel %vm2373, %v8959, %v9398
      %v9528 = vsel %vm2373, %v8960, %v9400
      %v9561 = vunpack.c.l.b16 %v9435
      %v9562 = vunpack.c.l.b16 %v9459
      %v9563 = vunpack.c.l.b16 %v9483
      %v9564 = vunpack.c.l.b16 %v9507
      %v9565 = vunpack.c.l.b16 %v9425
      %v9566 = vunpack.c.l.b16 %v9438
      %v9567 = vunpack.c.l.b16 %v9462
      %v9568 = vunpack.c.l.b16 %v9486
      %v9569 = vunpack.c.l.b16 %v9510
      %v9570 = vunpack.c.l.b16 %v9426
      %v9571 = vunpack.c.l.b16 %v9441
      %v9572 = vunpack.c.l.b16 %v9465
      %v9573 = vunpack.c.l.b16 %v9489
      %v9574 = vunpack.c.l.b16 %v9513
      %v9575 = vunpack.c.l.b16 %v9427
      %v9576 = vunpack.c.l.b16 %v9444
      %v9577 = vunpack.c.l.b16 %v9468
      %v9578 = vunpack.c.l.b16 %v9492
      %v9579 = vunpack.c.l.b16 %v9516
      %v9580 = vunpack.c.l.b16 %v9428
      %v9581 = vunpack.c.l.b16 %v9447
      %v9582 = vunpack.c.l.b16 %v9471
      %v9583 = vunpack.c.l.b16 %v9495
      %v9584 = vunpack.c.l.b16 %v9519
      %v9585 = vunpack.c.l.b16 %v9429
      %v9586 = vunpack.c.l.b16 %v9450
      %v9587 = vunpack.c.l.b16 %v9474
      %v9588 = vunpack.c.l.b16 %v9498
      %v9589 = vunpack.c.l.b16 %v9522
      %v9590 = vunpack.c.l.b16 %v9430
      %v9591 = vunpack.c.l.b16 %v9453
      %v9592 = vunpack.c.l.b16 %v9477
      %v9593 = vunpack.c.l.b16 %v9501
      %v9594 = vunpack.c.l.b16 %v9525
      %v9595 = vunpack.c.l.b16 %v9431
      %v9596 = vunpack.c.l.b16 %v9456
      %v9597 = vunpack.c.l.b16 %v9480
      %v9598 = vunpack.c.l.b16 %v9504
      %v9599 = vunpack.c.l.b16 %v9528
      %v9600 = vunpack.c.l.b16 %v9432
      %v9601 = vld [vmem:[%s10] sm:$0xf]
      %v9602 = vld [vmem:[%s10 + $0x4] sm:$0xf]
      %v9603 = vld [vmem:[%s10 + $0x8] sm:$0xf]
      %v9604 = vld [vmem:[%s10 + $0xc] sm:$0xf]
      %v9605 = vld [vmem:[%s10 + $0x10] sm:$0xf]
      %v9606 = vld [vmem:[%s10 + $0x14] sm:$0xf]
      %v9607 = vld [vmem:[%s10 + $0x18] sm:$0xf]
      %v9608 = vld [vmem:[%s10 + $0x1c] sm:$0xf]
      %v9609 = vld [vmem:[%s10 + $0x20] sm:$0xf]
      %v9610 = vld [vmem:[%s10 + $0x24] sm:$0xf]
      %v9611 = vld [vmem:[%s10 + $0x28] sm:$0xf]
      %v9612 = vld [vmem:[%s10 + $0x2c] sm:$0xf]
      %v9613 = vld [vmem:[%s10 + $0x30] sm:$0xf]
      %v9614 = vld [vmem:[%s10 + $0x34] sm:$0xf]
      %v9615 = vld [vmem:[%s10 + $0x38] sm:$0xf]
      %v9616 = vld [vmem:[%s10 + $0x3c] sm:$0xf]
      %v9617 = vld [vmem:[%s10 + $0x40] sm:$0xf]
      %v9618 = vld [vmem:[%s10 + $0x44] sm:$0xf]
      %v9619 = vld [vmem:[%s10 + $0x48] sm:$0xf]
      %v9620 = vld [vmem:[%s10 + $0x4c] sm:$0xf]
      %v9621 = vld [vmem:[%s10 + $0x50] sm:$0xf]
      %v9622 = vld [vmem:[%s10 + $0x54] sm:$0xf]
      %v9623 = vld [vmem:[%s10 + $0x58] sm:$0xf]
      %v9624 = vld [vmem:[%s10 + $0x5c] sm:$0xf]
      %v9625 = vld [vmem:[%s10 + $0x60] sm:$0xf]
      %v9626 = vld [vmem:[%s10 + $0x64] sm:$0xf]
      %v9627 = vld [vmem:[%s10 + $0x68] sm:$0xf]
      %v9628 = vld [vmem:[%s10 + $0x6c] sm:$0xf]
      %v9629 = vld [vmem:[%s10 + $0x70] sm:$0xf]
      %v9630 = vld [vmem:[%s10 + $0x74] sm:$0xf]
      %v9631 = vld [vmem:[%s10 + $0x78] sm:$0xf]
      %v9632 = vld [vmem:[%s10 + $0x7c] sm:$0xf]
      %v9633 = vld [vmem:[%s10 + $0x80] sm:$0xf]
      %v9634 = vld [vmem:[%s10 + $0x84] sm:$0xf]
      %v9635 = vld [vmem:[%s10 + $0x88] sm:$0xf]
      %v9636 = vld [vmem:[%s10 + $0x8c] sm:$0xf]
      %v9637 = vld [vmem:[%s10 + $0x90] sm:$0xf]
      %v9638 = vld [vmem:[%s10 + $0x94] sm:$0xf]
      %v9639 = vld [vmem:[%s10 + $0x98] sm:$0xf]
      %v9640 = vld [vmem:[%s10 + $0x9c] sm:$0xf]
      %v9641 = vld [vmem:[%s10 + $0xa0] sm:$0xf]
      %v9642 = vld [vmem:[%s10 + $0xa4] sm:$0xf]
      %v9643 = vld [vmem:[%s10 + $0xa8] sm:$0xf]
      %v9644 = vld [vmem:[%s10 + $0xac] sm:$0xf]
      %v9645 = vld [vmem:[%s10 + $0xb0] sm:$0xf]
      %v9646 = vld [vmem:[%s10 + $0xb4] sm:$0xf]
      %v9647 = vld [vmem:[%s10 + $0xb8] sm:$0xf]
      %v9648 = vld [vmem:[%s10 + $0xbc] sm:$0xf]
      %v9649 = vld [vmem:[%s10 + $0xc0] sm:$0xf]
      %v9650 = vld [vmem:[%s10 + $0xc4] sm:$0xf]
      %v9651 = vld [vmem:[%s10 + $0xc8] sm:$0xf]
      %v9652 = vld [vmem:[%s10 + $0xcc] sm:$0xf]
      %v9653 = vld [vmem:[%s10 + $0xd0] sm:$0xf]
      %v9654 = vld [vmem:[%s10 + $0xd4] sm:$0xf]
      %v9655 = vld [vmem:[%s10 + $0xd8] sm:$0xf]
      %v9656 = vld [vmem:[%s10 + $0xdc] sm:$0xf]
      %v9657 = vld [vmem:[%s10 + $0xe0] sm:$0xf]
      %v9658 = vld [vmem:[%s10 + $0xe4] sm:$0xf]
      %v9659 = vld [vmem:[%s10 + $0xe8] sm:$0xf]
      %v9660 = vld [vmem:[%s10 + $0xec] sm:$0xf]
      %v9661 = vld [vmem:[%s10 + $0xf0] sm:$0xf]
      %v9662 = vld [vmem:[%s10 + $0xf4] sm:$0xf]
      %v9663 = vld [vmem:[%s10 + $0xf8] sm:$0xf]
      %v9664 = vld [vmem:[%s10 + $0xfc] sm:$0xf]
      %v9665 = vld [vmem:[%s10 + $0x100] sm:$0xf]
      %v9666 = vld [vmem:[%s10 + $0x104] sm:$0xf]
      %v9667 = vld [vmem:[%s10 + $0x108] sm:$0xf]
      %v9668 = vld [vmem:[%s10 + $0x10c] sm:$0xf]
      %v9669 = vld [vmem:[%s10 + $0x110] sm:$0xf]
      %v9670 = vld [vmem:[%s10 + $0x114] sm:$0xf]
      %v9671 = vld [vmem:[%s10 + $0x118] sm:$0xf]
      %v9672 = vld [vmem:[%s10 + $0x11c] sm:$0xf]
      %v9673 = vpack.c.b16 %v9566, %v9561
      %v9674 = vpack.c.b16 %v9567, %v9562
      %v9675 = vpack.c.b16 %v9568, %v9563
      %v9676 = vpack.c.b16 %v9569, %v9564
      %v9677 = vpack.c.b16 %v9570, %v9565
      %v9678 = vpack.c.b16 %v9576, %v9571
      %v9679 = vpack.c.b16 %v9577, %v9572
      %v9680 = vpack.c.b16 %v9578, %v9573
      %v9681 = vpack.c.b16 %v9579, %v9574
      %v9682 = vpack.c.b16 %v9580, %v9575
      %v9683 = vpack.c.b16 %v9586, %v9581
      %v9684 = vpack.c.b16 %v9587, %v9582
      %v9685 = vpack.c.b16 %v9588, %v9583
      %v9686 = vpack.c.b16 %v9589, %v9584
      %v9687 = vpack.c.b16 %v9590, %v9585
      %v9688 = vpack.c.b16 %v9596, %v9591
      %v9689 = vpack.c.b16 %v9597, %v9592
      %v9690 = vpack.c.b16 %v9598, %v9593
      %v9691 = vpack.c.b16 %v9599, %v9594
      %v9692 = vpack.c.b16 %v9600, %v9595
      %v9781 = vunpack.c.l.b16 %v9601
      %v9782 = vunpack.c.l.b16 %v9602
      %v9783 = vunpack.c.l.b16 %v9603
      %v9784 = vunpack.c.l.b16 %v9604
      %v9785 = vunpack.c.l.b16 %v9605
      %v9786 = vunpack.c.l.b16 %v9606
      %v9787 = vunpack.c.l.b16 %v9607
      %v9788 = vunpack.c.l.b16 %v9608
      %v9789 = vunpack.c.l.b16 %v9609
      %v9790 = vunpack.c.l.b16 %v9610
      %v9791 = vunpack.c.l.b16 %v9611
      %v9792 = vunpack.c.l.b16 %v9612
      %v9793 = vunpack.c.l.b16 %v9613
      %v9794 = vunpack.c.l.b16 %v9614
      %v9795 = vunpack.c.l.b16 %v9615
      %v9796 = vunpack.c.l.b16 %v9616
      %v9797 = vunpack.c.l.b16 %v9617
      %v9798 = vunpack.c.l.b16 %v9618
      %v9799 = vunpack.c.l.b16 %v9619
      %v9800 = vunpack.c.l.b16 %v9620
      %v9801 = vunpack.c.l.b16 %v9621
      %v9802 = vunpack.c.l.b16 %v9622
      %v9803 = vunpack.c.l.b16 %v9623
      %v9804 = vunpack.c.l.b16 %v9624
      %v9805 = vunpack.c.l.b16 %v9625
      %v9806 = vunpack.c.l.b16 %v9626
      %v9807 = vunpack.c.l.b16 %v9627
      %v9808 = vunpack.c.l.b16 %v9628
      %v9809 = vunpack.c.l.b16 %v9629
      %v9810 = vunpack.c.l.b16 %v9630
      %v9811 = vunpack.c.l.b16 %v9631
      %v9812 = vunpack.c.l.b16 %v9632
      %v9813 = vunpack.c.l.b16 %v9633
      %v9814 = vunpack.c.l.b16 %v9634
      %v9815 = vunpack.c.l.b16 %v9635
      %v9816 = vunpack.c.l.b16 %v9636
      %v9817 = vunpack.c.l.b16 %v9637
      %v9818 = vunpack.c.l.b16 %v9638
      %v9819 = vunpack.c.l.b16 %v9639
      %v9820 = vunpack.c.l.b16 %v9640
      %v9821 = vunpack.c.l.b16 %v9641
      %v9822 = vunpack.c.l.b16 %v9642
      %v9823 = vunpack.c.l.b16 %v9643
      %v9824 = vunpack.c.l.b16 %v9644
      %v9825 = vunpack.c.l.b16 %v9645
      %v9826 = vunpack.c.l.b16 %v9646
      %v9827 = vunpack.c.l.b16 %v9647
      %v9828 = vunpack.c.l.b16 %v9648
      %v9829 = vunpack.c.l.b16 %v9649
      %v9830 = vunpack.c.l.b16 %v9650
      %v9831 = vunpack.c.l.b16 %v9651
      %v9832 = vunpack.c.l.b16 %v9652
      %v9833 = vunpack.c.l.b16 %v9653
      %v9834 = vunpack.c.l.b16 %v9654
      %v9835 = vunpack.c.l.b16 %v9655
      %v9836 = vunpack.c.l.b16 %v9656
      %v9837 = vunpack.c.l.b16 %v9657
      %v9838 = vunpack.c.l.b16 %v9658
      %v9839 = vunpack.c.l.b16 %v9659
      %v9840 = vunpack.c.l.b16 %v9660
      %v9841 = vunpack.c.l.b16 %v9661
      %v9842 = vunpack.c.l.b16 %v9662
      %v9843 = vunpack.c.l.b16 %v9663
      %v9844 = vunpack.c.l.b16 %v9664
      %v9845 = vunpack.c.l.b16 %v9665
      %v9846 = vunpack.c.l.b16 %v9666
      %v9847 = vunpack.c.l.b16 %v9667
      %v9848 = vunpack.c.l.b16 %v9668
      %v9849 = vunpack.c.l.b16 %v9669
      %v9850 = vunpack.c.l.b16 %v9670
      %v9851 = vunpack.c.l.b16 %v9671
      %v9852 = vunpack.c.l.b16 %v9672
      %v9853 = vpack.c.b16 %v9782, %v9781
      %v9854 = vpack.c.b16 %v9784, %v9783
      %v9855 = vpack.c.b16 %v9786, %v9785
      %v9856 = vpack.c.b16 %v9788, %v9787
      %v9857 = vpack.c.b16 %v9790, %v9789
      %v9858 = vpack.c.b16 %v9792, %v9791
      %v9859 = vpack.c.b16 %v9794, %v9793
      %v9860 = vpack.c.b16 %v9796, %v9795
      %v9861 = vpack.c.b16 %v9798, %v9797
      %v9862 = vpack.c.b16 %v9800, %v9799
      %v9863 = vpack.c.b16 %v9802, %v9801
      %v9864 = vpack.c.b16 %v9804, %v9803
      %v9865 = vpack.c.b16 %v9806, %v9805
      %v9866 = vpack.c.b16 %v9808, %v9807
      %v9867 = vpack.c.b16 %v9810, %v9809
      %v9868 = vpack.c.b16 %v9812, %v9811
      %v9869 = vpack.c.b16 %v9814, %v9813
      %v9870 = vpack.c.b16 %v9816, %v9815
      %v9871 = vpack.c.b16 %v9818, %v9817
      %v9872 = vpack.c.b16 %v9820, %v9819
      %v9873 = vpack.c.b16 %v9822, %v9821
      %v9874 = vpack.c.b16 %v9824, %v9823
      %v9875 = vpack.c.b16 %v9826, %v9825
      %v9876 = vpack.c.b16 %v9828, %v9827
      %v9877 = vpack.c.b16 %v9830, %v9829
      %v9878 = vpack.c.b16 %v9832, %v9831
      %v9879 = vpack.c.b16 %v9834, %v9833
      %v9880 = vpack.c.b16 %v9836, %v9835
      %v9881 = vpack.c.b16 %v9838, %v9837
      %v9882 = vpack.c.b16 %v9840, %v9839
      %v9883 = vpack.c.b16 %v9842, %v9841
      %v9884 = vpack.c.b16 %v9844, %v9843
      %v9885 = vpack.c.b16 %v9846, %v9845
      %v9886 = vpack.c.b16 %v9848, %v9847
      %v9887 = vpack.c.b16 %v9850, %v9849
      %v9888 = vpack.c.b16 %v9852, %v9851
      %v9926 = vsel %vm2373, %v9677, 0
      %v9929 = vsel %vm2373, %v9682, 0
      %v9932 = vsel %vm2373, %v9687, 0
      %v9935 = vsel %vm2373, %v9692, 0
      %9937 = vmatprep.subr.bf16.mxu0 0
      %9938 = vmatpush1.bf16.msra.mxu0 %v9853
      %9939 = vmatprep.subr.bf16.mxu0 0
      %9940 = vmatpush1.bf16.msra.mxu0 %v9854
      %9941 = vmatprep.subr.bf16.mxu0 0
      %9942 = vmatpush1.bf16.msra.mxu0 %v9855
      %9943 = vmatprep.subr.bf16.mxu0 0
      %9944 = vmatpush1.bf16.msra.mxu0 %v9856
      %9945 = vmatprep.subr.bf16.mxu0 0
      %9946 = vmatpush1.bf16.msra.mxu0 %v9857
      %9947 = vmatprep.subr.bf16.mxu0 0
      %9948 = vmatpush1.bf16.msra.mxu0 %v9858
      %9949 = vmatprep.subr.bf16.mxu0 0
      %9950 = vmatpush1.bf16.msra.mxu0 %v9859
      %9951 = vmatprep.subr.bf16.mxu0 0
      %9952 = vmatpush1.bf16.msra.mxu0 %v9860
      %9953 = vmatprep.subr.bf16.mxu0 0
      %9954 = vmatpush1.bf16.msra.mxu0 %v9861
      %9955 = vmatprep.subr.bf16.mxu0 0
      %9956 = vmatpush1.bf16.msra.mxu0 %v9862
      %9957 = vmatprep.subr.bf16.mxu0 0
      %9958 = vmatpush1.bf16.msra.mxu0 %v9863
      %9959 = vmatprep.subr.bf16.mxu0 0
      %9960 = vmatpush1.bf16.msra.mxu0 %v9864
      %9961 = vmatprep.subr.bf16.mxu0 0
      %9962 = vmatpush1.bf16.msra.mxu0 %v9865
      %9963 = vmatprep.subr.bf16.mxu0 0
      %9964 = vmatpush1.bf16.msra.mxu0 %v9866
      %9965 = vmatprep.subr.bf16.mxu0 0
      %9966 = vmatpush1.bf16.msra.mxu0 %v9867
      %9967 = vmatprep.subr.bf16.mxu0 0
      %9968 = vmatpush1.bf16.msra.mxu0 %v9868
      %9969 = vmatprep.mubr.bf16.mxu0 %v9674
      %9970 = vmatmul.mubr.bf16.gmra.mrb[0].mxu0 %v9673
      %v9971 = vpop.f32.mrb[0].mxu0
      %v9972 = vadd.f32 0.0, %v9971
      %v9973 = vpop.f32.mrb[0].mxu0
      %v9974 = vpop.f32.mrb[0].mxu0
      %v9975 = vadd.f32 0.0, %v9974
      %v9976 = vpop.f32.mrb[0].mxu0
      %9977 = vmatprep.mubr.bf16.mxu0 %v9679
      %9978 = vmatmul.mubr.bf16.gmra.mrb[0].mxu0 %v9678
      %v9979 = vpop.f32.mrb[0].mxu0
      %v9980 = vadd.f32 0.0, %v9979
      %v9981 = vpop.f32.mrb[0].mxu0
      %v9982 = vpop.f32.mrb[0].mxu0
      %v9983 = vadd.f32 0.0, %v9982
      %v9984 = vpop.f32.mrb[0].mxu0
      %9985 = vmatprep.mubr.bf16.mxu0 %v9684
      %9986 = vmatmul.mubr.bf16.gmra.mrb[0].mxu0 %v9683
      %v9987 = vpop.f32.mrb[0].mxu0
      %v9988 = vadd.f32 0.0, %v9987
      %v9989 = vpop.f32.mrb[0].mxu0
      %v9990 = vpop.f32.mrb[0].mxu0
      %v9991 = vadd.f32 0.0, %v9990
      %v9992 = vpop.f32.mrb[0].mxu0
      %9993 = vmatprep.mubr.bf16.mxu0 %v9689
      %9994 = vmatmul.mubr.bf16.gmra.mrb[0].mxu0 %v9688
      %v9995 = vpop.f32.mrb[0].mxu0
      %v9996 = vadd.f32 0.0, %v9995
      %v9997 = vpop.f32.mrb[0].mxu0
      %v9998 = vpop.f32.mrb[0].mxu0
      %v9999 = vadd.f32 0.0, %v9998
      %v10000 = vpop.f32.mrb[0].mxu0
      %10001 = vdwg.mxu0
      %10002 = vmatprep.subr.bf16.mxu0 0
      %10003 = vmatpush1.bf16.msra.mxu0 %v9869
      %10004 = vmatprep.subr.bf16.mxu0 0
      %10005 = vmatpush1.bf16.msra.mxu0 %v9870
      %10006 = vmatprep.subr.bf16.mxu0 0
      %10007 = vmatpush1.bf16.msra.mxu0 %v9871
      %10008 = vmatprep.subr.bf16.mxu0 0
      %10009 = vmatpush1.bf16.msra.mxu0 %v9872
      %10010 = vmatprep.subr.bf16.mxu0 0
      %10011 = vmatpush1.bf16.msra.mxu0 %v9873
      %10012 = vmatprep.subr.bf16.mxu0 0
      %10013 = vmatpush1.bf16.msra.mxu0 %v9874
      %10014 = vmatprep.subr.bf16.mxu0 0
      %10015 = vmatpush1.bf16.msra.mxu0 %v9875
      %10016 = vmatprep.subr.bf16.mxu0 0
      %10017 = vmatpush1.bf16.msra.mxu0 %v9876
      %10018 = vmatprep.subr.bf16.mxu0 0
      %10019 = vmatpush1.bf16.msra.mxu0 %v9877
      %10020 = vmatprep.subr.bf16.mxu0 0
      %10021 = vmatpush1.bf16.msra.mxu0 %v9878
      %10022 = vmatprep.subr.bf16.mxu0 0
      %10023 = vmatpush1.bf16.msra.mxu0 %v9879
      %10024 = vmatprep.subr.bf16.mxu0 0
      %10025 = vmatpush1.bf16.msra.mxu0 %v9880
      %10026 = vmatprep.subr.bf16.mxu0 0
      %10027 = vmatpush1.bf16.msra.mxu0 %v9881
      %10028 = vmatprep.subr.bf16.mxu0 0
      %10029 = vmatpush1.bf16.msra.mxu0 %v9882
      %10030 = vmatprep.subr.bf16.mxu0 0
      %10031 = vmatpush1.bf16.msra.mxu0 %v9883
      %10032 = vmatprep.subr.bf16.mxu0 0
      %10033 = vmatpush1.bf16.msra.mxu0 %v9884
      %10034 = vmatprep.mubr.bf16.mxu0 %v9676
      %10035 = vmatmul.mubr.bf16.gmra.mrb[0].mxu0 %v9675
      %v10036 = vpop.f32.mrb[0].mxu0
      %v10037 = vadd.f32 %v9972, %v10036
      %v10038 = vpop.f32.mrb[0].mxu0
      %v10039 = vpop.f32.mrb[0].mxu0
      %v10040 = vadd.f32 %v9975, %v10039
      %v10041 = vpop.f32.mrb[0].mxu0
      %10042 = vmatprep.mubr.bf16.mxu0 %v9681
      %10043 = vmatmul.mubr.bf16.gmra.mrb[0].mxu0 %v9680
      %v10044 = vpop.f32.mrb[0].mxu0
      %v10045 = vadd.f32 %v9980, %v10044
      %v10046 = vpop.f32.mrb[0].mxu0
      %v10047 = vpop.f32.mrb[0].mxu0
      %v10048 = vadd.f32 %v9983, %v10047
      %v10049 = vpop.f32.mrb[0].mxu0
      %10050 = vmatprep.mubr.bf16.mxu0 %v9686
      %10051 = vmatmul.mubr.bf16.gmra.mrb[0].mxu0 %v9685
      %v10052 = vpop.f32.mrb[0].mxu0
      %v10053 = vadd.f32 %v9988, %v10052
      %v10054 = vpop.f32.mrb[0].mxu0
      %v10055 = vpop.f32.mrb[0].mxu0
      %v10056 = vadd.f32 %v9991, %v10055
      %v10057 = vpop.f32.mrb[0].mxu0
      %10058 = vmatprep.mubr.bf16.mxu0 %v9691
      %10059 = vmatmul.mubr.bf16.gmra.mrb[0].mxu0 %v9690
      %v10060 = vpop.f32.mrb[0].mxu0
      %v10061 = vadd.f32 %v9996, %v10060
      %v10062 = vpop.f32.mrb[0].mxu0
      %v10063 = vpop.f32.mrb[0].mxu0
      %v10064 = vadd.f32 %v9999, %v10063
      %v10065 = vpop.f32.mrb[0].mxu0
      %10066 = vdwg.mxu0
      %10067 = vmatprep.subr.bf16.mxu0 0
      %10068 = vmatpush1.bf16.msra.mxu0 %v9885
      %10069 = vmatprep.subr.bf16.mxu0 0
      %10070 = vmatpush1.bf16.msra.mxu0 %v9886
      %10071 = vmatprep.subr.bf16.mxu0 0
      %10072 = vmatpush1.bf16.msra.mxu0 %v9887
      %10073 = vmatprep.subr.bf16.mxu0 0
      %10074 = vmatpush1.bf16.msra.mxu0 %v9888
      %10075 = vmatprep.subr.bf16.mxu0 0
      %10076 = vmatpush1.bf16.msra.mxu0 0
      %10077 = vmatprep.subr.bf16.mxu0 0
      %10078 = vmatpush1.bf16.msra.mxu0 0
      %10079 = vmatprep.subr.bf16.mxu0 0
      %10080 = vmatpush1.bf16.msra.mxu0 0
      %10081 = vmatprep.subr.bf16.mxu0 0
      %10082 = vmatpush1.bf16.msra.mxu0 0
      %10083 = vmatprep.subr.bf16.mxu0 0
      %10084 = vmatpush1.bf16.msra.mxu0 0
      %10085 = vmatprep.subr.bf16.mxu0 0
      %10086 = vmatpush1.bf16.msra.mxu0 0
      %10087 = vmatprep.subr.bf16.mxu0 0
      %10088 = vmatpush1.bf16.msra.mxu0 0
      %10089 = vmatprep.subr.bf16.mxu0 0
      %10090 = vmatpush1.bf16.msra.mxu0 0
      %10091 = vmatprep.subr.bf16.mxu0 0
      %10092 = vmatpush1.bf16.msra.mxu0 0
      %10093 = vmatprep.subr.bf16.mxu0 0
      %10094 = vmatpush1.bf16.msra.mxu0 0
      %10095 = vmatprep.subr.bf16.mxu0 0
      %10096 = vmatpush1.bf16.msra.mxu0 0
      %10097 = vmatprep.subr.bf16.mxu0 0
      %10098 = vmatpush1.bf16.msra.mxu0 0
      %10099 = vmatprep.mubr.bf16.mxu0 0
      %10100 = vmatmul.mubr.bf16.gmra.mrb[0].mxu0 %v9926
      %v10101 = vpop.f32.mrb[0].mxu0
      %v10102 = vadd.f32 %v10037, %v10101
      %v10103 = vpop.f32.mrb[0].mxu0
      %v10104 = vpop.f32.mrb[0].mxu0
      %v10105 = vadd.f32 %v10040, %v10104
      %v10106 = vpop.f32.mrb[0].mxu0
      %10107 = vmatprep.mubr.bf16.mxu0 0
      %10108 = vmatmul.mubr.bf16.gmra.mrb[0].mxu0 %v9929
      %v10109 = vpop.f32.mrb[0].mxu0
      %v10110 = vadd.f32 %v10045, %v10109
      %v10111 = vpop.f32.mrb[0].mxu0
      %v10112 = vpop.f32.mrb[0].mxu0
      %v10113 = vadd.f32 %v10048, %v10112
      %v10114 = vpop.f32.mrb[0].mxu0
      %10115 = vmatprep.mubr.bf16.mxu0 0
      %10116 = vmatmul.mubr.bf16.gmra.mrb[0].mxu0 %v9932
      %v10117 = vpop.f32.mrb[0].mxu0
      %v10118 = vadd.f32 %v10053, %v10117
      %v10119 = vpop.f32.mrb[0].mxu0
      %v10120 = vpop.f32.mrb[0].mxu0
      %v10121 = vadd.f32 %v10056, %v10120
      %v10122 = vpop.f32.mrb[0].mxu0
      %10123 = vmatprep.mubr.bf16.mxu0 0
      %10124 = vmatmul.mubr.bf16.gmra.mrb[0].mxu0 %v9935
      %v10125 = vpop.f32.mrb[0].mxu0
      %v10126 = vadd.f32 %v10061, %v10125
      %v10127 = vpop.f32.mrb[0].mxu0
      %v10128 = vpop.f32.mrb[0].mxu0
      %v10129 = vadd.f32 %v10064, %v10128
      %v10130 = vpop.f32.mrb[0].mxu0
      %10131 = vdwg.mxu0
      %v10132 = vld [vmem:[%s11] sm:$0x1]
      %v10134 = vlaneseq
      %v10135 = vshrl.u32 %v10134, 7
      %v10136 = vsub.s32 0, %v10135
      %v10137 = vrot.slane %v10132, %v10136
      %v10139 = vmul.f32 %v10102, %v10137
      %v10140 = vmul.f32 %v10105, %v10137
      %v10141 = vmul.f32 %v10110, %v10137
      %v10142 = vmul.f32 %v10113, %v10137
      %v10143 = vmul.f32 %v10118, %v10137
      %v10144 = vmul.f32 %v10121, %v10137
      %v10145 = vmul.f32 %v10126, %v10137
      %v10146 = vmul.f32 %v10129, %v10137
      %v10147 = vld [vmem:[%s12] sm:$0x1]
      %v10149 = vlaneseq
      %v10150 = vshrl.u32 %v10149, 7
      %v10151 = vsub.s32 0, %v10150
      %v10152 = vrot.slane %v10147, %v10151
      %v10154 = vadd.f32 %v10139, %v10152
      %v10155 = vadd.f32 %v10140, %v10152
      %v10156 = vadd.f32 %v10141, %v10152
      %v10157 = vadd.f32 %v10142, %v10152
      %v10158 = vadd.f32 %v10143, %v10152
      %v10159 = vadd.f32 %v10144, %v10152
      %v10160 = vadd.f32 %v10145, %v10152
      %v10161 = vadd.f32 %v10146, %v10152
      %v10162 = vmax.f32 %v10154, 0.0
      %v10163 = vmax.f32 %v10155, 0.0
      %v10164 = vmax.f32 %v10156, 0.0
      %v10165 = vmax.f32 %v10157, 0.0
      %v10166 = vmax.f32 %v10158, 0.0
      %v10167 = vmax.f32 %v10159, 0.0
      %v10168 = vmax.f32 %v10160, 0.0
      %v10169 = vmax.f32 %v10161, 0.0
      %v10178 = vcombine.high %v10162, %v10162
      %v10180 = vunpack.c.l.s4 1983009808
      %v10181 = vunpack.c.0.s8 %v10180
      %v10182 = vlaneseq
      %v10183 = vshrl.u32 %v10182, 7
      %v10184 = vsub.s32 %v10181, %v10183
      %v10185 = vrot.slane %v10162, %v10184
      %v10187 = vunpack.c.l.s4 1983009808
      %v10188 = vunpack.c.0.s8 %v10187
      %v10189 = vlaneseq
      %v10190 = vshrl.u32 %v10189, 7
      %v10191 = vsub.s32 %v10188, %v10190
      %v10192 = vrot.slane %v10178, %v10191
      %v10193 = vcombine.high %v10185, %v10185
      %v10194 = vcombine.high %v10192, %v10192
      %v10195 = vcombine.high %v10163, %v10163
      %v10197 = vunpack.c.l.s4 1983009808
      %v10198 = vunpack.c.0.s8 %v10197
      %v10199 = vlaneseq
      %v10200 = vshrl.u32 %v10199, 7
      %v10201 = vsub.s32 %v10198, %v10200
      %v10202 = vrot.slane %v10163, %v10201
      %v10204 = vunpack.c.l.s4 1983009808
      %v10205 = vunpack.c.0.s8 %v10204
      %v10206 = vlaneseq
      %v10207 = vshrl.u32 %v10206, 7
      %v10208 = vsub.s32 %v10205, %v10207
      %v10209 = vrot.slane %v10195, %v10208
      %v10210 = vcombine.high %v10202, %v10202
      %v10211 = vcombine.high %v10209, %v10209
      %v10212 = vcombine.high %v10164, %v10164
      %v10214 = vunpack.c.l.s4 1983009808
      %v10215 = vunpack.c.0.s8 %v10214
      %v10216 = vlaneseq
      %v10217 = vshrl.u32 %v10216, 7
      %v10218 = vsub.s32 %v10215, %v10217
      %v10219 = vrot.slane %v10164, %v10218
      %v10221 = vunpack.c.l.s4 1983009808
      %v10222 = vunpack.c.0.s8 %v10221
      %v10223 = vlaneseq
      %v10224 = vshrl.u32 %v10223, 7
      %v10225 = vsub.s32 %v10222, %v10224
      %v10226 = vrot.slane %v10212, %v10225
      %v10227 = vcombine.high %v10219, %v10219
      %v10228 = vcombine.high %v10226, %v10226
      %v10229 = vcombine.high %v10165, %v10165
      %v10231 = vunpack.c.l.s4 1983009808
      %v10232 = vunpack.c.0.s8 %v10231
      %v10233 = vlaneseq
      %v10234 = vshrl.u32 %v10233, 7
      %v10235 = vsub.s32 %v10232, %v10234
      %v10236 = vrot.slane %v10165, %v10235
      %v10238 = vunpack.c.l.s4 1983009808
      %v10239 = vunpack.c.0.s8 %v10238
      %v10240 = vlaneseq
      %v10241 = vshrl.u32 %v10240, 7
      %v10242 = vsub.s32 %v10239, %v10241
      %v10243 = vrot.slane %v10229, %v10242
      %v10244 = vcombine.high %v10236, %v10236
      %v10245 = vcombine.high %v10243, %v10243
      %v10246 = vcombine.high %v10166, %v10166
      %v10248 = vunpack.c.l.s4 1983009808
      %v10249 = vunpack.c.0.s8 %v10248
      %v10250 = vlaneseq
      %v10251 = vshrl.u32 %v10250, 7
      %v10252 = vsub.s32 %v10249, %v10251
      %v10253 = vrot.slane %v10166, %v10252
      %v10255 = vunpack.c.l.s4 1983009808
      %v10256 = vunpack.c.0.s8 %v10255
      %v10257 = vlaneseq
      %v10258 = vshrl.u32 %v10257, 7
      %v10259 = vsub.s32 %v10256, %v10258
      %v10260 = vrot.slane %v10246, %v10259
      %v10261 = vcombine.high %v10253, %v10253
      %v10262 = vcombine.high %v10260, %v10260
      %v10263 = vcombine.high %v10167, %v10167
      %v10265 = vunpack.c.l.s4 1983009808
      %v10266 = vunpack.c.0.s8 %v10265
      %v10267 = vlaneseq
      %v10268 = vshrl.u32 %v10267, 7
      %v10269 = vsub.s32 %v10266, %v10268
      %v10270 = vrot.slane %v10167, %v10269
      %v10272 = vunpack.c.l.s4 1983009808
      %v10273 = vunpack.c.0.s8 %v10272
      %v10274 = vlaneseq
      %v10275 = vshrl.u32 %v10274, 7
      %v10276 = vsub.s32 %v10273, %v10275
      %v10277 = vrot.slane %v10263, %v10276
      %v10278 = vcombine.high %v10270, %v10270
      %v10279 = vcombine.high %v10277, %v10277
      %v10280 = vcombine.high %v10168, %v10168
      %v10282 = vunpack.c.l.s4 1983009808
      %v10283 = vunpack.c.0.s8 %v10282
      %v10284 = vlaneseq
      %v10285 = vshrl.u32 %v10284, 7
      %v10286 = vsub.s32 %v10283, %v10285
      %v10287 = vrot.slane %v10168, %v10286
      %v10289 = vunpack.c.l.s4 1983009808
      %v10290 = vunpack.c.0.s8 %v10289
      %v10291 = vlaneseq
      %v10292 = vshrl.u32 %v10291, 7
      %v10293 = vsub.s32 %v10290, %v10292
      %v10294 = vrot.slane %v10280, %v10293
      %v10295 = vcombine.high %v10287, %v10287
      %v10296 = vcombine.high %v10294, %v10294
      %v10297 = vcombine.high %v10169, %v10169
      %v10299 = vunpack.c.l.s4 1983009808
      %v10300 = vunpack.c.0.s8 %v10299
      %v10301 = vlaneseq
      %v10302 = vshrl.u32 %v10301, 7
      %v10303 = vsub.s32 %v10300, %v10302
      %v10304 = vrot.slane %v10169, %v10303
      %v10306 = vunpack.c.l.s4 1983009808
      %v10307 = vunpack.c.0.s8 %v10306
      %v10308 = vlaneseq
      %v10309 = vshrl.u32 %v10308, 7
      %v10310 = vsub.s32 %v10307, %v10309
      %v10311 = vrot.slane %v10297, %v10310
      %v10312 = vcombine.high %v10304, %v10304
      %v10313 = vcombine.high %v10311, %v10311
      %v10346 = vrot.slane %v10185, 7
      %v10347 = vrot.slane %v10346, 2
      %v10348 = vrot.slane %v10193, 7
      %v10349 = vrot.slane %v10348, 2
      %v10350 = vrot.slane %v10192, 7
      %v10351 = vrot.slane %v10350, 2
      %v10352 = vrot.slane %v10194, 7
      %v10353 = vrot.slane %v10352, 2
      %v10354 = vrot.slane %v10202, 7
      %v10355 = vrot.slane %v10354, 2
      %v10356 = vrot.slane %v10210, 7
      %v10357 = vrot.slane %v10356, 2
      %v10358 = vrot.slane %v10209, 7
      %v10359 = vrot.slane %v10358, 2
      %v10360 = vrot.slane %v10211, 7
      %v10361 = vrot.slane %v10360, 2
      %v10362 = vrot.slane %v10219, 7
      %v10363 = vrot.slane %v10362, 2
      %v10364 = vrot.slane %v10227, 7
      %v10365 = vrot.slane %v10364, 2
      %v10366 = vrot.slane %v10226, 7
      %v10367 = vrot.slane %v10366, 2
      %v10368 = vrot.slane %v10228, 7
      %v10369 = vrot.slane %v10368, 2
      %v10370 = vrot.slane %v10236, 7
      %v10371 = vrot.slane %v10370, 2
      %v10372 = vrot.slane %v10244, 7
      %v10373 = vrot.slane %v10372, 2
      %v10374 = vrot.slane %v10243, 7
      %v10375 = vrot.slane %v10374, 2
      %v10376 = vrot.slane %v10245, 7
      %v10377 = vrot.slane %v10376, 2
      %v10378 = vrot.slane %v10253, 7
      %v10379 = vrot.slane %v10378, 2
      %v10380 = vrot.slane %v10261, 7
      %v10381 = vrot.slane %v10380, 2
      %v10382 = vrot.slane %v10260, 7
      %v10383 = vrot.slane %v10382, 2
      %v10384 = vrot.slane %v10262, 7
      %v10385 = vrot.slane %v10384, 2
      %v10386 = vrot.slane %v10270, 7
      %v10387 = vrot.slane %v10386, 2
      %v10388 = vrot.slane %v10278, 7
      %v10389 = vrot.slane %v10388, 2
      %v10390 = vrot.slane %v10277, 7
      %v10391 = vrot.slane %v10390, 2
      %v10392 = vrot.slane %v10279, 7
      %v10393 = vrot.slane %v10392, 2
      %v10394 = vrot.slane %v10287, 7
      %v10395 = vrot.slane %v10394, 2
      %v10396 = vrot.slane %v10295, 7
      %v10397 = vrot.slane %v10396, 2
      %v10398 = vrot.slane %v10294, 7
      %v10399 = vrot.slane %v10398, 2
      %v10400 = vrot.slane %v10296, 7
      %v10401 = vrot.slane %v10400, 2
      %v10402 = vrot.slane %v10304, 7
      %v10403 = vrot.slane %v10402, 2
      %v10404 = vrot.slane %v10312, 7
      %v10405 = vrot.slane %v10404, 2
      %v10406 = vrot.slane %v10311, 7
      %v10407 = vrot.slane %v10406, 2
      %v10408 = vrot.slane %v10313, 7
      %v10409 = vrot.slane %v10408, 2
      %v10442 = vmax.f32 %v10185, %v10347
      %v10443 = vmax.f32 %v10193, %v10349
      %v10444 = vmax.f32 %v10192, %v10351
      %v10445 = vmax.f32 %v10194, %v10353
      %v10446 = vmax.f32 %v10202, %v10355
      %v10447 = vmax.f32 %v10210, %v10357
      %v10448 = vmax.f32 %v10209, %v10359
      %v10449 = vmax.f32 %v10211, %v10361
      %v10450 = vmax.f32 %v10219, %v10363
      %v10451 = vmax.f32 %v10227, %v10365
      %v10452 = vmax.f32 %v10226, %v10367
      %v10453 = vmax.f32 %v10228, %v10369
      %v10454 = vmax.f32 %v10236, %v10371
      %v10455 = vmax.f32 %v10244, %v10373
      %v10456 = vmax.f32 %v10243, %v10375
      %v10457 = vmax.f32 %v10245, %v10377
      %v10458 = vmax.f32 %v10253, %v10379
      %v10459 = vmax.f32 %v10261, %v10381
      %v10460 = vmax.f32 %v10260, %v10383
      %v10461 = vmax.f32 %v10262, %v10385
      %v10462 = vmax.f32 %v10270, %v10387
      %v10463 = vmax.f32 %v10278, %v10389
      %v10464 = vmax.f32 %v10277, %v10391
      %v10465 = vmax.f32 %v10279, %v10393
      %v10466 = vmax.f32 %v10287, %v10395
      %v10467 = vmax.f32 %v10295, %v10397
      %v10468 = vmax.f32 %v10294, %v10399
      %v10469 = vmax.f32 %v10296, %v10401
      %v10470 = vmax.f32 %v10304, %v10403
      %v10471 = vmax.f32 %v10312, %v10405
      %v10472 = vmax.f32 %v10311, %v10407
      %v10473 = vmax.f32 %v10313, %v10409
      %v10474 = vmax.f32 %v10442, %v10446
      %v10475 = vmax.f32 %v10443, %v10447
      %v10476 = vmax.f32 %v10444, %v10448
      %v10477 = vmax.f32 %v10445, %v10449
      %v10478 = vmax.f32 %v10450, %v10454
      %v10479 = vmax.f32 %v10451, %v10455
      %v10480 = vmax.f32 %v10452, %v10456
      %v10481 = vmax.f32 %v10453, %v10457
      %v10482 = vmax.f32 %v10458, %v10462
      %v10483 = vmax.f32 %v10459, %v10463
      %v10484 = vmax.f32 %v10460, %v10464
      %v10485 = vmax.f32 %v10461, %v10465
      %v10486 = vmax.f32 %v10466, %v10470
      %v10487 = vmax.f32 %v10467, %v10471
      %v10488 = vmax.f32 %v10468, %v10472
      %v10489 = vmax.f32 %v10469, %v10473
      %v10490 = vpack.c.bf16 %v10474, %v10474
      %v10491 = vpack.c.bf16 %v10475, %v10475
      %v10492 = vpack.c.bf16 %v10476, %v10476
      %v10493 = vpack.c.bf16 %v10477, %v10477
      %v10494 = vpack.c.bf16 %v10478, %v10478
      %v10495 = vpack.c.bf16 %v10479, %v10479
      %v10496 = vpack.c.bf16 %v10480, %v10480
      %v10497 = vpack.c.bf16 %v10481, %v10481
      %v10498 = vpack.c.bf16 %v10482, %v10482
      %v10499 = vpack.c.bf16 %v10483, %v10483
      %v10500 = vpack.c.bf16 %v10484, %v10484
      %v10501 = vpack.c.bf16 %v10485, %v10485
      %v10502 = vpack.c.bf16 %v10486, %v10486
      %v10503 = vpack.c.bf16 %v10487, %v10487
      %v10504 = vpack.c.bf16 %v10488, %v10488
      %v10505 = vpack.c.bf16 %v10489, %v10489
      %v10523 = vunpack.c.l.s4 1983009808
      %v10524 = vunpack.c.0.s8 %v10523
      %v10525 = vlaneseq
      %v10526 = vshrl.u32 %v10525, 7
      %v10527 = vsub.s32 %v10524, %v10526
      %v10528 = vrot.slane %v10490, %v10527
      %v10530 = vunpack.c.l.s4 1983009808
      %v10531 = vunpack.c.0.s8 %v10530
      %v10532 = vlaneseq
      %v10533 = vshrl.u32 %v10532, 7
      %v10534 = vsub.s32 %v10531, %v10533
      %v10535 = vrot.slane %v10491, %v10534
      %v10537 = vunpack.c.l.s4 1983009808
      %v10538 = vunpack.c.0.s8 %v10537
      %v10539 = vlaneseq
      %v10540 = vshrl.u32 %v10539, 7
      %v10541 = vsub.s32 %v10538, %v10540
      %v10542 = vrot.slane %v10492, %v10541
      %v10544 = vunpack.c.l.s4 1983009808
      %v10545 = vunpack.c.0.s8 %v10544
      %v10546 = vlaneseq
      %v10547 = vshrl.u32 %v10546, 7
      %v10548 = vsub.s32 %v10545, %v10547
      %v10549 = vrot.slane %v10493, %v10548
      %v10551 = vunpack.c.l.s4 1983009808
      %v10552 = vunpack.c.0.s8 %v10551
      %v10553 = vlaneseq
      %v10554 = vshrl.u32 %v10553, 7
      %v10555 = vsub.s32 %v10552, %v10554
      %v10556 = vrot.slane %v10494, %v10555
      %v10558 = vunpack.c.l.s4 1983009808
      %v10559 = vunpack.c.0.s8 %v10558
      %v10560 = vlaneseq
      %v10561 = vshrl.u32 %v10560, 7
      %v10562 = vsub.s32 %v10559, %v10561
      %v10563 = vrot.slane %v10495, %v10562
      %v10565 = vunpack.c.l.s4 1983009808
      %v10566 = vunpack.c.0.s8 %v10565
      %v10567 = vlaneseq
      %v10568 = vshrl.u32 %v10567, 7
      %v10569 = vsub.s32 %v10566, %v10568
      %v10570 = vrot.slane %v10496, %v10569
      %v10572 = vunpack.c.l.s4 1983009808
      %v10573 = vunpack.c.0.s8 %v10572
      %v10574 = vlaneseq
      %v10575 = vshrl.u32 %v10574, 7
      %v10576 = vsub.s32 %v10573, %v10575
      %v10577 = vrot.slane %v10497, %v10576
      %v10579 = vunpack.c.l.s4 1983009808
      %v10580 = vunpack.c.0.s8 %v10579
      %v10581 = vlaneseq
      %v10582 = vshrl.u32 %v10581, 7
      %v10583 = vsub.s32 %v10580, %v10582
      %v10584 = vrot.slane %v10498, %v10583
      %v10586 = vunpack.c.l.s4 1983009808
      %v10587 = vunpack.c.0.s8 %v10586
      %v10588 = vlaneseq
      %v10589 = vshrl.u32 %v10588, 7
      %v10590 = vsub.s32 %v10587, %v10589
      %v10591 = vrot.slane %v10499, %v10590
      %v10593 = vunpack.c.l.s4 1983009808
      %v10594 = vunpack.c.0.s8 %v10593
      %v10595 = vlaneseq
      %v10596 = vshrl.u32 %v10595, 7
      %v10597 = vsub.s32 %v10594, %v10596
      %v10598 = vrot.slane %v10500, %v10597
      %v10600 = vunpack.c.l.s4 1983009808
      %v10601 = vunpack.c.0.s8 %v10600
      %v10602 = vlaneseq
      %v10603 = vshrl.u32 %v10602, 7
      %v10604 = vsub.s32 %v10601, %v10603
      %v10605 = vrot.slane %v10501, %v10604
      %v10607 = vunpack.c.l.s4 1983009808
      %v10608 = vunpack.c.0.s8 %v10607
      %v10609 = vlaneseq
      %v10610 = vshrl.u32 %v10609, 7
      %v10611 = vsub.s32 %v10608, %v10610
      %v10612 = vrot.slane %v10502, %v10611
      %v10614 = vunpack.c.l.s4 1983009808
      %v10615 = vunpack.c.0.s8 %v10614
      %v10616 = vlaneseq
      %v10617 = vshrl.u32 %v10616, 7
      %v10618 = vsub.s32 %v10615, %v10617
      %v10619 = vrot.slane %v10503, %v10618
      %v10621 = vunpack.c.l.s4 1983009808
      %v10622 = vunpack.c.0.s8 %v10621
      %v10623 = vlaneseq
      %v10624 = vshrl.u32 %v10623, 7
      %v10625 = vsub.s32 %v10622, %v10624
      %v10626 = vrot.slane %v10504, %v10625
      %v10628 = vunpack.c.l.s4 1983009808
      %v10629 = vunpack.c.0.s8 %v10628
      %v10630 = vlaneseq
      %v10631 = vshrl.u32 %v10630, 7
      %v10632 = vsub.s32 %v10629, %v10631
      %v10633 = vrot.slane %v10505, %v10632
      %v10635 = vunpack.c.l.s4 1983009808
      %v10636 = vunpack.c.0.s8 %v10635
      %v10637 = vlaneseq
      %v10638 = vshrl.u32 %v10637, 7
      %v10639 = vsub.s32 %v10636, %v10638
      %v10640 = vrot.slane %v10528, %v10639
      %v10642 = vunpack.c.l.s4 1983009808
      %v10643 = vunpack.c.0.s8 %v10642
      %v10644 = vlaneseq
      %v10645 = vshrl.u32 %v10644, 7
      %v10646 = vsub.s32 %v10643, %v10645
      %v10647 = vrot.slane %v10535, %v10646
      %v10649 = vunpack.c.l.s4 1983009808
      %v10650 = vunpack.c.0.s8 %v10649
      %v10651 = vlaneseq
      %v10652 = vshrl.u32 %v10651, 7
      %v10653 = vsub.s32 %v10650, %v10652
      %v10654 = vrot.slane %v10542, %v10653
      %v10656 = vunpack.c.l.s4 1983009808
      %v10657 = vunpack.c.0.s8 %v10656
      %v10658 = vlaneseq
      %v10659 = vshrl.u32 %v10658, 7
      %v10660 = vsub.s32 %v10657, %v10659
      %v10661 = vrot.slane %v10549, %v10660
      %v10663 = vunpack.c.l.s4 1983009808
      %v10664 = vunpack.c.0.s8 %v10663
      %v10665 = vlaneseq
      %v10666 = vshrl.u32 %v10665, 7
      %v10667 = vsub.s32 %v10664, %v10666
      %v10668 = vrot.slane %v10556, %v10667
      %v10670 = vunpack.c.l.s4 1983009808
      %v10671 = vunpack.c.0.s8 %v10670
      %v10672 = vlaneseq
      %v10673 = vshrl.u32 %v10672, 7
      %v10674 = vsub.s32 %v10671, %v10673
      %v10675 = vrot.slane %v10563, %v10674
      %v10677 = vunpack.c.l.s4 1983009808
      %v10678 = vunpack.c.0.s8 %v10677
      %v10679 = vlaneseq
      %v10680 = vshrl.u32 %v10679, 7
      %v10681 = vsub.s32 %v10678, %v10680
      %v10682 = vrot.slane %v10570, %v10681
      %v10684 = vunpack.c.l.s4 1983009808
      %v10685 = vunpack.c.0.s8 %v10684
      %v10686 = vlaneseq
      %v10687 = vshrl.u32 %v10686, 7
      %v10688 = vsub.s32 %v10685, %v10687
      %v10689 = vrot.slane %v10577, %v10688
      %v10691 = vunpack.c.l.s4 1983009808
      %v10692 = vunpack.c.0.s8 %v10691
      %v10693 = vlaneseq
      %v10694 = vshrl.u32 %v10693, 7
      %v10695 = vsub.s32 %v10692, %v10694
      %v10696 = vrot.slane %v10584, %v10695
      %v10698 = vunpack.c.l.s4 1983009808
      %v10699 = vunpack.c.0.s8 %v10698
      %v10700 = vlaneseq
      %v10701 = vshrl.u32 %v10700, 7
      %v10702 = vsub.s32 %v10699, %v10701
      %v10703 = vrot.slane %v10591, %v10702
      %v10705 = vunpack.c.l.s4 1983009808
      %v10706 = vunpack.c.0.s8 %v10705
      %v10707 = vlaneseq
      %v10708 = vshrl.u32 %v10707, 7
      %v10709 = vsub.s32 %v10706, %v10708
      %v10710 = vrot.slane %v10598, %v10709
      %v10712 = vunpack.c.l.s4 1983009808
      %v10713 = vunpack.c.0.s8 %v10712
      %v10714 = vlaneseq
      %v10715 = vshrl.u32 %v10714, 7
      %v10716 = vsub.s32 %v10713, %v10715
      %v10717 = vrot.slane %v10605, %v10716
      %v10719 = vunpack.c.l.s4 1983009808
      %v10720 = vunpack.c.0.s8 %v10719
      %v10721 = vlaneseq
      %v10722 = vshrl.u32 %v10721, 7
      %v10723 = vsub.s32 %v10720, %v10722
      %v10724 = vrot.slane %v10612, %v10723
      %v10726 = vunpack.c.l.s4 1983009808
      %v10727 = vunpack.c.0.s8 %v10726
      %v10728 = vlaneseq
      %v10729 = vshrl.u32 %v10728, 7
      %v10730 = vsub.s32 %v10727, %v10729
      %v10731 = vrot.slane %v10619, %v10730
      %v10733 = vunpack.c.l.s4 1983009808
      %v10734 = vunpack.c.0.s8 %v10733
      %v10735 = vlaneseq
      %v10736 = vshrl.u32 %v10735, 7
      %v10737 = vsub.s32 %v10734, %v10736
      %v10738 = vrot.slane %v10626, %v10737
      %v10740 = vunpack.c.l.s4 1983009808
      %v10741 = vunpack.c.0.s8 %v10740
      %v10742 = vlaneseq
      %v10743 = vshrl.u32 %v10742, 7
      %v10744 = vsub.s32 %v10741, %v10743
      %v10745 = vrot.slane %v10633, %v10744
      %v10746 = vunpack.c.l.b16 %v10640
      %v10747 = vunpack.c.l.b16 %v10647
      %v10748 = vunpack.c.l.b16 %v10654
      %v10749 = vunpack.c.l.b16 %v10661
      %v10750 = vunpack.c.l.b16 %v10668
      %v10751 = vunpack.c.l.b16 %v10675
      %v10752 = vunpack.c.l.b16 %v10682
      %v10753 = vunpack.c.l.b16 %v10689
      %v10754 = vunpack.c.l.b16 %v10696
      %v10755 = vunpack.c.l.b16 %v10703
      %v10756 = vunpack.c.l.b16 %v10710
      %v10757 = vunpack.c.l.b16 %v10717
      %v10758 = vunpack.c.l.b16 %v10724
      %v10759 = vunpack.c.l.b16 %v10731
      %v10760 = vunpack.c.l.b16 %v10738
      %v10761 = vunpack.c.l.b16 %v10745
      %v10762 = vrot.slane %v10747, 7
      %vm10763 = vcmask 1041409
      %v10764 = vsel %vm10763, %v10762, %v10746
      %v10765 = vrot.slane %v10748, 6
      %v10766 = vsel %vm7463, %v10765, %v10764
      %v10767 = vrot.slane %v10749, 5
      %v10768 = vsel %vm7466, %v10767, %v10766
      %v10769 = vrot.slane %v10751, 7
      %v10770 = vsel %vm10763, %v10769, %v10750
      %v10771 = vrot.slane %v10752, 6
      %v10772 = vsel %vm7463, %v10771, %v10770
      %v10773 = vrot.slane %v10753, 5
      %v10774 = vsel %vm7466, %v10773, %v10772
      %v10775 = vrot.slane %v10755, 7
      %v10776 = vsel %vm10763, %v10775, %v10754
      %v10777 = vrot.slane %v10756, 6
      %v10778 = vsel %vm7463, %v10777, %v10776
      %v10779 = vrot.slane %v10757, 5
      %v10780 = vsel %vm7466, %v10779, %v10778
      %v10781 = vrot.slane %v10759, 7
      %v10782 = vsel %vm10763, %v10781, %v10758
      %v10783 = vrot.slane %v10760, 6
      %v10784 = vsel %vm7463, %v10783, %v10782
      %v10785 = vrot.slane %v10761, 5
      %v10786 = vsel %vm7466, %v10785, %v10784
      %v10787 = vpack.c.b16 %v10768, %v10768
      %v10788 = vpack.c.b16 %v10774, %v10774
      %v10789 = vpack.c.b16 %v10780, %v10780
      %v10790 = vpack.c.b16 %v10786, %v10786
      %v10792 = vunpack.c.l.s4 1983009808
      %v10793 = vunpack.c.0.s8 %v10792
      %v10794 = vlaneseq
      %v10795 = vshrl.u32 %v10794, 7
      %v10796 = vsub.s32 %v10793, %v10795
      %v10797 = vrot.slane %v10787, %v10796
      %v10799 = vunpack.c.l.s4 1983009808
      %v10800 = vunpack.c.0.s8 %v10799
      %v10801 = vlaneseq
      %v10802 = vshrl.u32 %v10801, 7
      %v10803 = vsub.s32 %v10800, %v10802
      %v10804 = vrot.slane %v10788, %v10803
      %v10806 = vunpack.c.l.s4 1983009808
      %v10807 = vunpack.c.0.s8 %v10806
      %v10808 = vlaneseq
      %v10809 = vshrl.u32 %v10808, 7
      %v10810 = vsub.s32 %v10807, %v10809
      %v10811 = vrot.slane %v10789, %v10810
      %v10813 = vunpack.c.l.s4 1983009808
      %v10814 = vunpack.c.0.s8 %v10813
      %v10815 = vlaneseq
      %v10816 = vshrl.u32 %v10815, 7
      %v10817 = vsub.s32 %v10814, %v10816
      %v10818 = vrot.slane %v10790, %v10817
      %vm10823 = vcmask 517120
      %10824 = vst.msk [vmem:[%s440] sm:$0x3] %vm10823, %v10797
      %10825 = vst.msk [vmem:[%s440 + $0x2] sm:$0x3] %vm10823, %v10804
      %10826 = vst.msk [vmem:[%s440 + $0x4] sm:$0x3] %vm10823, %v10811
      %10827 = vst.msk [vmem:[%s440 + $0x6] sm:$0x3] %vm10823, %v10818
      %p10828 = scmp.lt.s32.totalorder %s24, 1
      %s10829 = scalar_select %p10828, %s24, 1
      %s10830 = smul.addr %s10829, 4
      %s10831 = smul.addr %s10830, 2
      %s10832 = scalar_lea.vmem %s13, %s10831
      // Predicated region
      $region73: #{medium_cnn_forward.2} parent=71 // pred_check
        %p10833 = pneg %p320
      $region74: #{medium_cnn_forward.2} parent=71 // pred_check_branch
        %10835 = sbr.rel (%p10833) target = $region76
      $region75: #{medium_cnn_forward.2} parent=71 // pred_region
        _
      $region76: #{medium_cnn_forward.2} parent=71 // pred_fallthru
        _
    $region72: #{medium_cnn_forward.2} parent=5 // pred_fallthru
      _
    %p10836 = scmp.le.s32.totalorder 2, %s19
    // Predicated region
    $region77: #{medium_cnn_forward.2} parent=5 // pred_check
      %p10837 = pneg %p10836
    $region78: #{medium_cnn_forward.2} parent=5 // pred_check_branch
      %10839 = sbr.rel (%p10837) target = $region80
    $region79: #{medium_cnn_forward.2} parent=5 // pred_region
      %s10840 = ssub.s32 %s19, 2
      // Predicated region
      $region81: #{medium_cnn_forward.2} parent=79 // pred_check
        %p10841 = pneg %p326
      $region82: #{medium_cnn_forward.2} parent=79 // pred_check_branch
        %10843 = sbr.rel (%p10841) target = $region84
      $region83: #{medium_cnn_forward.2} parent=79 // pred_region
        %p10844 = scmp.lt.s32.totalorder %s25, 1
        %s10845 = scalar_select %p10844, %s25, 1
        %s10846 = smul.addr %s10845, 4
        %s10847 = smul.addr %s10846, 2
        %s10848 = scalar_lea.vmem %s13, %s10847
      $region84: #{medium_cnn_forward.2} parent=79 // pred_fallthru
        _
    $region80: #{medium_cnn_forward.2} parent=5 // pred_fallthru
      _
  $region6: #{medium_cnn_forward.2} parent=0 // loop_footer
    %s23 = sadd.s32 1, %s19
  $region7: #{medium_cnn_forward.2} parent=0 // loop_footer_branch
    %18 = sbr.rel target = $region3
  $region8: #{medium_cnn_forward.2} parent=0 // loop_exit
    _

</llo_original>
